<compile_context>
chip_gen: v6e
topology: v6e:2x2x1
jax: 0.10.0
libtpu: 0.0.40
codegen_flags: <defaults>
</compile_context>

<pallas_src>
import jax
import jax.numpy as jnp
from jax.experimental import pallas as pl
from jax.experimental.pallas import tpu as pltpu


# ------------------------------ fused kernel -------------------------------

def _make_fused_kernel(num_layers):
    """Builds a kernel running `num_layers` BiLSTM layers + projection."""

    def kernel(*refs):
        emb_ref = refs[0]
        layer_refs = refs[1:1 + 3 * num_layers]        # (wih, whh, b) per layer
        wp_ref = refs[1 + 3 * num_layers]
        bp_ref = refs[2 + 3 * num_layers]
        out_ref = refs[3 + 3 * num_layers]
        scratch = refs[4 + 3 * num_layers:]            # (g, yf, yb) per layer

        T, B, E = emb_ref.shape
        Vp = out_ref.shape[-1]

        def run_layer(xf, xb, wih_ref, whh_ref, b_ref, h0, c0,
                      g_sc, yf_sc, yb_sc):
            """One bidirectional layer, both directions interleaved.

            xf, xb : (T*B, P) bf16   the two feature-halves of the layer input
            wih_ref: (2, P, 8H) bf16 input->gates, halves x {fwd 4H | bwd 4H}
            whh_ref: (2H, 8H) bf16   block-diagonal hidden->gates (fwd | bwd)
            b_ref  : (1, 8H) f32     b_ih + b_hh for both directions
            h0, c0 : (B, 2H) f32 (or None -> zeros)  [fwd half | bwd half]
            g_sc   : (T, B, 8H) f32  hoisted gate pre-activations
            yf_sc  : (T, B, H) bf16  forward outputs (true time order)
            yb_sc  : (T, B, H) bf16  backward outputs (true time order)
            """
            H = whh_ref.shape[0] // 2
            G = 4 * H

            # Hoisted input projection: both directions in one wide matmul pair.
            g_sc[...] = (
                jnp.dot(xf, wih_ref[0], preferred_element_type=jnp.float32)
                + jnp.dot(xb, wih_ref[1], preferred_element_type=jnp.float32)
                + b_ref[...]
            ).reshape(T, B, 2 * G)

            # Loop-invariant recurrent weight (bf16, block-diagonal fwd/bwd).
            # TODO(synk): hold whh resident in the MXU weight registers across
            # the T steps via pltpu.matmul_push_rhs/matmul_acc_lhs/matmul_pop.
            whh = whh_ref[...]

            if h0 is None:
                h_f = jnp.zeros((B, H), jnp.float32)
                h_b = jnp.zeros((B, H), jnp.float32)
                c_f = jnp.zeros((B, H), jnp.float32)
                c_b = jnp.zeros((B, H), jnp.float32)
            else:
                h_f, h_b = h0[:, :H], h0[:, H:]
                c_f, c_b = c0[:, :H], c0[:, H:]

            def cell(g, c_prev):
                # gate column order is [i | f | o | g] (pre-permuted at init):
                # sigmoid only over the 3H i/f/o lanes, tanh only over g lanes.
                sig = jax.nn.sigmoid(g[:, :3 * H])
                gg = jnp.tanh(g[:, 3 * H:])
                c_new = sig[:, H:2 * H] * c_prev + sig[:, :H] * gg
                h_new = sig[:, 2 * H:] * jnp.tanh(c_new)
                return h_new, c_new

            # Static unroll: all indices are constants; forward consumes step
            # s, backward consumes step T-1-s (in-kernel time reversal).
            for s in range(T):
                hcat = jnp.concatenate([h_f, h_b], axis=1).astype(jnp.bfloat16)
                hh = jnp.dot(hcat, whh,
                             preferred_element_type=jnp.float32)   # (B, 8H)
                g_f = g_sc[s][:, :G] + hh[:, :G]
                g_b = g_sc[T - 1 - s][:, G:] + hh[:, G:]
                h_f, c_f = cell(g_f, c_f)
                h_b, c_b = cell(g_b, c_b)
                yf_sc[s] = h_f.astype(yf_sc.dtype)
                yb_sc[T - 1 - s] = h_b.astype(yb_sc.dtype)

            hn = jnp.concatenate([h_f, h_b], axis=1)
            cn = jnp.concatenate([c_f, c_b], axis=1)
            return hn, cn

        # ---- layer 0: the two embedding feature-halves feed the first layer
        x = emb_ref[...].reshape(T * B, E)
        P0 = E // 2
        xf, xb = x[:, :P0], x[:, P0:]
        hn = cn = None
        for l in range(num_layers):
            wih_ref, whh_ref, b_ref = layer_refs[3 * l: 3 * l + 3]
            g_sc, yf_sc, yb_sc = scratch[3 * l: 3 * l + 3]
            # mirror the reference quirk: layer l's final (hn, cn) seed l+1.
            hn, cn = run_layer(xf, xb, wih_ref, whh_ref, b_ref, hn, cn,
                               g_sc, yf_sc, yb_sc)
            H = yf_sc.shape[-1]
            xf = yf_sc[...].reshape(T * B, H)
            xb = yb_sc[...].reshape(T * B, H)

        # ---- projection on direction halves (lane-dense padded Vp output)
        out = (jnp.dot(xf, wp_ref[0], preferred_element_type=jnp.float32)
               + jnp.dot(xb, wp_ref[1], preferred_element_type=jnp.float32)
               + bp_ref[...])
        out_ref[...] = out.reshape(T, B, Vp)

    return kernel


def _full_spec(shape):
    nd = len(shape)
    return pl.BlockSpec(shape, lambda i, _nd=nd: (0,) * _nd)


def fused_forward(emb_tbe, lstm_params, wp, bp):
    """emb_tbe: (T, B, E) bf16 -> (T, B, Vp) f32 padded logits."""
    T, B, E = emb_tbe.shape
    Vp = wp.shape[-1]
    args = [emb_tbe]
    scratch = []
    for lp in lstm_params:
        H = lp["whh"].shape[0] // 2
        args += [lp["wih"], lp["whh"], lp["b"]]
        scratch += [pltpu.VMEM((T, B, 8 * H), jnp.float32),   # hoisted gates
                    pltpu.VMEM((T, B, H), jnp.bfloat16),      # forward y
                    pltpu.VMEM((T, B, H), jnp.bfloat16)]      # backward y
    args += [wp, bp]
    # TODO(synk): for large T, time-chunk the hoisted-gates scratch (double-
    # buffered) so it fits v7x's 64 MiB VMEM; at T=8 a single block is optimal.
    # TODO(synk): on v7x the two directions could be split across the two
    # TensorCores via pl.core_map(pltpu.create_tensorcore_mesh) + core_barrier,
    # at the cost of breaking the single-program all-layer fusion used here.
    return pl.pallas_call(
        _make_fused_kernel(len(lstm_params)),
        out_shape=jax.ShapeDtypeStruct((T, B, Vp), jnp.float32),
        grid=(1,),
        in_specs=[_full_spec(a.shape) for a in args],
        out_specs=pl.BlockSpec((T, B, Vp), lambda i: (0, 0, 0)),
        scratch_shapes=scratch,
        compiler_params=pltpu.CompilerParams(
            dimension_semantics=("arbitrary",)),
    )(*args)


# ------------------------------ parameters ---------------------------------

def _gate_perm_T(w, H):
    """(4H, X) rows in torch order [i, f, g, o] -> (X, 4H) cols in [i, f, o, g]."""
    wi, wf, wg, wo = w[:H], w[H:2 * H], w[2 * H:3 * H], w[3 * H:]
    return jnp.concatenate([wi, wf, wo, wg], axis=0).T


def _gate_perm_b(b, H):
    bi, bf, bg, bo = b[:H], b[H:2 * H], b[2 * H:3 * H], b[3 * H:]
    return jnp.concatenate([bi, bf, bo, bg], axis=0)


def init_params(key, inp_vocab_size, targ_vocab_size, embedding_dim,
                layers_units):
    # The reference's (hn, cn) chaining only shape-checks when all layer
    # widths match (same constraint as the PyTorch module).
    assert all(u == layers_units[0] for u in layers_units), layers_units
    units = [embedding_dim // 2] + list(layers_units)
    keys = iter(jax.random.split(key, 64))

    params = {
        # bf16 table: the gathered embedding is only ever an MXU operand.
        "embedding": (0.1 * jax.random.normal(
            next(keys), (inp_vocab_size, embedding_dim), jnp.float32)
                      ).astype(jnp.bfloat16),
    }

    def dir_params(in_dim, H):
        s = 1.0 / float(H) ** 0.5
        wih = jax.random.uniform(next(keys), (4 * H, in_dim), jnp.float32, -s, s)
        whh = jax.random.uniform(next(keys), (4 * H, H), jnp.float32, -s, s)
        bih = jax.random.uniform(next(keys), (4 * H,), jnp.float32, -s, s)
        bhh = jax.random.uniform(next(keys), (4 * H,), jnp.float32, -s, s)
        return wih, whh, bih + bhh

    lstms = []
    for i in range(1, len(units)):
        P = units[i - 1]                 # half of this layer's input feature dim
        H = units[i]
        wih_f, whh_f, b_f = dir_params(2 * P, H)
        wih_b, whh_b, b_b = dir_params(2 * P, H)
        # input->gates: (2P, 8H) = [fwd 4H | bwd 4H], split into input halves.
        wih = jnp.concatenate([_gate_perm_T(wih_f, H), _gate_perm_T(wih_b, H)],
                              axis=1)                               # (2P, 8H)
        wih = wih.reshape(2, P, 8 * H).astype(jnp.bfloat16)
        # hidden->gates: block-diagonal so ONE matmul serves both directions.
        whh = jnp.zeros((2 * H, 8 * H), jnp.float32)
        whh = whh.at[:H, :4 * H].set(_gate_perm_T(whh_f, H))
        whh = whh.at[H:, 4 * H:].set(_gate_perm_T(whh_b, H))
        whh = whh.astype(jnp.bfloat16)
        b = jnp.concatenate([_gate_perm_b(b_f, H),
                             _gate_perm_b(b_b, H)])[None, :]        # (1, 8H) f32
        lstms.append({"wih": wih, "whh": whh, "b": b})
    params["lstms"] = lstms

    V = targ_vocab_size
    H_last = units[-1]
    D = 2 * H_last
    s = 1.0 / float(D) ** 0.5
    wp = jax.random.uniform(next(keys), (V, D), jnp.float32, -s, s)
    bp = jax.random.uniform(next(keys), (V,), jnp.float32, -s, s)
    Vp = ((V + 127) // 128) * 128                      # pad to 128 lanes
    wp_pad = jnp.zeros((D, Vp), jnp.float32).at[:, :V].set(wp.T)
    bp_pad = jnp.zeros((1, Vp), jnp.float32).at[:, :V].set(bp[None, :])
    params["proj"] = {"w": wp_pad.reshape(2, H_last, Vp).astype(jnp.bfloat16),
                      "b": bp_pad}
    return params


# ------------------------------- model glue --------------------------------

def baseline_forward(params, src, lengths, targ_vocab, target=None):
    del lengths, target                 # unused by the reference forward too
    emb = jnp.take(params["embedding"], src, axis=0)   # (B, T, E) bf16
    x = jnp.transpose(emb, (1, 0, 2))                  # (T, B, E)
    pred = fused_forward(x, params["lstms"],
                         params["proj"]["w"], params["proj"]["b"])  # (T, B, Vp)
    pred = pred[:, :, :targ_vocab]                     # drop lane padding
    return {"diacritics": jnp.transpose(pred, (1, 0, 2))}


# ---------------------------------- main ------------------------------------

if __name__ == "__main__":
    INP_VOCAB = 16
    TARG_VOCAB = 12
    EMBED_DIM = 64            # -> layers_units = [32, 32, 32, 32]
    LAYERS_UNITS = [32, 32, 32]
    B, T = 2, 8

    key = jax.random.PRNGKey(0)
    kp, ks = jax.random.split(key, 2)
    params = init_params(kp, INP_VOCAB, TARG_VOCAB, EMBED_DIM, LAYERS_UNITS)

    src = jax.random.randint(ks, (B, T), 0, INP_VOCAB, dtype=jnp.int32)
    lengths = jnp.full((B,), T, dtype=jnp.int32)

    forward = jax.jit(baseline_forward, static_argnames=("targ_vocab",))
    out = forward(params, src, lengths, targ_vocab=TARG_VOCAB)
    preds = jax.block_until_ready(out["diacritics"])

    assert preds.shape == (B, T, TARG_VOCAB), preds.shape
    assert preds.dtype == jnp.float32
    assert bool(jnp.all(jnp.isfinite(preds)))
    print("KERNEL_OK")
</pallas_src>

<mosaic_0001>
module attributes {stable_mosaic.version = 11 : i64} {
  func.func @kernel(%arg0: i32, %arg1: memref<8x2x64xbf16, #tpu.memory_space<vmem>>, %arg2: memref<2x32x256xbf16, #tpu.memory_space<vmem>>, %arg3: memref<64x256xbf16, #tpu.memory_space<vmem>>, %arg4: memref<1x256xf32, #tpu.memory_space<vmem>>, %arg5: memref<2x32x256xbf16, #tpu.memory_space<vmem>>, %arg6: memref<64x256xbf16, #tpu.memory_space<vmem>>, %arg7: memref<1x256xf32, #tpu.memory_space<vmem>>, %arg8: memref<2x32x256xbf16, #tpu.memory_space<vmem>>, %arg9: memref<64x256xbf16, #tpu.memory_space<vmem>>, %arg10: memref<1x256xf32, #tpu.memory_space<vmem>>, %arg11: memref<2x32x128xbf16, #tpu.memory_space<vmem>>, %arg12: memref<1x128xf32, #tpu.memory_space<vmem>>, %arg13: memref<8x2x128xf32, #tpu.memory_space<vmem>>, %arg14: memref<8x2x256xf32, #tpu.memory_space<vmem>>, %arg15: memref<8x2x32xbf16, #tpu.memory_space<vmem>>, %arg16: memref<8x2x32xbf16, #tpu.memory_space<vmem>>, %arg17: memref<8x2x256xf32, #tpu.memory_space<vmem>>, %arg18: memref<8x2x32xbf16, #tpu.memory_space<vmem>>, %arg19: memref<8x2x32xbf16, #tpu.memory_space<vmem>>, %arg20: memref<8x2x256xf32, #tpu.memory_space<vmem>>, %arg21: memref<8x2x32xbf16, #tpu.memory_space<vmem>>, %arg22: memref<8x2x32xbf16, #tpu.memory_space<vmem>>) attributes {dimension_semantics = [#tpu.dimension_semantics<arbitrary>], iteration_bounds = array<i64: 1>, scalar_prefetch = 0 : i64, scratch_operands = 9 : i64, tpu.core_type = #tpu.core_type<tc>, window_params = [{pipeline_mode = #tpu.pipeline_mode<synchronous>, transform_indices = @transform_0, window_bounds = array<i64: 8, 2, 64>}, {pipeline_mode = #tpu.pipeline_mode<synchronous>, transform_indices = @transform_1, window_bounds = array<i64: 2, 32, 256>}, {pipeline_mode = #tpu.pipeline_mode<synchronous>, transform_indices = @transform_2, window_bounds = array<i64: 64, 256>}, {pipeline_mode = #tpu.pipeline_mode<synchronous>, transform_indices = @transform_3, window_bounds = array<i64: 1, 256>}, {pipeline_mode = #tpu.pipeline_mode<synchronous>, transform_indices = @transform_4, window_bounds = array<i64: 2, 32, 256>}, {pipeline_mode = #tpu.pipeline_mode<synchronous>, transform_indices = @transform_5, window_bounds = array<i64: 64, 256>}, {pipeline_mode = #tpu.pipeline_mode<synchronous>, transform_indices = @transform_6, window_bounds = array<i64: 1, 256>}, {pipeline_mode = #tpu.pipeline_mode<synchronous>, transform_indices = @transform_7, window_bounds = array<i64: 2, 32, 256>}, {pipeline_mode = #tpu.pipeline_mode<synchronous>, transform_indices = @transform_8, window_bounds = array<i64: 64, 256>}, {pipeline_mode = #tpu.pipeline_mode<synchronous>, transform_indices = @transform_9, window_bounds = array<i64: 1, 256>}, {pipeline_mode = #tpu.pipeline_mode<synchronous>, transform_indices = @transform_10, window_bounds = array<i64: 2, 32, 128>}, {pipeline_mode = #tpu.pipeline_mode<synchronous>, transform_indices = @transform_11, window_bounds = array<i64: 1, 128>}, {pipeline_mode = #tpu.pipeline_mode<synchronous>, transform_indices = @transform_12, window_bounds = array<i64: 8, 2, 128>}]} {
    %c0 = arith.constant 0 : index
    %c0_0 = arith.constant 0 : index
    %c0_1 = arith.constant 0 : index
    %0 = vector.load %arg1[%c0, %c0_0, %c0_1] : memref<8x2x64xbf16, #tpu.memory_space<vmem>>, vector<8x2x64xbf16>
    %1 = vector.shape_cast %0 : vector<8x2x64xbf16> to vector<16x64xbf16>
    %2 = vector.extract_strided_slice %1 {offsets = [0, 0], sizes = [16, 32], strides = [1, 1]} : vector<16x64xbf16> to vector<16x32xbf16>
    %3 = vector.extract_strided_slice %1 {offsets = [0, 32], sizes = [16, 32], strides = [1, 1]} : vector<16x64xbf16> to vector<16x32xbf16>
    %c0_2 = arith.constant 0 : index
    %c0_3 = arith.constant 0 : index
    %c0_4 = arith.constant 0 : index
    %4 = vector.load %arg2[%c0_2, %c0_3, %c0_4] : memref<2x32x256xbf16, #tpu.memory_space<vmem>>, vector<1x32x256xbf16>
    %5 = vector.shape_cast %4 : vector<1x32x256xbf16> to vector<32x256xbf16>
    %cst = arith.constant dense<0.000000e+00> : vector<16x256xf32>
    %6 = tpu.matmul %2, %5, %cst {dimension_numbers = #tpu.dot_dimension_numbers<[1], [0], [0], [1], [0, 0, 1, 1], [], []>} : vector<16x32xbf16>, vector<32x256xbf16>, vector<16x256xf32> -> vector<16x256xf32>
    %c1 = arith.constant 1 : index
    %c0_5 = arith.constant 0 : index
    %c0_6 = arith.constant 0 : index
    %7 = vector.load %arg2[%c1, %c0_5, %c0_6] : memref<2x32x256xbf16, #tpu.memory_space<vmem>>, vector<1x32x256xbf16>
    %8 = vector.shape_cast %7 : vector<1x32x256xbf16> to vector<32x256xbf16>
    %cst_7 = arith.constant dense<0.000000e+00> : vector<16x256xf32>
    %9 = tpu.matmul %3, %8, %cst_7 {dimension_numbers = #tpu.dot_dimension_numbers<[1], [0], [0], [1], [0, 0, 1, 1], [], []>} : vector<16x32xbf16>, vector<32x256xbf16>, vector<16x256xf32> -> vector<16x256xf32>
    %10 = arith.addf %6, %9 : vector<16x256xf32>
    %c0_8 = arith.constant 0 : index
    %c0_9 = arith.constant 0 : index
    %11 = vector.load %arg4[%c0_8, %c0_9] : memref<1x256xf32, #tpu.memory_space<vmem>>, vector<1x256xf32>
    %12 = vector.broadcast %11 : vector<1x256xf32> to vector<16x256xf32>
    %13 = arith.addf %10, %12 : vector<16x256xf32>
    %14 = vector.shape_cast %13 : vector<16x256xf32> to vector<8x2x256xf32>
    %c0_10 = arith.constant 0 : index
    %c0_11 = arith.constant 0 : index
    %c0_12 = arith.constant 0 : index
    %15 = vector.load %arg14[%c0_10, %c0_11, %c0_12] : memref<8x2x256xf32, #tpu.memory_space<vmem>>, vector<8x2x256xf32>
    tpu.vector_store %arg14[%c0_10, %c0_11, %c0_12], %14 {strides = array<i32>} : memref<8x2x256xf32, #tpu.memory_space<vmem>>, vector<8x2x256xf32>,
    %c0_13 = arith.constant 0 : index
    %c0_14 = arith.constant 0 : index
    %16 = vector.load %arg3[%c0_13, %c0_14] : memref<64x256xbf16, #tpu.memory_space<vmem>>, vector<64x256xbf16>
    %cst_15 = arith.constant 0.000000e+00 : f32
    %17 = vector.broadcast %cst_15 : f32 to vector<2x32xf32>
    %cst_16 = arith.constant 0.000000e+00 : f32
    %18 = vector.broadcast %cst_16 : f32 to vector<2x32xf32>
    %cst_17 = arith.constant 0.000000e+00 : f32
    %19 = vector.broadcast %cst_17 : f32 to vector<2x32xf32>
    %cst_18 = arith.constant 0.000000e+00 : f32
    %20 = vector.broadcast %cst_18 : f32 to vector<2x32xf32>
    %21 = tpu.concatenate %17, %18 in 1 : vector<2x32xf32>, vector<2x32xf32> -> vector<2x64xf32>
    %22 = arith.truncf %21 : vector<2x64xf32> to vector<2x64xbf16>
    %cst_19 = arith.constant dense<0.000000e+00> : vector<2x256xf32>
    %23 = tpu.matmul %22, %16, %cst_19 {dimension_numbers = #tpu.dot_dimension_numbers<[1], [0], [0], [1], [0, 0, 1, 1], [], []>} : vector<2x64xbf16>, vector<64x256xbf16>, vector<2x256xf32> -> vector<2x256xf32>
    %c0_20 = arith.constant 0 : index
    %c0_21 = arith.constant 0 : index
    %c0_22 = arith.constant 0 : index
    %24 = vector.load %arg14[%c0_20, %c0_21, %c0_22] : memref<8x2x256xf32, #tpu.memory_space<vmem>>, vector<1x2x256xf32>
    %25 = vector.shape_cast %24 : vector<1x2x256xf32> to vector<2x256xf32>
    %26 = vector.extract_strided_slice %25 {offsets = [0, 0], sizes = [2, 128], strides = [1, 1]} : vector<2x256xf32> to vector<2x128xf32>
    %27 = vector.extract_strided_slice %23 {offsets = [0, 0], sizes = [2, 128], strides = [1, 1]} : vector<2x256xf32> to vector<2x128xf32>
    %28 = arith.addf %26, %27 : vector<2x128xf32>
    %c7 = arith.constant 7 : index
    %c0_23 = arith.constant 0 : index
    %c0_24 = arith.constant 0 : index
    %29 = vector.load %arg14[%c7, %c0_23, %c0_24] : memref<8x2x256xf32, #tpu.memory_space<vmem>>, vector<1x2x256xf32>
    %30 = vector.shape_cast %29 : vector<1x2x256xf32> to vector<2x256xf32>
    %31 = vector.extract_strided_slice %30 {offsets = [0, 128], sizes = [2, 128], strides = [1, 1]} : vector<2x256xf32> to vector<2x128xf32>
    %32 = vector.extract_strided_slice %23 {offsets = [0, 128], sizes = [2, 128], strides = [1, 1]} : vector<2x256xf32> to vector<2x128xf32>
    %33 = arith.addf %31, %32 : vector<2x128xf32>
    %34 = vector.extract_strided_slice %28 {offsets = [0, 0], sizes = [2, 96], strides = [1, 1]} : vector<2x128xf32> to vector<2x96xf32>
    %35 = arith.negf %34 : vector<2x96xf32>
    %36 = math.exp %35 : vector<2x96xf32>
    %cst_25 = arith.constant 1.000000e+00 : f32
    %37 = vector.broadcast %cst_25 : f32 to vector<2x96xf32>
    %38 = arith.addf %37, %36 : vector<2x96xf32>
    %39 = arith.divf %37, %38 : vector<2x96xf32>
    %40 = vector.extract_strided_slice %28 {offsets = [0, 96], sizes = [2, 32], strides = [1, 1]} : vector<2x128xf32> to vector<2x32xf32>
    %41 = math.tanh %40 : vector<2x32xf32>
    %42 = vector.extract_strided_slice %39 {offsets = [0, 32], sizes = [2, 32], strides = [1, 1]} : vector<2x96xf32> to vector<2x32xf32>
    %43 = arith.mulf %42, %19 : vector<2x32xf32>
    %44 = vector.extract_strided_slice %39 {offsets = [0, 0], sizes = [2, 32], strides = [1, 1]} : vector<2x96xf32> to vector<2x32xf32>
    %45 = arith.mulf %44, %41 : vector<2x32xf32>
    %46 = arith.addf %43, %45 : vector<2x32xf32>
    %47 = vector.extract_strided_slice %39 {offsets = [0, 64], sizes = [2, 32], strides = [1, 1]} : vector<2x96xf32> to vector<2x32xf32>
    %48 = math.tanh %46 : vector<2x32xf32>
    %49 = arith.mulf %47, %48 : vector<2x32xf32>
    %50 = vector.extract_strided_slice %33 {offsets = [0, 0], sizes = [2, 96], strides = [1, 1]} : vector<2x128xf32> to vector<2x96xf32>
    %51 = arith.negf %50 : vector<2x96xf32>
    %52 = math.exp %51 : vector<2x96xf32>
    %cst_26 = arith.constant 1.000000e+00 : f32
    %53 = vector.broadcast %cst_26 : f32 to vector<2x96xf32>
    %54 = arith.addf %53, %52 : vector<2x96xf32>
    %55 = arith.divf %53, %54 : vector<2x96xf32>
    %56 = vector.extract_strided_slice %33 {offsets = [0, 96], sizes = [2, 32], strides = [1, 1]} : vector<2x128xf32> to vector<2x32xf32>
    %57 = math.tanh %56 : vector<2x32xf32>
    %58 = vector.extract_strided_slice %55 {offsets = [0, 32], sizes = [2, 32], strides = [1, 1]} : vector<2x96xf32> to vector<2x32xf32>
    %59 = arith.mulf %58, %20 : vector<2x32xf32>
    %60 = vector.extract_strided_slice %55 {offsets = [0, 0], sizes = [2, 32], strides = [1, 1]} : vector<2x96xf32> to vector<2x32xf32>
    %61 = arith.mulf %60, %57 : vector<2x32xf32>
    %62 = arith.addf %59, %61 : vector<2x32xf32>
    %63 = vector.extract_strided_slice %55 {offsets = [0, 64], sizes = [2, 32], strides = [1, 1]} : vector<2x96xf32> to vector<2x32xf32>
    %64 = math.tanh %62 : vector<2x32xf32>
    %65 = arith.mulf %63, %64 : vector<2x32xf32>
    %66 = arith.truncf %49 : vector<2x32xf32> to vector<2x32xbf16>
    %c0_27 = arith.constant 0 : index
    %c0_28 = arith.constant 0 : index
    %c0_29 = arith.constant 0 : index
    %67 = vector.load %arg15[%c0_27, %c0_28, %c0_29] : memref<8x2x32xbf16, #tpu.memory_space<vmem>>, vector<1x2x32xbf16>
    %68 = vector.shape_cast %67 : vector<1x2x32xbf16> to vector<2x32xbf16>
    %69 = vector.shape_cast %66 : vector<2x32xbf16> to vector<1x2x32xbf16>
    tpu.vector_store %arg15[%c0_27, %c0_28, %c0_29], %69 {strides = array<i32>} : memref<8x2x32xbf16, #tpu.memory_space<vmem>>, vector<1x2x32xbf16>,
    %70 = arith.truncf %65 : vector<2x32xf32> to vector<2x32xbf16>
    %c7_30 = arith.constant 7 : index
    %c0_31 = arith.constant 0 : index
    %c0_32 = arith.constant 0 : index
    %71 = vector.load %arg16[%c7_30, %c0_31, %c0_32] : memref<8x2x32xbf16, #tpu.memory_space<vmem>>, vector<1x2x32xbf16>
    %72 = vector.shape_cast %71 : vector<1x2x32xbf16> to vector<2x32xbf16>
    %73 = vector.shape_cast %70 : vector<2x32xbf16> to vector<1x2x32xbf16>
    tpu.vector_store %arg16[%c7_30, %c0_31, %c0_32], %73 {strides = array<i32>} : memref<8x2x32xbf16, #tpu.memory_space<vmem>>, vector<1x2x32xbf16>,
    %74 = tpu.concatenate %49, %65 in 1 : vector<2x32xf32>, vector<2x32xf32> -> vector<2x64xf32>
    %75 = arith.truncf %74 : vector<2x64xf32> to vector<2x64xbf16>
    %cst_33 = arith.constant dense<0.000000e+00> : vector<2x256xf32>
    %76 = tpu.matmul %75, %16, %cst_33 {dimension_numbers = #tpu.dot_dimension_numbers<[1], [0], [0], [1], [0, 0, 1, 1], [], []>} : vector<2x64xbf16>, vector<64x256xbf16>, vector<2x256xf32> -> vector<2x256xf32>
    %c1_34 = arith.constant 1 : index
    %c0_35 = arith.constant 0 : index
    %c0_36 = arith.constant 0 : index
    %77 = vector.load %arg14[%c1_34, %c0_35, %c0_36] : memref<8x2x256xf32, #tpu.memory_space<vmem>>, vector<1x2x256xf32>
    %78 = vector.shape_cast %77 : vector<1x2x256xf32> to vector<2x256xf32>
    %79 = vector.extract_strided_slice %78 {offsets = [0, 0], sizes = [2, 128], strides = [1, 1]} : vector<2x256xf32> to vector<2x128xf32>
    %80 = vector.extract_strided_slice %76 {offsets = [0, 0], sizes = [2, 128], strides = [1, 1]} : vector<2x256xf32> to vector<2x128xf32>
    %81 = arith.addf %79, %80 : vector<2x128xf32>
    %c6 = arith.constant 6 : index
    %c0_37 = arith.constant 0 : index
    %c0_38 = arith.constant 0 : index
    %82 = vector.load %arg14[%c6, %c0_37, %c0_38] : memref<8x2x256xf32, #tpu.memory_space<vmem>>, vector<1x2x256xf32>
    %83 = vector.shape_cast %82 : vector<1x2x256xf32> to vector<2x256xf32>
    %84 = vector.extract_strided_slice %83 {offsets = [0, 128], sizes = [2, 128], strides = [1, 1]} : vector<2x256xf32> to vector<2x128xf32>
    %85 = vector.extract_strided_slice %76 {offsets = [0, 128], sizes = [2, 128], strides = [1, 1]} : vector<2x256xf32> to vector<2x128xf32>
    %86 = arith.addf %84, %85 : vector<2x128xf32>
    %87 = vector.extract_strided_slice %81 {offsets = [0, 0], sizes = [2, 96], strides = [1, 1]} : vector<2x128xf32> to vector<2x96xf32>
    %88 = arith.negf %87 : vector<2x96xf32>
    %89 = math.exp %88 : vector<2x96xf32>
    %cst_39 = arith.constant 1.000000e+00 : f32
    %90 = vector.broadcast %cst_39 : f32 to vector<2x96xf32>
    %91 = arith.addf %90, %89 : vector<2x96xf32>
    %92 = arith.divf %90, %91 : vector<2x96xf32>
    %93 = vector.extract_strided_slice %81 {offsets = [0, 96], sizes = [2, 32], strides = [1, 1]} : vector<2x128xf32> to vector<2x32xf32>
    %94 = math.tanh %93 : vector<2x32xf32>
    %95 = vector.extract_strided_slice %92 {offsets = [0, 32], sizes = [2, 32], strides = [1, 1]} : vector<2x96xf32> to vector<2x32xf32>
    %96 = arith.mulf %95, %46 : vector<2x32xf32>
    %97 = vector.extract_strided_slice %92 {offsets = [0, 0], sizes = [2, 32], strides = [1, 1]} : vector<2x96xf32> to vector<2x32xf32>
    %98 = arith.mulf %97, %94 : vector<2x32xf32>
    %99 = arith.addf %96, %98 : vector<2x32xf32>
    %100 = vector.extract_strided_slice %92 {offsets = [0, 64], sizes = [2, 32], strides = [1, 1]} : vector<2x96xf32> to vector<2x32xf32>
    %101 = math.tanh %99 : vector<2x32xf32>
    %102 = arith.mulf %100, %101 : vector<2x32xf32>
    %103 = vector.extract_strided_slice %86 {offsets = [0, 0], sizes = [2, 96], strides = [1, 1]} : vector<2x128xf32> to vector<2x96xf32>
    %104 = arith.negf %103 : vector<2x96xf32>
    %105 = math.exp %104 : vector<2x96xf32>
    %cst_40 = arith.constant 1.000000e+00 : f32
    %106 = vector.broadcast %cst_40 : f32 to vector<2x96xf32>
    %107 = arith.addf %106, %105 : vector<2x96xf32>
    %108 = arith.divf %106, %107 : vector<2x96xf32>
    %109 = vector.extract_strided_slice %86 {offsets = [0, 96], sizes = [2, 32], strides = [1, 1]} : vector<2x128xf32> to vector<2x32xf32>
    %110 = math.tanh %109 : vector<2x32xf32>
    %111 = vector.extract_strided_slice %108 {offsets = [0, 32], sizes = [2, 32], strides = [1, 1]} : vector<2x96xf32> to vector<2x32xf32>
    %112 = arith.mulf %111, %62 : vector<2x32xf32>
    %113 = vector.extract_strided_slice %108 {offsets = [0, 0], sizes = [2, 32], strides = [1, 1]} : vector<2x96xf32> to vector<2x32xf32>
    %114 = arith.mulf %113, %110 : vector<2x32xf32>
    %115 = arith.addf %112, %114 : vector<2x32xf32>
    %116 = vector.extract_strided_slice %108 {offsets = [0, 64], sizes = [2, 32], strides = [1, 1]} : vector<2x96xf32> to vector<2x32xf32>
    %117 = math.tanh %115 : vector<2x32xf32>
    %118 = arith.mulf %116, %117 : vector<2x32xf32>
    %119 = arith.truncf %102 : vector<2x32xf32> to vector<2x32xbf16>
    %c1_41 = arith.constant 1 : index
    %c0_42 = arith.constant 0 : index
    %c0_43 = arith.constant 0 : index
    %120 = vector.load %arg15[%c1_41, %c0_42, %c0_43] : memref<8x2x32xbf16, #tpu.memory_space<vmem>>, vector<1x2x32xbf16>
    %121 = vector.shape_cast %120 : vector<1x2x32xbf16> to vector<2x32xbf16>
    %122 = vector.shape_cast %119 : vector<2x32xbf16> to vector<1x2x32xbf16>
    tpu.vector_store %arg15[%c1_41, %c0_42, %c0_43], %122 {strides = array<i32>} : memref<8x2x32xbf16, #tpu.memory_space<vmem>>, vector<1x2x32xbf16>,
    %123 = arith.truncf %118 : vector<2x32xf32> to vector<2x32xbf16>
    %c6_44 = arith.constant 6 : index
    %c0_45 = arith.constant 0 : index
    %c0_46 = arith.constant 0 : index
    %124 = vector.load %arg16[%c6_44, %c0_45, %c0_46] : memref<8x2x32xbf16, #tpu.memory_space<vmem>>, vector<1x2x32xbf16>
    %125 = vector.shape_cast %124 : vector<1x2x32xbf16> to vector<2x32xbf16>
    %126 = vector.shape_cast %123 : vector<2x32xbf16> to vector<1x2x32xbf16>
    tpu.vector_store %arg16[%c6_44, %c0_45, %c0_46], %126 {strides = array<i32>} : memref<8x2x32xbf16, #tpu.memory_space<vmem>>, vector<1x2x32xbf16>,
    %127 = tpu.concatenate %102, %118 in 1 : vector<2x32xf32>, vector<2x32xf32> -> vector<2x64xf32>
    %128 = arith.truncf %127 : vector<2x64xf32> to vector<2x64xbf16>
    %cst_47 = arith.constant dense<0.000000e+00> : vector<2x256xf32>
    %129 = tpu.matmul %128, %16, %cst_47 {dimension_numbers = #tpu.dot_dimension_numbers<[1], [0], [0], [1], [0, 0, 1, 1], [], []>} : vector<2x64xbf16>, vector<64x256xbf16>, vector<2x256xf32> -> vector<2x256xf32>
    %c2 = arith.constant 2 : index
    %c0_48 = arith.constant 0 : index
    %c0_49 = arith.constant 0 : index
    %130 = vector.load %arg14[%c2, %c0_48, %c0_49] : memref<8x2x256xf32, #tpu.memory_space<vmem>>, vector<1x2x256xf32>
    %131 = vector.shape_cast %130 : vector<1x2x256xf32> to vector<2x256xf32>
    %132 = vector.extract_strided_slice %131 {offsets = [0, 0], sizes = [2, 128], strides = [1, 1]} : vector<2x256xf32> to vector<2x128xf32>
    %133 = vector.extract_strided_slice %129 {offsets = [0, 0], sizes = [2, 128], strides = [1, 1]} : vector<2x256xf32> to vector<2x128xf32>
    %134 = arith.addf %132, %133 : vector<2x128xf32>
    %c5 = arith.constant 5 : index
    %c0_50 = arith.constant 0 : index
    %c0_51 = arith.constant 0 : index
    %135 = vector.load %arg14[%c5, %c0_50, %c0_51] : memref<8x2x256xf32, #tpu.memory_space<vmem>>, vector<1x2x256xf32>
    %136 = vector.shape_cast %135 : vector<1x2x256xf32> to vector<2x256xf32>
    %137 = vector.extract_strided_slice %136 {offsets = [0, 128], sizes = [2, 128], strides = [1, 1]} : vector<2x256xf32> to vector<2x128xf32>
    %138 = vector.extract_strided_slice %129 {offsets = [0, 128], sizes = [2, 128], strides = [1, 1]} : vector<2x256xf32> to vector<2x128xf32>
    %139 = arith.addf %137, %138 : vector<2x128xf32>
    %140 = vector.extract_strided_slice %134 {offsets = [0, 0], sizes = [2, 96], strides = [1, 1]} : vector<2x128xf32> to vector<2x96xf32>
    %141 = arith.negf %140 : vector<2x96xf32>
    %142 = math.exp %141 : vector<2x96xf32>
    %cst_52 = arith.constant 1.000000e+00 : f32
    %143 = vector.broadcast %cst_52 : f32 to vector<2x96xf32>
    %144 = arith.addf %143, %142 : vector<2x96xf32>
    %145 = arith.divf %143, %144 : vector<2x96xf32>
    %146 = vector.extract_strided_slice %134 {offsets = [0, 96], sizes = [2, 32], strides = [1, 1]} : vector<2x128xf32> to vector<2x32xf32>
    %147 = math.tanh %146 : vector<2x32xf32>
    %148 = vector.extract_strided_slice %145 {offsets = [0, 32], sizes = [2, 32], strides = [1, 1]} : vector<2x96xf32> to vector<2x32xf32>
    %149 = arith.mulf %148, %99 : vector<2x32xf32>
    %150 = vector.extract_strided_slice %145 {offsets = [0, 0], sizes = [2, 32], strides = [1, 1]} : vector<2x96xf32> to vector<2x32xf32>
    %151 = arith.mulf %150, %147 : vector<2x32xf32>
    %152 = arith.addf %149, %151 : vector<2x32xf32>
    %153 = vector.extract_strided_slice %145 {offsets = [0, 64], sizes = [2, 32], strides = [1, 1]} : vector<2x96xf32> to vector<2x32xf32>
    %154 = math.tanh %152 : vector<2x32xf32>
    %155 = arith.mulf %153, %154 : vector<2x32xf32>
    %156 = vector.extract_strided_slice %139 {offsets = [0, 0], sizes = [2, 96], strides = [1, 1]} : vector<2x128xf32> to vector<2x96xf32>
    %157 = arith.negf %156 : vector<2x96xf32>
    %158 = math.exp %157 : vector<2x96xf32>
    %cst_53 = arith.constant 1.000000e+00 : f32
    %159 = vector.broadcast %cst_53 : f32 to vector<2x96xf32>
    %160 = arith.addf %159, %158 : vector<2x96xf32>
    %161 = arith.divf %159, %160 : vector<2x96xf32>
    %162 = vector.extract_strided_slice %139 {offsets = [0, 96], sizes = [2, 32], strides = [1, 1]} : vector<2x128xf32> to vector<2x32xf32>
    %163 = math.tanh %162 : vector<2x32xf32>
    %164 = vector.extract_strided_slice %161 {offsets = [0, 32], sizes = [2, 32], strides = [1, 1]} : vector<2x96xf32> to vector<2x32xf32>
    %165 = arith.mulf %164, %115 : vector<2x32xf32>
    %166 = vector.extract_strided_slice %161 {offsets = [0, 0], sizes = [2, 32], strides = [1, 1]} : vector<2x96xf32> to vector<2x32xf32>
    %167 = arith.mulf %166, %163 : vector<2x32xf32>
    %168 = arith.addf %165, %167 : vector<2x32xf32>
    %169 = vector.extract_strided_slice %161 {offsets = [0, 64], sizes = [2, 32], strides = [1, 1]} : vector<2x96xf32> to vector<2x32xf32>
    %170 = math.tanh %168 : vector<2x32xf32>
    %171 = arith.mulf %169, %170 : vector<2x32xf32>
    %172 = arith.truncf %155 : vector<2x32xf32> to vector<2x32xbf16>
    %c2_54 = arith.constant 2 : index
    %c0_55 = arith.constant 0 : index
    %c0_56 = arith.constant 0 : index
    %173 = vector.load %arg15[%c2_54, %c0_55, %c0_56] : memref<8x2x32xbf16, #tpu.memory_space<vmem>>, vector<1x2x32xbf16>
    %174 = vector.shape_cast %173 : vector<1x2x32xbf16> to vector<2x32xbf16>
    %175 = vector.shape_cast %172 : vector<2x32xbf16> to vector<1x2x32xbf16>
    tpu.vector_store %arg15[%c2_54, %c0_55, %c0_56], %175 {strides = array<i32>} : memref<8x2x32xbf16, #tpu.memory_space<vmem>>, vector<1x2x32xbf16>,
    %176 = arith.truncf %171 : vector<2x32xf32> to vector<2x32xbf16>
    %c5_57 = arith.constant 5 : index
    %c0_58 = arith.constant 0 : index
    %c0_59 = arith.constant 0 : index
    %177 = vector.load %arg16[%c5_57, %c0_58, %c0_59] : memref<8x2x32xbf16, #tpu.memory_space<vmem>>, vector<1x2x32xbf16>
    %178 = vector.shape_cast %177 : vector<1x2x32xbf16> to vector<2x32xbf16>
    %179 = vector.shape_cast %176 : vector<2x32xbf16> to vector<1x2x32xbf16>
    tpu.vector_store %arg16[%c5_57, %c0_58, %c0_59], %179 {strides = array<i32>} : memref<8x2x32xbf16, #tpu.memory_space<vmem>>, vector<1x2x32xbf16>,
    %180 = tpu.concatenate %155, %171 in 1 : vector<2x32xf32>, vector<2x32xf32> -> vector<2x64xf32>
    %181 = arith.truncf %180 : vector<2x64xf32> to vector<2x64xbf16>
    %cst_60 = arith.constant dense<0.000000e+00> : vector<2x256xf32>
    %182 = tpu.matmul %181, %16, %cst_60 {dimension_numbers = #tpu.dot_dimension_numbers<[1], [0], [0], [1], [0, 0, 1, 1], [], []>} : vector<2x64xbf16>, vector<64x256xbf16>, vector<2x256xf32> -> vector<2x256xf32>
    %c3 = arith.constant 3 : index
    %c0_61 = arith.constant 0 : index
    %c0_62 = arith.constant 0 : index
    %183 = vector.load %arg14[%c3, %c0_61, %c0_62] : memref<8x2x256xf32, #tpu.memory_space<vmem>>, vector<1x2x256xf32>
    %184 = vector.shape_cast %183 : vector<1x2x256xf32> to vector<2x256xf32>
    %185 = vector.extract_strided_slice %184 {offsets = [0, 0], sizes = [2, 128], strides = [1, 1]} : vector<2x256xf32> to vector<2x128xf32>
    %186 = vector.extract_strided_slice %182 {offsets = [0, 0], sizes = [2, 128], strides = [1, 1]} : vector<2x256xf32> to vector<2x128xf32>
    %187 = arith.addf %185, %186 : vector<2x128xf32>
    %c4 = arith.constant 4 : index
    %c0_63 = arith.constant 0 : index
    %c0_64 = arith.constant 0 : index
    %188 = vector.load %arg14[%c4, %c0_63, %c0_64] : memref<8x2x256xf32, #tpu.memory_space<vmem>>, vector<1x2x256xf32>
    %189 = vector.shape_cast %188 : vector<1x2x256xf32> to vector<2x256xf32>
    %190 = vector.extract_strided_slice %189 {offsets = [0, 128], sizes = [2, 128], strides = [1, 1]} : vector<2x256xf32> to vector<2x128xf32>
    %191 = vector.extract_strided_slice %182 {offsets = [0, 128], sizes = [2, 128], strides = [1, 1]} : vector<2x256xf32> to vector<2x128xf32>
    %192 = arith.addf %190, %191 : vector<2x128xf32>
    %193 = vector.extract_strided_slice %187 {offsets = [0, 0], sizes = [2, 96], strides = [1, 1]} : vector<2x128xf32> to vector<2x96xf32>
    %194 = arith.negf %193 : vector<2x96xf32>
    %195 = math.exp %194 : vector<2x96xf32>
    %cst_65 = arith.constant 1.000000e+00 : f32
    %196 = vector.broadcast %cst_65 : f32 to vector<2x96xf32>
    %197 = arith.addf %196, %195 : vector<2x96xf32>
    %198 = arith.divf %196, %197 : vector<2x96xf32>
    %199 = vector.extract_strided_slice %187 {offsets = [0, 96], sizes = [2, 32], strides = [1, 1]} : vector<2x128xf32> to vector<2x32xf32>
    %200 = math.tanh %199 : vector<2x32xf32>
    %201 = vector.extract_strided_slice %198 {offsets = [0, 32], sizes = [2, 32], strides = [1, 1]} : vector<2x96xf32> to vector<2x32xf32>
    %202 = arith.mulf %201, %152 : vector<2x32xf32>
    %203 = vector.extract_strided_slice %198 {offsets = [0, 0], sizes = [2, 32], strides = [1, 1]} : vector<2x96xf32> to vector<2x32xf32>
    %204 = arith.mulf %203, %200 : vector<2x32xf32>
    %205 = arith.addf %202, %204 : vector<2x32xf32>
    %206 = vector.extract_strided_slice %198 {offsets = [0, 64], sizes = [2, 32], strides = [1, 1]} : vector<2x96xf32> to vector<2x32xf32>
    %207 = math.tanh %205 : vector<2x32xf32>
    %208 = arith.mulf %206, %207 : vector<2x32xf32>
    %209 = vector.extract_strided_slice %192 {offsets = [0, 0], sizes = [2, 96], strides = [1, 1]} : vector<2x128xf32> to vector<2x96xf32>
    %210 = arith.negf %209 : vector<2x96xf32>
    %211 = math.exp %210 : vector<2x96xf32>
    %cst_66 = arith.constant 1.000000e+00 : f32
    %212 = vector.broadcast %cst_66 : f32 to vector<2x96xf32>
    %213 = arith.addf %212, %211 : vector<2x96xf32>
    %214 = arith.divf %212, %213 : vector<2x96xf32>
    %215 = vector.extract_strided_slice %192 {offsets = [0, 96], sizes = [2, 32], strides = [1, 1]} : vector<2x128xf32> to vector<2x32xf32>
    %216 = math.tanh %215 : vector<2x32xf32>
    %217 = vector.extract_strided_slice %214 {offsets = [0, 32], sizes = [2, 32], strides = [1, 1]} : vector<2x96xf32> to vector<2x32xf32>
    %218 = arith.mulf %217, %168 : vector<2x32xf32>
    %219 = vector.extract_strided_slice %214 {offsets = [0, 0], sizes = [2, 32], strides = [1, 1]} : vector<2x96xf32> to vector<2x32xf32>
    %220 = arith.mulf %219, %216 : vector<2x32xf32>
    %221 = arith.addf %218, %220 : vector<2x32xf32>
    %222 = vector.extract_strided_slice %214 {offsets = [0, 64], sizes = [2, 32], strides = [1, 1]} : vector<2x96xf32> to vector<2x32xf32>
    %223 = math.tanh %221 : vector<2x32xf32>
    %224 = arith.mulf %222, %223 : vector<2x32xf32>
    %225 = arith.truncf %208 : vector<2x32xf32> to vector<2x32xbf16>
    %c3_67 = arith.constant 3 : index
    %c0_68 = arith.constant 0 : index
    %c0_69 = arith.constant 0 : index
    %226 = vector.load %arg15[%c3_67, %c0_68, %c0_69] : memref<8x2x32xbf16, #tpu.memory_space<vmem>>, vector<1x2x32xbf16>
    %227 = vector.shape_cast %226 : vector<1x2x32xbf16> to vector<2x32xbf16>
    %228 = vector.shape_cast %225 : vector<2x32xbf16> to vector<1x2x32xbf16>
    tpu.vector_store %arg15[%c3_67, %c0_68, %c0_69], %228 {strides = array<i32>} : memref<8x2x32xbf16, #tpu.memory_space<vmem>>, vector<1x2x32xbf16>,
    %229 = arith.truncf %224 : vector<2x32xf32> to vector<2x32xbf16>
    %c4_70 = arith.constant 4 : index
    %c0_71 = arith.constant 0 : index
    %c0_72 = arith.constant 0 : index
    %230 = vector.load %arg16[%c4_70, %c0_71, %c0_72] : memref<8x2x32xbf16, #tpu.memory_space<vmem>>, vector<1x2x32xbf16>
    %231 = vector.shape_cast %230 : vector<1x2x32xbf16> to vector<2x32xbf16>
    %232 = vector.shape_cast %229 : vector<2x32xbf16> to vector<1x2x32xbf16>
    tpu.vector_store %arg16[%c4_70, %c0_71, %c0_72], %232 {strides = array<i32>} : memref<8x2x32xbf16, #tpu.memory_space<vmem>>, vector<1x2x32xbf16>,
    %233 = tpu.concatenate %208, %224 in 1 : vector<2x32xf32>, vector<2x32xf32> -> vector<2x64xf32>
    %234 = arith.truncf %233 : vector<2x64xf32> to vector<2x64xbf16>
    %cst_73 = arith.constant dense<0.000000e+00> : vector<2x256xf32>
    %235 = tpu.matmul %234, %16, %cst_73 {dimension_numbers = #tpu.dot_dimension_numbers<[1], [0], [0], [1], [0, 0, 1, 1], [], []>} : vector<2x64xbf16>, vector<64x256xbf16>, vector<2x256xf32> -> vector<2x256xf32>
    %c4_74 = arith.constant 4 : index
    %c0_75 = arith.constant 0 : index
    %c0_76 = arith.constant 0 : index
    %236 = vector.load %arg14[%c4_74, %c0_75, %c0_76] : memref<8x2x256xf32, #tpu.memory_space<vmem>>, vector<1x2x256xf32>
    %237 = vector.shape_cast %236 : vector<1x2x256xf32> to vector<2x256xf32>
    %238 = vector.extract_strided_slice %237 {offsets = [0, 0], sizes = [2, 128], strides = [1, 1]} : vector<2x256xf32> to vector<2x128xf32>
    %239 = vector.extract_strided_slice %235 {offsets = [0, 0], sizes = [2, 128], strides = [1, 1]} : vector<2x256xf32> to vector<2x128xf32>
    %240 = arith.addf %238, %239 : vector<2x128xf32>
    %c3_77 = arith.constant 3 : index
    %c0_78 = arith.constant 0 : index
    %c0_79 = arith.constant 0 : index
    %241 = vector.load %arg14[%c3_77, %c0_78, %c0_79] : memref<8x2x256xf32, #tpu.memory_space<vmem>>, vector<1x2x256xf32>
    %242 = vector.shape_cast %241 : vector<1x2x256xf32> to vector<2x256xf32>
    %243 = vector.extract_strided_slice %242 {offsets = [0, 128], sizes = [2, 128], strides = [1, 1]} : vector<2x256xf32> to vector<2x128xf32>
    %244 = vector.extract_strided_slice %235 {offsets = [0, 128], sizes = [2, 128], strides = [1, 1]} : vector<2x256xf32> to vector<2x128xf32>
    %245 = arith.addf %243, %244 : vector<2x128xf32>
    %246 = vector.extract_strided_slice %240 {offsets = [0, 0], sizes = [2, 96], strides = [1, 1]} : vector<2x128xf32> to vector<2x96xf32>
    %247 = arith.negf %246 : vector<2x96xf32>
    %248 = math.exp %247 : vector<2x96xf32>
    %cst_80 = arith.constant 1.000000e+00 : f32
    %249 = vector.broadcast %cst_80 : f32 to vector<2x96xf32>
    %250 = arith.addf %249, %248 : vector<2x96xf32>
    %251 = arith.divf %249, %250 : vector<2x96xf32>
    %252 = vector.extract_strided_slice %240 {offsets = [0, 96], sizes = [2, 32], strides = [1, 1]} : vector<2x128xf32> to vector<2x32xf32>
    %253 = math.tanh %252 : vector<2x32xf32>
    %254 = vector.extract_strided_slice %251 {offsets = [0, 32], sizes = [2, 32], strides = [1, 1]} : vector<2x96xf32> to vector<2x32xf32>
    %255 = arith.mulf %254, %205 : vector<2x32xf32>
    %256 = vector.extract_strided_slice %251 {offsets = [0, 0], sizes = [2, 32], strides = [1, 1]} : vector<2x96xf32> to vector<2x32xf32>
    %257 = arith.mulf %256, %253 : vector<2x32xf32>
    %258 = arith.addf %255, %257 : vector<2x32xf32>
    %259 = vector.extract_strided_slice %251 {offsets = [0, 64], sizes = [2, 32], strides = [1, 1]} : vector<2x96xf32> to vector<2x32xf32>
    %260 = math.tanh %258 : vector<2x32xf32>
    %261 = arith.mulf %259, %260 : vector<2x32xf32>
    %262 = vector.extract_strided_slice %245 {offsets = [0, 0], sizes = [2, 96], strides = [1, 1]} : vector<2x128xf32> to vector<2x96xf32>
    %263 = arith.negf %262 : vector<2x96xf32>
    %264 = math.exp %263 : vector<2x96xf32>
    %cst_81 = arith.constant 1.000000e+00 : f32
    %265 = vector.broadcast %cst_81 : f32 to vector<2x96xf32>
    %266 = arith.addf %265, %264 : vector<2x96xf32>
    %267 = arith.divf %265, %266 : vector<2x96xf32>
    %268 = vector.extract_strided_slice %245 {offsets = [0, 96], sizes = [2, 32], strides = [1, 1]} : vector<2x128xf32> to vector<2x32xf32>
    %269 = math.tanh %268 : vector<2x32xf32>
    %270 = vector.extract_strided_slice %267 {offsets = [0, 32], sizes = [2, 32], strides = [1, 1]} : vector<2x96xf32> to vector<2x32xf32>
    %271 = arith.mulf %270, %221 : vector<2x32xf32>
    %272 = vector.extract_strided_slice %267 {offsets = [0, 0], sizes = [2, 32], strides = [1, 1]} : vector<2x96xf32> to vector<2x32xf32>
    %273 = arith.mulf %272, %269 : vector<2x32xf32>
    %274 = arith.addf %271, %273 : vector<2x32xf32>
    %275 = vector.extract_strided_slice %267 {offsets = [0, 64], sizes = [2, 32], strides = [1, 1]} : vector<2x96xf32> to vector<2x32xf32>
    %276 = math.tanh %274 : vector<2x32xf32>
    %277 = arith.mulf %275, %276 : vector<2x32xf32>
    %278 = arith.truncf %261 : vector<2x32xf32> to vector<2x32xbf16>
    %c4_82 = arith.constant 4 : index
    %c0_83 = arith.constant 0 : index
    %c0_84 = arith.constant 0 : index
    %279 = vector.load %arg15[%c4_82, %c0_83, %c0_84] : memref<8x2x32xbf16, #tpu.memory_space<vmem>>, vector<1x2x32xbf16>
    %280 = vector.shape_cast %279 : vector<1x2x32xbf16> to vector<2x32xbf16>
    %281 = vector.shape_cast %278 : vector<2x32xbf16> to vector<1x2x32xbf16>
    tpu.vector_store %arg15[%c4_82, %c0_83, %c0_84], %281 {strides = array<i32>} : memref<8x2x32xbf16, #tpu.memory_space<vmem>>, vector<1x2x32xbf16>,
    %282 = arith.truncf %277 : vector<2x32xf32> to vector<2x32xbf16>
    %c3_85 = arith.constant 3 : index
    %c0_86 = arith.constant 0 : index
    %c0_87 = arith.constant 0 : index
    %283 = vector.load %arg16[%c3_85, %c0_86, %c0_87] : memref<8x2x32xbf16, #tpu.memory_space<vmem>>, vector<1x2x32xbf16>
    %284 = vector.shape_cast %283 : vector<1x2x32xbf16> to vector<2x32xbf16>
    %285 = vector.shape_cast %282 : vector<2x32xbf16> to vector<1x2x32xbf16>
    tpu.vector_store %arg16[%c3_85, %c0_86, %c0_87], %285 {strides = array<i32>} : memref<8x2x32xbf16, #tpu.memory_space<vmem>>, vector<1x2x32xbf16>,
    %286 = tpu.concatenate %261, %277 in 1 : vector<2x32xf32>, vector<2x32xf32> -> vector<2x64xf32>
    %287 = arith.truncf %286 : vector<2x64xf32> to vector<2x64xbf16>
    %cst_88 = arith.constant dense<0.000000e+00> : vector<2x256xf32>
    %288 = tpu.matmul %287, %16, %cst_88 {dimension_numbers = #tpu.dot_dimension_numbers<[1], [0], [0], [1], [0, 0, 1, 1], [], []>} : vector<2x64xbf16>, vector<64x256xbf16>, vector<2x256xf32> -> vector<2x256xf32>
    %c5_89 = arith.constant 5 : index
    %c0_90 = arith.constant 0 : index
    %c0_91 = arith.constant 0 : index
    %289 = vector.load %arg14[%c5_89, %c0_90, %c0_91] : memref<8x2x256xf32, #tpu.memory_space<vmem>>, vector<1x2x256xf32>
    %290 = vector.shape_cast %289 : vector<1x2x256xf32> to vector<2x256xf32>
    %291 = vector.extract_strided_slice %290 {offsets = [0, 0], sizes = [2, 128], strides = [1, 1]} : vector<2x256xf32> to vector<2x128xf32>
    %292 = vector.extract_strided_slice %288 {offsets = [0, 0], sizes = [2, 128], strides = [1, 1]} : vector<2x256xf32> to vector<2x128xf32>
    %293 = arith.addf %291, %292 : vector<2x128xf32>
    %c2_92 = arith.constant 2 : index
    %c0_93 = arith.constant 0 : index
    %c0_94 = arith.constant 0 : index
    %294 = vector.load %arg14[%c2_92, %c0_93, %c0_94] : memref<8x2x256xf32, #tpu.memory_space<vmem>>, vector<1x2x256xf32>
    %295 = vector.shape_cast %294 : vector<1x2x256xf32> to vector<2x256xf32>
    %296 = vector.extract_strided_slice %295 {offsets = [0, 128], sizes = [2, 128], strides = [1, 1]} : vector<2x256xf32> to vector<2x128xf32>
    %297 = vector.extract_strided_slice %288 {offsets = [0, 128], sizes = [2, 128], strides = [1, 1]} : vector<2x256xf32> to vector<2x128xf32>
    %298 = arith.addf %296, %297 : vector<2x128xf32>
    %299 = vector.extract_strided_slice %293 {offsets = [0, 0], sizes = [2, 96], strides = [1, 1]} : vector<2x128xf32> to vector<2x96xf32>
    %300 = arith.negf %299 : vector<2x96xf32>
    %301 = math.exp %300 : vector<2x96xf32>
    %cst_95 = arith.constant 1.000000e+00 : f32
    %302 = vector.broadcast %cst_95 : f32 to vector<2x96xf32>
    %303 = arith.addf %302, %301 : vector<2x96xf32>
    %304 = arith.divf %302, %303 : vector<2x96xf32>
    %305 = vector.extract_strided_slice %293 {offsets = [0, 96], sizes = [2, 32], strides = [1, 1]} : vector<2x128xf32> to vector<2x32xf32>
    %306 = math.tanh %305 : vector<2x32xf32>
    %307 = vector.extract_strided_slice %304 {offsets = [0, 32], sizes = [2, 32], strides = [1, 1]} : vector<2x96xf32> to vector<2x32xf32>
    %308 = arith.mulf %307, %258 : vector<2x32xf32>
    %309 = vector.extract_strided_slice %304 {offsets = [0, 0], sizes = [2, 32], strides = [1, 1]} : vector<2x96xf32> to vector<2x32xf32>
    %310 = arith.mulf %309, %306 : vector<2x32xf32>
    %311 = arith.addf %308, %310 : vector<2x32xf32>
    %312 = vector.extract_strided_slice %304 {offsets = [0, 64], sizes = [2, 32], strides = [1, 1]} : vector<2x96xf32> to vector<2x32xf32>
    %313 = math.tanh %311 : vector<2x32xf32>
    %314 = arith.mulf %312, %313 : vector<2x32xf32>
    %315 = vector.extract_strided_slice %298 {offsets = [0, 0], sizes = [2, 96], strides = [1, 1]} : vector<2x128xf32> to vector<2x96xf32>
    %316 = arith.negf %315 : vector<2x96xf32>
    %317 = math.exp %316 : vector<2x96xf32>
    %cst_96 = arith.constant 1.000000e+00 : f32
    %318 = vector.broadcast %cst_96 : f32 to vector<2x96xf32>
    %319 = arith.addf %318, %317 : vector<2x96xf32>
    %320 = arith.divf %318, %319 : vector<2x96xf32>
    %321 = vector.extract_strided_slice %298 {offsets = [0, 96], sizes = [2, 32], strides = [1, 1]} : vector<2x128xf32> to vector<2x32xf32>
    %322 = math.tanh %321 : vector<2x32xf32>
    %323 = vector.extract_strided_slice %320 {offsets = [0, 32], sizes = [2, 32], strides = [1, 1]} : vector<2x96xf32> to vector<2x32xf32>
    %324 = arith.mulf %323, %274 : vector<2x32xf32>
    %325 = vector.extract_strided_slice %320 {offsets = [0, 0], sizes = [2, 32], strides = [1, 1]} : vector<2x96xf32> to vector<2x32xf32>
    %326 = arith.mulf %325, %322 : vector<2x32xf32>
    %327 = arith.addf %324, %326 : vector<2x32xf32>
    %328 = vector.extract_strided_slice %320 {offsets = [0, 64], sizes = [2, 32], strides = [1, 1]} : vector<2x96xf32> to vector<2x32xf32>
    %329 = math.tanh %327 : vector<2x32xf32>
    %330 = arith.mulf %328, %329 : vector<2x32xf32>
    %331 = arith.truncf %314 : vector<2x32xf32> to vector<2x32xbf16>
    %c5_97 = arith.constant 5 : index
    %c0_98 = arith.constant 0 : index
    %c0_99 = arith.constant 0 : index
    %332 = vector.load %arg15[%c5_97, %c0_98, %c0_99] : memref<8x2x32xbf16, #tpu.memory_space<vmem>>, vector<1x2x32xbf16>
    %333 = vector.shape_cast %332 : vector<1x2x32xbf16> to vector<2x32xbf16>
    %334 = vector.shape_cast %331 : vector<2x32xbf16> to vector<1x2x32xbf16>
    tpu.vector_store %arg15[%c5_97, %c0_98, %c0_99], %334 {strides = array<i32>} : memref<8x2x32xbf16, #tpu.memory_space<vmem>>, vector<1x2x32xbf16>,
    %335 = arith.truncf %330 : vector<2x32xf32> to vector<2x32xbf16>
    %c2_100 = arith.constant 2 : index
    %c0_101 = arith.constant 0 : index
    %c0_102 = arith.constant 0 : index
    %336 = vector.load %arg16[%c2_100, %c0_101, %c0_102] : memref<8x2x32xbf16, #tpu.memory_space<vmem>>, vector<1x2x32xbf16>
    %337 = vector.shape_cast %336 : vector<1x2x32xbf16> to vector<2x32xbf16>
    %338 = vector.shape_cast %335 : vector<2x32xbf16> to vector<1x2x32xbf16>
    tpu.vector_store %arg16[%c2_100, %c0_101, %c0_102], %338 {strides = array<i32>} : memref<8x2x32xbf16, #tpu.memory_space<vmem>>, vector<1x2x32xbf16>,
    %339 = tpu.concatenate %314, %330 in 1 : vector<2x32xf32>, vector<2x32xf32> -> vector<2x64xf32>
    %340 = arith.truncf %339 : vector<2x64xf32> to vector<2x64xbf16>
    %cst_103 = arith.constant dense<0.000000e+00> : vector<2x256xf32>
    %341 = tpu.matmul %340, %16, %cst_103 {dimension_numbers = #tpu.dot_dimension_numbers<[1], [0], [0], [1], [0, 0, 1, 1], [], []>} : vector<2x64xbf16>, vector<64x256xbf16>, vector<2x256xf32> -> vector<2x256xf32>
    %c6_104 = arith.constant 6 : index
    %c0_105 = arith.constant 0 : index
    %c0_106 = arith.constant 0 : index
    %342 = vector.load %arg14[%c6_104, %c0_105, %c0_106] : memref<8x2x256xf32, #tpu.memory_space<vmem>>, vector<1x2x256xf32>
    %343 = vector.shape_cast %342 : vector<1x2x256xf32> to vector<2x256xf32>
    %344 = vector.extract_strided_slice %343 {offsets = [0, 0], sizes = [2, 128], strides = [1, 1]} : vector<2x256xf32> to vector<2x128xf32>
    %345 = vector.extract_strided_slice %341 {offsets = [0, 0], sizes = [2, 128], strides = [1, 1]} : vector<2x256xf32> to vector<2x128xf32>
    %346 = arith.addf %344, %345 : vector<2x128xf32>
    %c1_107 = arith.constant 1 : index
    %c0_108 = arith.constant 0 : index
    %c0_109 = arith.constant 0 : index
    %347 = vector.load %arg14[%c1_107, %c0_108, %c0_109] : memref<8x2x256xf32, #tpu.memory_space<vmem>>, vector<1x2x256xf32>
    %348 = vector.shape_cast %347 : vector<1x2x256xf32> to vector<2x256xf32>
    %349 = vector.extract_strided_slice %348 {offsets = [0, 128], sizes = [2, 128], strides = [1, 1]} : vector<2x256xf32> to vector<2x128xf32>
    %350 = vector.extract_strided_slice %341 {offsets = [0, 128], sizes = [2, 128], strides = [1, 1]} : vector<2x256xf32> to vector<2x128xf32>
    %351 = arith.addf %349, %350 : vector<2x128xf32>
    %352 = vector.extract_strided_slice %346 {offsets = [0, 0], sizes = [2, 96], strides = [1, 1]} : vector<2x128xf32> to vector<2x96xf32>
    %353 = arith.negf %352 : vector<2x96xf32>
    %354 = math.exp %353 : vector<2x96xf32>
    %cst_110 = arith.constant 1.000000e+00 : f32
    %355 = vector.broadcast %cst_110 : f32 to vector<2x96xf32>
    %356 = arith.addf %355, %354 : vector<2x96xf32>
    %357 = arith.divf %355, %356 : vector<2x96xf32>
    %358 = vector.extract_strided_slice %346 {offsets = [0, 96], sizes = [2, 32], strides = [1, 1]} : vector<2x128xf32> to vector<2x32xf32>
    %359 = math.tanh %358 : vector<2x32xf32>
    %360 = vector.extract_strided_slice %357 {offsets = [0, 32], sizes = [2, 32], strides = [1, 1]} : vector<2x96xf32> to vector<2x32xf32>
    %361 = arith.mulf %360, %311 : vector<2x32xf32>
    %362 = vector.extract_strided_slice %357 {offsets = [0, 0], sizes = [2, 32], strides = [1, 1]} : vector<2x96xf32> to vector<2x32xf32>
    %363 = arith.mulf %362, %359 : vector<2x32xf32>
    %364 = arith.addf %361, %363 : vector<2x32xf32>
    %365 = vector.extract_strided_slice %357 {offsets = [0, 64], sizes = [2, 32], strides = [1, 1]} : vector<2x96xf32> to vector<2x32xf32>
    %366 = math.tanh %364 : vector<2x32xf32>
    %367 = arith.mulf %365, %366 : vector<2x32xf32>
    %368 = vector.extract_strided_slice %351 {offsets = [0, 0], sizes = [2, 96], strides = [1, 1]} : vector<2x128xf32> to vector<2x96xf32>
    %369 = arith.negf %368 : vector<2x96xf32>
    %370 = math.exp %369 : vector<2x96xf32>
    %cst_111 = arith.constant 1.000000e+00 : f32
    %371 = vector.broadcast %cst_111 : f32 to vector<2x96xf32>
    %372 = arith.addf %371, %370 : vector<2x96xf32>
    %373 = arith.divf %371, %372 : vector<2x96xf32>
    %374 = vector.extract_strided_slice %351 {offsets = [0, 96], sizes = [2, 32], strides = [1, 1]} : vector<2x128xf32> to vector<2x32xf32>
    %375 = math.tanh %374 : vector<2x32xf32>
    %376 = vector.extract_strided_slice %373 {offsets = [0, 32], sizes = [2, 32], strides = [1, 1]} : vector<2x96xf32> to vector<2x32xf32>
    %377 = arith.mulf %376, %327 : vector<2x32xf32>
    %378 = vector.extract_strided_slice %373 {offsets = [0, 0], sizes = [2, 32], strides = [1, 1]} : vector<2x96xf32> to vector<2x32xf32>
    %379 = arith.mulf %378, %375 : vector<2x32xf32>
    %380 = arith.addf %377, %379 : vector<2x32xf32>
    %381 = vector.extract_strided_slice %373 {offsets = [0, 64], sizes = [2, 32], strides = [1, 1]} : vector<2x96xf32> to vector<2x32xf32>
    %382 = math.tanh %380 : vector<2x32xf32>
    %383 = arith.mulf %381, %382 : vector<2x32xf32>
    %384 = arith.truncf %367 : vector<2x32xf32> to vector<2x32xbf16>
    %c6_112 = arith.constant 6 : index
    %c0_113 = arith.constant 0 : index
    %c0_114 = arith.constant 0 : index
    %385 = vector.load %arg15[%c6_112, %c0_113, %c0_114] : memref<8x2x32xbf16, #tpu.memory_space<vmem>>, vector<1x2x32xbf16>
    %386 = vector.shape_cast %385 : vector<1x2x32xbf16> to vector<2x32xbf16>
    %387 = vector.shape_cast %384 : vector<2x32xbf16> to vector<1x2x32xbf16>
    tpu.vector_store %arg15[%c6_112, %c0_113, %c0_114], %387 {strides = array<i32>} : memref<8x2x32xbf16, #tpu.memory_space<vmem>>, vector<1x2x32xbf16>,
    %388 = arith.truncf %383 : vector<2x32xf32> to vector<2x32xbf16>
    %c1_115 = arith.constant 1 : index
    %c0_116 = arith.constant 0 : index
    %c0_117 = arith.constant 0 : index
    %389 = vector.load %arg16[%c1_115, %c0_116, %c0_117] : memref<8x2x32xbf16, #tpu.memory_space<vmem>>, vector<1x2x32xbf16>
    %390 = vector.shape_cast %389 : vector<1x2x32xbf16> to vector<2x32xbf16>
    %391 = vector.shape_cast %388 : vector<2x32xbf16> to vector<1x2x32xbf16>
    tpu.vector_store %arg16[%c1_115, %c0_116, %c0_117], %391 {strides = array<i32>} : memref<8x2x32xbf16, #tpu.memory_space<vmem>>, vector<1x2x32xbf16>,
    %392 = tpu.concatenate %367, %383 in 1 : vector<2x32xf32>, vector<2x32xf32> -> vector<2x64xf32>
    %393 = arith.truncf %392 : vector<2x64xf32> to vector<2x64xbf16>
    %cst_118 = arith.constant dense<0.000000e+00> : vector<2x256xf32>
    %394 = tpu.matmul %393, %16, %cst_118 {dimension_numbers = #tpu.dot_dimension_numbers<[1], [0], [0], [1], [0, 0, 1, 1], [], []>} : vector<2x64xbf16>, vector<64x256xbf16>, vector<2x256xf32> -> vector<2x256xf32>
    %c7_119 = arith.constant 7 : index
    %c0_120 = arith.constant 0 : index
    %c0_121 = arith.constant 0 : index
    %395 = vector.load %arg14[%c7_119, %c0_120, %c0_121] : memref<8x2x256xf32, #tpu.memory_space<vmem>>, vector<1x2x256xf32>
    %396 = vector.shape_cast %395 : vector<1x2x256xf32> to vector<2x256xf32>
    %397 = vector.extract_strided_slice %396 {offsets = [0, 0], sizes = [2, 128], strides = [1, 1]} : vector<2x256xf32> to vector<2x128xf32>
    %398 = vector.extract_strided_slice %394 {offsets = [0, 0], sizes = [2, 128], strides = [1, 1]} : vector<2x256xf32> to vector<2x128xf32>
    %399 = arith.addf %397, %398 : vector<2x128xf32>
    %c0_122 = arith.constant 0 : index
    %c0_123 = arith.constant 0 : index
    %c0_124 = arith.constant 0 : index
    %400 = vector.load %arg14[%c0_122, %c0_123, %c0_124] : memref<8x2x256xf32, #tpu.memory_space<vmem>>, vector<1x2x256xf32>
    %401 = vector.shape_cast %400 : vector<1x2x256xf32> to vector<2x256xf32>
    %402 = vector.extract_strided_slice %401 {offsets = [0, 128], sizes = [2, 128], strides = [1, 1]} : vector<2x256xf32> to vector<2x128xf32>
    %403 = vector.extract_strided_slice %394 {offsets = [0, 128], sizes = [2, 128], strides = [1, 1]} : vector<2x256xf32> to vector<2x128xf32>
    %404 = arith.addf %402, %403 : vector<2x128xf32>
    %405 = vector.extract_strided_slice %399 {offsets = [0, 0], sizes = [2, 96], strides = [1, 1]} : vector<2x128xf32> to vector<2x96xf32>
    %406 = arith.negf %405 : vector<2x96xf32>
    %407 = math.exp %406 : vector<2x96xf32>
    %cst_125 = arith.constant 1.000000e+00 : f32
    %408 = vector.broadcast %cst_125 : f32 to vector<2x96xf32>
    %409 = arith.addf %408, %407 : vector<2x96xf32>
    %410 = arith.divf %408, %409 : vector<2x96xf32>
    %411 = vector.extract_strided_slice %399 {offsets = [0, 96], sizes = [2, 32], strides = [1, 1]} : vector<2x128xf32> to vector<2x32xf32>
    %412 = math.tanh %411 : vector<2x32xf32>
    %413 = vector.extract_strided_slice %410 {offsets = [0, 32], sizes = [2, 32], strides = [1, 1]} : vector<2x96xf32> to vector<2x32xf32>
    %414 = arith.mulf %413, %364 : vector<2x32xf32>
    %415 = vector.extract_strided_slice %410 {offsets = [0, 0], sizes = [2, 32], strides = [1, 1]} : vector<2x96xf32> to vector<2x32xf32>
    %416 = arith.mulf %415, %412 : vector<2x32xf32>
    %417 = arith.addf %414, %416 : vector<2x32xf32>
    %418 = vector.extract_strided_slice %410 {offsets = [0, 64], sizes = [2, 32], strides = [1, 1]} : vector<2x96xf32> to vector<2x32xf32>
    %419 = math.tanh %417 : vector<2x32xf32>
    %420 = arith.mulf %418, %419 : vector<2x32xf32>
    %421 = vector.extract_strided_slice %404 {offsets = [0, 0], sizes = [2, 96], strides = [1, 1]} : vector<2x128xf32> to vector<2x96xf32>
    %422 = arith.negf %421 : vector<2x96xf32>
    %423 = math.exp %422 : vector<2x96xf32>
    %cst_126 = arith.constant 1.000000e+00 : f32
    %424 = vector.broadcast %cst_126 : f32 to vector<2x96xf32>
    %425 = arith.addf %424, %423 : vector<2x96xf32>
    %426 = arith.divf %424, %425 : vector<2x96xf32>
    %427 = vector.extract_strided_slice %404 {offsets = [0, 96], sizes = [2, 32], strides = [1, 1]} : vector<2x128xf32> to vector<2x32xf32>
    %428 = math.tanh %427 : vector<2x32xf32>
    %429 = vector.extract_strided_slice %426 {offsets = [0, 32], sizes = [2, 32], strides = [1, 1]} : vector<2x96xf32> to vector<2x32xf32>
    %430 = arith.mulf %429, %380 : vector<2x32xf32>
    %431 = vector.extract_strided_slice %426 {offsets = [0, 0], sizes = [2, 32], strides = [1, 1]} : vector<2x96xf32> to vector<2x32xf32>
    %432 = arith.mulf %431, %428 : vector<2x32xf32>
    %433 = arith.addf %430, %432 : vector<2x32xf32>
    %434 = vector.extract_strided_slice %426 {offsets = [0, 64], sizes = [2, 32], strides = [1, 1]} : vector<2x96xf32> to vector<2x32xf32>
    %435 = math.tanh %433 : vector<2x32xf32>
    %436 = arith.mulf %434, %435 : vector<2x32xf32>
    %437 = arith.truncf %420 : vector<2x32xf32> to vector<2x32xbf16>
    %c7_127 = arith.constant 7 : index
    %c0_128 = arith.constant 0 : index
    %c0_129 = arith.constant 0 : index
    %438 = vector.load %arg15[%c7_127, %c0_128, %c0_129] : memref<8x2x32xbf16, #tpu.memory_space<vmem>>, vector<1x2x32xbf16>
    %439 = vector.shape_cast %438 : vector<1x2x32xbf16> to vector<2x32xbf16>
    %440 = vector.shape_cast %437 : vector<2x32xbf16> to vector<1x2x32xbf16>
    tpu.vector_store %arg15[%c7_127, %c0_128, %c0_129], %440 {strides = array<i32>} : memref<8x2x32xbf16, #tpu.memory_space<vmem>>, vector<1x2x32xbf16>,
    %441 = arith.truncf %436 : vector<2x32xf32> to vector<2x32xbf16>
    %c0_130 = arith.constant 0 : index
    %c0_131 = arith.constant 0 : index
    %c0_132 = arith.constant 0 : index
    %442 = vector.load %arg16[%c0_130, %c0_131, %c0_132] : memref<8x2x32xbf16, #tpu.memory_space<vmem>>, vector<1x2x32xbf16>
    %443 = vector.shape_cast %442 : vector<1x2x32xbf16> to vector<2x32xbf16>
    %444 = vector.shape_cast %441 : vector<2x32xbf16> to vector<1x2x32xbf16>
    tpu.vector_store %arg16[%c0_130, %c0_131, %c0_132], %444 {strides = array<i32>} : memref<8x2x32xbf16, #tpu.memory_space<vmem>>, vector<1x2x32xbf16>,
    %445 = tpu.concatenate %420, %436 in 1 : vector<2x32xf32>, vector<2x32xf32> -> vector<2x64xf32>
    %446 = tpu.concatenate %417, %433 in 1 : vector<2x32xf32>, vector<2x32xf32> -> vector<2x64xf32>
    %c0_133 = arith.constant 0 : index
    %c0_134 = arith.constant 0 : index
    %c0_135 = arith.constant 0 : index
    %447 = vector.load %arg15[%c0_133, %c0_134, %c0_135] : memref<8x2x32xbf16, #tpu.memory_space<vmem>>, vector<8x2x32xbf16>
    %448 = vector.shape_cast %447 : vector<8x2x32xbf16> to vector<16x32xbf16>
    %c0_136 = arith.constant 0 : index
    %c0_137 = arith.constant 0 : index
    %c0_138 = arith.constant 0 : index
    %449 = vector.load %arg16[%c0_136, %c0_137, %c0_138] : memref<8x2x32xbf16, #tpu.memory_space<vmem>>, vector<8x2x32xbf16>
    %450 = vector.shape_cast %449 : vector<8x2x32xbf16> to vector<16x32xbf16>
    %c0_139 = arith.constant 0 : index
    %c0_140 = arith.constant 0 : index
    %c0_141 = arith.constant 0 : index
    %451 = vector.load %arg5[%c0_139, %c0_140, %c0_141] : memref<2x32x256xbf16, #tpu.memory_space<vmem>>, vector<1x32x256xbf16>
    %452 = vector.shape_cast %451 : vector<1x32x256xbf16> to vector<32x256xbf16>
    %cst_142 = arith.constant dense<0.000000e+00> : vector<16x256xf32>
    %453 = tpu.matmul %448, %452, %cst_142 {dimension_numbers = #tpu.dot_dimension_numbers<[1], [0], [0], [1], [0, 0, 1, 1], [], []>} : vector<16x32xbf16>, vector<32x256xbf16>, vector<16x256xf32> -> vector<16x256xf32>
    %c1_143 = arith.constant 1 : index
    %c0_144 = arith.constant 0 : index
    %c0_145 = arith.constant 0 : index
    %454 = vector.load %arg5[%c1_143, %c0_144, %c0_145] : memref<2x32x256xbf16, #tpu.memory_space<vmem>>, vector<1x32x256xbf16>
    %455 = vector.shape_cast %454 : vector<1x32x256xbf16> to vector<32x256xbf16>
    %cst_146 = arith.constant dense<0.000000e+00> : vector<16x256xf32>
    %456 = tpu.matmul %450, %455, %cst_146 {dimension_numbers = #tpu.dot_dimension_numbers<[1], [0], [0], [1], [0, 0, 1, 1], [], []>} : vector<16x32xbf16>, vector<32x256xbf16>, vector<16x256xf32> -> vector<16x256xf32>
    %457 = arith.addf %453, %456 : vector<16x256xf32>
    %c0_147 = arith.constant 0 : index
    %c0_148 = arith.constant 0 : index
    %458 = vector.load %arg7[%c0_147, %c0_148] : memref<1x256xf32, #tpu.memory_space<vmem>>, vector<1x256xf32>
    %459 = vector.broadcast %458 : vector<1x256xf32> to vector<16x256xf32>
    %460 = arith.addf %457, %459 : vector<16x256xf32>
    %461 = vector.shape_cast %460 : vector<16x256xf32> to vector<8x2x256xf32>
    %c0_149 = arith.constant 0 : index
    %c0_150 = arith.constant 0 : index
    %c0_151 = arith.constant 0 : index
    %462 = vector.load %arg17[%c0_149, %c0_150, %c0_151] : memref<8x2x256xf32, #tpu.memory_space<vmem>>, vector<8x2x256xf32>
    tpu.vector_store %arg17[%c0_149, %c0_150, %c0_151], %461 {strides = array<i32>} : memref<8x2x256xf32, #tpu.memory_space<vmem>>, vector<8x2x256xf32>,
    %c0_152 = arith.constant 0 : index
    %c0_153 = arith.constant 0 : index
    %463 = vector.load %arg6[%c0_152, %c0_153] : memref<64x256xbf16, #tpu.memory_space<vmem>>, vector<64x256xbf16>
    %464 = vector.extract_strided_slice %445 {offsets = [0, 0], sizes = [2, 32], strides = [1, 1]} : vector<2x64xf32> to vector<2x32xf32>
    %465 = vector.extract_strided_slice %445 {offsets = [0, 32], sizes = [2, 32], strides = [1, 1]} : vector<2x64xf32> to vector<2x32xf32>
    %466 = vector.extract_strided_slice %446 {offsets = [0, 0], sizes = [2, 32], strides = [1, 1]} : vector<2x64xf32> to vector<2x32xf32>
    %467 = vector.extract_strided_slice %446 {offsets = [0, 32], sizes = [2, 32], strides = [1, 1]} : vector<2x64xf32> to vector<2x32xf32>
    %468 = tpu.concatenate %464, %465 in 1 : vector<2x32xf32>, vector<2x32xf32> -> vector<2x64xf32>
    %469 = arith.truncf %468 : vector<2x64xf32> to vector<2x64xbf16>
    %cst_154 = arith.constant dense<0.000000e+00> : vector<2x256xf32>
    %470 = tpu.matmul %469, %463, %cst_154 {dimension_numbers = #tpu.dot_dimension_numbers<[1], [0], [0], [1], [0, 0, 1, 1], [], []>} : vector<2x64xbf16>, vector<64x256xbf16>, vector<2x256xf32> -> vector<2x256xf32>
    %c0_155 = arith.constant 0 : index
    %c0_156 = arith.constant 0 : index
    %c0_157 = arith.constant 0 : index
    %471 = vector.load %arg17[%c0_155, %c0_156, %c0_157] : memref<8x2x256xf32, #tpu.memory_space<vmem>>, vector<1x2x256xf32>
    %472 = vector.shape_cast %471 : vector<1x2x256xf32> to vector<2x256xf32>
    %473 = vector.extract_strided_slice %472 {offsets = [0, 0], sizes = [2, 128], strides = [1, 1]} : vector<2x256xf32> to vector<2x128xf32>
    %474 = vector.extract_strided_slice %470 {offsets = [0, 0], sizes = [2, 128], strides = [1, 1]} : vector<2x256xf32> to vector<2x128xf32>
    %475 = arith.addf %473, %474 : vector<2x128xf32>
    %c7_158 = arith.constant 7 : index
    %c0_159 = arith.constant 0 : index
    %c0_160 = arith.constant 0 : index
    %476 = vector.load %arg17[%c7_158, %c0_159, %c0_160] : memref<8x2x256xf32, #tpu.memory_space<vmem>>, vector<1x2x256xf32>
    %477 = vector.shape_cast %476 : vector<1x2x256xf32> to vector<2x256xf32>
    %478 = vector.extract_strided_slice %477 {offsets = [0, 128], sizes = [2, 128], strides = [1, 1]} : vector<2x256xf32> to vector<2x128xf32>
    %479 = vector.extract_strided_slice %470 {offsets = [0, 128], sizes = [2, 128], strides = [1, 1]} : vector<2x256xf32> to vector<2x128xf32>
    %480 = arith.addf %478, %479 : vector<2x128xf32>
    %481 = vector.extract_strided_slice %475 {offsets = [0, 0], sizes = [2, 96], strides = [1, 1]} : vector<2x128xf32> to vector<2x96xf32>
    %482 = arith.negf %481 : vector<2x96xf32>
    %483 = math.exp %482 : vector<2x96xf32>
    %cst_161 = arith.constant 1.000000e+00 : f32
    %484 = vector.broadcast %cst_161 : f32 to vector<2x96xf32>
    %485 = arith.addf %484, %483 : vector<2x96xf32>
    %486 = arith.divf %484, %485 : vector<2x96xf32>
    %487 = vector.extract_strided_slice %475 {offsets = [0, 96], sizes = [2, 32], strides = [1, 1]} : vector<2x128xf32> to vector<2x32xf32>
    %488 = math.tanh %487 : vector<2x32xf32>
    %489 = vector.extract_strided_slice %486 {offsets = [0, 32], sizes = [2, 32], strides = [1, 1]} : vector<2x96xf32> to vector<2x32xf32>
    %490 = arith.mulf %489, %466 : vector<2x32xf32>
    %491 = vector.extract_strided_slice %486 {offsets = [0, 0], sizes = [2, 32], strides = [1, 1]} : vector<2x96xf32> to vector<2x32xf32>
    %492 = arith.mulf %491, %488 : vector<2x32xf32>
    %493 = arith.addf %490, %492 : vector<2x32xf32>
    %494 = vector.extract_strided_slice %486 {offsets = [0, 64], sizes = [2, 32], strides = [1, 1]} : vector<2x96xf32> to vector<2x32xf32>
    %495 = math.tanh %493 : vector<2x32xf32>
    %496 = arith.mulf %494, %495 : vector<2x32xf32>
    %497 = vector.extract_strided_slice %480 {offsets = [0, 0], sizes = [2, 96], strides = [1, 1]} : vector<2x128xf32> to vector<2x96xf32>
    %498 = arith.negf %497 : vector<2x96xf32>
    %499 = math.exp %498 : vector<2x96xf32>
    %cst_162 = arith.constant 1.000000e+00 : f32
    %500 = vector.broadcast %cst_162 : f32 to vector<2x96xf32>
    %501 = arith.addf %500, %499 : vector<2x96xf32>
    %502 = arith.divf %500, %501 : vector<2x96xf32>
    %503 = vector.extract_strided_slice %480 {offsets = [0, 96], sizes = [2, 32], strides = [1, 1]} : vector<2x128xf32> to vector<2x32xf32>
    %504 = math.tanh %503 : vector<2x32xf32>
    %505 = vector.extract_strided_slice %502 {offsets = [0, 32], sizes = [2, 32], strides = [1, 1]} : vector<2x96xf32> to vector<2x32xf32>
    %506 = arith.mulf %505, %467 : vector<2x32xf32>
    %507 = vector.extract_strided_slice %502 {offsets = [0, 0], sizes = [2, 32], strides = [1, 1]} : vector<2x96xf32> to vector<2x32xf32>
    %508 = arith.mulf %507, %504 : vector<2x32xf32>
    %509 = arith.addf %506, %508 : vector<2x32xf32>
    %510 = vector.extract_strided_slice %502 {offsets = [0, 64], sizes = [2, 32], strides = [1, 1]} : vector<2x96xf32> to vector<2x32xf32>
    %511 = math.tanh %509 : vector<2x32xf32>
    %512 = arith.mulf %510, %511 : vector<2x32xf32>
    %513 = arith.truncf %496 : vector<2x32xf32> to vector<2x32xbf16>
    %c0_163 = arith.constant 0 : index
    %c0_164 = arith.constant 0 : index
    %c0_165 = arith.constant 0 : index
    %514 = vector.load %arg18[%c0_163, %c0_164, %c0_165] : memref<8x2x32xbf16, #tpu.memory_space<vmem>>, vector<1x2x32xbf16>
    %515 = vector.shape_cast %514 : vector<1x2x32xbf16> to vector<2x32xbf16>
    %516 = vector.shape_cast %513 : vector<2x32xbf16> to vector<1x2x32xbf16>
    tpu.vector_store %arg18[%c0_163, %c0_164, %c0_165], %516 {strides = array<i32>} : memref<8x2x32xbf16, #tpu.memory_space<vmem>>, vector<1x2x32xbf16>,
    %517 = arith.truncf %512 : vector<2x32xf32> to vector<2x32xbf16>
    %c7_166 = arith.constant 7 : index
    %c0_167 = arith.constant 0 : index
    %c0_168 = arith.constant 0 : index
    %518 = vector.load %arg19[%c7_166, %c0_167, %c0_168] : memref<8x2x32xbf16, #tpu.memory_space<vmem>>, vector<1x2x32xbf16>
    %519 = vector.shape_cast %518 : vector<1x2x32xbf16> to vector<2x32xbf16>
    %520 = vector.shape_cast %517 : vector<2x32xbf16> to vector<1x2x32xbf16>
    tpu.vector_store %arg19[%c7_166, %c0_167, %c0_168], %520 {strides = array<i32>} : memref<8x2x32xbf16, #tpu.memory_space<vmem>>, vector<1x2x32xbf16>,
    %521 = tpu.concatenate %496, %512 in 1 : vector<2x32xf32>, vector<2x32xf32> -> vector<2x64xf32>
    %522 = arith.truncf %521 : vector<2x64xf32> to vector<2x64xbf16>
    %cst_169 = arith.constant dense<0.000000e+00> : vector<2x256xf32>
    %523 = tpu.matmul %522, %463, %cst_169 {dimension_numbers = #tpu.dot_dimension_numbers<[1], [0], [0], [1], [0, 0, 1, 1], [], []>} : vector<2x64xbf16>, vector<64x256xbf16>, vector<2x256xf32> -> vector<2x256xf32>
    %c1_170 = arith.constant 1 : index
    %c0_171 = arith.constant 0 : index
    %c0_172 = arith.constant 0 : index
    %524 = vector.load %arg17[%c1_170, %c0_171, %c0_172] : memref<8x2x256xf32, #tpu.memory_space<vmem>>, vector<1x2x256xf32>
    %525 = vector.shape_cast %524 : vector<1x2x256xf32> to vector<2x256xf32>
    %526 = vector.extract_strided_slice %525 {offsets = [0, 0], sizes = [2, 128], strides = [1, 1]} : vector<2x256xf32> to vector<2x128xf32>
    %527 = vector.extract_strided_slice %523 {offsets = [0, 0], sizes = [2, 128], strides = [1, 1]} : vector<2x256xf32> to vector<2x128xf32>
    %528 = arith.addf %526, %527 : vector<2x128xf32>
    %c6_173 = arith.constant 6 : index
    %c0_174 = arith.constant 0 : index
    %c0_175 = arith.constant 0 : index
    %529 = vector.load %arg17[%c6_173, %c0_174, %c0_175] : memref<8x2x256xf32, #tpu.memory_space<vmem>>, vector<1x2x256xf32>
    %530 = vector.shape_cast %529 : vector<1x2x256xf32> to vector<2x256xf32>
    %531 = vector.extract_strided_slice %530 {offsets = [0, 128], sizes = [2, 128], strides = [1, 1]} : vector<2x256xf32> to vector<2x128xf32>
    %532 = vector.extract_strided_slice %523 {offsets = [0, 128], sizes = [2, 128], strides = [1, 1]} : vector<2x256xf32> to vector<2x128xf32>
    %533 = arith.addf %531, %532 : vector<2x128xf32>
    %534 = vector.extract_strided_slice %528 {offsets = [0, 0], sizes = [2, 96], strides = [1, 1]} : vector<2x128xf32> to vector<2x96xf32>
    %535 = arith.negf %534 : vector<2x96xf32>
    %536 = math.exp %535 : vector<2x96xf32>
    %cst_176 = arith.constant 1.000000e+00 : f32
    %537 = vector.broadcast %cst_176 : f32 to vector<2x96xf32>
    %538 = arith.addf %537, %536 : vector<2x96xf32>
    %539 = arith.divf %537, %538 : vector<2x96xf32>
    %540 = vector.extract_strided_slice %528 {offsets = [0, 96], sizes = [2, 32], strides = [1, 1]} : vector<2x128xf32> to vector<2x32xf32>
    %541 = math.tanh %540 : vector<2x32xf32>
    %542 = vector.extract_strided_slice %539 {offsets = [0, 32], sizes = [2, 32], strides = [1, 1]} : vector<2x96xf32> to vector<2x32xf32>
    %543 = arith.mulf %542, %493 : vector<2x32xf32>
    %544 = vector.extract_strided_slice %539 {offsets = [0, 0], sizes = [2, 32], strides = [1, 1]} : vector<2x96xf32> to vector<2x32xf32>
    %545 = arith.mulf %544, %541 : vector<2x32xf32>
    %546 = arith.addf %543, %545 : vector<2x32xf32>
    %547 = vector.extract_strided_slice %539 {offsets = [0, 64], sizes = [2, 32], strides = [1, 1]} : vector<2x96xf32> to vector<2x32xf32>
    %548 = math.tanh %546 : vector<2x32xf32>
    %549 = arith.mulf %547, %548 : vector<2x32xf32>
    %550 = vector.extract_strided_slice %533 {offsets = [0, 0], sizes = [2, 96], strides = [1, 1]} : vector<2x128xf32> to vector<2x96xf32>
    %551 = arith.negf %550 : vector<2x96xf32>
    %552 = math.exp %551 : vector<2x96xf32>
    %cst_177 = arith.constant 1.000000e+00 : f32
    %553 = vector.broadcast %cst_177 : f32 to vector<2x96xf32>
    %554 = arith.addf %553, %552 : vector<2x96xf32>
    %555 = arith.divf %553, %554 : vector<2x96xf32>
    %556 = vector.extract_strided_slice %533 {offsets = [0, 96], sizes = [2, 32], strides = [1, 1]} : vector<2x128xf32> to vector<2x32xf32>
    %557 = math.tanh %556 : vector<2x32xf32>
    %558 = vector.extract_strided_slice %555 {offsets = [0, 32], sizes = [2, 32], strides = [1, 1]} : vector<2x96xf32> to vector<2x32xf32>
    %559 = arith.mulf %558, %509 : vector<2x32xf32>
    %560 = vector.extract_strided_slice %555 {offsets = [0, 0], sizes = [2, 32], strides = [1, 1]} : vector<2x96xf32> to vector<2x32xf32>
    %561 = arith.mulf %560, %557 : vector<2x32xf32>
    %562 = arith.addf %559, %561 : vector<2x32xf32>
    %563 = vector.extract_strided_slice %555 {offsets = [0, 64], sizes = [2, 32], strides = [1, 1]} : vector<2x96xf32> to vector<2x32xf32>
    %564 = math.tanh %562 : vector<2x32xf32>
    %565 = arith.mulf %563, %564 : vector<2x32xf32>
    %566 = arith.truncf %549 : vector<2x32xf32> to vector<2x32xbf16>
    %c1_178 = arith.constant 1 : index
    %c0_179 = arith.constant 0 : index
    %c0_180 = arith.constant 0 : index
    %567 = vector.load %arg18[%c1_178, %c0_179, %c0_180] : memref<8x2x32xbf16, #tpu.memory_space<vmem>>, vector<1x2x32xbf16>
    %568 = vector.shape_cast %567 : vector<1x2x32xbf16> to vector<2x32xbf16>
    %569 = vector.shape_cast %566 : vector<2x32xbf16> to vector<1x2x32xbf16>
    tpu.vector_store %arg18[%c1_178, %c0_179, %c0_180], %569 {strides = array<i32>} : memref<8x2x32xbf16, #tpu.memory_space<vmem>>, vector<1x2x32xbf16>,
    %570 = arith.truncf %565 : vector<2x32xf32> to vector<2x32xbf16>
    %c6_181 = arith.constant 6 : index
    %c0_182 = arith.constant 0 : index
    %c0_183 = arith.constant 0 : index
    %571 = vector.load %arg19[%c6_181, %c0_182, %c0_183] : memref<8x2x32xbf16, #tpu.memory_space<vmem>>, vector<1x2x32xbf16>
    %572 = vector.shape_cast %571 : vector<1x2x32xbf16> to vector<2x32xbf16>
    %573 = vector.shape_cast %570 : vector<2x32xbf16> to vector<1x2x32xbf16>
    tpu.vector_store %arg19[%c6_181, %c0_182, %c0_183], %573 {strides = array<i32>} : memref<8x2x32xbf16, #tpu.memory_space<vmem>>, vector<1x2x32xbf16>,
    %574 = tpu.concatenate %549, %565 in 1 : vector<2x32xf32>, vector<2x32xf32> -> vector<2x64xf32>
    %575 = arith.truncf %574 : vector<2x64xf32> to vector<2x64xbf16>
    %cst_184 = arith.constant dense<0.000000e+00> : vector<2x256xf32>
    %576 = tpu.matmul %575, %463, %cst_184 {dimension_numbers = #tpu.dot_dimension_numbers<[1], [0], [0], [1], [0, 0, 1, 1], [], []>} : vector<2x64xbf16>, vector<64x256xbf16>, vector<2x256xf32> -> vector<2x256xf32>
    %c2_185 = arith.constant 2 : index
    %c0_186 = arith.constant 0 : index
    %c0_187 = arith.constant 0 : index
    %577 = vector.load %arg17[%c2_185, %c0_186, %c0_187] : memref<8x2x256xf32, #tpu.memory_space<vmem>>, vector<1x2x256xf32>
    %578 = vector.shape_cast %577 : vector<1x2x256xf32> to vector<2x256xf32>
    %579 = vector.extract_strided_slice %578 {offsets = [0, 0], sizes = [2, 128], strides = [1, 1]} : vector<2x256xf32> to vector<2x128xf32>
    %580 = vector.extract_strided_slice %576 {offsets = [0, 0], sizes = [2, 128], strides = [1, 1]} : vector<2x256xf32> to vector<2x128xf32>
    %581 = arith.addf %579, %580 : vector<2x128xf32>
    %c5_188 = arith.constant 5 : index
    %c0_189 = arith.constant 0 : index
    %c0_190 = arith.constant 0 : index
    %582 = vector.load %arg17[%c5_188, %c0_189, %c0_190] : memref<8x2x256xf32, #tpu.memory_space<vmem>>, vector<1x2x256xf32>
    %583 = vector.shape_cast %582 : vector<1x2x256xf32> to vector<2x256xf32>
    %584 = vector.extract_strided_slice %583 {offsets = [0, 128], sizes = [2, 128], strides = [1, 1]} : vector<2x256xf32> to vector<2x128xf32>
    %585 = vector.extract_strided_slice %576 {offsets = [0, 128], sizes = [2, 128], strides = [1, 1]} : vector<2x256xf32> to vector<2x128xf32>
    %586 = arith.addf %584, %585 : vector<2x128xf32>
    %587 = vector.extract_strided_slice %581 {offsets = [0, 0], sizes = [2, 96], strides = [1, 1]} : vector<2x128xf32> to vector<2x96xf32>
    %588 = arith.negf %587 : vector<2x96xf32>
    %589 = math.exp %588 : vector<2x96xf32>
    %cst_191 = arith.constant 1.000000e+00 : f32
    %590 = vector.broadcast %cst_191 : f32 to vector<2x96xf32>
    %591 = arith.addf %590, %589 : vector<2x96xf32>
    %592 = arith.divf %590, %591 : vector<2x96xf32>
    %593 = vector.extract_strided_slice %581 {offsets = [0, 96], sizes = [2, 32], strides = [1, 1]} : vector<2x128xf32> to vector<2x32xf32>
    %594 = math.tanh %593 : vector<2x32xf32>
    %595 = vector.extract_strided_slice %592 {offsets = [0, 32], sizes = [2, 32], strides = [1, 1]} : vector<2x96xf32> to vector<2x32xf32>
    %596 = arith.mulf %595, %546 : vector<2x32xf32>
    %597 = vector.extract_strided_slice %592 {offsets = [0, 0], sizes = [2, 32], strides = [1, 1]} : vector<2x96xf32> to vector<2x32xf32>
    %598 = arith.mulf %597, %594 : vector<2x32xf32>
    %599 = arith.addf %596, %598 : vector<2x32xf32>
    %600 = vector.extract_strided_slice %592 {offsets = [0, 64], sizes = [2, 32], strides = [1, 1]} : vector<2x96xf32> to vector<2x32xf32>
    %601 = math.tanh %599 : vector<2x32xf32>
    %602 = arith.mulf %600, %601 : vector<2x32xf32>
    %603 = vector.extract_strided_slice %586 {offsets = [0, 0], sizes = [2, 96], strides = [1, 1]} : vector<2x128xf32> to vector<2x96xf32>
    %604 = arith.negf %603 : vector<2x96xf32>
    %605 = math.exp %604 : vector<2x96xf32>
    %cst_192 = arith.constant 1.000000e+00 : f32
    %606 = vector.broadcast %cst_192 : f32 to vector<2x96xf32>
    %607 = arith.addf %606, %605 : vector<2x96xf32>
    %608 = arith.divf %606, %607 : vector<2x96xf32>
    %609 = vector.extract_strided_slice %586 {offsets = [0, 96], sizes = [2, 32], strides = [1, 1]} : vector<2x128xf32> to vector<2x32xf32>
    %610 = math.tanh %609 : vector<2x32xf32>
    %611 = vector.extract_strided_slice %608 {offsets = [0, 32], sizes = [2, 32], strides = [1, 1]} : vector<2x96xf32> to vector<2x32xf32>
    %612 = arith.mulf %611, %562 : vector<2x32xf32>
    %613 = vector.extract_strided_slice %608 {offsets = [0, 0], sizes = [2, 32], strides = [1, 1]} : vector<2x96xf32> to vector<2x32xf32>
    %614 = arith.mulf %613, %610 : vector<2x32xf32>
    %615 = arith.addf %612, %614 : vector<2x32xf32>
    %616 = vector.extract_strided_slice %608 {offsets = [0, 64], sizes = [2, 32], strides = [1, 1]} : vector<2x96xf32> to vector<2x32xf32>
    %617 = math.tanh %615 : vector<2x32xf32>
    %618 = arith.mulf %616, %617 : vector<2x32xf32>
    %619 = arith.truncf %602 : vector<2x32xf32> to vector<2x32xbf16>
    %c2_193 = arith.constant 2 : index
    %c0_194 = arith.constant 0 : index
    %c0_195 = arith.constant 0 : index
    %620 = vector.load %arg18[%c2_193, %c0_194, %c0_195] : memref<8x2x32xbf16, #tpu.memory_space<vmem>>, vector<1x2x32xbf16>
    %621 = vector.shape_cast %620 : vector<1x2x32xbf16> to vector<2x32xbf16>
    %622 = vector.shape_cast %619 : vector<2x32xbf16> to vector<1x2x32xbf16>
    tpu.vector_store %arg18[%c2_193, %c0_194, %c0_195], %622 {strides = array<i32>} : memref<8x2x32xbf16, #tpu.memory_space<vmem>>, vector<1x2x32xbf16>,
    %623 = arith.truncf %618 : vector<2x32xf32> to vector<2x32xbf16>
    %c5_196 = arith.constant 5 : index
    %c0_197 = arith.constant 0 : index
    %c0_198 = arith.constant 0 : index
    %624 = vector.load %arg19[%c5_196, %c0_197, %c0_198] : memref<8x2x32xbf16, #tpu.memory_space<vmem>>, vector<1x2x32xbf16>
    %625 = vector.shape_cast %624 : vector<1x2x32xbf16> to vector<2x32xbf16>
    %626 = vector.shape_cast %623 : vector<2x32xbf16> to vector<1x2x32xbf16>
    tpu.vector_store %arg19[%c5_196, %c0_197, %c0_198], %626 {strides = array<i32>} : memref<8x2x32xbf16, #tpu.memory_space<vmem>>, vector<1x2x32xbf16>,
    %627 = tpu.concatenate %602, %618 in 1 : vector<2x32xf32>, vector<2x32xf32> -> vector<2x64xf32>
    %628 = arith.truncf %627 : vector<2x64xf32> to vector<2x64xbf16>
    %cst_199 = arith.constant dense<0.000000e+00> : vector<2x256xf32>
    %629 = tpu.matmul %628, %463, %cst_199 {dimension_numbers = #tpu.dot_dimension_numbers<[1], [0], [0], [1], [0, 0, 1, 1], [], []>} : vector<2x64xbf16>, vector<64x256xbf16>, vector<2x256xf32> -> vector<2x256xf32>
    %c3_200 = arith.constant 3 : index
    %c0_201 = arith.constant 0 : index
    %c0_202 = arith.constant 0 : index
    %630 = vector.load %arg17[%c3_200, %c0_201, %c0_202] : memref<8x2x256xf32, #tpu.memory_space<vmem>>, vector<1x2x256xf32>
    %631 = vector.shape_cast %630 : vector<1x2x256xf32> to vector<2x256xf32>
    %632 = vector.extract_strided_slice %631 {offsets = [0, 0], sizes = [2, 128], strides = [1, 1]} : vector<2x256xf32> to vector<2x128xf32>
    %633 = vector.extract_strided_slice %629 {offsets = [0, 0], sizes = [2, 128], strides = [1, 1]} : vector<2x256xf32> to vector<2x128xf32>
    %634 = arith.addf %632, %633 : vector<2x128xf32>
    %c4_203 = arith.constant 4 : index
    %c0_204 = arith.constant 0 : index
    %c0_205 = arith.constant 0 : index
    %635 = vector.load %arg17[%c4_203, %c0_204, %c0_205] : memref<8x2x256xf32, #tpu.memory_space<vmem>>, vector<1x2x256xf32>
    %636 = vector.shape_cast %635 : vector<1x2x256xf32> to vector<2x256xf32>
    %637 = vector.extract_strided_slice %636 {offsets = [0, 128], sizes = [2, 128], strides = [1, 1]} : vector<2x256xf32> to vector<2x128xf32>
    %638 = vector.extract_strided_slice %629 {offsets = [0, 128], sizes = [2, 128], strides = [1, 1]} : vector<2x256xf32> to vector<2x128xf32>
    %639 = arith.addf %637, %638 : vector<2x128xf32>
    %640 = vector.extract_strided_slice %634 {offsets = [0, 0], sizes = [2, 96], strides = [1, 1]} : vector<2x128xf32> to vector<2x96xf32>
    %641 = arith.negf %640 : vector<2x96xf32>
    %642 = math.exp %641 : vector<2x96xf32>
    %cst_206 = arith.constant 1.000000e+00 : f32
    %643 = vector.broadcast %cst_206 : f32 to vector<2x96xf32>
    %644 = arith.addf %643, %642 : vector<2x96xf32>
    %645 = arith.divf %643, %644 : vector<2x96xf32>
    %646 = vector.extract_strided_slice %634 {offsets = [0, 96], sizes = [2, 32], strides = [1, 1]} : vector<2x128xf32> to vector<2x32xf32>
    %647 = math.tanh %646 : vector<2x32xf32>
    %648 = vector.extract_strided_slice %645 {offsets = [0, 32], sizes = [2, 32], strides = [1, 1]} : vector<2x96xf32> to vector<2x32xf32>
    %649 = arith.mulf %648, %599 : vector<2x32xf32>
    %650 = vector.extract_strided_slice %645 {offsets = [0, 0], sizes = [2, 32], strides = [1, 1]} : vector<2x96xf32> to vector<2x32xf32>
    %651 = arith.mulf %650, %647 : vector<2x32xf32>
    %652 = arith.addf %649, %651 : vector<2x32xf32>
    %653 = vector.extract_strided_slice %645 {offsets = [0, 64], sizes = [2, 32], strides = [1, 1]} : vector<2x96xf32> to vector<2x32xf32>
    %654 = math.tanh %652 : vector<2x32xf32>
    %655 = arith.mulf %653, %654 : vector<2x32xf32>
    %656 = vector.extract_strided_slice %639 {offsets = [0, 0], sizes = [2, 96], strides = [1, 1]} : vector<2x128xf32> to vector<2x96xf32>
    %657 = arith.negf %656 : vector<2x96xf32>
    %658 = math.exp %657 : vector<2x96xf32>
    %cst_207 = arith.constant 1.000000e+00 : f32
    %659 = vector.broadcast %cst_207 : f32 to vector<2x96xf32>
    %660 = arith.addf %659, %658 : vector<2x96xf32>
    %661 = arith.divf %659, %660 : vector<2x96xf32>
    %662 = vector.extract_strided_slice %639 {offsets = [0, 96], sizes = [2, 32], strides = [1, 1]} : vector<2x128xf32> to vector<2x32xf32>
    %663 = math.tanh %662 : vector<2x32xf32>
    %664 = vector.extract_strided_slice %661 {offsets = [0, 32], sizes = [2, 32], strides = [1, 1]} : vector<2x96xf32> to vector<2x32xf32>
    %665 = arith.mulf %664, %615 : vector<2x32xf32>
    %666 = vector.extract_strided_slice %661 {offsets = [0, 0], sizes = [2, 32], strides = [1, 1]} : vector<2x96xf32> to vector<2x32xf32>
    %667 = arith.mulf %666, %663 : vector<2x32xf32>
    %668 = arith.addf %665, %667 : vector<2x32xf32>
    %669 = vector.extract_strided_slice %661 {offsets = [0, 64], sizes = [2, 32], strides = [1, 1]} : vector<2x96xf32> to vector<2x32xf32>
    %670 = math.tanh %668 : vector<2x32xf32>
    %671 = arith.mulf %669, %670 : vector<2x32xf32>
    %672 = arith.truncf %655 : vector<2x32xf32> to vector<2x32xbf16>
    %c3_208 = arith.constant 3 : index
    %c0_209 = arith.constant 0 : index
    %c0_210 = arith.constant 0 : index
    %673 = vector.load %arg18[%c3_208, %c0_209, %c0_210] : memref<8x2x32xbf16, #tpu.memory_space<vmem>>, vector<1x2x32xbf16>
    %674 = vector.shape_cast %673 : vector<1x2x32xbf16> to vector<2x32xbf16>
    %675 = vector.shape_cast %672 : vector<2x32xbf16> to vector<1x2x32xbf16>
    tpu.vector_store %arg18[%c3_208, %c0_209, %c0_210], %675 {strides = array<i32>} : memref<8x2x32xbf16, #tpu.memory_space<vmem>>, vector<1x2x32xbf16>,
    %676 = arith.truncf %671 : vector<2x32xf32> to vector<2x32xbf16>
    %c4_211 = arith.constant 4 : index
    %c0_212 = arith.constant 0 : index
    %c0_213 = arith.constant 0 : index
    %677 = vector.load %arg19[%c4_211, %c0_212, %c0_213] : memref<8x2x32xbf16, #tpu.memory_space<vmem>>, vector<1x2x32xbf16>
    %678 = vector.shape_cast %677 : vector<1x2x32xbf16> to vector<2x32xbf16>
    %679 = vector.shape_cast %676 : vector<2x32xbf16> to vector<1x2x32xbf16>
    tpu.vector_store %arg19[%c4_211, %c0_212, %c0_213], %679 {strides = array<i32>} : memref<8x2x32xbf16, #tpu.memory_space<vmem>>, vector<1x2x32xbf16>,
    %680 = tpu.concatenate %655, %671 in 1 : vector<2x32xf32>, vector<2x32xf32> -> vector<2x64xf32>
    %681 = arith.truncf %680 : vector<2x64xf32> to vector<2x64xbf16>
    %cst_214 = arith.constant dense<0.000000e+00> : vector<2x256xf32>
    %682 = tpu.matmul %681, %463, %cst_214 {dimension_numbers = #tpu.dot_dimension_numbers<[1], [0], [0], [1], [0, 0, 1, 1], [], []>} : vector<2x64xbf16>, vector<64x256xbf16>, vector<2x256xf32> -> vector<2x256xf32>
    %c4_215 = arith.constant 4 : index
    %c0_216 = arith.constant 0 : index
    %c0_217 = arith.constant 0 : index
    %683 = vector.load %arg17[%c4_215, %c0_216, %c0_217] : memref<8x2x256xf32, #tpu.memory_space<vmem>>, vector<1x2x256xf32>
    %684 = vector.shape_cast %683 : vector<1x2x256xf32> to vector<2x256xf32>
    %685 = vector.extract_strided_slice %684 {offsets = [0, 0], sizes = [2, 128], strides = [1, 1]} : vector<2x256xf32> to vector<2x128xf32>
    %686 = vector.extract_strided_slice %682 {offsets = [0, 0], sizes = [2, 128], strides = [1, 1]} : vector<2x256xf32> to vector<2x128xf32>
    %687 = arith.addf %685, %686 : vector<2x128xf32>
    %c3_218 = arith.constant 3 : index
    %c0_219 = arith.constant 0 : index
    %c0_220 = arith.constant 0 : index
    %688 = vector.load %arg17[%c3_218, %c0_219, %c0_220] : memref<8x2x256xf32, #tpu.memory_space<vmem>>, vector<1x2x256xf32>
    %689 = vector.shape_cast %688 : vector<1x2x256xf32> to vector<2x256xf32>
    %690 = vector.extract_strided_slice %689 {offsets = [0, 128], sizes = [2, 128], strides = [1, 1]} : vector<2x256xf32> to vector<2x128xf32>
    %691 = vector.extract_strided_slice %682 {offsets = [0, 128], sizes = [2, 128], strides = [1, 1]} : vector<2x256xf32> to vector<2x128xf32>
    %692 = arith.addf %690, %691 : vector<2x128xf32>
    %693 = vector.extract_strided_slice %687 {offsets = [0, 0], sizes = [2, 96], strides = [1, 1]} : vector<2x128xf32> to vector<2x96xf32>
    %694 = arith.negf %693 : vector<2x96xf32>
    %695 = math.exp %694 : vector<2x96xf32>
    %cst_221 = arith.constant 1.000000e+00 : f32
    %696 = vector.broadcast %cst_221 : f32 to vector<2x96xf32>
    %697 = arith.addf %696, %695 : vector<2x96xf32>
    %698 = arith.divf %696, %697 : vector<2x96xf32>
    %699 = vector.extract_strided_slice %687 {offsets = [0, 96], sizes = [2, 32], strides = [1, 1]} : vector<2x128xf32> to vector<2x32xf32>
    %700 = math.tanh %699 : vector<2x32xf32>
    %701 = vector.extract_strided_slice %698 {offsets = [0, 32], sizes = [2, 32], strides = [1, 1]} : vector<2x96xf32> to vector<2x32xf32>
    %702 = arith.mulf %701, %652 : vector<2x32xf32>
    %703 = vector.extract_strided_slice %698 {offsets = [0, 0], sizes = [2, 32], strides = [1, 1]} : vector<2x96xf32> to vector<2x32xf32>
    %704 = arith.mulf %703, %700 : vector<2x32xf32>
    %705 = arith.addf %702, %704 : vector<2x32xf32>
    %706 = vector.extract_strided_slice %698 {offsets = [0, 64], sizes = [2, 32], strides = [1, 1]} : vector<2x96xf32> to vector<2x32xf32>
    %707 = math.tanh %705 : vector<2x32xf32>
    %708 = arith.mulf %706, %707 : vector<2x32xf32>
    %709 = vector.extract_strided_slice %692 {offsets = [0, 0], sizes = [2, 96], strides = [1, 1]} : vector<2x128xf32> to vector<2x96xf32>
    %710 = arith.negf %709 : vector<2x96xf32>
    %711 = math.exp %710 : vector<2x96xf32>
    %cst_222 = arith.constant 1.000000e+00 : f32
    %712 = vector.broadcast %cst_222 : f32 to vector<2x96xf32>
    %713 = arith.addf %712, %711 : vector<2x96xf32>
    %714 = arith.divf %712, %713 : vector<2x96xf32>
    %715 = vector.extract_strided_slice %692 {offsets = [0, 96], sizes = [2, 32], strides = [1, 1]} : vector<2x128xf32> to vector<2x32xf32>
    %716 = math.tanh %715 : vector<2x32xf32>
    %717 = vector.extract_strided_slice %714 {offsets = [0, 32], sizes = [2, 32], strides = [1, 1]} : vector<2x96xf32> to vector<2x32xf32>
    %718 = arith.mulf %717, %668 : vector<2x32xf32>
    %719 = vector.extract_strided_slice %714 {offsets = [0, 0], sizes = [2, 32], strides = [1, 1]} : vector<2x96xf32> to vector<2x32xf32>
    %720 = arith.mulf %719, %716 : vector<2x32xf32>
    %721 = arith.addf %718, %720 : vector<2x32xf32>
    %722 = vector.extract_strided_slice %714 {offsets = [0, 64], sizes = [2, 32], strides = [1, 1]} : vector<2x96xf32> to vector<2x32xf32>
    %723 = math.tanh %721 : vector<2x32xf32>
    %724 = arith.mulf %722, %723 : vector<2x32xf32>
    %725 = arith.truncf %708 : vector<2x32xf32> to vector<2x32xbf16>
    %c4_223 = arith.constant 4 : index
    %c0_224 = arith.constant 0 : index
    %c0_225 = arith.constant 0 : index
    %726 = vector.load %arg18[%c4_223, %c0_224, %c0_225] : memref<8x2x32xbf16, #tpu.memory_space<vmem>>, vector<1x2x32xbf16>
    %727 = vector.shape_cast %726 : vector<1x2x32xbf16> to vector<2x32xbf16>
    %728 = vector.shape_cast %725 : vector<2x32xbf16> to vector<1x2x32xbf16>
    tpu.vector_store %arg18[%c4_223, %c0_224, %c0_225], %728 {strides = array<i32>} : memref<8x2x32xbf16, #tpu.memory_space<vmem>>, vector<1x2x32xbf16>,
    %729 = arith.truncf %724 : vector<2x32xf32> to vector<2x32xbf16>
    %c3_226 = arith.constant 3 : index
    %c0_227 = arith.constant 0 : index
    %c0_228 = arith.constant 0 : index
    %730 = vector.load %arg19[%c3_226, %c0_227, %c0_228] : memref<8x2x32xbf16, #tpu.memory_space<vmem>>, vector<1x2x32xbf16>
    %731 = vector.shape_cast %730 : vector<1x2x32xbf16> to vector<2x32xbf16>
    %732 = vector.shape_cast %729 : vector<2x32xbf16> to vector<1x2x32xbf16>
    tpu.vector_store %arg19[%c3_226, %c0_227, %c0_228], %732 {strides = array<i32>} : memref<8x2x32xbf16, #tpu.memory_space<vmem>>, vector<1x2x32xbf16>,
    %733 = tpu.concatenate %708, %724 in 1 : vector<2x32xf32>, vector<2x32xf32> -> vector<2x64xf32>
    %734 = arith.truncf %733 : vector<2x64xf32> to vector<2x64xbf16>
    %cst_229 = arith.constant dense<0.000000e+00> : vector<2x256xf32>
    %735 = tpu.matmul %734, %463, %cst_229 {dimension_numbers = #tpu.dot_dimension_numbers<[1], [0], [0], [1], [0, 0, 1, 1], [], []>} : vector<2x64xbf16>, vector<64x256xbf16>, vector<2x256xf32> -> vector<2x256xf32>
    %c5_230 = arith.constant 5 : index
    %c0_231 = arith.constant 0 : index
    %c0_232 = arith.constant 0 : index
    %736 = vector.load %arg17[%c5_230, %c0_231, %c0_232] : memref<8x2x256xf32, #tpu.memory_space<vmem>>, vector<1x2x256xf32>
    %737 = vector.shape_cast %736 : vector<1x2x256xf32> to vector<2x256xf32>
    %738 = vector.extract_strided_slice %737 {offsets = [0, 0], sizes = [2, 128], strides = [1, 1]} : vector<2x256xf32> to vector<2x128xf32>
    %739 = vector.extract_strided_slice %735 {offsets = [0, 0], sizes = [2, 128], strides = [1, 1]} : vector<2x256xf32> to vector<2x128xf32>
    %740 = arith.addf %738, %739 : vector<2x128xf32>
    %c2_233 = arith.constant 2 : index
    %c0_234 = arith.constant 0 : index
    %c0_235 = arith.constant 0 : index
    %741 = vector.load %arg17[%c2_233, %c0_234, %c0_235] : memref<8x2x256xf32, #tpu.memory_space<vmem>>, vector<1x2x256xf32>
    %742 = vector.shape_cast %741 : vector<1x2x256xf32> to vector<2x256xf32>
    %743 = vector.extract_strided_slice %742 {offsets = [0, 128], sizes = [2, 128], strides = [1, 1]} : vector<2x256xf32> to vector<2x128xf32>
    %744 = vector.extract_strided_slice %735 {offsets = [0, 128], sizes = [2, 128], strides = [1, 1]} : vector<2x256xf32> to vector<2x128xf32>
    %745 = arith.addf %743, %744 : vector<2x128xf32>
    %746 = vector.extract_strided_slice %740 {offsets = [0, 0], sizes = [2, 96], strides = [1, 1]} : vector<2x128xf32> to vector<2x96xf32>
    %747 = arith.negf %746 : vector<2x96xf32>
    %748 = math.exp %747 : vector<2x96xf32>
    %cst_236 = arith.constant 1.000000e+00 : f32
    %749 = vector.broadcast %cst_236 : f32 to vector<2x96xf32>
    %750 = arith.addf %749, %748 : vector<2x96xf32>
    %751 = arith.divf %749, %750 : vector<2x96xf32>
    %752 = vector.extract_strided_slice %740 {offsets = [0, 96], sizes = [2, 32], strides = [1, 1]} : vector<2x128xf32> to vector<2x32xf32>
    %753 = math.tanh %752 : vector<2x32xf32>
    %754 = vector.extract_strided_slice %751 {offsets = [0, 32], sizes = [2, 32], strides = [1, 1]} : vector<2x96xf32> to vector<2x32xf32>
    %755 = arith.mulf %754, %705 : vector<2x32xf32>
    %756 = vector.extract_strided_slice %751 {offsets = [0, 0], sizes = [2, 32], strides = [1, 1]} : vector<2x96xf32> to vector<2x32xf32>
    %757 = arith.mulf %756, %753 : vector<2x32xf32>
    %758 = arith.addf %755, %757 : vector<2x32xf32>
    %759 = vector.extract_strided_slice %751 {offsets = [0, 64], sizes = [2, 32], strides = [1, 1]} : vector<2x96xf32> to vector<2x32xf32>
    %760 = math.tanh %758 : vector<2x32xf32>
    %761 = arith.mulf %759, %760 : vector<2x32xf32>
    %762 = vector.extract_strided_slice %745 {offsets = [0, 0], sizes = [2, 96], strides = [1, 1]} : vector<2x128xf32> to vector<2x96xf32>
    %763 = arith.negf %762 : vector<2x96xf32>
    %764 = math.exp %763 : vector<2x96xf32>
    %cst_237 = arith.constant 1.000000e+00 : f32
    %765 = vector.broadcast %cst_237 : f32 to vector<2x96xf32>
    %766 = arith.addf %765, %764 : vector<2x96xf32>
    %767 = arith.divf %765, %766 : vector<2x96xf32>
    %768 = vector.extract_strided_slice %745 {offsets = [0, 96], sizes = [2, 32], strides = [1, 1]} : vector<2x128xf32> to vector<2x32xf32>
    %769 = math.tanh %768 : vector<2x32xf32>
    %770 = vector.extract_strided_slice %767 {offsets = [0, 32], sizes = [2, 32], strides = [1, 1]} : vector<2x96xf32> to vector<2x32xf32>
    %771 = arith.mulf %770, %721 : vector<2x32xf32>
    %772 = vector.extract_strided_slice %767 {offsets = [0, 0], sizes = [2, 32], strides = [1, 1]} : vector<2x96xf32> to vector<2x32xf32>
    %773 = arith.mulf %772, %769 : vector<2x32xf32>
    %774 = arith.addf %771, %773 : vector<2x32xf32>
    %775 = vector.extract_strided_slice %767 {offsets = [0, 64], sizes = [2, 32], strides = [1, 1]} : vector<2x96xf32> to vector<2x32xf32>
    %776 = math.tanh %774 : vector<2x32xf32>
    %777 = arith.mulf %775, %776 : vector<2x32xf32>
    %778 = arith.truncf %761 : vector<2x32xf32> to vector<2x32xbf16>
    %c5_238 = arith.constant 5 : index
    %c0_239 = arith.constant 0 : index
    %c0_240 = arith.constant 0 : index
    %779 = vector.load %arg18[%c5_238, %c0_239, %c0_240] : memref<8x2x32xbf16, #tpu.memory_space<vmem>>, vector<1x2x32xbf16>
    %780 = vector.shape_cast %779 : vector<1x2x32xbf16> to vector<2x32xbf16>
    %781 = vector.shape_cast %778 : vector<2x32xbf16> to vector<1x2x32xbf16>
    tpu.vector_store %arg18[%c5_238, %c0_239, %c0_240], %781 {strides = array<i32>} : memref<8x2x32xbf16, #tpu.memory_space<vmem>>, vector<1x2x32xbf16>,
    %782 = arith.truncf %777 : vector<2x32xf32> to vector<2x32xbf16>
    %c2_241 = arith.constant 2 : index
    %c0_242 = arith.constant 0 : index
    %c0_243 = arith.constant 0 : index
    %783 = vector.load %arg19[%c2_241, %c0_242, %c0_243] : memref<8x2x32xbf16, #tpu.memory_space<vmem>>, vector<1x2x32xbf16>
    %784 = vector.shape_cast %783 : vector<1x2x32xbf16> to vector<2x32xbf16>
    %785 = vector.shape_cast %782 : vector<2x32xbf16> to vector<1x2x32xbf16>
    tpu.vector_store %arg19[%c2_241, %c0_242, %c0_243], %785 {strides = array<i32>} : memref<8x2x32xbf16, #tpu.memory_space<vmem>>, vector<1x2x32xbf16>,
    %786 = tpu.concatenate %761, %777 in 1 : vector<2x32xf32>, vector<2x32xf32> -> vector<2x64xf32>
    %787 = arith.truncf %786 : vector<2x64xf32> to vector<2x64xbf16>
    %cst_244 = arith.constant dense<0.000000e+00> : vector<2x256xf32>
    %788 = tpu.matmul %787, %463, %cst_244 {dimension_numbers = #tpu.dot_dimension_numbers<[1], [0], [0], [1], [0, 0, 1, 1], [], []>} : vector<2x64xbf16>, vector<64x256xbf16>, vector<2x256xf32> -> vector<2x256xf32>
    %c6_245 = arith.constant 6 : index
    %c0_246 = arith.constant 0 : index
    %c0_247 = arith.constant 0 : index
    %789 = vector.load %arg17[%c6_245, %c0_246, %c0_247] : memref<8x2x256xf32, #tpu.memory_space<vmem>>, vector<1x2x256xf32>
    %790 = vector.shape_cast %789 : vector<1x2x256xf32> to vector<2x256xf32>
    %791 = vector.extract_strided_slice %790 {offsets = [0, 0], sizes = [2, 128], strides = [1, 1]} : vector<2x256xf32> to vector<2x128xf32>
    %792 = vector.extract_strided_slice %788 {offsets = [0, 0], sizes = [2, 128], strides = [1, 1]} : vector<2x256xf32> to vector<2x128xf32>
    %793 = arith.addf %791, %792 : vector<2x128xf32>
    %c1_248 = arith.constant 1 : index
    %c0_249 = arith.constant 0 : index
    %c0_250 = arith.constant 0 : index
    %794 = vector.load %arg17[%c1_248, %c0_249, %c0_250] : memref<8x2x256xf32, #tpu.memory_space<vmem>>, vector<1x2x256xf32>
    %795 = vector.shape_cast %794 : vector<1x2x256xf32> to vector<2x256xf32>
    %796 = vector.extract_strided_slice %795 {offsets = [0, 128], sizes = [2, 128], strides = [1, 1]} : vector<2x256xf32> to vector<2x128xf32>
    %797 = vector.extract_strided_slice %788 {offsets = [0, 128], sizes = [2, 128], strides = [1, 1]} : vector<2x256xf32> to vector<2x128xf32>
    %798 = arith.addf %796, %797 : vector<2x128xf32>
    %799 = vector.extract_strided_slice %793 {offsets = [0, 0], sizes = [2, 96], strides = [1, 1]} : vector<2x128xf32> to vector<2x96xf32>
    %800 = arith.negf %799 : vector<2x96xf32>
    %801 = math.exp %800 : vector<2x96xf32>
    %cst_251 = arith.constant 1.000000e+00 : f32
    %802 = vector.broadcast %cst_251 : f32 to vector<2x96xf32>
    %803 = arith.addf %802, %801 : vector<2x96xf32>
    %804 = arith.divf %802, %803 : vector<2x96xf32>
    %805 = vector.extract_strided_slice %793 {offsets = [0, 96], sizes = [2, 32], strides = [1, 1]} : vector<2x128xf32> to vector<2x32xf32>
    %806 = math.tanh %805 : vector<2x32xf32>
    %807 = vector.extract_strided_slice %804 {offsets = [0, 32], sizes = [2, 32], strides = [1, 1]} : vector<2x96xf32> to vector<2x32xf32>
    %808 = arith.mulf %807, %758 : vector<2x32xf32>
    %809 = vector.extract_strided_slice %804 {offsets = [0, 0], sizes = [2, 32], strides = [1, 1]} : vector<2x96xf32> to vector<2x32xf32>
    %810 = arith.mulf %809, %806 : vector<2x32xf32>
    %811 = arith.addf %808, %810 : vector<2x32xf32>
    %812 = vector.extract_strided_slice %804 {offsets = [0, 64], sizes = [2, 32], strides = [1, 1]} : vector<2x96xf32> to vector<2x32xf32>
    %813 = math.tanh %811 : vector<2x32xf32>
    %814 = arith.mulf %812, %813 : vector<2x32xf32>
    %815 = vector.extract_strided_slice %798 {offsets = [0, 0], sizes = [2, 96], strides = [1, 1]} : vector<2x128xf32> to vector<2x96xf32>
    %816 = arith.negf %815 : vector<2x96xf32>
    %817 = math.exp %816 : vector<2x96xf32>
    %cst_252 = arith.constant 1.000000e+00 : f32
    %818 = vector.broadcast %cst_252 : f32 to vector<2x96xf32>
    %819 = arith.addf %818, %817 : vector<2x96xf32>
    %820 = arith.divf %818, %819 : vector<2x96xf32>
    %821 = vector.extract_strided_slice %798 {offsets = [0, 96], sizes = [2, 32], strides = [1, 1]} : vector<2x128xf32> to vector<2x32xf32>
    %822 = math.tanh %821 : vector<2x32xf32>
    %823 = vector.extract_strided_slice %820 {offsets = [0, 32], sizes = [2, 32], strides = [1, 1]} : vector<2x96xf32> to vector<2x32xf32>
    %824 = arith.mulf %823, %774 : vector<2x32xf32>
    %825 = vector.extract_strided_slice %820 {offsets = [0, 0], sizes = [2, 32], strides = [1, 1]} : vector<2x96xf32> to vector<2x32xf32>
    %826 = arith.mulf %825, %822 : vector<2x32xf32>
    %827 = arith.addf %824, %826 : vector<2x32xf32>
    %828 = vector.extract_strided_slice %820 {offsets = [0, 64], sizes = [2, 32], strides = [1, 1]} : vector<2x96xf32> to vector<2x32xf32>
    %829 = math.tanh %827 : vector<2x32xf32>
    %830 = arith.mulf %828, %829 : vector<2x32xf32>
    %831 = arith.truncf %814 : vector<2x32xf32> to vector<2x32xbf16>
    %c6_253 = arith.constant 6 : index
    %c0_254 = arith.constant 0 : index
    %c0_255 = arith.constant 0 : index
    %832 = vector.load %arg18[%c6_253, %c0_254, %c0_255] : memref<8x2x32xbf16, #tpu.memory_space<vmem>>, vector<1x2x32xbf16>
    %833 = vector.shape_cast %832 : vector<1x2x32xbf16> to vector<2x32xbf16>
    %834 = vector.shape_cast %831 : vector<2x32xbf16> to vector<1x2x32xbf16>
    tpu.vector_store %arg18[%c6_253, %c0_254, %c0_255], %834 {strides = array<i32>} : memref<8x2x32xbf16, #tpu.memory_space<vmem>>, vector<1x2x32xbf16>,
    %835 = arith.truncf %830 : vector<2x32xf32> to vector<2x32xbf16>
    %c1_256 = arith.constant 1 : index
    %c0_257 = arith.constant 0 : index
    %c0_258 = arith.constant 0 : index
    %836 = vector.load %arg19[%c1_256, %c0_257, %c0_258] : memref<8x2x32xbf16, #tpu.memory_space<vmem>>, vector<1x2x32xbf16>
    %837 = vector.shape_cast %836 : vector<1x2x32xbf16> to vector<2x32xbf16>
    %838 = vector.shape_cast %835 : vector<2x32xbf16> to vector<1x2x32xbf16>
    tpu.vector_store %arg19[%c1_256, %c0_257, %c0_258], %838 {strides = array<i32>} : memref<8x2x32xbf16, #tpu.memory_space<vmem>>, vector<1x2x32xbf16>,
    %839 = tpu.concatenate %814, %830 in 1 : vector<2x32xf32>, vector<2x32xf32> -> vector<2x64xf32>
    %840 = arith.truncf %839 : vector<2x64xf32> to vector<2x64xbf16>
    %cst_259 = arith.constant dense<0.000000e+00> : vector<2x256xf32>
    %841 = tpu.matmul %840, %463, %cst_259 {dimension_numbers = #tpu.dot_dimension_numbers<[1], [0], [0], [1], [0, 0, 1, 1], [], []>} : vector<2x64xbf16>, vector<64x256xbf16>, vector<2x256xf32> -> vector<2x256xf32>
    %c7_260 = arith.constant 7 : index
    %c0_261 = arith.constant 0 : index
    %c0_262 = arith.constant 0 : index
    %842 = vector.load %arg17[%c7_260, %c0_261, %c0_262] : memref<8x2x256xf32, #tpu.memory_space<vmem>>, vector<1x2x256xf32>
    %843 = vector.shape_cast %842 : vector<1x2x256xf32> to vector<2x256xf32>
    %844 = vector.extract_strided_slice %843 {offsets = [0, 0], sizes = [2, 128], strides = [1, 1]} : vector<2x256xf32> to vector<2x128xf32>
    %845 = vector.extract_strided_slice %841 {offsets = [0, 0], sizes = [2, 128], strides = [1, 1]} : vector<2x256xf32> to vector<2x128xf32>
    %846 = arith.addf %844, %845 : vector<2x128xf32>
    %c0_263 = arith.constant 0 : index
    %c0_264 = arith.constant 0 : index
    %c0_265 = arith.constant 0 : index
    %847 = vector.load %arg17[%c0_263, %c0_264, %c0_265] : memref<8x2x256xf32, #tpu.memory_space<vmem>>, vector<1x2x256xf32>
    %848 = vector.shape_cast %847 : vector<1x2x256xf32> to vector<2x256xf32>
    %849 = vector.extract_strided_slice %848 {offsets = [0, 128], sizes = [2, 128], strides = [1, 1]} : vector<2x256xf32> to vector<2x128xf32>
    %850 = vector.extract_strided_slice %841 {offsets = [0, 128], sizes = [2, 128], strides = [1, 1]} : vector<2x256xf32> to vector<2x128xf32>
    %851 = arith.addf %849, %850 : vector<2x128xf32>
    %852 = vector.extract_strided_slice %846 {offsets = [0, 0], sizes = [2, 96], strides = [1, 1]} : vector<2x128xf32> to vector<2x96xf32>
    %853 = arith.negf %852 : vector<2x96xf32>
    %854 = math.exp %853 : vector<2x96xf32>
    %cst_266 = arith.constant 1.000000e+00 : f32
    %855 = vector.broadcast %cst_266 : f32 to vector<2x96xf32>
    %856 = arith.addf %855, %854 : vector<2x96xf32>
    %857 = arith.divf %855, %856 : vector<2x96xf32>
    %858 = vector.extract_strided_slice %846 {offsets = [0, 96], sizes = [2, 32], strides = [1, 1]} : vector<2x128xf32> to vector<2x32xf32>
    %859 = math.tanh %858 : vector<2x32xf32>
    %860 = vector.extract_strided_slice %857 {offsets = [0, 32], sizes = [2, 32], strides = [1, 1]} : vector<2x96xf32> to vector<2x32xf32>
    %861 = arith.mulf %860, %811 : vector<2x32xf32>
    %862 = vector.extract_strided_slice %857 {offsets = [0, 0], sizes = [2, 32], strides = [1, 1]} : vector<2x96xf32> to vector<2x32xf32>
    %863 = arith.mulf %862, %859 : vector<2x32xf32>
    %864 = arith.addf %861, %863 : vector<2x32xf32>
    %865 = vector.extract_strided_slice %857 {offsets = [0, 64], sizes = [2, 32], strides = [1, 1]} : vector<2x96xf32> to vector<2x32xf32>
    %866 = math.tanh %864 : vector<2x32xf32>
    %867 = arith.mulf %865, %866 : vector<2x32xf32>
    %868 = vector.extract_strided_slice %851 {offsets = [0, 0], sizes = [2, 96], strides = [1, 1]} : vector<2x128xf32> to vector<2x96xf32>
    %869 = arith.negf %868 : vector<2x96xf32>
    %870 = math.exp %869 : vector<2x96xf32>
    %cst_267 = arith.constant 1.000000e+00 : f32
    %871 = vector.broadcast %cst_267 : f32 to vector<2x96xf32>
    %872 = arith.addf %871, %870 : vector<2x96xf32>
    %873 = arith.divf %871, %872 : vector<2x96xf32>
    %874 = vector.extract_strided_slice %851 {offsets = [0, 96], sizes = [2, 32], strides = [1, 1]} : vector<2x128xf32> to vector<2x32xf32>
    %875 = math.tanh %874 : vector<2x32xf32>
    %876 = vector.extract_strided_slice %873 {offsets = [0, 32], sizes = [2, 32], strides = [1, 1]} : vector<2x96xf32> to vector<2x32xf32>
    %877 = arith.mulf %876, %827 : vector<2x32xf32>
    %878 = vector.extract_strided_slice %873 {offsets = [0, 0], sizes = [2, 32], strides = [1, 1]} : vector<2x96xf32> to vector<2x32xf32>
    %879 = arith.mulf %878, %875 : vector<2x32xf32>
    %880 = arith.addf %877, %879 : vector<2x32xf32>
    %881 = vector.extract_strided_slice %873 {offsets = [0, 64], sizes = [2, 32], strides = [1, 1]} : vector<2x96xf32> to vector<2x32xf32>
    %882 = math.tanh %880 : vector<2x32xf32>
    %883 = arith.mulf %881, %882 : vector<2x32xf32>
    %884 = arith.truncf %867 : vector<2x32xf32> to vector<2x32xbf16>
    %c7_268 = arith.constant 7 : index
    %c0_269 = arith.constant 0 : index
    %c0_270 = arith.constant 0 : index
    %885 = vector.load %arg18[%c7_268, %c0_269, %c0_270] : memref<8x2x32xbf16, #tpu.memory_space<vmem>>, vector<1x2x32xbf16>
    %886 = vector.shape_cast %885 : vector<1x2x32xbf16> to vector<2x32xbf16>
    %887 = vector.shape_cast %884 : vector<2x32xbf16> to vector<1x2x32xbf16>
    tpu.vector_store %arg18[%c7_268, %c0_269, %c0_270], %887 {strides = array<i32>} : memref<8x2x32xbf16, #tpu.memory_space<vmem>>, vector<1x2x32xbf16>,
    %888 = arith.truncf %883 : vector<2x32xf32> to vector<2x32xbf16>
    %c0_271 = arith.constant 0 : index
    %c0_272 = arith.constant 0 : index
    %c0_273 = arith.constant 0 : index
    %889 = vector.load %arg19[%c0_271, %c0_272, %c0_273] : memref<8x2x32xbf16, #tpu.memory_space<vmem>>, vector<1x2x32xbf16>
    %890 = vector.shape_cast %889 : vector<1x2x32xbf16> to vector<2x32xbf16>
    %891 = vector.shape_cast %888 : vector<2x32xbf16> to vector<1x2x32xbf16>
    tpu.vector_store %arg19[%c0_271, %c0_272, %c0_273], %891 {strides = array<i32>} : memref<8x2x32xbf16, #tpu.memory_space<vmem>>, vector<1x2x32xbf16>,
    %892 = tpu.concatenate %867, %883 in 1 : vector<2x32xf32>, vector<2x32xf32> -> vector<2x64xf32>
    %893 = tpu.concatenate %864, %880 in 1 : vector<2x32xf32>, vector<2x32xf32> -> vector<2x64xf32>
    %c0_274 = arith.constant 0 : index
    %c0_275 = arith.constant 0 : index
    %c0_276 = arith.constant 0 : index
    %894 = vector.load %arg18[%c0_274, %c0_275, %c0_276] : memref<8x2x32xbf16, #tpu.memory_space<vmem>>, vector<8x2x32xbf16>
    %895 = vector.shape_cast %894 : vector<8x2x32xbf16> to vector<16x32xbf16>
    %c0_277 = arith.constant 0 : index
    %c0_278 = arith.constant 0 : index
    %c0_279 = arith.constant 0 : index
    %896 = vector.load %arg19[%c0_277, %c0_278, %c0_279] : memref<8x2x32xbf16, #tpu.memory_space<vmem>>, vector<8x2x32xbf16>
    %897 = vector.shape_cast %896 : vector<8x2x32xbf16> to vector<16x32xbf16>
    %c0_280 = arith.constant 0 : index
    %c0_281 = arith.constant 0 : index
    %c0_282 = arith.constant 0 : index
    %898 = vector.load %arg8[%c0_280, %c0_281, %c0_282] : memref<2x32x256xbf16, #tpu.memory_space<vmem>>, vector<1x32x256xbf16>
    %899 = vector.shape_cast %898 : vector<1x32x256xbf16> to vector<32x256xbf16>
    %cst_283 = arith.constant dense<0.000000e+00> : vector<16x256xf32>
    %900 = tpu.matmul %895, %899, %cst_283 {dimension_numbers = #tpu.dot_dimension_numbers<[1], [0], [0], [1], [0, 0, 1, 1], [], []>} : vector<16x32xbf16>, vector<32x256xbf16>, vector<16x256xf32> -> vector<16x256xf32>
    %c1_284 = arith.constant 1 : index
    %c0_285 = arith.constant 0 : index
    %c0_286 = arith.constant 0 : index
    %901 = vector.load %arg8[%c1_284, %c0_285, %c0_286] : memref<2x32x256xbf16, #tpu.memory_space<vmem>>, vector<1x32x256xbf16>
    %902 = vector.shape_cast %901 : vector<1x32x256xbf16> to vector<32x256xbf16>
    %cst_287 = arith.constant dense<0.000000e+00> : vector<16x256xf32>
    %903 = tpu.matmul %897, %902, %cst_287 {dimension_numbers = #tpu.dot_dimension_numbers<[1], [0], [0], [1], [0, 0, 1, 1], [], []>} : vector<16x32xbf16>, vector<32x256xbf16>, vector<16x256xf32> -> vector<16x256xf32>
    %904 = arith.addf %900, %903 : vector<16x256xf32>
    %c0_288 = arith.constant 0 : index
    %c0_289 = arith.constant 0 : index
    %905 = vector.load %arg10[%c0_288, %c0_289] : memref<1x256xf32, #tpu.memory_space<vmem>>, vector<1x256xf32>
    %906 = vector.broadcast %905 : vector<1x256xf32> to vector<16x256xf32>
    %907 = arith.addf %904, %906 : vector<16x256xf32>
    %908 = vector.shape_cast %907 : vector<16x256xf32> to vector<8x2x256xf32>
    %c0_290 = arith.constant 0 : index
    %c0_291 = arith.constant 0 : index
    %c0_292 = arith.constant 0 : index
    %909 = vector.load %arg20[%c0_290, %c0_291, %c0_292] : memref<8x2x256xf32, #tpu.memory_space<vmem>>, vector<8x2x256xf32>
    tpu.vector_store %arg20[%c0_290, %c0_291, %c0_292], %908 {strides = array<i32>} : memref<8x2x256xf32, #tpu.memory_space<vmem>>, vector<8x2x256xf32>,
    %c0_293 = arith.constant 0 : index
    %c0_294 = arith.constant 0 : index
    %910 = vector.load %arg9[%c0_293, %c0_294] : memref<64x256xbf16, #tpu.memory_space<vmem>>, vector<64x256xbf16>
    %911 = vector.extract_strided_slice %892 {offsets = [0, 0], sizes = [2, 32], strides = [1, 1]} : vector<2x64xf32> to vector<2x32xf32>
    %912 = vector.extract_strided_slice %892 {offsets = [0, 32], sizes = [2, 32], strides = [1, 1]} : vector<2x64xf32> to vector<2x32xf32>
    %913 = vector.extract_strided_slice %893 {offsets = [0, 0], sizes = [2, 32], strides = [1, 1]} : vector<2x64xf32> to vector<2x32xf32>
    %914 = vector.extract_strided_slice %893 {offsets = [0, 32], sizes = [2, 32], strides = [1, 1]} : vector<2x64xf32> to vector<2x32xf32>
    %915 = tpu.concatenate %911, %912 in 1 : vector<2x32xf32>, vector<2x32xf32> -> vector<2x64xf32>
    %916 = arith.truncf %915 : vector<2x64xf32> to vector<2x64xbf16>
    %cst_295 = arith.constant dense<0.000000e+00> : vector<2x256xf32>
    %917 = tpu.matmul %916, %910, %cst_295 {dimension_numbers = #tpu.dot_dimension_numbers<[1], [0], [0], [1], [0, 0, 1, 1], [], []>} : vector<2x64xbf16>, vector<64x256xbf16>, vector<2x256xf32> -> vector<2x256xf32>
    %c0_296 = arith.constant 0 : index
    %c0_297 = arith.constant 0 : index
    %c0_298 = arith.constant 0 : index
    %918 = vector.load %arg20[%c0_296, %c0_297, %c0_298] : memref<8x2x256xf32, #tpu.memory_space<vmem>>, vector<1x2x256xf32>
    %919 = vector.shape_cast %918 : vector<1x2x256xf32> to vector<2x256xf32>
    %920 = vector.extract_strided_slice %919 {offsets = [0, 0], sizes = [2, 128], strides = [1, 1]} : vector<2x256xf32> to vector<2x128xf32>
    %921 = vector.extract_strided_slice %917 {offsets = [0, 0], sizes = [2, 128], strides = [1, 1]} : vector<2x256xf32> to vector<2x128xf32>
    %922 = arith.addf %920, %921 : vector<2x128xf32>
    %c7_299 = arith.constant 7 : index
    %c0_300 = arith.constant 0 : index
    %c0_301 = arith.constant 0 : index
    %923 = vector.load %arg20[%c7_299, %c0_300, %c0_301] : memref<8x2x256xf32, #tpu.memory_space<vmem>>, vector<1x2x256xf32>
    %924 = vector.shape_cast %923 : vector<1x2x256xf32> to vector<2x256xf32>
    %925 = vector.extract_strided_slice %924 {offsets = [0, 128], sizes = [2, 128], strides = [1, 1]} : vector<2x256xf32> to vector<2x128xf32>
    %926 = vector.extract_strided_slice %917 {offsets = [0, 128], sizes = [2, 128], strides = [1, 1]} : vector<2x256xf32> to vector<2x128xf32>
    %927 = arith.addf %925, %926 : vector<2x128xf32>
    %928 = vector.extract_strided_slice %922 {offsets = [0, 0], sizes = [2, 96], strides = [1, 1]} : vector<2x128xf32> to vector<2x96xf32>
    %929 = arith.negf %928 : vector<2x96xf32>
    %930 = math.exp %929 : vector<2x96xf32>
    %cst_302 = arith.constant 1.000000e+00 : f32
    %931 = vector.broadcast %cst_302 : f32 to vector<2x96xf32>
    %932 = arith.addf %931, %930 : vector<2x96xf32>
    %933 = arith.divf %931, %932 : vector<2x96xf32>
    %934 = vector.extract_strided_slice %922 {offsets = [0, 96], sizes = [2, 32], strides = [1, 1]} : vector<2x128xf32> to vector<2x32xf32>
    %935 = math.tanh %934 : vector<2x32xf32>
    %936 = vector.extract_strided_slice %933 {offsets = [0, 32], sizes = [2, 32], strides = [1, 1]} : vector<2x96xf32> to vector<2x32xf32>
    %937 = arith.mulf %936, %913 : vector<2x32xf32>
    %938 = vector.extract_strided_slice %933 {offsets = [0, 0], sizes = [2, 32], strides = [1, 1]} : vector<2x96xf32> to vector<2x32xf32>
    %939 = arith.mulf %938, %935 : vector<2x32xf32>
    %940 = arith.addf %937, %939 : vector<2x32xf32>
    %941 = vector.extract_strided_slice %933 {offsets = [0, 64], sizes = [2, 32], strides = [1, 1]} : vector<2x96xf32> to vector<2x32xf32>
    %942 = math.tanh %940 : vector<2x32xf32>
    %943 = arith.mulf %941, %942 : vector<2x32xf32>
    %944 = vector.extract_strided_slice %927 {offsets = [0, 0], sizes = [2, 96], strides = [1, 1]} : vector<2x128xf32> to vector<2x96xf32>
    %945 = arith.negf %944 : vector<2x96xf32>
    %946 = math.exp %945 : vector<2x96xf32>
    %cst_303 = arith.constant 1.000000e+00 : f32
    %947 = vector.broadcast %cst_303 : f32 to vector<2x96xf32>
    %948 = arith.addf %947, %946 : vector<2x96xf32>
    %949 = arith.divf %947, %948 : vector<2x96xf32>
    %950 = vector.extract_strided_slice %927 {offsets = [0, 96], sizes = [2, 32], strides = [1, 1]} : vector<2x128xf32> to vector<2x32xf32>
    %951 = math.tanh %950 : vector<2x32xf32>
    %952 = vector.extract_strided_slice %949 {offsets = [0, 32], sizes = [2, 32], strides = [1, 1]} : vector<2x96xf32> to vector<2x32xf32>
    %953 = arith.mulf %952, %914 : vector<2x32xf32>
    %954 = vector.extract_strided_slice %949 {offsets = [0, 0], sizes = [2, 32], strides = [1, 1]} : vector<2x96xf32> to vector<2x32xf32>
    %955 = arith.mulf %954, %951 : vector<2x32xf32>
    %956 = arith.addf %953, %955 : vector<2x32xf32>
    %957 = vector.extract_strided_slice %949 {offsets = [0, 64], sizes = [2, 32], strides = [1, 1]} : vector<2x96xf32> to vector<2x32xf32>
    %958 = math.tanh %956 : vector<2x32xf32>
    %959 = arith.mulf %957, %958 : vector<2x32xf32>
    %960 = arith.truncf %943 : vector<2x32xf32> to vector<2x32xbf16>
    %c0_304 = arith.constant 0 : index
    %c0_305 = arith.constant 0 : index
    %c0_306 = arith.constant 0 : index
    %961 = vector.load %arg21[%c0_304, %c0_305, %c0_306] : memref<8x2x32xbf16, #tpu.memory_space<vmem>>, vector<1x2x32xbf16>
    %962 = vector.shape_cast %961 : vector<1x2x32xbf16> to vector<2x32xbf16>
    %963 = vector.shape_cast %960 : vector<2x32xbf16> to vector<1x2x32xbf16>
    tpu.vector_store %arg21[%c0_304, %c0_305, %c0_306], %963 {strides = array<i32>} : memref<8x2x32xbf16, #tpu.memory_space<vmem>>, vector<1x2x32xbf16>,
    %964 = arith.truncf %959 : vector<2x32xf32> to vector<2x32xbf16>
    %c7_307 = arith.constant 7 : index
    %c0_308 = arith.constant 0 : index
    %c0_309 = arith.constant 0 : index
    %965 = vector.load %arg22[%c7_307, %c0_308, %c0_309] : memref<8x2x32xbf16, #tpu.memory_space<vmem>>, vector<1x2x32xbf16>
    %966 = vector.shape_cast %965 : vector<1x2x32xbf16> to vector<2x32xbf16>
    %967 = vector.shape_cast %964 : vector<2x32xbf16> to vector<1x2x32xbf16>
    tpu.vector_store %arg22[%c7_307, %c0_308, %c0_309], %967 {strides = array<i32>} : memref<8x2x32xbf16, #tpu.memory_space<vmem>>, vector<1x2x32xbf16>,
    %968 = tpu.concatenate %943, %959 in 1 : vector<2x32xf32>, vector<2x32xf32> -> vector<2x64xf32>
    %969 = arith.truncf %968 : vector<2x64xf32> to vector<2x64xbf16>
    %cst_310 = arith.constant dense<0.000000e+00> : vector<2x256xf32>
    %970 = tpu.matmul %969, %910, %cst_310 {dimension_numbers = #tpu.dot_dimension_numbers<[1], [0], [0], [1], [0, 0, 1, 1], [], []>} : vector<2x64xbf16>, vector<64x256xbf16>, vector<2x256xf32> -> vector<2x256xf32>
    %c1_311 = arith.constant 1 : index
    %c0_312 = arith.constant 0 : index
    %c0_313 = arith.constant 0 : index
    %971 = vector.load %arg20[%c1_311, %c0_312, %c0_313] : memref<8x2x256xf32, #tpu.memory_space<vmem>>, vector<1x2x256xf32>
    %972 = vector.shape_cast %971 : vector<1x2x256xf32> to vector<2x256xf32>
    %973 = vector.extract_strided_slice %972 {offsets = [0, 0], sizes = [2, 128], strides = [1, 1]} : vector<2x256xf32> to vector<2x128xf32>
    %974 = vector.extract_strided_slice %970 {offsets = [0, 0], sizes = [2, 128], strides = [1, 1]} : vector<2x256xf32> to vector<2x128xf32>
    %975 = arith.addf %973, %974 : vector<2x128xf32>
    %c6_314 = arith.constant 6 : index
    %c0_315 = arith.constant 0 : index
    %c0_316 = arith.constant 0 : index
    %976 = vector.load %arg20[%c6_314, %c0_315, %c0_316] : memref<8x2x256xf32, #tpu.memory_space<vmem>>, vector<1x2x256xf32>
    %977 = vector.shape_cast %976 : vector<1x2x256xf32> to vector<2x256xf32>
    %978 = vector.extract_strided_slice %977 {offsets = [0, 128], sizes = [2, 128], strides = [1, 1]} : vector<2x256xf32> to vector<2x128xf32>
    %979 = vector.extract_strided_slice %970 {offsets = [0, 128], sizes = [2, 128], strides = [1, 1]} : vector<2x256xf32> to vector<2x128xf32>
    %980 = arith.addf %978, %979 : vector<2x128xf32>
    %981 = vector.extract_strided_slice %975 {offsets = [0, 0], sizes = [2, 96], strides = [1, 1]} : vector<2x128xf32> to vector<2x96xf32>
    %982 = arith.negf %981 : vector<2x96xf32>
    %983 = math.exp %982 : vector<2x96xf32>
    %cst_317 = arith.constant 1.000000e+00 : f32
    %984 = vector.broadcast %cst_317 : f32 to vector<2x96xf32>
    %985 = arith.addf %984, %983 : vector<2x96xf32>
    %986 = arith.divf %984, %985 : vector<2x96xf32>
    %987 = vector.extract_strided_slice %975 {offsets = [0, 96], sizes = [2, 32], strides = [1, 1]} : vector<2x128xf32> to vector<2x32xf32>
    %988 = math.tanh %987 : vector<2x32xf32>
    %989 = vector.extract_strided_slice %986 {offsets = [0, 32], sizes = [2, 32], strides = [1, 1]} : vector<2x96xf32> to vector<2x32xf32>
    %990 = arith.mulf %989, %940 : vector<2x32xf32>
    %991 = vector.extract_strided_slice %986 {offsets = [0, 0], sizes = [2, 32], strides = [1, 1]} : vector<2x96xf32> to vector<2x32xf32>
    %992 = arith.mulf %991, %988 : vector<2x32xf32>
    %993 = arith.addf %990, %992 : vector<2x32xf32>
    %994 = vector.extract_strided_slice %986 {offsets = [0, 64], sizes = [2, 32], strides = [1, 1]} : vector<2x96xf32> to vector<2x32xf32>
    %995 = math.tanh %993 : vector<2x32xf32>
    %996 = arith.mulf %994, %995 : vector<2x32xf32>
    %997 = vector.extract_strided_slice %980 {offsets = [0, 0], sizes = [2, 96], strides = [1, 1]} : vector<2x128xf32> to vector<2x96xf32>
    %998 = arith.negf %997 : vector<2x96xf32>
    %999 = math.exp %998 : vector<2x96xf32>
    %cst_318 = arith.constant 1.000000e+00 : f32
    %1000 = vector.broadcast %cst_318 : f32 to vector<2x96xf32>
    %1001 = arith.addf %1000, %999 : vector<2x96xf32>
    %1002 = arith.divf %1000, %1001 : vector<2x96xf32>
    %1003 = vector.extract_strided_slice %980 {offsets = [0, 96], sizes = [2, 32], strides = [1, 1]} : vector<2x128xf32> to vector<2x32xf32>
    %1004 = math.tanh %1003 : vector<2x32xf32>
    %1005 = vector.extract_strided_slice %1002 {offsets = [0, 32], sizes = [2, 32], strides = [1, 1]} : vector<2x96xf32> to vector<2x32xf32>
    %1006 = arith.mulf %1005, %956 : vector<2x32xf32>
    %1007 = vector.extract_strided_slice %1002 {offsets = [0, 0], sizes = [2, 32], strides = [1, 1]} : vector<2x96xf32> to vector<2x32xf32>
    %1008 = arith.mulf %1007, %1004 : vector<2x32xf32>
    %1009 = arith.addf %1006, %1008 : vector<2x32xf32>
    %1010 = vector.extract_strided_slice %1002 {offsets = [0, 64], sizes = [2, 32], strides = [1, 1]} : vector<2x96xf32> to vector<2x32xf32>
    %1011 = math.tanh %1009 : vector<2x32xf32>
    %1012 = arith.mulf %1010, %1011 : vector<2x32xf32>
    %1013 = arith.truncf %996 : vector<2x32xf32> to vector<2x32xbf16>
    %c1_319 = arith.constant 1 : index
    %c0_320 = arith.constant 0 : index
    %c0_321 = arith.constant 0 : index
    %1014 = vector.load %arg21[%c1_319, %c0_320, %c0_321] : memref<8x2x32xbf16, #tpu.memory_space<vmem>>, vector<1x2x32xbf16>
    %1015 = vector.shape_cast %1014 : vector<1x2x32xbf16> to vector<2x32xbf16>
    %1016 = vector.shape_cast %1013 : vector<2x32xbf16> to vector<1x2x32xbf16>
    tpu.vector_store %arg21[%c1_319, %c0_320, %c0_321], %1016 {strides = array<i32>} : memref<8x2x32xbf16, #tpu.memory_space<vmem>>, vector<1x2x32xbf16>,
    %1017 = arith.truncf %1012 : vector<2x32xf32> to vector<2x32xbf16>
    %c6_322 = arith.constant 6 : index
    %c0_323 = arith.constant 0 : index
    %c0_324 = arith.constant 0 : index
    %1018 = vector.load %arg22[%c6_322, %c0_323, %c0_324] : memref<8x2x32xbf16, #tpu.memory_space<vmem>>, vector<1x2x32xbf16>
    %1019 = vector.shape_cast %1018 : vector<1x2x32xbf16> to vector<2x32xbf16>
    %1020 = vector.shape_cast %1017 : vector<2x32xbf16> to vector<1x2x32xbf16>
    tpu.vector_store %arg22[%c6_322, %c0_323, %c0_324], %1020 {strides = array<i32>} : memref<8x2x32xbf16, #tpu.memory_space<vmem>>, vector<1x2x32xbf16>,
    %1021 = tpu.concatenate %996, %1012 in 1 : vector<2x32xf32>, vector<2x32xf32> -> vector<2x64xf32>
    %1022 = arith.truncf %1021 : vector<2x64xf32> to vector<2x64xbf16>
    %cst_325 = arith.constant dense<0.000000e+00> : vector<2x256xf32>
    %1023 = tpu.matmul %1022, %910, %cst_325 {dimension_numbers = #tpu.dot_dimension_numbers<[1], [0], [0], [1], [0, 0, 1, 1], [], []>} : vector<2x64xbf16>, vector<64x256xbf16>, vector<2x256xf32> -> vector<2x256xf32>
    %c2_326 = arith.constant 2 : index
    %c0_327 = arith.constant 0 : index
    %c0_328 = arith.constant 0 : index
    %1024 = vector.load %arg20[%c2_326, %c0_327, %c0_328] : memref<8x2x256xf32, #tpu.memory_space<vmem>>, vector<1x2x256xf32>
    %1025 = vector.shape_cast %1024 : vector<1x2x256xf32> to vector<2x256xf32>
    %1026 = vector.extract_strided_slice %1025 {offsets = [0, 0], sizes = [2, 128], strides = [1, 1]} : vector<2x256xf32> to vector<2x128xf32>
    %1027 = vector.extract_strided_slice %1023 {offsets = [0, 0], sizes = [2, 128], strides = [1, 1]} : vector<2x256xf32> to vector<2x128xf32>
    %1028 = arith.addf %1026, %1027 : vector<2x128xf32>
    %c5_329 = arith.constant 5 : index
    %c0_330 = arith.constant 0 : index
    %c0_331 = arith.constant 0 : index
    %1029 = vector.load %arg20[%c5_329, %c0_330, %c0_331] : memref<8x2x256xf32, #tpu.memory_space<vmem>>, vector<1x2x256xf32>
    %1030 = vector.shape_cast %1029 : vector<1x2x256xf32> to vector<2x256xf32>
    %1031 = vector.extract_strided_slice %1030 {offsets = [0, 128], sizes = [2, 128], strides = [1, 1]} : vector<2x256xf32> to vector<2x128xf32>
    %1032 = vector.extract_strided_slice %1023 {offsets = [0, 128], sizes = [2, 128], strides = [1, 1]} : vector<2x256xf32> to vector<2x128xf32>
    %1033 = arith.addf %1031, %1032 : vector<2x128xf32>
    %1034 = vector.extract_strided_slice %1028 {offsets = [0, 0], sizes = [2, 96], strides = [1, 1]} : vector<2x128xf32> to vector<2x96xf32>
    %1035 = arith.negf %1034 : vector<2x96xf32>
    %1036 = math.exp %1035 : vector<2x96xf32>
    %cst_332 = arith.constant 1.000000e+00 : f32
    %1037 = vector.broadcast %cst_332 : f32 to vector<2x96xf32>
    %1038 = arith.addf %1037, %1036 : vector<2x96xf32>
    %1039 = arith.divf %1037, %1038 : vector<2x96xf32>
    %1040 = vector.extract_strided_slice %1028 {offsets = [0, 96], sizes = [2, 32], strides = [1, 1]} : vector<2x128xf32> to vector<2x32xf32>
    %1041 = math.tanh %1040 : vector<2x32xf32>
    %1042 = vector.extract_strided_slice %1039 {offsets = [0, 32], sizes = [2, 32], strides = [1, 1]} : vector<2x96xf32> to vector<2x32xf32>
    %1043 = arith.mulf %1042, %993 : vector<2x32xf32>
    %1044 = vector.extract_strided_slice %1039 {offsets = [0, 0], sizes = [2, 32], strides = [1, 1]} : vector<2x96xf32> to vector<2x32xf32>
    %1045 = arith.mulf %1044, %1041 : vector<2x32xf32>
    %1046 = arith.addf %1043, %1045 : vector<2x32xf32>
    %1047 = vector.extract_strided_slice %1039 {offsets = [0, 64], sizes = [2, 32], strides = [1, 1]} : vector<2x96xf32> to vector<2x32xf32>
    %1048 = math.tanh %1046 : vector<2x32xf32>
    %1049 = arith.mulf %1047, %1048 : vector<2x32xf32>
    %1050 = vector.extract_strided_slice %1033 {offsets = [0, 0], sizes = [2, 96], strides = [1, 1]} : vector<2x128xf32> to vector<2x96xf32>
    %1051 = arith.negf %1050 : vector<2x96xf32>
    %1052 = math.exp %1051 : vector<2x96xf32>
    %cst_333 = arith.constant 1.000000e+00 : f32
    %1053 = vector.broadcast %cst_333 : f32 to vector<2x96xf32>
    %1054 = arith.addf %1053, %1052 : vector<2x96xf32>
    %1055 = arith.divf %1053, %1054 : vector<2x96xf32>
    %1056 = vector.extract_strided_slice %1033 {offsets = [0, 96], sizes = [2, 32], strides = [1, 1]} : vector<2x128xf32> to vector<2x32xf32>
    %1057 = math.tanh %1056 : vector<2x32xf32>
    %1058 = vector.extract_strided_slice %1055 {offsets = [0, 32], sizes = [2, 32], strides = [1, 1]} : vector<2x96xf32> to vector<2x32xf32>
    %1059 = arith.mulf %1058, %1009 : vector<2x32xf32>
    %1060 = vector.extract_strided_slice %1055 {offsets = [0, 0], sizes = [2, 32], strides = [1, 1]} : vector<2x96xf32> to vector<2x32xf32>
    %1061 = arith.mulf %1060, %1057 : vector<2x32xf32>
    %1062 = arith.addf %1059, %1061 : vector<2x32xf32>
    %1063 = vector.extract_strided_slice %1055 {offsets = [0, 64], sizes = [2, 32], strides = [1, 1]} : vector<2x96xf32> to vector<2x32xf32>
    %1064 = math.tanh %1062 : vector<2x32xf32>
    %1065 = arith.mulf %1063, %1064 : vector<2x32xf32>
    %1066 = arith.truncf %1049 : vector<2x32xf32> to vector<2x32xbf16>
    %c2_334 = arith.constant 2 : index
    %c0_335 = arith.constant 0 : index
    %c0_336 = arith.constant 0 : index
    %1067 = vector.load %arg21[%c2_334, %c0_335, %c0_336] : memref<8x2x32xbf16, #tpu.memory_space<vmem>>, vector<1x2x32xbf16>
    %1068 = vector.shape_cast %1067 : vector<1x2x32xbf16> to vector<2x32xbf16>
    %1069 = vector.shape_cast %1066 : vector<2x32xbf16> to vector<1x2x32xbf16>
    tpu.vector_store %arg21[%c2_334, %c0_335, %c0_336], %1069 {strides = array<i32>} : memref<8x2x32xbf16, #tpu.memory_space<vmem>>, vector<1x2x32xbf16>,
    %1070 = arith.truncf %1065 : vector<2x32xf32> to vector<2x32xbf16>
    %c5_337 = arith.constant 5 : index
    %c0_338 = arith.constant 0 : index
    %c0_339 = arith.constant 0 : index
    %1071 = vector.load %arg22[%c5_337, %c0_338, %c0_339] : memref<8x2x32xbf16, #tpu.memory_space<vmem>>, vector<1x2x32xbf16>
    %1072 = vector.shape_cast %1071 : vector<1x2x32xbf16> to vector<2x32xbf16>
    %1073 = vector.shape_cast %1070 : vector<2x32xbf16> to vector<1x2x32xbf16>
    tpu.vector_store %arg22[%c5_337, %c0_338, %c0_339], %1073 {strides = array<i32>} : memref<8x2x32xbf16, #tpu.memory_space<vmem>>, vector<1x2x32xbf16>,
    %1074 = tpu.concatenate %1049, %1065 in 1 : vector<2x32xf32>, vector<2x32xf32> -> vector<2x64xf32>
    %1075 = arith.truncf %1074 : vector<2x64xf32> to vector<2x64xbf16>
    %cst_340 = arith.constant dense<0.000000e+00> : vector<2x256xf32>
    %1076 = tpu.matmul %1075, %910, %cst_340 {dimension_numbers = #tpu.dot_dimension_numbers<[1], [0], [0], [1], [0, 0, 1, 1], [], []>} : vector<2x64xbf16>, vector<64x256xbf16>, vector<2x256xf32> -> vector<2x256xf32>
    %c3_341 = arith.constant 3 : index
    %c0_342 = arith.constant 0 : index
    %c0_343 = arith.constant 0 : index
    %1077 = vector.load %arg20[%c3_341, %c0_342, %c0_343] : memref<8x2x256xf32, #tpu.memory_space<vmem>>, vector<1x2x256xf32>
    %1078 = vector.shape_cast %1077 : vector<1x2x256xf32> to vector<2x256xf32>
    %1079 = vector.extract_strided_slice %1078 {offsets = [0, 0], sizes = [2, 128], strides = [1, 1]} : vector<2x256xf32> to vector<2x128xf32>
    %1080 = vector.extract_strided_slice %1076 {offsets = [0, 0], sizes = [2, 128], strides = [1, 1]} : vector<2x256xf32> to vector<2x128xf32>
    %1081 = arith.addf %1079, %1080 : vector<2x128xf32>
    %c4_344 = arith.constant 4 : index
    %c0_345 = arith.constant 0 : index
    %c0_346 = arith.constant 0 : index
    %1082 = vector.load %arg20[%c4_344, %c0_345, %c0_346] : memref<8x2x256xf32, #tpu.memory_space<vmem>>, vector<1x2x256xf32>
    %1083 = vector.shape_cast %1082 : vector<1x2x256xf32> to vector<2x256xf32>
    %1084 = vector.extract_strided_slice %1083 {offsets = [0, 128], sizes = [2, 128], strides = [1, 1]} : vector<2x256xf32> to vector<2x128xf32>
    %1085 = vector.extract_strided_slice %1076 {offsets = [0, 128], sizes = [2, 128], strides = [1, 1]} : vector<2x256xf32> to vector<2x128xf32>
    %1086 = arith.addf %1084, %1085 : vector<2x128xf32>
    %1087 = vector.extract_strided_slice %1081 {offsets = [0, 0], sizes = [2, 96], strides = [1, 1]} : vector<2x128xf32> to vector<2x96xf32>
    %1088 = arith.negf %1087 : vector<2x96xf32>
    %1089 = math.exp %1088 : vector<2x96xf32>
    %cst_347 = arith.constant 1.000000e+00 : f32
    %1090 = vector.broadcast %cst_347 : f32 to vector<2x96xf32>
    %1091 = arith.addf %1090, %1089 : vector<2x96xf32>
    %1092 = arith.divf %1090, %1091 : vector<2x96xf32>
    %1093 = vector.extract_strided_slice %1081 {offsets = [0, 96], sizes = [2, 32], strides = [1, 1]} : vector<2x128xf32> to vector<2x32xf32>
    %1094 = math.tanh %1093 : vector<2x32xf32>
    %1095 = vector.extract_strided_slice %1092 {offsets = [0, 32], sizes = [2, 32], strides = [1, 1]} : vector<2x96xf32> to vector<2x32xf32>
    %1096 = arith.mulf %1095, %1046 : vector<2x32xf32>
    %1097 = vector.extract_strided_slice %1092 {offsets = [0, 0], sizes = [2, 32], strides = [1, 1]} : vector<2x96xf32> to vector<2x32xf32>
    %1098 = arith.mulf %1097, %1094 : vector<2x32xf32>
    %1099 = arith.addf %1096, %1098 : vector<2x32xf32>
    %1100 = vector.extract_strided_slice %1092 {offsets = [0, 64], sizes = [2, 32], strides = [1, 1]} : vector<2x96xf32> to vector<2x32xf32>
    %1101 = math.tanh %1099 : vector<2x32xf32>
    %1102 = arith.mulf %1100, %1101 : vector<2x32xf32>
    %1103 = vector.extract_strided_slice %1086 {offsets = [0, 0], sizes = [2, 96], strides = [1, 1]} : vector<2x128xf32> to vector<2x96xf32>
    %1104 = arith.negf %1103 : vector<2x96xf32>
    %1105 = math.exp %1104 : vector<2x96xf32>
    %cst_348 = arith.constant 1.000000e+00 : f32
    %1106 = vector.broadcast %cst_348 : f32 to vector<2x96xf32>
    %1107 = arith.addf %1106, %1105 : vector<2x96xf32>
    %1108 = arith.divf %1106, %1107 : vector<2x96xf32>
    %1109 = vector.extract_strided_slice %1086 {offsets = [0, 96], sizes = [2, 32], strides = [1, 1]} : vector<2x128xf32> to vector<2x32xf32>
    %1110 = math.tanh %1109 : vector<2x32xf32>
    %1111 = vector.extract_strided_slice %1108 {offsets = [0, 32], sizes = [2, 32], strides = [1, 1]} : vector<2x96xf32> to vector<2x32xf32>
    %1112 = arith.mulf %1111, %1062 : vector<2x32xf32>
    %1113 = vector.extract_strided_slice %1108 {offsets = [0, 0], sizes = [2, 32], strides = [1, 1]} : vector<2x96xf32> to vector<2x32xf32>
    %1114 = arith.mulf %1113, %1110 : vector<2x32xf32>
    %1115 = arith.addf %1112, %1114 : vector<2x32xf32>
    %1116 = vector.extract_strided_slice %1108 {offsets = [0, 64], sizes = [2, 32], strides = [1, 1]} : vector<2x96xf32> to vector<2x32xf32>
    %1117 = math.tanh %1115 : vector<2x32xf32>
    %1118 = arith.mulf %1116, %1117 : vector<2x32xf32>
    %1119 = arith.truncf %1102 : vector<2x32xf32> to vector<2x32xbf16>
    %c3_349 = arith.constant 3 : index
    %c0_350 = arith.constant 0 : index
    %c0_351 = arith.constant 0 : index
    %1120 = vector.load %arg21[%c3_349, %c0_350, %c0_351] : memref<8x2x32xbf16, #tpu.memory_space<vmem>>, vector<1x2x32xbf16>
    %1121 = vector.shape_cast %1120 : vector<1x2x32xbf16> to vector<2x32xbf16>
    %1122 = vector.shape_cast %1119 : vector<2x32xbf16> to vector<1x2x32xbf16>
    tpu.vector_store %arg21[%c3_349, %c0_350, %c0_351], %1122 {strides = array<i32>} : memref<8x2x32xbf16, #tpu.memory_space<vmem>>, vector<1x2x32xbf16>,
    %1123 = arith.truncf %1118 : vector<2x32xf32> to vector<2x32xbf16>
    %c4_352 = arith.constant 4 : index
    %c0_353 = arith.constant 0 : index
    %c0_354 = arith.constant 0 : index
    %1124 = vector.load %arg22[%c4_352, %c0_353, %c0_354] : memref<8x2x32xbf16, #tpu.memory_space<vmem>>, vector<1x2x32xbf16>
    %1125 = vector.shape_cast %1124 : vector<1x2x32xbf16> to vector<2x32xbf16>
    %1126 = vector.shape_cast %1123 : vector<2x32xbf16> to vector<1x2x32xbf16>
    tpu.vector_store %arg22[%c4_352, %c0_353, %c0_354], %1126 {strides = array<i32>} : memref<8x2x32xbf16, #tpu.memory_space<vmem>>, vector<1x2x32xbf16>,
    %1127 = tpu.concatenate %1102, %1118 in 1 : vector<2x32xf32>, vector<2x32xf32> -> vector<2x64xf32>
    %1128 = arith.truncf %1127 : vector<2x64xf32> to vector<2x64xbf16>
    %cst_355 = arith.constant dense<0.000000e+00> : vector<2x256xf32>
    %1129 = tpu.matmul %1128, %910, %cst_355 {dimension_numbers = #tpu.dot_dimension_numbers<[1], [0], [0], [1], [0, 0, 1, 1], [], []>} : vector<2x64xbf16>, vector<64x256xbf16>, vector<2x256xf32> -> vector<2x256xf32>
    %c4_356 = arith.constant 4 : index
    %c0_357 = arith.constant 0 : index
    %c0_358 = arith.constant 0 : index
    %1130 = vector.load %arg20[%c4_356, %c0_357, %c0_358] : memref<8x2x256xf32, #tpu.memory_space<vmem>>, vector<1x2x256xf32>
    %1131 = vector.shape_cast %1130 : vector<1x2x256xf32> to vector<2x256xf32>
    %1132 = vector.extract_strided_slice %1131 {offsets = [0, 0], sizes = [2, 128], strides = [1, 1]} : vector<2x256xf32> to vector<2x128xf32>
    %1133 = vector.extract_strided_slice %1129 {offsets = [0, 0], sizes = [2, 128], strides = [1, 1]} : vector<2x256xf32> to vector<2x128xf32>
    %1134 = arith.addf %1132, %1133 : vector<2x128xf32>
    %c3_359 = arith.constant 3 : index
    %c0_360 = arith.constant 0 : index
    %c0_361 = arith.constant 0 : index
    %1135 = vector.load %arg20[%c3_359, %c0_360, %c0_361] : memref<8x2x256xf32, #tpu.memory_space<vmem>>, vector<1x2x256xf32>
    %1136 = vector.shape_cast %1135 : vector<1x2x256xf32> to vector<2x256xf32>
    %1137 = vector.extract_strided_slice %1136 {offsets = [0, 128], sizes = [2, 128], strides = [1, 1]} : vector<2x256xf32> to vector<2x128xf32>
    %1138 = vector.extract_strided_slice %1129 {offsets = [0, 128], sizes = [2, 128], strides = [1, 1]} : vector<2x256xf32> to vector<2x128xf32>
    %1139 = arith.addf %1137, %1138 : vector<2x128xf32>
    %1140 = vector.extract_strided_slice %1134 {offsets = [0, 0], sizes = [2, 96], strides = [1, 1]} : vector<2x128xf32> to vector<2x96xf32>
    %1141 = arith.negf %1140 : vector<2x96xf32>
    %1142 = math.exp %1141 : vector<2x96xf32>
    %cst_362 = arith.constant 1.000000e+00 : f32
    %1143 = vector.broadcast %cst_362 : f32 to vector<2x96xf32>
    %1144 = arith.addf %1143, %1142 : vector<2x96xf32>
    %1145 = arith.divf %1143, %1144 : vector<2x96xf32>
    %1146 = vector.extract_strided_slice %1134 {offsets = [0, 96], sizes = [2, 32], strides = [1, 1]} : vector<2x128xf32> to vector<2x32xf32>
    %1147 = math.tanh %1146 : vector<2x32xf32>
    %1148 = vector.extract_strided_slice %1145 {offsets = [0, 32], sizes = [2, 32], strides = [1, 1]} : vector<2x96xf32> to vector<2x32xf32>
    %1149 = arith.mulf %1148, %1099 : vector<2x32xf32>
    %1150 = vector.extract_strided_slice %1145 {offsets = [0, 0], sizes = [2, 32], strides = [1, 1]} : vector<2x96xf32> to vector<2x32xf32>
    %1151 = arith.mulf %1150, %1147 : vector<2x32xf32>
    %1152 = arith.addf %1149, %1151 : vector<2x32xf32>
    %1153 = vector.extract_strided_slice %1145 {offsets = [0, 64], sizes = [2, 32], strides = [1, 1]} : vector<2x96xf32> to vector<2x32xf32>
    %1154 = math.tanh %1152 : vector<2x32xf32>
    %1155 = arith.mulf %1153, %1154 : vector<2x32xf32>
    %1156 = vector.extract_strided_slice %1139 {offsets = [0, 0], sizes = [2, 96], strides = [1, 1]} : vector<2x128xf32> to vector<2x96xf32>
    %1157 = arith.negf %1156 : vector<2x96xf32>
    %1158 = math.exp %1157 : vector<2x96xf32>
    %cst_363 = arith.constant 1.000000e+00 : f32
    %1159 = vector.broadcast %cst_363 : f32 to vector<2x96xf32>
    %1160 = arith.addf %1159, %1158 : vector<2x96xf32>
    %1161 = arith.divf %1159, %1160 : vector<2x96xf32>
    %1162 = vector.extract_strided_slice %1139 {offsets = [0, 96], sizes = [2, 32], strides = [1, 1]} : vector<2x128xf32> to vector<2x32xf32>
    %1163 = math.tanh %1162 : vector<2x32xf32>
    %1164 = vector.extract_strided_slice %1161 {offsets = [0, 32], sizes = [2, 32], strides = [1, 1]} : vector<2x96xf32> to vector<2x32xf32>
    %1165 = arith.mulf %1164, %1115 : vector<2x32xf32>
    %1166 = vector.extract_strided_slice %1161 {offsets = [0, 0], sizes = [2, 32], strides = [1, 1]} : vector<2x96xf32> to vector<2x32xf32>
    %1167 = arith.mulf %1166, %1163 : vector<2x32xf32>
    %1168 = arith.addf %1165, %1167 : vector<2x32xf32>
    %1169 = vector.extract_strided_slice %1161 {offsets = [0, 64], sizes = [2, 32], strides = [1, 1]} : vector<2x96xf32> to vector<2x32xf32>
    %1170 = math.tanh %1168 : vector<2x32xf32>
    %1171 = arith.mulf %1169, %1170 : vector<2x32xf32>
    %1172 = arith.truncf %1155 : vector<2x32xf32> to vector<2x32xbf16>
    %c4_364 = arith.constant 4 : index
    %c0_365 = arith.constant 0 : index
    %c0_366 = arith.constant 0 : index
    %1173 = vector.load %arg21[%c4_364, %c0_365, %c0_366] : memref<8x2x32xbf16, #tpu.memory_space<vmem>>, vector<1x2x32xbf16>
    %1174 = vector.shape_cast %1173 : vector<1x2x32xbf16> to vector<2x32xbf16>
    %1175 = vector.shape_cast %1172 : vector<2x32xbf16> to vector<1x2x32xbf16>
    tpu.vector_store %arg21[%c4_364, %c0_365, %c0_366], %1175 {strides = array<i32>} : memref<8x2x32xbf16, #tpu.memory_space<vmem>>, vector<1x2x32xbf16>,
    %1176 = arith.truncf %1171 : vector<2x32xf32> to vector<2x32xbf16>
    %c3_367 = arith.constant 3 : index
    %c0_368 = arith.constant 0 : index
    %c0_369 = arith.constant 0 : index
    %1177 = vector.load %arg22[%c3_367, %c0_368, %c0_369] : memref<8x2x32xbf16, #tpu.memory_space<vmem>>, vector<1x2x32xbf16>
    %1178 = vector.shape_cast %1177 : vector<1x2x32xbf16> to vector<2x32xbf16>
    %1179 = vector.shape_cast %1176 : vector<2x32xbf16> to vector<1x2x32xbf16>
    tpu.vector_store %arg22[%c3_367, %c0_368, %c0_369], %1179 {strides = array<i32>} : memref<8x2x32xbf16, #tpu.memory_space<vmem>>, vector<1x2x32xbf16>,
    %1180 = tpu.concatenate %1155, %1171 in 1 : vector<2x32xf32>, vector<2x32xf32> -> vector<2x64xf32>
    %1181 = arith.truncf %1180 : vector<2x64xf32> to vector<2x64xbf16>
    %cst_370 = arith.constant dense<0.000000e+00> : vector<2x256xf32>
    %1182 = tpu.matmul %1181, %910, %cst_370 {dimension_numbers = #tpu.dot_dimension_numbers<[1], [0], [0], [1], [0, 0, 1, 1], [], []>} : vector<2x64xbf16>, vector<64x256xbf16>, vector<2x256xf32> -> vector<2x256xf32>
    %c5_371 = arith.constant 5 : index
    %c0_372 = arith.constant 0 : index
    %c0_373 = arith.constant 0 : index
    %1183 = vector.load %arg20[%c5_371, %c0_372, %c0_373] : memref<8x2x256xf32, #tpu.memory_space<vmem>>, vector<1x2x256xf32>
    %1184 = vector.shape_cast %1183 : vector<1x2x256xf32> to vector<2x256xf32>
    %1185 = vector.extract_strided_slice %1184 {offsets = [0, 0], sizes = [2, 128], strides = [1, 1]} : vector<2x256xf32> to vector<2x128xf32>
    %1186 = vector.extract_strided_slice %1182 {offsets = [0, 0], sizes = [2, 128], strides = [1, 1]} : vector<2x256xf32> to vector<2x128xf32>
    %1187 = arith.addf %1185, %1186 : vector<2x128xf32>
    %c2_374 = arith.constant 2 : index
    %c0_375 = arith.constant 0 : index
    %c0_376 = arith.constant 0 : index
    %1188 = vector.load %arg20[%c2_374, %c0_375, %c0_376] : memref<8x2x256xf32, #tpu.memory_space<vmem>>, vector<1x2x256xf32>
    %1189 = vector.shape_cast %1188 : vector<1x2x256xf32> to vector<2x256xf32>
    %1190 = vector.extract_strided_slice %1189 {offsets = [0, 128], sizes = [2, 128], strides = [1, 1]} : vector<2x256xf32> to vector<2x128xf32>
    %1191 = vector.extract_strided_slice %1182 {offsets = [0, 128], sizes = [2, 128], strides = [1, 1]} : vector<2x256xf32> to vector<2x128xf32>
    %1192 = arith.addf %1190, %1191 : vector<2x128xf32>
    %1193 = vector.extract_strided_slice %1187 {offsets = [0, 0], sizes = [2, 96], strides = [1, 1]} : vector<2x128xf32> to vector<2x96xf32>
    %1194 = arith.negf %1193 : vector<2x96xf32>
    %1195 = math.exp %1194 : vector<2x96xf32>
    %cst_377 = arith.constant 1.000000e+00 : f32
    %1196 = vector.broadcast %cst_377 : f32 to vector<2x96xf32>
    %1197 = arith.addf %1196, %1195 : vector<2x96xf32>
    %1198 = arith.divf %1196, %1197 : vector<2x96xf32>
    %1199 = vector.extract_strided_slice %1187 {offsets = [0, 96], sizes = [2, 32], strides = [1, 1]} : vector<2x128xf32> to vector<2x32xf32>
    %1200 = math.tanh %1199 : vector<2x32xf32>
    %1201 = vector.extract_strided_slice %1198 {offsets = [0, 32], sizes = [2, 32], strides = [1, 1]} : vector<2x96xf32> to vector<2x32xf32>
    %1202 = arith.mulf %1201, %1152 : vector<2x32xf32>
    %1203 = vector.extract_strided_slice %1198 {offsets = [0, 0], sizes = [2, 32], strides = [1, 1]} : vector<2x96xf32> to vector<2x32xf32>
    %1204 = arith.mulf %1203, %1200 : vector<2x32xf32>
    %1205 = arith.addf %1202, %1204 : vector<2x32xf32>
    %1206 = vector.extract_strided_slice %1198 {offsets = [0, 64], sizes = [2, 32], strides = [1, 1]} : vector<2x96xf32> to vector<2x32xf32>
    %1207 = math.tanh %1205 : vector<2x32xf32>
    %1208 = arith.mulf %1206, %1207 : vector<2x32xf32>
    %1209 = vector.extract_strided_slice %1192 {offsets = [0, 0], sizes = [2, 96], strides = [1, 1]} : vector<2x128xf32> to vector<2x96xf32>
    %1210 = arith.negf %1209 : vector<2x96xf32>
    %1211 = math.exp %1210 : vector<2x96xf32>
    %cst_378 = arith.constant 1.000000e+00 : f32
    %1212 = vector.broadcast %cst_378 : f32 to vector<2x96xf32>
    %1213 = arith.addf %1212, %1211 : vector<2x96xf32>
    %1214 = arith.divf %1212, %1213 : vector<2x96xf32>
    %1215 = vector.extract_strided_slice %1192 {offsets = [0, 96], sizes = [2, 32], strides = [1, 1]} : vector<2x128xf32> to vector<2x32xf32>
    %1216 = math.tanh %1215 : vector<2x32xf32>
    %1217 = vector.extract_strided_slice %1214 {offsets = [0, 32], sizes = [2, 32], strides = [1, 1]} : vector<2x96xf32> to vector<2x32xf32>
    %1218 = arith.mulf %1217, %1168 : vector<2x32xf32>
    %1219 = vector.extract_strided_slice %1214 {offsets = [0, 0], sizes = [2, 32], strides = [1, 1]} : vector<2x96xf32> to vector<2x32xf32>
    %1220 = arith.mulf %1219, %1216 : vector<2x32xf32>
    %1221 = arith.addf %1218, %1220 : vector<2x32xf32>
    %1222 = vector.extract_strided_slice %1214 {offsets = [0, 64], sizes = [2, 32], strides = [1, 1]} : vector<2x96xf32> to vector<2x32xf32>
    %1223 = math.tanh %1221 : vector<2x32xf32>
    %1224 = arith.mulf %1222, %1223 : vector<2x32xf32>
    %1225 = arith.truncf %1208 : vector<2x32xf32> to vector<2x32xbf16>
    %c5_379 = arith.constant 5 : index
    %c0_380 = arith.constant 0 : index
    %c0_381 = arith.constant 0 : index
    %1226 = vector.load %arg21[%c5_379, %c0_380, %c0_381] : memref<8x2x32xbf16, #tpu.memory_space<vmem>>, vector<1x2x32xbf16>
    %1227 = vector.shape_cast %1226 : vector<1x2x32xbf16> to vector<2x32xbf16>
    %1228 = vector.shape_cast %1225 : vector<2x32xbf16> to vector<1x2x32xbf16>
    tpu.vector_store %arg21[%c5_379, %c0_380, %c0_381], %1228 {strides = array<i32>} : memref<8x2x32xbf16, #tpu.memory_space<vmem>>, vector<1x2x32xbf16>,
    %1229 = arith.truncf %1224 : vector<2x32xf32> to vector<2x32xbf16>
    %c2_382 = arith.constant 2 : index
    %c0_383 = arith.constant 0 : index
    %c0_384 = arith.constant 0 : index
    %1230 = vector.load %arg22[%c2_382, %c0_383, %c0_384] : memref<8x2x32xbf16, #tpu.memory_space<vmem>>, vector<1x2x32xbf16>
    %1231 = vector.shape_cast %1230 : vector<1x2x32xbf16> to vector<2x32xbf16>
    %1232 = vector.shape_cast %1229 : vector<2x32xbf16> to vector<1x2x32xbf16>
    tpu.vector_store %arg22[%c2_382, %c0_383, %c0_384], %1232 {strides = array<i32>} : memref<8x2x32xbf16, #tpu.memory_space<vmem>>, vector<1x2x32xbf16>,
    %1233 = tpu.concatenate %1208, %1224 in 1 : vector<2x32xf32>, vector<2x32xf32> -> vector<2x64xf32>
    %1234 = arith.truncf %1233 : vector<2x64xf32> to vector<2x64xbf16>
    %cst_385 = arith.constant dense<0.000000e+00> : vector<2x256xf32>
    %1235 = tpu.matmul %1234, %910, %cst_385 {dimension_numbers = #tpu.dot_dimension_numbers<[1], [0], [0], [1], [0, 0, 1, 1], [], []>} : vector<2x64xbf16>, vector<64x256xbf16>, vector<2x256xf32> -> vector<2x256xf32>
    %c6_386 = arith.constant 6 : index
    %c0_387 = arith.constant 0 : index
    %c0_388 = arith.constant 0 : index
    %1236 = vector.load %arg20[%c6_386, %c0_387, %c0_388] : memref<8x2x256xf32, #tpu.memory_space<vmem>>, vector<1x2x256xf32>
    %1237 = vector.shape_cast %1236 : vector<1x2x256xf32> to vector<2x256xf32>
    %1238 = vector.extract_strided_slice %1237 {offsets = [0, 0], sizes = [2, 128], strides = [1, 1]} : vector<2x256xf32> to vector<2x128xf32>
    %1239 = vector.extract_strided_slice %1235 {offsets = [0, 0], sizes = [2, 128], strides = [1, 1]} : vector<2x256xf32> to vector<2x128xf32>
    %1240 = arith.addf %1238, %1239 : vector<2x128xf32>
    %c1_389 = arith.constant 1 : index
    %c0_390 = arith.constant 0 : index
    %c0_391 = arith.constant 0 : index
    %1241 = vector.load %arg20[%c1_389, %c0_390, %c0_391] : memref<8x2x256xf32, #tpu.memory_space<vmem>>, vector<1x2x256xf32>
    %1242 = vector.shape_cast %1241 : vector<1x2x256xf32> to vector<2x256xf32>
    %1243 = vector.extract_strided_slice %1242 {offsets = [0, 128], sizes = [2, 128], strides = [1, 1]} : vector<2x256xf32> to vector<2x128xf32>
    %1244 = vector.extract_strided_slice %1235 {offsets = [0, 128], sizes = [2, 128], strides = [1, 1]} : vector<2x256xf32> to vector<2x128xf32>
    %1245 = arith.addf %1243, %1244 : vector<2x128xf32>
    %1246 = vector.extract_strided_slice %1240 {offsets = [0, 0], sizes = [2, 96], strides = [1, 1]} : vector<2x128xf32> to vector<2x96xf32>
    %1247 = arith.negf %1246 : vector<2x96xf32>
    %1248 = math.exp %1247 : vector<2x96xf32>
    %cst_392 = arith.constant 1.000000e+00 : f32
    %1249 = vector.broadcast %cst_392 : f32 to vector<2x96xf32>
    %1250 = arith.addf %1249, %1248 : vector<2x96xf32>
    %1251 = arith.divf %1249, %1250 : vector<2x96xf32>
    %1252 = vector.extract_strided_slice %1240 {offsets = [0, 96], sizes = [2, 32], strides = [1, 1]} : vector<2x128xf32> to vector<2x32xf32>
    %1253 = math.tanh %1252 : vector<2x32xf32>
    %1254 = vector.extract_strided_slice %1251 {offsets = [0, 32], sizes = [2, 32], strides = [1, 1]} : vector<2x96xf32> to vector<2x32xf32>
    %1255 = arith.mulf %1254, %1205 : vector<2x32xf32>
    %1256 = vector.extract_strided_slice %1251 {offsets = [0, 0], sizes = [2, 32], strides = [1, 1]} : vector<2x96xf32> to vector<2x32xf32>
    %1257 = arith.mulf %1256, %1253 : vector<2x32xf32>
    %1258 = arith.addf %1255, %1257 : vector<2x32xf32>
    %1259 = vector.extract_strided_slice %1251 {offsets = [0, 64], sizes = [2, 32], strides = [1, 1]} : vector<2x96xf32> to vector<2x32xf32>
    %1260 = math.tanh %1258 : vector<2x32xf32>
    %1261 = arith.mulf %1259, %1260 : vector<2x32xf32>
    %1262 = vector.extract_strided_slice %1245 {offsets = [0, 0], sizes = [2, 96], strides = [1, 1]} : vector<2x128xf32> to vector<2x96xf32>
    %1263 = arith.negf %1262 : vector<2x96xf32>
    %1264 = math.exp %1263 : vector<2x96xf32>
    %cst_393 = arith.constant 1.000000e+00 : f32
    %1265 = vector.broadcast %cst_393 : f32 to vector<2x96xf32>
    %1266 = arith.addf %1265, %1264 : vector<2x96xf32>
    %1267 = arith.divf %1265, %1266 : vector<2x96xf32>
    %1268 = vector.extract_strided_slice %1245 {offsets = [0, 96], sizes = [2, 32], strides = [1, 1]} : vector<2x128xf32> to vector<2x32xf32>
    %1269 = math.tanh %1268 : vector<2x32xf32>
    %1270 = vector.extract_strided_slice %1267 {offsets = [0, 32], sizes = [2, 32], strides = [1, 1]} : vector<2x96xf32> to vector<2x32xf32>
    %1271 = arith.mulf %1270, %1221 : vector<2x32xf32>
    %1272 = vector.extract_strided_slice %1267 {offsets = [0, 0], sizes = [2, 32], strides = [1, 1]} : vector<2x96xf32> to vector<2x32xf32>
    %1273 = arith.mulf %1272, %1269 : vector<2x32xf32>
    %1274 = arith.addf %1271, %1273 : vector<2x32xf32>
    %1275 = vector.extract_strided_slice %1267 {offsets = [0, 64], sizes = [2, 32], strides = [1, 1]} : vector<2x96xf32> to vector<2x32xf32>
    %1276 = math.tanh %1274 : vector<2x32xf32>
    %1277 = arith.mulf %1275, %1276 : vector<2x32xf32>
    %1278 = arith.truncf %1261 : vector<2x32xf32> to vector<2x32xbf16>
    %c6_394 = arith.constant 6 : index
    %c0_395 = arith.constant 0 : index
    %c0_396 = arith.constant 0 : index
    %1279 = vector.load %arg21[%c6_394, %c0_395, %c0_396] : memref<8x2x32xbf16, #tpu.memory_space<vmem>>, vector<1x2x32xbf16>
    %1280 = vector.shape_cast %1279 : vector<1x2x32xbf16> to vector<2x32xbf16>
    %1281 = vector.shape_cast %1278 : vector<2x32xbf16> to vector<1x2x32xbf16>
    tpu.vector_store %arg21[%c6_394, %c0_395, %c0_396], %1281 {strides = array<i32>} : memref<8x2x32xbf16, #tpu.memory_space<vmem>>, vector<1x2x32xbf16>,
    %1282 = arith.truncf %1277 : vector<2x32xf32> to vector<2x32xbf16>
    %c1_397 = arith.constant 1 : index
    %c0_398 = arith.constant 0 : index
    %c0_399 = arith.constant 0 : index
    %1283 = vector.load %arg22[%c1_397, %c0_398, %c0_399] : memref<8x2x32xbf16, #tpu.memory_space<vmem>>, vector<1x2x32xbf16>
    %1284 = vector.shape_cast %1283 : vector<1x2x32xbf16> to vector<2x32xbf16>
    %1285 = vector.shape_cast %1282 : vector<2x32xbf16> to vector<1x2x32xbf16>
    tpu.vector_store %arg22[%c1_397, %c0_398, %c0_399], %1285 {strides = array<i32>} : memref<8x2x32xbf16, #tpu.memory_space<vmem>>, vector<1x2x32xbf16>,
    %1286 = tpu.concatenate %1261, %1277 in 1 : vector<2x32xf32>, vector<2x32xf32> -> vector<2x64xf32>
    %1287 = arith.truncf %1286 : vector<2x64xf32> to vector<2x64xbf16>
    %cst_400 = arith.constant dense<0.000000e+00> : vector<2x256xf32>
    %1288 = tpu.matmul %1287, %910, %cst_400 {dimension_numbers = #tpu.dot_dimension_numbers<[1], [0], [0], [1], [0, 0, 1, 1], [], []>} : vector<2x64xbf16>, vector<64x256xbf16>, vector<2x256xf32> -> vector<2x256xf32>
    %c7_401 = arith.constant 7 : index
    %c0_402 = arith.constant 0 : index
    %c0_403 = arith.constant 0 : index
    %1289 = vector.load %arg20[%c7_401, %c0_402, %c0_403] : memref<8x2x256xf32, #tpu.memory_space<vmem>>, vector<1x2x256xf32>
    %1290 = vector.shape_cast %1289 : vector<1x2x256xf32> to vector<2x256xf32>
    %1291 = vector.extract_strided_slice %1290 {offsets = [0, 0], sizes = [2, 128], strides = [1, 1]} : vector<2x256xf32> to vector<2x128xf32>
    %1292 = vector.extract_strided_slice %1288 {offsets = [0, 0], sizes = [2, 128], strides = [1, 1]} : vector<2x256xf32> to vector<2x128xf32>
    %1293 = arith.addf %1291, %1292 : vector<2x128xf32>
    %c0_404 = arith.constant 0 : index
    %c0_405 = arith.constant 0 : index
    %c0_406 = arith.constant 0 : index
    %1294 = vector.load %arg20[%c0_404, %c0_405, %c0_406] : memref<8x2x256xf32, #tpu.memory_space<vmem>>, vector<1x2x256xf32>
    %1295 = vector.shape_cast %1294 : vector<1x2x256xf32> to vector<2x256xf32>
    %1296 = vector.extract_strided_slice %1295 {offsets = [0, 128], sizes = [2, 128], strides = [1, 1]} : vector<2x256xf32> to vector<2x128xf32>
    %1297 = vector.extract_strided_slice %1288 {offsets = [0, 128], sizes = [2, 128], strides = [1, 1]} : vector<2x256xf32> to vector<2x128xf32>
    %1298 = arith.addf %1296, %1297 : vector<2x128xf32>
    %1299 = vector.extract_strided_slice %1293 {offsets = [0, 0], sizes = [2, 96], strides = [1, 1]} : vector<2x128xf32> to vector<2x96xf32>
    %1300 = arith.negf %1299 : vector<2x96xf32>
    %1301 = math.exp %1300 : vector<2x96xf32>
    %cst_407 = arith.constant 1.000000e+00 : f32
    %1302 = vector.broadcast %cst_407 : f32 to vector<2x96xf32>
    %1303 = arith.addf %1302, %1301 : vector<2x96xf32>
    %1304 = arith.divf %1302, %1303 : vector<2x96xf32>
    %1305 = vector.extract_strided_slice %1293 {offsets = [0, 96], sizes = [2, 32], strides = [1, 1]} : vector<2x128xf32> to vector<2x32xf32>
    %1306 = math.tanh %1305 : vector<2x32xf32>
    %1307 = vector.extract_strided_slice %1304 {offsets = [0, 32], sizes = [2, 32], strides = [1, 1]} : vector<2x96xf32> to vector<2x32xf32>
    %1308 = arith.mulf %1307, %1258 : vector<2x32xf32>
    %1309 = vector.extract_strided_slice %1304 {offsets = [0, 0], sizes = [2, 32], strides = [1, 1]} : vector<2x96xf32> to vector<2x32xf32>
    %1310 = arith.mulf %1309, %1306 : vector<2x32xf32>
    %1311 = arith.addf %1308, %1310 : vector<2x32xf32>
    %1312 = vector.extract_strided_slice %1304 {offsets = [0, 64], sizes = [2, 32], strides = [1, 1]} : vector<2x96xf32> to vector<2x32xf32>
    %1313 = math.tanh %1311 : vector<2x32xf32>
    %1314 = arith.mulf %1312, %1313 : vector<2x32xf32>
    %1315 = vector.extract_strided_slice %1298 {offsets = [0, 0], sizes = [2, 96], strides = [1, 1]} : vector<2x128xf32> to vector<2x96xf32>
    %1316 = arith.negf %1315 : vector<2x96xf32>
    %1317 = math.exp %1316 : vector<2x96xf32>
    %cst_408 = arith.constant 1.000000e+00 : f32
    %1318 = vector.broadcast %cst_408 : f32 to vector<2x96xf32>
    %1319 = arith.addf %1318, %1317 : vector<2x96xf32>
    %1320 = arith.divf %1318, %1319 : vector<2x96xf32>
    %1321 = vector.extract_strided_slice %1298 {offsets = [0, 96], sizes = [2, 32], strides = [1, 1]} : vector<2x128xf32> to vector<2x32xf32>
    %1322 = math.tanh %1321 : vector<2x32xf32>
    %1323 = vector.extract_strided_slice %1320 {offsets = [0, 32], sizes = [2, 32], strides = [1, 1]} : vector<2x96xf32> to vector<2x32xf32>
    %1324 = arith.mulf %1323, %1274 : vector<2x32xf32>
    %1325 = vector.extract_strided_slice %1320 {offsets = [0, 0], sizes = [2, 32], strides = [1, 1]} : vector<2x96xf32> to vector<2x32xf32>
    %1326 = arith.mulf %1325, %1322 : vector<2x32xf32>
    %1327 = arith.addf %1324, %1326 : vector<2x32xf32>
    %1328 = vector.extract_strided_slice %1320 {offsets = [0, 64], sizes = [2, 32], strides = [1, 1]} : vector<2x96xf32> to vector<2x32xf32>
    %1329 = math.tanh %1327 : vector<2x32xf32>
    %1330 = arith.mulf %1328, %1329 : vector<2x32xf32>
    %1331 = arith.truncf %1314 : vector<2x32xf32> to vector<2x32xbf16>
    %c7_409 = arith.constant 7 : index
    %c0_410 = arith.constant 0 : index
    %c0_411 = arith.constant 0 : index
    %1332 = vector.load %arg21[%c7_409, %c0_410, %c0_411] : memref<8x2x32xbf16, #tpu.memory_space<vmem>>, vector<1x2x32xbf16>
    %1333 = vector.shape_cast %1332 : vector<1x2x32xbf16> to vector<2x32xbf16>
    %1334 = vector.shape_cast %1331 : vector<2x32xbf16> to vector<1x2x32xbf16>
    tpu.vector_store %arg21[%c7_409, %c0_410, %c0_411], %1334 {strides = array<i32>} : memref<8x2x32xbf16, #tpu.memory_space<vmem>>, vector<1x2x32xbf16>,
    %1335 = arith.truncf %1330 : vector<2x32xf32> to vector<2x32xbf16>
    %c0_412 = arith.constant 0 : index
    %c0_413 = arith.constant 0 : index
    %c0_414 = arith.constant 0 : index
    %1336 = vector.load %arg22[%c0_412, %c0_413, %c0_414] : memref<8x2x32xbf16, #tpu.memory_space<vmem>>, vector<1x2x32xbf16>
    %1337 = vector.shape_cast %1336 : vector<1x2x32xbf16> to vector<2x32xbf16>
    %1338 = vector.shape_cast %1335 : vector<2x32xbf16> to vector<1x2x32xbf16>
    tpu.vector_store %arg22[%c0_412, %c0_413, %c0_414], %1338 {strides = array<i32>} : memref<8x2x32xbf16, #tpu.memory_space<vmem>>, vector<1x2x32xbf16>,
    %c0_415 = arith.constant 0 : index
    %c0_416 = arith.constant 0 : index
    %c0_417 = arith.constant 0 : index
    %1339 = vector.load %arg21[%c0_415, %c0_416, %c0_417] : memref<8x2x32xbf16, #tpu.memory_space<vmem>>, vector<8x2x32xbf16>
    %1340 = vector.shape_cast %1339 : vector<8x2x32xbf16> to vector<16x32xbf16>
    %c0_418 = arith.constant 0 : index
    %c0_419 = arith.constant 0 : index
    %c0_420 = arith.constant 0 : index
    %1341 = vector.load %arg22[%c0_418, %c0_419, %c0_420] : memref<8x2x32xbf16, #tpu.memory_space<vmem>>, vector<8x2x32xbf16>
    %1342 = vector.shape_cast %1341 : vector<8x2x32xbf16> to vector<16x32xbf16>
    %c0_421 = arith.constant 0 : index
    %c0_422 = arith.constant 0 : index
    %c0_423 = arith.constant 0 : index
    %1343 = vector.load %arg11[%c0_421, %c0_422, %c0_423] : memref<2x32x128xbf16, #tpu.memory_space<vmem>>, vector<1x32x128xbf16>
    %1344 = vector.shape_cast %1343 : vector<1x32x128xbf16> to vector<32x128xbf16>
    %cst_424 = arith.constant dense<0.000000e+00> : vector<16x128xf32>
    %1345 = tpu.matmul %1340, %1344, %cst_424 {dimension_numbers = #tpu.dot_dimension_numbers<[1], [0], [0], [1], [0, 0, 1, 1], [], []>} : vector<16x32xbf16>, vector<32x128xbf16>, vector<16x128xf32> -> vector<16x128xf32>
    %c1_425 = arith.constant 1 : index
    %c0_426 = arith.constant 0 : index
    %c0_427 = arith.constant 0 : index
    %1346 = vector.load %arg11[%c1_425, %c0_426, %c0_427] : memref<2x32x128xbf16, #tpu.memory_space<vmem>>, vector<1x32x128xbf16>
    %1347 = vector.shape_cast %1346 : vector<1x32x128xbf16> to vector<32x128xbf16>
    %cst_428 = arith.constant dense<0.000000e+00> : vector<16x128xf32>
    %1348 = tpu.matmul %1342, %1347, %cst_428 {dimension_numbers = #tpu.dot_dimension_numbers<[1], [0], [0], [1], [0, 0, 1, 1], [], []>} : vector<16x32xbf16>, vector<32x128xbf16>, vector<16x128xf32> -> vector<16x128xf32>
    %1349 = arith.addf %1345, %1348 : vector<16x128xf32>
    %c0_429 = arith.constant 0 : index
    %c0_430 = arith.constant 0 : index
    %1350 = vector.load %arg12[%c0_429, %c0_430] : memref<1x128xf32, #tpu.memory_space<vmem>>, vector<1x128xf32>
    %1351 = vector.broadcast %1350 : vector<1x128xf32> to vector<16x128xf32>
    %1352 = arith.addf %1349, %1351 : vector<16x128xf32>
    %1353 = vector.shape_cast %1352 : vector<16x128xf32> to vector<8x2x128xf32>
    %c0_431 = arith.constant 0 : index
    %c0_432 = arith.constant 0 : index
    %c0_433 = arith.constant 0 : index
    %1354 = vector.load %arg13[%c0_431, %c0_432, %c0_433] : memref<8x2x128xf32, #tpu.memory_space<vmem>>, vector<8x2x128xf32>
    tpu.vector_store %arg13[%c0_431, %c0_432, %c0_433], %1353 {strides = array<i32>} : memref<8x2x128xf32, #tpu.memory_space<vmem>>, vector<8x2x128xf32>,
    return
  }
  func.func @transform_0(%arg0: i32) -> (i32, i32, i32) {
    %c0_i32 = arith.constant 0 : i32
    %c0_i32_0 = arith.constant 0 : i32
    %c0_i32_1 = arith.constant 0 : i32
    %c0_i32_2 = arith.constant 0 : i32
    return %c0_i32, %c0_i32_0, %c0_i32_1 : i32, i32, i32
  }
  func.func @transform_1(%arg0: i32) -> (i32, i32, i32) {
    %c0_i32 = arith.constant 0 : i32
    %c0_i32_0 = arith.constant 0 : i32
    %c0_i32_1 = arith.constant 0 : i32
    %c0_i32_2 = arith.constant 0 : i32
    return %c0_i32, %c0_i32_0, %c0_i32_1 : i32, i32, i32
  }
  func.func @transform_2(%arg0: i32) -> (i32, i32) {
    %c0_i32 = arith.constant 0 : i32
    %c0_i32_0 = arith.constant 0 : i32
    %c0_i32_1 = arith.constant 0 : i32
    return %c0_i32, %c0_i32_0 : i32, i32
  }
  func.func @transform_3(%arg0: i32) -> (i32, i32) {
    %c0_i32 = arith.constant 0 : i32
    %c0_i32_0 = arith.constant 0 : i32
    %c0_i32_1 = arith.constant 0 : i32
    return %c0_i32, %c0_i32_0 : i32, i32
  }
  func.func @transform_4(%arg0: i32) -> (i32, i32, i32) {
    %c0_i32 = arith.constant 0 : i32
    %c0_i32_0 = arith.constant 0 : i32
    %c0_i32_1 = arith.constant 0 : i32
    %c0_i32_2 = arith.constant 0 : i32
    return %c0_i32, %c0_i32_0, %c0_i32_1 : i32, i32, i32
  }
  func.func @transform_5(%arg0: i32) -> (i32, i32) {
    %c0_i32 = arith.constant 0 : i32
    %c0_i32_0 = arith.constant 0 : i32
    %c0_i32_1 = arith.constant 0 : i32
    return %c0_i32, %c0_i32_0 : i32, i32
  }
  func.func @transform_6(%arg0: i32) -> (i32, i32) {
    %c0_i32 = arith.constant 0 : i32
    %c0_i32_0 = arith.constant 0 : i32
    %c0_i32_1 = arith.constant 0 : i32
    return %c0_i32, %c0_i32_0 : i32, i32
  }
  func.func @transform_7(%arg0: i32) -> (i32, i32, i32) {
    %c0_i32 = arith.constant 0 : i32
    %c0_i32_0 = arith.constant 0 : i32
    %c0_i32_1 = arith.constant 0 : i32
    %c0_i32_2 = arith.constant 0 : i32
    return %c0_i32, %c0_i32_0, %c0_i32_1 : i32, i32, i32
  }
  func.func @transform_8(%arg0: i32) -> (i32, i32) {
    %c0_i32 = arith.constant 0 : i32
    %c0_i32_0 = arith.constant 0 : i32
    %c0_i32_1 = arith.constant 0 : i32
    return %c0_i32, %c0_i32_0 : i32, i32
  }
  func.func @transform_9(%arg0: i32) -> (i32, i32) {
    %c0_i32 = arith.constant 0 : i32
    %c0_i32_0 = arith.constant 0 : i32
    %c0_i32_1 = arith.constant 0 : i32
    return %c0_i32, %c0_i32_0 : i32, i32
  }
  func.func @transform_10(%arg0: i32) -> (i32, i32, i32) {
    %c0_i32 = arith.constant 0 : i32
    %c0_i32_0 = arith.constant 0 : i32
    %c0_i32_1 = arith.constant 0 : i32
    %c0_i32_2 = arith.constant 0 : i32
    return %c0_i32, %c0_i32_0, %c0_i32_1 : i32, i32, i32
  }
  func.func @transform_11(%arg0: i32) -> (i32, i32) {
    %c0_i32 = arith.constant 0 : i32
    %c0_i32_0 = arith.constant 0 : i32
    %c0_i32_1 = arith.constant 0 : i32
    return %c0_i32, %c0_i32_0 : i32, i32
  }
  func.func @transform_12(%arg0: i32) -> (i32, i32, i32) {
    %c0_i32 = arith.constant 0 : i32
    %c0_i32_0 = arith.constant 0 : i32
    %c0_i32_1 = arith.constant 0 : i32
    %c0_i32_2 = arith.constant 0 : i32
    return %c0_i32, %c0_i32_0, %c0_i32_1 : i32, i32, i32
  }
}

</mosaic_0001>

<llo_original>
// kernel: baseline_forward.1
$region0: #{baseline_forward.1}
  #allocation0 [shape = 'u32[]', space=smem, size = 0x4, offset = 0x4, fixed_abs, tag = 'smem constant byte address 0x4 - core index']
  #allocation1 [shape = 'u32[144,128]{1,0:T(1,128)}', space=vmem, size = 0x12000, scoped, tag = 'internal scratch']
  #allocation2 [shape = 'f32[8,2,256]{2,1,0:T(2,128)}', space=vmem, size = 0x4000, scoped, tag = 'scratch operand']
  #allocation3 [shape = 'bf16[8,2,32]{2,1,0:T(2,128)(2,1)}', space=vmem, size = 0x1000, scoped, tag = 'scratch operand']
  #allocation4 [shape = 'bf16[8,2,32]{2,1,0:T(2,128)(2,1)}', space=vmem, size = 0x1000, scoped, tag = 'scratch operand']
  #allocation5 [shape = 'f32[8,2,256]{2,1,0:T(2,128)}', space=vmem, size = 0x4000, scoped, tag = 'scratch operand']
  #allocation6 [shape = 'bf16[8,2,32]{2,1,0:T(2,128)(2,1)}', space=vmem, size = 0x1000, scoped, tag = 'scratch operand']
  #allocation7 [shape = 'bf16[8,2,32]{2,1,0:T(2,128)(2,1)}', space=vmem, size = 0x1000, scoped, tag = 'scratch operand']
  #allocation8 [shape = 'f32[8,2,256]{2,1,0:T(2,128)}', space=vmem, size = 0x4000, scoped, tag = 'scratch operand']
  #allocation9 [shape = 'bf16[8,2,32]{2,1,0:T(2,128)(2,1)}', space=vmem, size = 0x1000, scoped, tag = 'scratch operand']
  #allocation10 [shape = 'bf16[8,2,32]{2,1,0:T(2,128)(2,1)}', space=vmem, size = 0x1000, scoped, tag = 'scratch operand']
  %s0 = inlined_call_operand.vmem [shape: bf16[8,2,64], index: 0, kind: input, shape index: {}]
  %s1 = inlined_call_operand.vmem [shape: bf16[2,32,256], index: 1, kind: input, shape index: {}]
  %s2 = inlined_call_operand.hbm [shape: bf16[64,256], index: 2, kind: input, shape index: {}]
  %s3 = inlined_call_operand.hbm [shape: f32[1,256], index: 3, kind: input, shape index: {}]
  %s4 = inlined_call_operand.hbm [shape: bf16[2,32,256], index: 4, kind: input, shape index: {}]
  %s5 = inlined_call_operand.hbm [shape: bf16[64,256], index: 5, kind: input, shape index: {}]
  %s6 = inlined_call_operand.hbm [shape: f32[1,256], index: 6, kind: input, shape index: {}]
  %s7 = inlined_call_operand.vmem [shape: bf16[2,32,256], index: 7, kind: input, shape index: {}]
  %s8 = inlined_call_operand.hbm [shape: bf16[64,256], index: 8, kind: input, shape index: {}]
  %s9 = inlined_call_operand.hbm [shape: f32[1,256], index: 9, kind: input, shape index: {}]
  %s10 = inlined_call_operand.hbm [shape: bf16[2,32,128], index: 10, kind: input, shape index: {}]
  %s11 = inlined_call_operand.vmem [shape: f32[1,128], index: 11, kind: input, shape index: {}]
  %s12 = inlined_call_operand.vmem [shape: f32[8,2,128], index: 12, kind: output, shape index: {}]
  %s13 = sld [smem:[#allocation0]]
  $region90: #{baseline_forward.1} parent=0
    _
  %s15 = ssub.s32 1, %s13
  %s16 = scalar_select 0, %s15, %s13
  $region1: #{baseline_forward.1} parent=0
    #allocation11 [shape = 'u8[32768]{0}', space=vmem, size = 0x8000, scoped, tag = 'input window, operand 2, single buffered']
    #allocation12 [shape = 's32[1]{0}', space=sflag, size = 0x4, scoped, tag = 'scoped memory for baseline_forward.1']
    #allocation13 [shape = 'u8[1024]{0}', space=vmem, size = 0x400, scoped, tag = 'input window, operand 3, single buffered']
    #allocation14 [shape = 's32[1]{0}', space=sflag, size = 0x4, scoped, tag = 'scoped memory for baseline_forward.1']
    #allocation15 [shape = 'u8[32768]{0}', space=vmem, size = 0x8000, scoped, tag = 'input window, operand 4, single buffered']
    #allocation16 [shape = 'u8[32768]{0}', space=vmem, size = 0x8000, scoped, tag = 'input window, operand 5, single buffered']
    #allocation17 [shape = 's32[1]{0}', space=sflag, size = 0x4, scoped, tag = 'scoped memory for baseline_forward.1']
    #allocation18 [shape = 'u8[1024]{0}', space=vmem, size = 0x400, scoped, tag = 'input window, operand 6, single buffered']
    #allocation19 [shape = 'u8[32768]{0}', space=vmem, size = 0x8000, scoped, tag = 'input window, operand 8, single buffered']
    #allocation20 [shape = 's32[1]{0}', space=sflag, size = 0x4, scoped, tag = 'scoped memory for baseline_forward.1']
    #allocation21 [shape = 'u8[1024]{0}', space=vmem, size = 0x400, scoped, tag = 'input window, operand 9, single buffered']
    #allocation22 [shape = 'u8[16384]{0}', space=vmem, size = 0x4000, scoped, tag = 'input window, operand 10, single buffered']
    #allocation23 [shape = 's32[1]{0}', space=sflag, size = 0x4, scoped, tag = 'scoped memory for baseline_forward.1']
    %17 = vsyncpa [#allocation12], 0
    %18 = vsyncpa [#allocation14], 0
    %19 = vsyncpa [#allocation17], 0
    %20 = vsyncpa [#allocation20], 0
    %21 = vsyncpa [#allocation23], 0
    // Predicated region
    $region2: #{baseline_forward.1} parent=1 // pred_check
      _
    $region3: #{baseline_forward.1} parent=1 // pred_check_branch
      %23 = sbr.rel (0) target = $region5
    $region4: #{baseline_forward.1} parent=1 // pred_region
      _
    $region5: #{baseline_forward.1} parent=1 // pred_fallthru
      _
    // Predicated region
    $region6: #{baseline_forward.1} parent=1 // pred_check
      _
    $region7: #{baseline_forward.1} parent=1 // pred_check_branch
      %25 = sbr.rel (0) target = $region9
    $region8: #{baseline_forward.1} parent=1 // pred_region
      _
    $region9: #{baseline_forward.1} parent=1 // pred_fallthru
      _
    // Predicated region
    $region10: #{baseline_forward.1} parent=1 // pred_check
      _
    $region11: #{baseline_forward.1} parent=1 // pred_check_branch
      %27 = sbr.rel (0) target = $region13
    $region12: #{baseline_forward.1} parent=1 // pred_region
      %s29 = ssub.s32 1024, 1024
      %30 = vsyncadd [#allocation12], %s29
      %s31 = sshll.u32 [#allocation11], 4
      %s32 = int_to_ptr.vmem [resolvable:$true] %s31
      %37 = dma.hbm_to_vmem [thread:$0]  %s2, 1024, %s32, [#allocation12], 128, 128, 8
    $region13: #{baseline_forward.1} parent=1 // pred_fallthru
      _
    // Predicated region
    $region14: #{baseline_forward.1} parent=1 // pred_check
      _
    $region15: #{baseline_forward.1} parent=1 // pred_check_branch
      %39 = sbr.rel (0) target = $region17
    $region16: #{baseline_forward.1} parent=1 // pred_region
      %s41 = ssub.s32 32, 32
      %42 = vsyncadd [#allocation14], %s41
      %s44 = sshll.u32 [#allocation13], 4
      %s45 = int_to_ptr.vmem [resolvable:$true] %s44
      %47 = dma.hbm_to_vmem [thread:$0]  %s3, 32, %s45, [#allocation14]
    $region17: #{baseline_forward.1} parent=1 // pred_fallthru
      _
    // Predicated region
    $region18: #{baseline_forward.1} parent=1 // pred_check
      _
    $region19: #{baseline_forward.1} parent=1 // pred_check_branch
      %49 = sbr.rel (0) target = $region21
    $region20: #{baseline_forward.1} parent=1 // pred_region
      %s51 = ssub.s32 1024, 1024
      %52 = vsyncadd [#allocation14], %s51
      %s53 = sshll.u32 [#allocation15], 4
      %s54 = int_to_ptr.vmem [resolvable:$true] %s53
      %59 = dma.hbm_to_vmem [thread:$0]  %s4, 1024, %s54, [#allocation14], 128, 128, 8
    $region21: #{baseline_forward.1} parent=1 // pred_fallthru
      _
    // Predicated region
    $region22: #{baseline_forward.1} parent=1 // pred_check
      _
    $region23: #{baseline_forward.1} parent=1 // pred_check_branch
      %61 = sbr.rel (0) target = $region25
    $region24: #{baseline_forward.1} parent=1 // pred_region
      %s63 = ssub.s32 1024, 1024
      %64 = vsyncadd [#allocation17], %s63
      %s65 = sshll.u32 [#allocation16], 4
      %s66 = int_to_ptr.vmem [resolvable:$true] %s65
      %71 = dma.hbm_to_vmem [thread:$0]  %s5, 1024, %s66, [#allocation17], 128, 128, 8
    $region25: #{baseline_forward.1} parent=1 // pred_fallthru
      _
    // Predicated region
    $region26: #{baseline_forward.1} parent=1 // pred_check
      _
    $region27: #{baseline_forward.1} parent=1 // pred_check_branch
      %73 = sbr.rel (0) target = $region29
    $region28: #{baseline_forward.1} parent=1 // pred_region
      %s75 = ssub.s32 32, 32
      %76 = vsyncadd [#allocation17], %s75
      %s78 = sshll.u32 [#allocation18], 4
      %s79 = int_to_ptr.vmem [resolvable:$true] %s78
      %81 = dma.hbm_to_vmem [thread:$0]  %s6, 32, %s79, [#allocation17]
    $region29: #{baseline_forward.1} parent=1 // pred_fallthru
      _
    // Predicated region
    $region30: #{baseline_forward.1} parent=1 // pred_check
      _
    $region31: #{baseline_forward.1} parent=1 // pred_check_branch
      %83 = sbr.rel (0) target = $region33
    $region32: #{baseline_forward.1} parent=1 // pred_region
      _
    $region33: #{baseline_forward.1} parent=1 // pred_fallthru
      _
    // Predicated region
    $region34: #{baseline_forward.1} parent=1 // pred_check
      _
    $region35: #{baseline_forward.1} parent=1 // pred_check_branch
      %85 = sbr.rel (0) target = $region37
    $region36: #{baseline_forward.1} parent=1 // pred_region
      %s87 = ssub.s32 1024, 1024
      %88 = vsyncadd [#allocation20], %s87
      %s89 = sshll.u32 [#allocation19], 4
      %s90 = int_to_ptr.vmem [resolvable:$true] %s89
      %95 = dma.hbm_to_vmem [thread:$0]  %s8, 1024, %s90, [#allocation20], 128, 128, 8
    $region37: #{baseline_forward.1} parent=1 // pred_fallthru
      _
    // Predicated region
    $region38: #{baseline_forward.1} parent=1 // pred_check
      _
    $region39: #{baseline_forward.1} parent=1 // pred_check_branch
      %97 = sbr.rel (0) target = $region41
    $region40: #{baseline_forward.1} parent=1 // pred_region
      %s99 = ssub.s32 32, 32
      %100 = vsyncadd [#allocation20], %s99
      %s102 = sshll.u32 [#allocation21], 4
      %s103 = int_to_ptr.vmem [resolvable:$true] %s102
      %105 = dma.hbm_to_vmem [thread:$0]  %s9, 32, %s103, [#allocation20]
    $region41: #{baseline_forward.1} parent=1 // pred_fallthru
      _
    // Predicated region
    $region42: #{baseline_forward.1} parent=1 // pred_check
      _
    $region43: #{baseline_forward.1} parent=1 // pred_check_branch
      %107 = sbr.rel (0) target = $region45
    $region44: #{baseline_forward.1} parent=1 // pred_region
      %s109 = ssub.s32 512, 512
      %110 = vsyncadd [#allocation23], %s109
      %s111 = sshll.u32 [#allocation22], 4
      %s112 = int_to_ptr.vmem [resolvable:$true] %s111
      %117 = dma.hbm_to_vmem [thread:$0]  %s10, 512, %s112, [#allocation23], 64, 64, 4
    $region45: #{baseline_forward.1} parent=1 // pred_fallthru
      _
    // Predicated region
    $region46: #{baseline_forward.1} parent=1 // pred_check
      _
    $region47: #{baseline_forward.1} parent=1 // pred_check_branch
      %119 = sbr.rel (0) target = $region49
    $region48: #{baseline_forward.1} parent=1 // pred_region
      _
    $region49: #{baseline_forward.1} parent=1 // pred_fallthru
      _
    // Predicated region
    $region50: #{baseline_forward.1} parent=1 // pred_check
      _
    $region51: #{baseline_forward.1} parent=1 // pred_check_branch
      %121 = sbr.rel (0) target = $region53
    $region52: #{baseline_forward.1} parent=1 // pred_region
      %122 = dma.done [#allocation12], 1024
    $region53: #{baseline_forward.1} parent=1 // pred_fallthru
      _
    // Predicated region
    $region54: #{baseline_forward.1} parent=1 // pred_check
      _
    $region55: #{baseline_forward.1} parent=1 // pred_check_branch
      %124 = sbr.rel (0) target = $region57
    $region56: #{baseline_forward.1} parent=1 // pred_region
      %125 = dma.done [#allocation14], 32
    $region57: #{baseline_forward.1} parent=1 // pred_fallthru
      _
    // Predicated region
    $region58: #{baseline_forward.1} parent=1 // pred_check
      _
    $region59: #{baseline_forward.1} parent=1 // pred_check_branch
      %127 = sbr.rel (0) target = $region61
    $region60: #{baseline_forward.1} parent=1 // pred_region
      %128 = dma.done [#allocation14], 1024
    $region61: #{baseline_forward.1} parent=1 // pred_fallthru
      _
    // Predicated region
    $region62: #{baseline_forward.1} parent=1 // pred_check
      _
    $region63: #{baseline_forward.1} parent=1 // pred_check_branch
      %130 = sbr.rel (0) target = $region65
    $region64: #{baseline_forward.1} parent=1 // pred_region
      %131 = dma.done [#allocation17], 1024
    $region65: #{baseline_forward.1} parent=1 // pred_fallthru
      _
    // Predicated region
    $region66: #{baseline_forward.1} parent=1 // pred_check
      _
    $region67: #{baseline_forward.1} parent=1 // pred_check_branch
      %133 = sbr.rel (0) target = $region69
    $region68: #{baseline_forward.1} parent=1 // pred_region
      %134 = dma.done [#allocation17], 32
    $region69: #{baseline_forward.1} parent=1 // pred_fallthru
      _
    // Predicated region
    $region70: #{baseline_forward.1} parent=1 // pred_check
      _
    $region71: #{baseline_forward.1} parent=1 // pred_check_branch
      %136 = sbr.rel (0) target = $region73
    $region72: #{baseline_forward.1} parent=1 // pred_region
      %137 = dma.done [#allocation20], 1024
    $region73: #{baseline_forward.1} parent=1 // pred_fallthru
      _
    // Predicated region
    $region74: #{baseline_forward.1} parent=1 // pred_check
      _
    $region75: #{baseline_forward.1} parent=1 // pred_check_branch
      %139 = sbr.rel (0) target = $region77
    $region76: #{baseline_forward.1} parent=1 // pred_region
      %140 = dma.done [#allocation20], 32
    $region77: #{baseline_forward.1} parent=1 // pred_fallthru
      _
    // Predicated region
    $region78: #{baseline_forward.1} parent=1 // pred_check
      _
    $region79: #{baseline_forward.1} parent=1 // pred_check_branch
      %142 = sbr.rel (0) target = $region81
    $region80: #{baseline_forward.1} parent=1 // pred_region
      %143 = dma.done [#allocation23], 512
    $region81: #{baseline_forward.1} parent=1 // pred_fallthru
      _
    %v145 = vld [vmem:[%s0] sm:$0x1]
    %v146 = vld [vmem:[%s0 + $0x1] sm:$0x1]
    %v147 = vld [vmem:[%s0 + $0x2] sm:$0x1]
    %v148 = vld [vmem:[%s0 + $0x3] sm:$0x1]
    %v149 = vld [vmem:[%s0 + $0x4] sm:$0x1]
    %v150 = vld [vmem:[%s0 + $0x5] sm:$0x1]
    %v151 = vld [vmem:[%s0 + $0x6] sm:$0x1]
    %v152 = vld [vmem:[%s0 + $0x7] sm:$0x1]
    %v153 = vld [vmem:[%s1] sm:$0xff]
    %v154 = vld [vmem:[%s1 + $0x8] sm:$0xff]
    %v155 = vld [vmem:[%s1 + $0x10] sm:$0xff]
    %v156 = vld [vmem:[%s1 + $0x18] sm:$0xff]
    %s157 = scalar_lea.vmem %s1, 32
    %v158 = vld [vmem:[%s157] sm:$0xff]
    %v159 = vld [vmem:[%s157 + $0x8] sm:$0xff]
    %v160 = vld [vmem:[%s157 + $0x10] sm:$0xff]
    %v161 = vld [vmem:[%s157 + $0x18] sm:$0xff]
    %v170 = vcombine.low %v145, %v146
    %v171 = vcombine.low %v147, %v148
    %v172 = vcombine.low %v149, %v150
    %v173 = vcombine.low %v151, %v152
    %v175 = vunpack.c.l.s4 1966171168
    %v176 = vunpack.c.0.s8 %v175
    %v177 = vlaneseq
    %v178 = vshrl.u32 %v177, 7
    %v179 = vsub.s32 %v176, %v178
    %v180 = vrot.slane %v170, %v179
    %v182 = vunpack.c.l.s4 1966171168
    %v183 = vunpack.c.0.s8 %v182
    %v184 = vlaneseq
    %v185 = vshrl.u32 %v184, 7
    %v186 = vsub.s32 %v183, %v185
    %v187 = vrot.slane %v171, %v186
    %v189 = vunpack.c.l.s4 1966171168
    %v190 = vunpack.c.0.s8 %v189
    %v191 = vlaneseq
    %v192 = vshrl.u32 %v191, 7
    %v193 = vsub.s32 %v190, %v192
    %v194 = vrot.slane %v172, %v193
    %v196 = vunpack.c.l.s4 1966171168
    %v197 = vunpack.c.0.s8 %v196
    %v198 = vlaneseq
    %v199 = vshrl.u32 %v198, 7
    %v200 = vsub.s32 %v197, %v199
    %v201 = vrot.slane %v173, %v200
    %v202 = vcombine.low %v180, %v187
    %v203 = vcombine.low %v194, %v201
    %v205 = vunpack.c.l.s4 1966171168
    %v206 = vunpack.c.0.s8 %v205
    %v207 = vlaneseq
    %v208 = vshrl.u32 %v207, 7
    %v209 = vsub.s32 %v206, %v208
    %v210 = vrot.slane %v202, %v209
    %v212 = vunpack.c.l.s4 1966171168
    %v213 = vunpack.c.0.s8 %v212
    %v214 = vlaneseq
    %v215 = vshrl.u32 %v214, 7
    %v216 = vsub.s32 %v213, %v215
    %v217 = vrot.slane %v203, %v216
    %v218 = vcombine.low %v210, %v217
    %219 = vrot.lane.b32.xlu0 %v218, 96
    %v220 = vpop.permute.xlu0 %219
    %v225 = vunpack.c.l.b16 %v158
    %v226 = vunpack.c.h.b16 %v158
    %v227 = vunpack.c.l.b16 %v159
    %v228 = vunpack.c.h.b16 %v159
    %v229 = vunpack.c.l.b16 %v160
    %v230 = vunpack.c.h.b16 %v160
    %v231 = vunpack.c.l.b16 %v161
    %v232 = vunpack.c.h.b16 %v161
    %v233 = vpack.c.b16 %v227, %v225
    %v234 = vpack.c.b16 %v228, %v226
    %v235 = vpack.c.b16 %v231, %v229
    %v236 = vpack.c.b16 %v232, %v230
    %vm241 = vcmask 261120
    %v243 = vsel %vm241, %v220, 0
    %245 = vmatprep.subr.bf16.mxu0 0
    %246 = vmatpush1.bf16.msra.mxu0 0
    %247 = vmatprep.subr.bf16.mxu0 0
    %248 = vmatpush1.bf16.msra.mxu0 0
    %249 = vmatprep.subr.bf16.mxu0 0
    %250 = vmatpush1.bf16.msra.mxu0 0
    %251 = vmatprep.subr.bf16.mxu0 0
    %252 = vmatpush1.bf16.msra.mxu0 0
    %253 = vmatprep.subr.bf16.mxu0 0
    %254 = vmatpush1.bf16.msra.mxu0 0
    %255 = vmatprep.subr.bf16.mxu0 0
    %256 = vmatpush1.bf16.msra.mxu0 0
    %257 = vmatprep.subr.bf16.mxu0 %v236
    %258 = vmatpush1.bf16.msra.mxu0 %v235
    %259 = vmatprep.subr.bf16.mxu0 %v234
    %260 = vmatpush1.bf16.msra.mxu0 %v233
    %261 = vmatprep.subr.bf16.mxu0 0
    %262 = vmatpush2.bf16.msra.mxu0 0
    %263 = vmatprep.subr.bf16.mxu0 0
    %264 = vmatpush2.bf16.msra.mxu0 0
    %265 = vmatprep.subr.bf16.mxu0 0
    %266 = vmatpush2.bf16.msra.mxu0 0
    %267 = vmatprep.subr.bf16.mxu0 0
    %268 = vmatpush2.bf16.msra.mxu0 0
    %269 = vmatprep.subr.bf16.mxu0 0
    %270 = vmatpush2.bf16.msra.mxu0 0
    %271 = vmatprep.subr.bf16.mxu0 0
    %272 = vmatpush2.bf16.msra.mxu0 0
    %273 = vmatprep.subr.bf16.mxu0 0
    %274 = vmatpush2.bf16.msra.mxu0 0
    %275 = vmatprep.subr.bf16.mxu0 0
    %276 = vmatpush2.bf16.msra.mxu0 0
    %277 = vmatprep.mubr.bf16.mxu0 0
    %278 = vmatmul.mubr.bf16.gmra.mxu0 %v243
    %v279 = vpop.f32.mrf.mxu0
    %v280 = vadd.f32 0.0, %v279
    %v281 = vpop.f32.mrf.mxu0
    %v282 = vadd.f32 0.0, %v281
    %v283 = vpop.f32.mrf.mxu0
    %v284 = vadd.f32 0.0, %v283
    %v285 = vpop.f32.mrf.mxu0
    %v286 = vadd.f32 0.0, %v285
    %287 = vdwg.mxu0
    %v292 = vunpack.c.l.b16 %v153
    %v293 = vunpack.c.h.b16 %v153
    %v294 = vunpack.c.l.b16 %v154
    %v295 = vunpack.c.h.b16 %v154
    %v296 = vunpack.c.l.b16 %v155
    %v297 = vunpack.c.h.b16 %v155
    %v298 = vunpack.c.l.b16 %v156
    %v299 = vunpack.c.h.b16 %v156
    %v300 = vpack.c.b16 %v294, %v292
    %v301 = vpack.c.b16 %v295, %v293
    %v302 = vpack.c.b16 %v298, %v296
    %v303 = vpack.c.b16 %v299, %v297
    %v309 = vsel %vm241, %v218, 0
    %311 = vmatprep.subr.bf16.mxu0 0
    %312 = vmatpush1.bf16.msra.mxu0 0
    %313 = vmatprep.subr.bf16.mxu0 0
    %314 = vmatpush1.bf16.msra.mxu0 0
    %315 = vmatprep.subr.bf16.mxu0 0
    %316 = vmatpush1.bf16.msra.mxu0 0
    %317 = vmatprep.subr.bf16.mxu0 0
    %318 = vmatpush1.bf16.msra.mxu0 0
    %319 = vmatprep.subr.bf16.mxu0 0
    %320 = vmatpush1.bf16.msra.mxu0 0
    %321 = vmatprep.subr.bf16.mxu0 0
    %322 = vmatpush1.bf16.msra.mxu0 0
    %323 = vmatprep.subr.bf16.mxu0 %v303
    %324 = vmatpush1.bf16.msra.mxu0 %v302
    %325 = vmatprep.subr.bf16.mxu0 %v301
    %326 = vmatpush1.bf16.msra.mxu0 %v300
    %327 = vmatprep.subr.bf16.mxu0 0
    %328 = vmatpush2.bf16.msra.mxu0 0
    %329 = vmatprep.subr.bf16.mxu0 0
    %330 = vmatpush2.bf16.msra.mxu0 0
    %331 = vmatprep.subr.bf16.mxu0 0
    %332 = vmatpush2.bf16.msra.mxu0 0
    %333 = vmatprep.subr.bf16.mxu0 0
    %334 = vmatpush2.bf16.msra.mxu0 0
    %335 = vmatprep.subr.bf16.mxu0 0
    %336 = vmatpush2.bf16.msra.mxu0 0
    %337 = vmatprep.subr.bf16.mxu0 0
    %338 = vmatpush2.bf16.msra.mxu0 0
    %339 = vmatprep.subr.bf16.mxu0 0
    %340 = vmatpush2.bf16.msra.mxu0 0
    %341 = vmatprep.subr.bf16.mxu0 0
    %342 = vmatpush2.bf16.msra.mxu0 0
    %343 = vmatprep.mubr.bf16.mxu0 0
    %344 = vmatmul.mubr.bf16.gmra.mxu0 %v309
    %v345 = vpop.f32.mrf.mxu0
    %v346 = vadd.f32 %v280, %v345
    %v347 = vpop.f32.mrf.mxu0
    %v348 = vadd.f32 %v282, %v347
    %v349 = vpop.f32.mrf.mxu0
    %v350 = vadd.f32 %v284, %v349
    %v351 = vpop.f32.mrf.mxu0
    %v352 = vadd.f32 %v286, %v351
    %353 = vdwg.mxu0
    %v354 = vld [vmem:[#allocation13] sm:$0x3]
    %v356 = vlaneseq
    %v357 = vshrl.u32 %v356, 7
    %v358 = vsub.s32 0, %v357
    %v359 = vrot.slane %v354, %v358
    %v360 = vlaneseq
    %v361 = vshrl.u32 %v360, 7
    %v362 = vsub.s32 1, %v361
    %v363 = vrot.slane %v354, %v362
    %v366 = vadd.f32 %v346, %v359
    %v367 = vadd.f32 %v348, %v363
    %v368 = vadd.f32 %v350, %v359
    %v369 = vadd.f32 %v352, %v363
    %v374 = vcombine.low %v366, %v367
    %v375 = vcombine.high %v366, %v367
    %v377 = vunpack.c.l.s4 1983009808
    %v378 = vunpack.c.0.s8 %v377
    %v379 = vlaneseq
    %v380 = vshrl.u32 %v379, 7
    %v381 = vsub.s32 %v378, %v380
    %v382 = vrot.slane %v374, %v381
    %v384 = vunpack.c.l.s4 1983009808
    %v385 = vunpack.c.0.s8 %v384
    %v386 = vlaneseq
    %v387 = vshrl.u32 %v386, 7
    %v388 = vsub.s32 %v385, %v387
    %v389 = vrot.slane %v375, %v388
    %v390 = vcombine.high %v382, %v382
    %v391 = vcombine.high %v389, %v389
    %v392 = vcombine.low %v368, %v369
    %v393 = vcombine.high %v368, %v369
    %v395 = vunpack.c.l.s4 1983009808
    %v396 = vunpack.c.0.s8 %v395
    %v397 = vlaneseq
    %v398 = vshrl.u32 %v397, 7
    %v399 = vsub.s32 %v396, %v398
    %v400 = vrot.slane %v392, %v399
    %v402 = vunpack.c.l.s4 1983009808
    %v403 = vunpack.c.0.s8 %v402
    %v404 = vlaneseq
    %v405 = vshrl.u32 %v404, 7
    %v406 = vsub.s32 %v403, %v405
    %v407 = vrot.slane %v393, %v406
    %v408 = vcombine.high %v400, %v400
    %v409 = vcombine.high %v407, %v407
    %418 = vst [vmem:[#allocation2] sm:$0xf] %v382
    %419 = vst [vmem:[#allocation2 + $0x4] sm:$0xf] %v390
    %420 = vst [vmem:[#allocation2 + $0x8] sm:$0xf] %v389
    %421 = vst [vmem:[#allocation2 + $0xc] sm:$0xf] %v391
    %422 = vst [vmem:[#allocation2 + $0x10] sm:$0xf] %v400
    %423 = vst [vmem:[#allocation2 + $0x14] sm:$0xf] %v408
    %424 = vst [vmem:[#allocation2 + $0x18] sm:$0xf] %v407
    %425 = vst [vmem:[#allocation2 + $0x1c] sm:$0xf] %v409
    %v426 = vld [vmem:[#allocation11] sm:$0xff]
    %v427 = vld [vmem:[#allocation11 + $0x8] sm:$0xff]
    %v428 = vld [vmem:[#allocation11 + $0x10] sm:$0xff]
    %v429 = vld [vmem:[#allocation11 + $0x18] sm:$0xff]
    %v430 = vld [vmem:[#allocation11 + $0x20] sm:$0xff]
    %v431 = vld [vmem:[#allocation11 + $0x28] sm:$0xff]
    %v432 = vld [vmem:[#allocation11 + $0x30] sm:$0xff]
    %v433 = vld [vmem:[#allocation11 + $0x38] sm:$0xff]
    %v434 = vpack.c.bf16 0.0, 0.0
    %v443 = vunpack.c.l.b16 %v426
    %v444 = vunpack.c.h.b16 %v426
    %v445 = vunpack.c.l.b16 %v427
    %v446 = vunpack.c.h.b16 %v427
    %v447 = vunpack.c.l.b16 %v428
    %v448 = vunpack.c.h.b16 %v428
    %v449 = vunpack.c.l.b16 %v429
    %v450 = vunpack.c.h.b16 %v429
    %v451 = vunpack.c.l.b16 %v430
    %v452 = vunpack.c.h.b16 %v430
    %v453 = vunpack.c.l.b16 %v431
    %v454 = vunpack.c.h.b16 %v431
    %v455 = vunpack.c.l.b16 %v432
    %v456 = vunpack.c.h.b16 %v432
    %v457 = vunpack.c.l.b16 %v433
    %v458 = vunpack.c.h.b16 %v433
    %v459 = vpack.c.b16 %v445, %v443
    %v460 = vpack.c.b16 %v446, %v444
    %v461 = vpack.c.b16 %v449, %v447
    %v462 = vpack.c.b16 %v450, %v448
    %v463 = vpack.c.b16 %v453, %v451
    %v464 = vpack.c.b16 %v454, %v452
    %v465 = vpack.c.b16 %v457, %v455
    %v466 = vpack.c.b16 %v458, %v456
    %vm475 = vcmask 523264
    %v477 = vsel %vm475, %v434, 0
    %479 = vmatprep.subr.bf16.mxu0 0
    %480 = vmatpush1.bf16.msra.mxu0 0
    %481 = vmatprep.subr.bf16.mxu0 0
    %482 = vmatpush1.bf16.msra.mxu0 0
    %483 = vmatprep.subr.bf16.mxu0 0
    %484 = vmatpush1.bf16.msra.mxu0 0
    %485 = vmatprep.subr.bf16.mxu0 0
    %486 = vmatpush1.bf16.msra.mxu0 0
    %487 = vmatprep.subr.bf16.mxu0 %v466
    %488 = vmatpush1.bf16.msra.mxu0 %v465
    %489 = vmatprep.subr.bf16.mxu0 %v464
    %490 = vmatpush1.bf16.msra.mxu0 %v463
    %491 = vmatprep.subr.bf16.mxu0 %v462
    %492 = vmatpush1.bf16.msra.mxu0 %v461
    %493 = vmatprep.subr.bf16.mxu0 %v460
    %494 = vmatpush1.bf16.msra.mxu0 %v459
    %495 = vmatprep.subr.bf16.mxu0 0
    %496 = vmatpush2.bf16.msra.mxu0 0
    %497 = vmatprep.subr.bf16.mxu0 0
    %498 = vmatpush2.bf16.msra.mxu0 0
    %499 = vmatprep.subr.bf16.mxu0 0
    %500 = vmatpush2.bf16.msra.mxu0 0
    %501 = vmatprep.subr.bf16.mxu0 0
    %502 = vmatpush2.bf16.msra.mxu0 0
    %503 = vmatprep.subr.bf16.mxu0 0
    %504 = vmatpush2.bf16.msra.mxu0 0
    %505 = vmatprep.subr.bf16.mxu0 0
    %506 = vmatpush2.bf16.msra.mxu0 0
    %507 = vmatprep.subr.bf16.mxu0 0
    %508 = vmatpush2.bf16.msra.mxu0 0
    %509 = vmatprep.subr.bf16.mxu0 0
    %510 = vmatpush2.bf16.msra.mxu0 0
    %511 = vmatprep.mubr.bf16.mxu0 0
    %512 = vmatmul.mubr.bf16.gmra.mxu0 %v477
    %v513 = vpop.f32.mrf.mxu0
    %v514 = vadd.f32 0.0, %v513
    %v515 = vpop.f32.mrf.mxu0
    %v516 = vadd.f32 0.0, %v515
    %v517 = vpop.f32.mrf.mxu0
    %v518 = vpop.f32.mrf.mxu0
    %519 = vdwg.mxu0
    %v520 = vld [vmem:[#allocation2] sm:$0xf]
    %v521 = vadd.f32 %v520, %v514
    %s522 = scalar_lea.vmem [#allocation2], 28
    %v523 = vld [vmem:[%s522] sm:$0xf]
    %v525 = vrot.slane %v523, 2
    %v527 = vadd.f32 %v525, %v516
    %v528 = vxor.u32 %v521, 2147483648
    %v529 = vmul.f32 %v528, 1.442695
    %v530 = vpow.pop %v529
    %v531 = vadd.f32 %v530, 1.0
    %v532 = vrcp.pop %v531
    %v533 = vmul.f32 1.0, %v532
    %v534 = vtanh.pop %v521
    %v535 = vmul.f32 %v533, 0.0
    %537 = vrot.lane.b32.xlu0 %v534, 32
    %v538 = vpop.permute.xlu0 %537
    %v540 = vmul.f32 %v533, %v538
    %542 = vrot.lane.b32.xlu0 %v540, 32
    %v543 = vpop.permute.xlu0 %542
    %v545 = vadd.f32 %v535, %v543
    %v546 = vtanh.pop %v545
    %548 = vrot.lane.b32.xlu0 %v546, 32
    %v549 = vpop.permute.xlu0 %548
    %v551 = vmul.f32 %v533, %v549
    %v552 = vxor.u32 %v527, 2147483648
    %v553 = vmul.f32 %v552, 1.442695
    %v554 = vpow.pop %v553
    %v555 = vadd.f32 %v554, 1.0
    %v556 = vrcp.pop %v555
    %v557 = vmul.f32 1.0, %v556
    %v558 = vtanh.pop %v527
    %v559 = vmul.f32 %v557, 0.0
    %561 = vrot.lane.b32.xlu0 %v558, 32
    %v562 = vpop.permute.xlu0 %561
    %v564 = vmul.f32 %v557, %v562
    %566 = vrot.lane.b32.xlu0 %v564, 32
    %v567 = vpop.permute.xlu0 %566
    %v569 = vadd.f32 %v559, %v567
    %v570 = vtanh.pop %v569
    %572 = vrot.lane.b32.xlu0 %v570, 32
    %v573 = vpop.permute.xlu0 %572
    %v575 = vmul.f32 %v557, %v573
    %v576 = vpack.c.bf16 %v551, %v551
    %v579 = vunpack.c.l.s4 1966171168
    %v580 = vunpack.c.0.s8 %v579
    %v581 = vlaneseq
    %v582 = vshrl.u32 %v581, 7
    %v583 = vsub.s32 %v580, %v582
    %v584 = vrot.slane %v576, %v583
    %v586 = vunpack.c.l.s4 1966171168
    %v587 = vunpack.c.0.s8 %v586
    %v588 = vlaneseq
    %v589 = vshrl.u32 %v588, 7
    %v590 = vsub.s32 %v587, %v589
    %v591 = vrot.slane %v584, %v590
    %592 = vrot.lane.b32.xlu0 %v591, 64
    %v593 = vpop.permute.xlu0 %592
    %vm595 = vcmask 253952
    %596 = vst.msk [vmem:[#allocation3] sm:$0x1] %vm595, %v593
    %v597 = vpack.c.bf16 %v575, %v575
    %v600 = vunpack.c.l.s4 1966171168
    %v601 = vunpack.c.0.s8 %v600
    %v602 = vlaneseq
    %v603 = vshrl.u32 %v602, 7
    %v604 = vsub.s32 %v601, %v603
    %v605 = vrot.slane %v597, %v604
    %v607 = vunpack.c.l.s4 1966171168
    %v608 = vunpack.c.0.s8 %v607
    %v609 = vlaneseq
    %v610 = vshrl.u32 %v609, 7
    %v611 = vsub.s32 %v608, %v610
    %v612 = vrot.slane %v605, %v611
    %613 = vrot.lane.b32.xlu0 %v612, 64
    %v614 = vpop.permute.xlu0 %613
    %s616 = scalar_lea.vmem [#allocation4], 7
    %617 = vst.msk [vmem:[%s616] sm:$0x1] %vm595, %v614
    %v620 = vunpack.c.l.s4 1983009808
    %v621 = vunpack.c.0.s8 %v620
    %v622 = vlaneseq
    %v623 = vshrl.u32 %v622, 7
    %v624 = vsub.s32 %v621, %v623
    %v625 = vrot.slane %v551, %v624
    %626 = vrot.lane.b32.xlu0 %v625, 64
    %v627 = vpop.permute.xlu0 %626
    %v631 = vunpack.c.l.s4 1983009808
    %v632 = vunpack.c.0.s8 %v631
    %v633 = vlaneseq
    %v634 = vshrl.u32 %v633, 7
    %v635 = vsub.s32 %v632, %v634
    %v636 = vrot.slane %v575, %v635
    %637 = vrot.lane.b32.xlu0 %v636, 96
    %v638 = vpop.permute.xlu0 %637
    %v640 = vsel %vm241, %v627, %v638
    %v641 = vpack.c.bf16 %v640, %v640
    %v643 = vsel %vm475, %v641, 0
    %645 = vmatprep.subr.bf16.mxu0 0
    %646 = vmatpush1.bf16.msra.mxu0 0
    %647 = vmatprep.subr.bf16.mxu0 0
    %648 = vmatpush1.bf16.msra.mxu0 0
    %649 = vmatprep.subr.bf16.mxu0 0
    %650 = vmatpush1.bf16.msra.mxu0 0
    %651 = vmatprep.subr.bf16.mxu0 0
    %652 = vmatpush1.bf16.msra.mxu0 0
    %653 = vmatprep.subr.bf16.mxu0 %v466
    %654 = vmatpush1.bf16.msra.mxu0 %v465
    %655 = vmatprep.subr.bf16.mxu0 %v464
    %656 = vmatpush1.bf16.msra.mxu0 %v463
    %657 = vmatprep.subr.bf16.mxu0 %v462
    %658 = vmatpush1.bf16.msra.mxu0 %v461
    %659 = vmatprep.subr.bf16.mxu0 %v460
    %660 = vmatpush1.bf16.msra.mxu0 %v459
    %661 = vmatprep.subr.bf16.mxu0 0
    %662 = vmatpush2.bf16.msra.mxu0 0
    %663 = vmatprep.subr.bf16.mxu0 0
    %664 = vmatpush2.bf16.msra.mxu0 0
    %665 = vmatprep.subr.bf16.mxu0 0
    %666 = vmatpush2.bf16.msra.mxu0 0
    %667 = vmatprep.subr.bf16.mxu0 0
    %668 = vmatpush2.bf16.msra.mxu0 0
    %669 = vmatprep.subr.bf16.mxu0 0
    %670 = vmatpush2.bf16.msra.mxu0 0
    %671 = vmatprep.subr.bf16.mxu0 0
    %672 = vmatpush2.bf16.msra.mxu0 0
    %673 = vmatprep.subr.bf16.mxu0 0
    %674 = vmatpush2.bf16.msra.mxu0 0
    %675 = vmatprep.subr.bf16.mxu0 0
    %676 = vmatpush2.bf16.msra.mxu0 0
    %677 = vmatprep.mubr.bf16.mxu0 0
    %678 = vmatmul.mubr.bf16.gmra.mxu0 %v643
    %v679 = vpop.f32.mrf.mxu0
    %v680 = vadd.f32 0.0, %v679
    %v681 = vpop.f32.mrf.mxu0
    %v682 = vadd.f32 0.0, %v681
    %v683 = vpop.f32.mrf.mxu0
    %v684 = vpop.f32.mrf.mxu0
    %685 = vdwg.mxu0
    %s686 = scalar_lea.vmem [#allocation2], 4
    %v687 = vld [vmem:[%s686] sm:$0xf]
    %v688 = vadd.f32 %v687, %v680
    %s689 = scalar_lea.vmem [#allocation2], 24
    %v690 = vld [vmem:[%s689] sm:$0xf]
    %v692 = vrot.slane %v690, 2
    %v694 = vadd.f32 %v692, %v682
    %v695 = vxor.u32 %v688, 2147483648
    %v696 = vmul.f32 %v695, 1.442695
    %v697 = vpow.pop %v696
    %v698 = vadd.f32 %v697, 1.0
    %v699 = vrcp.pop %v698
    %v700 = vmul.f32 1.0, %v699
    %v701 = vtanh.pop %v688
    %v702 = vmul.f32 %v700, %v545
    %704 = vrot.lane.b32.xlu0 %v701, 32
    %v705 = vpop.permute.xlu0 %704
    %v707 = vmul.f32 %v700, %v705
    %709 = vrot.lane.b32.xlu0 %v707, 32
    %v710 = vpop.permute.xlu0 %709
    %v712 = vadd.f32 %v702, %v710
    %v713 = vtanh.pop %v712
    %715 = vrot.lane.b32.xlu0 %v713, 32
    %v716 = vpop.permute.xlu0 %715
    %v718 = vmul.f32 %v700, %v716
    %v719 = vxor.u32 %v694, 2147483648
    %v720 = vmul.f32 %v719, 1.442695
    %v721 = vpow.pop %v720
    %v722 = vadd.f32 %v721, 1.0
    %v723 = vrcp.pop %v722
    %v724 = vmul.f32 1.0, %v723
    %v725 = vtanh.pop %v694
    %v726 = vmul.f32 %v724, %v569
    %728 = vrot.lane.b32.xlu0 %v725, 32
    %v729 = vpop.permute.xlu0 %728
    %v731 = vmul.f32 %v724, %v729
    %733 = vrot.lane.b32.xlu0 %v731, 32
    %v734 = vpop.permute.xlu0 %733
    %v736 = vadd.f32 %v726, %v734
    %v737 = vtanh.pop %v736
    %739 = vrot.lane.b32.xlu0 %v737, 32
    %v740 = vpop.permute.xlu0 %739
    %v742 = vmul.f32 %v724, %v740
    %v743 = vpack.c.bf16 %v718, %v718
    %v746 = vunpack.c.l.s4 1966171168
    %v747 = vunpack.c.0.s8 %v746
    %v748 = vlaneseq
    %v749 = vshrl.u32 %v748, 7
    %v750 = vsub.s32 %v747, %v749
    %v751 = vrot.slane %v743, %v750
    %v753 = vunpack.c.l.s4 1966171168
    %v754 = vunpack.c.0.s8 %v753
    %v755 = vlaneseq
    %v756 = vshrl.u32 %v755, 7
    %v757 = vsub.s32 %v754, %v756
    %v758 = vrot.slane %v751, %v757
    %759 = vrot.lane.b32.xlu0 %v758, 64
    %v760 = vpop.permute.xlu0 %759
    %s762 = scalar_lea.vmem [#allocation3], 1
    %763 = vst.msk [vmem:[%s762] sm:$0x1] %vm595, %v760
    %v764 = vpack.c.bf16 %v742, %v742
    %v767 = vunpack.c.l.s4 1966171168
    %v768 = vunpack.c.0.s8 %v767
    %v769 = vlaneseq
    %v770 = vshrl.u32 %v769, 7
    %v771 = vsub.s32 %v768, %v770
    %v772 = vrot.slane %v764, %v771
    %v774 = vunpack.c.l.s4 1966171168
    %v775 = vunpack.c.0.s8 %v774
    %v776 = vlaneseq
    %v777 = vshrl.u32 %v776, 7
    %v778 = vsub.s32 %v775, %v777
    %v779 = vrot.slane %v772, %v778
    %780 = vrot.lane.b32.xlu0 %v779, 64
    %v781 = vpop.permute.xlu0 %780
    %s783 = scalar_lea.vmem [#allocation4], 6
    %784 = vst.msk [vmem:[%s783] sm:$0x1] %vm595, %v781
    %v787 = vunpack.c.l.s4 1983009808
    %v788 = vunpack.c.0.s8 %v787
    %v789 = vlaneseq
    %v790 = vshrl.u32 %v789, 7
    %v791 = vsub.s32 %v788, %v790
    %v792 = vrot.slane %v718, %v791
    %793 = vrot.lane.b32.xlu0 %v792, 64
    %v794 = vpop.permute.xlu0 %793
    %v798 = vunpack.c.l.s4 1983009808
    %v799 = vunpack.c.0.s8 %v798
    %v800 = vlaneseq
    %v801 = vshrl.u32 %v800, 7
    %v802 = vsub.s32 %v799, %v801
    %v803 = vrot.slane %v742, %v802
    %804 = vrot.lane.b32.xlu0 %v803, 96
    %v805 = vpop.permute.xlu0 %804
    %v807 = vsel %vm241, %v794, %v805
    %v808 = vpack.c.bf16 %v807, %v807
    %v810 = vsel %vm475, %v808, 0
    %812 = vmatprep.subr.bf16.mxu0 0
    %813 = vmatpush1.bf16.msra.mxu0 0
    %814 = vmatprep.subr.bf16.mxu0 0
    %815 = vmatpush1.bf16.msra.mxu0 0
    %816 = vmatprep.subr.bf16.mxu0 0
    %817 = vmatpush1.bf16.msra.mxu0 0
    %818 = vmatprep.subr.bf16.mxu0 0
    %819 = vmatpush1.bf16.msra.mxu0 0
    %820 = vmatprep.subr.bf16.mxu0 %v466
    %821 = vmatpush1.bf16.msra.mxu0 %v465
    %822 = vmatprep.subr.bf16.mxu0 %v464
    %823 = vmatpush1.bf16.msra.mxu0 %v463
    %824 = vmatprep.subr.bf16.mxu0 %v462
    %825 = vmatpush1.bf16.msra.mxu0 %v461
    %826 = vmatprep.subr.bf16.mxu0 %v460
    %827 = vmatpush1.bf16.msra.mxu0 %v459
    %828 = vmatprep.subr.bf16.mxu0 0
    %829 = vmatpush2.bf16.msra.mxu0 0
    %830 = vmatprep.subr.bf16.mxu0 0
    %831 = vmatpush2.bf16.msra.mxu0 0
    %832 = vmatprep.subr.bf16.mxu0 0
    %833 = vmatpush2.bf16.msra.mxu0 0
    %834 = vmatprep.subr.bf16.mxu0 0
    %835 = vmatpush2.bf16.msra.mxu0 0
    %836 = vmatprep.subr.bf16.mxu0 0
    %837 = vmatpush2.bf16.msra.mxu0 0
    %838 = vmatprep.subr.bf16.mxu0 0
    %839 = vmatpush2.bf16.msra.mxu0 0
    %840 = vmatprep.subr.bf16.mxu0 0
    %841 = vmatpush2.bf16.msra.mxu0 0
    %842 = vmatprep.subr.bf16.mxu0 0
    %843 = vmatpush2.bf16.msra.mxu0 0
    %844 = vmatprep.mubr.bf16.mxu0 0
    %845 = vmatmul.mubr.bf16.gmra.mxu0 %v810
    %v846 = vpop.f32.mrf.mxu0
    %v847 = vadd.f32 0.0, %v846
    %v848 = vpop.f32.mrf.mxu0
    %v849 = vadd.f32 0.0, %v848
    %v850 = vpop.f32.mrf.mxu0
    %v851 = vpop.f32.mrf.mxu0
    %852 = vdwg.mxu0
    %s853 = scalar_lea.vmem [#allocation2], 8
    %v854 = vld [vmem:[%s853] sm:$0xf]
    %v855 = vadd.f32 %v854, %v847
    %s856 = scalar_lea.vmem [#allocation2], 20
    %v857 = vld [vmem:[%s856] sm:$0xf]
    %v859 = vrot.slane %v857, 2
    %v861 = vadd.f32 %v859, %v849
    %v862 = vxor.u32 %v855, 2147483648
    %v863 = vmul.f32 %v862, 1.442695
    %v864 = vpow.pop %v863
    %v865 = vadd.f32 %v864, 1.0
    %v866 = vrcp.pop %v865
    %v867 = vmul.f32 1.0, %v866
    %v868 = vtanh.pop %v855
    %v869 = vmul.f32 %v867, %v712
    %871 = vrot.lane.b32.xlu0 %v868, 32
    %v872 = vpop.permute.xlu0 %871
    %v874 = vmul.f32 %v867, %v872
    %876 = vrot.lane.b32.xlu0 %v874, 32
    %v877 = vpop.permute.xlu0 %876
    %v879 = vadd.f32 %v869, %v877
    %v880 = vtanh.pop %v879
    %882 = vrot.lane.b32.xlu0 %v880, 32
    %v883 = vpop.permute.xlu0 %882
    %v885 = vmul.f32 %v867, %v883
    %v886 = vxor.u32 %v861, 2147483648
    %v887 = vmul.f32 %v886, 1.442695
    %v888 = vpow.pop %v887
    %v889 = vadd.f32 %v888, 1.0
    %v890 = vrcp.pop %v889
    %v891 = vmul.f32 1.0, %v890
    %v892 = vtanh.pop %v861
    %v893 = vmul.f32 %v891, %v736
    %895 = vrot.lane.b32.xlu0 %v892, 32
    %v896 = vpop.permute.xlu0 %895
    %v898 = vmul.f32 %v891, %v896
    %900 = vrot.lane.b32.xlu0 %v898, 32
    %v901 = vpop.permute.xlu0 %900
    %v903 = vadd.f32 %v893, %v901
    %v904 = vtanh.pop %v903
    %906 = vrot.lane.b32.xlu0 %v904, 32
    %v907 = vpop.permute.xlu0 %906
    %v909 = vmul.f32 %v891, %v907
    %v910 = vpack.c.bf16 %v885, %v885
    %v913 = vunpack.c.l.s4 1966171168
    %v914 = vunpack.c.0.s8 %v913
    %v915 = vlaneseq
    %v916 = vshrl.u32 %v915, 7
    %v917 = vsub.s32 %v914, %v916
    %v918 = vrot.slane %v910, %v917
    %v920 = vunpack.c.l.s4 1966171168
    %v921 = vunpack.c.0.s8 %v920
    %v922 = vlaneseq
    %v923 = vshrl.u32 %v922, 7
    %v924 = vsub.s32 %v921, %v923
    %v925 = vrot.slane %v918, %v924
    %926 = vrot.lane.b32.xlu0 %v925, 64
    %v927 = vpop.permute.xlu0 %926
    %s929 = scalar_lea.vmem [#allocation3], 2
    %930 = vst.msk [vmem:[%s929] sm:$0x1] %vm595, %v927
    %v931 = vpack.c.bf16 %v909, %v909
    %v934 = vunpack.c.l.s4 1966171168
    %v935 = vunpack.c.0.s8 %v934
    %v936 = vlaneseq
    %v937 = vshrl.u32 %v936, 7
    %v938 = vsub.s32 %v935, %v937
    %v939 = vrot.slane %v931, %v938
    %v941 = vunpack.c.l.s4 1966171168
    %v942 = vunpack.c.0.s8 %v941
    %v943 = vlaneseq
    %v944 = vshrl.u32 %v943, 7
    %v945 = vsub.s32 %v942, %v944
    %v946 = vrot.slane %v939, %v945
    %947 = vrot.lane.b32.xlu0 %v946, 64
    %v948 = vpop.permute.xlu0 %947
    %s950 = scalar_lea.vmem [#allocation4], 5
    %951 = vst.msk [vmem:[%s950] sm:$0x1] %vm595, %v948
    %v954 = vunpack.c.l.s4 1983009808
    %v955 = vunpack.c.0.s8 %v954
    %v956 = vlaneseq
    %v957 = vshrl.u32 %v956, 7
    %v958 = vsub.s32 %v955, %v957
    %v959 = vrot.slane %v885, %v958
    %960 = vrot.lane.b32.xlu0 %v959, 64
    %v961 = vpop.permute.xlu0 %960
    %v965 = vunpack.c.l.s4 1983009808
    %v966 = vunpack.c.0.s8 %v965
    %v967 = vlaneseq
    %v968 = vshrl.u32 %v967, 7
    %v969 = vsub.s32 %v966, %v968
    %v970 = vrot.slane %v909, %v969
    %971 = vrot.lane.b32.xlu0 %v970, 96
    %v972 = vpop.permute.xlu0 %971
    %v974 = vsel %vm241, %v961, %v972
    %v975 = vpack.c.bf16 %v974, %v974
    %v977 = vsel %vm475, %v975, 0
    %979 = vmatprep.subr.bf16.mxu0 0
    %980 = vmatpush1.bf16.msra.mxu0 0
    %981 = vmatprep.subr.bf16.mxu0 0
    %982 = vmatpush1.bf16.msra.mxu0 0
    %983 = vmatprep.subr.bf16.mxu0 0
    %984 = vmatpush1.bf16.msra.mxu0 0
    %985 = vmatprep.subr.bf16.mxu0 0
    %986 = vmatpush1.bf16.msra.mxu0 0
    %987 = vmatprep.subr.bf16.mxu0 %v466
    %988 = vmatpush1.bf16.msra.mxu0 %v465
    %989 = vmatprep.subr.bf16.mxu0 %v464
    %990 = vmatpush1.bf16.msra.mxu0 %v463
    %991 = vmatprep.subr.bf16.mxu0 %v462
    %992 = vmatpush1.bf16.msra.mxu0 %v461
    %993 = vmatprep.subr.bf16.mxu0 %v460
    %994 = vmatpush1.bf16.msra.mxu0 %v459
    %995 = vmatprep.subr.bf16.mxu0 0
    %996 = vmatpush2.bf16.msra.mxu0 0
    %997 = vmatprep.subr.bf16.mxu0 0
    %998 = vmatpush2.bf16.msra.mxu0 0
    %999 = vmatprep.subr.bf16.mxu0 0
    %1000 = vmatpush2.bf16.msra.mxu0 0
    %1001 = vmatprep.subr.bf16.mxu0 0
    %1002 = vmatpush2.bf16.msra.mxu0 0
    %1003 = vmatprep.subr.bf16.mxu0 0
    %1004 = vmatpush2.bf16.msra.mxu0 0
    %1005 = vmatprep.subr.bf16.mxu0 0
    %1006 = vmatpush2.bf16.msra.mxu0 0
    %1007 = vmatprep.subr.bf16.mxu0 0
    %1008 = vmatpush2.bf16.msra.mxu0 0
    %1009 = vmatprep.subr.bf16.mxu0 0
    %1010 = vmatpush2.bf16.msra.mxu0 0
    %1011 = vmatprep.mubr.bf16.mxu0 0
    %1012 = vmatmul.mubr.bf16.gmra.mxu0 %v977
    %v1013 = vpop.f32.mrf.mxu0
    %v1014 = vadd.f32 0.0, %v1013
    %v1015 = vpop.f32.mrf.mxu0
    %v1016 = vadd.f32 0.0, %v1015
    %v1017 = vpop.f32.mrf.mxu0
    %v1018 = vpop.f32.mrf.mxu0
    %1019 = vdwg.mxu0
    %s1020 = scalar_lea.vmem [#allocation2], 12
    %v1021 = vld [vmem:[%s1020] sm:$0xf]
    %v1022 = vadd.f32 %v1021, %v1014
    %s1023 = scalar_lea.vmem [#allocation2], 16
    %v1024 = vld [vmem:[%s1023] sm:$0xf]
    %v1026 = vrot.slane %v1024, 2
    %v1028 = vadd.f32 %v1026, %v1016
    %v1029 = vxor.u32 %v1022, 2147483648
    %v1030 = vmul.f32 %v1029, 1.442695
    %v1031 = vpow.pop %v1030
    %v1032 = vadd.f32 %v1031, 1.0
    %v1033 = vrcp.pop %v1032
    %v1034 = vmul.f32 1.0, %v1033
    %v1035 = vtanh.pop %v1022
    %v1036 = vmul.f32 %v1034, %v879
    %1038 = vrot.lane.b32.xlu0 %v1035, 32
    %v1039 = vpop.permute.xlu0 %1038
    %v1041 = vmul.f32 %v1034, %v1039
    %1043 = vrot.lane.b32.xlu0 %v1041, 32
    %v1044 = vpop.permute.xlu0 %1043
    %v1046 = vadd.f32 %v1036, %v1044
    %v1047 = vtanh.pop %v1046
    %1049 = vrot.lane.b32.xlu0 %v1047, 32
    %v1050 = vpop.permute.xlu0 %1049
    %v1052 = vmul.f32 %v1034, %v1050
    %v1053 = vxor.u32 %v1028, 2147483648
    %v1054 = vmul.f32 %v1053, 1.442695
    %v1055 = vpow.pop %v1054
    %v1056 = vadd.f32 %v1055, 1.0
    %v1057 = vrcp.pop %v1056
    %v1058 = vmul.f32 1.0, %v1057
    %v1059 = vtanh.pop %v1028
    %v1060 = vmul.f32 %v1058, %v903
    %1062 = vrot.lane.b32.xlu0 %v1059, 32
    %v1063 = vpop.permute.xlu0 %1062
    %v1065 = vmul.f32 %v1058, %v1063
    %1067 = vrot.lane.b32.xlu0 %v1065, 32
    %v1068 = vpop.permute.xlu0 %1067
    %v1070 = vadd.f32 %v1060, %v1068
    %v1071 = vtanh.pop %v1070
    %1073 = vrot.lane.b32.xlu0 %v1071, 32
    %v1074 = vpop.permute.xlu0 %1073
    %v1076 = vmul.f32 %v1058, %v1074
    %v1077 = vpack.c.bf16 %v1052, %v1052
    %v1080 = vunpack.c.l.s4 1966171168
    %v1081 = vunpack.c.0.s8 %v1080
    %v1082 = vlaneseq
    %v1083 = vshrl.u32 %v1082, 7
    %v1084 = vsub.s32 %v1081, %v1083
    %v1085 = vrot.slane %v1077, %v1084
    %v1087 = vunpack.c.l.s4 1966171168
    %v1088 = vunpack.c.0.s8 %v1087
    %v1089 = vlaneseq
    %v1090 = vshrl.u32 %v1089, 7
    %v1091 = vsub.s32 %v1088, %v1090
    %v1092 = vrot.slane %v1085, %v1091
    %1093 = vrot.lane.b32.xlu0 %v1092, 64
    %v1094 = vpop.permute.xlu0 %1093
    %s1096 = scalar_lea.vmem [#allocation3], 3
    %1097 = vst.msk [vmem:[%s1096] sm:$0x1] %vm595, %v1094
    %v1098 = vpack.c.bf16 %v1076, %v1076
    %v1101 = vunpack.c.l.s4 1966171168
    %v1102 = vunpack.c.0.s8 %v1101
    %v1103 = vlaneseq
    %v1104 = vshrl.u32 %v1103, 7
    %v1105 = vsub.s32 %v1102, %v1104
    %v1106 = vrot.slane %v1098, %v1105
    %v1108 = vunpack.c.l.s4 1966171168
    %v1109 = vunpack.c.0.s8 %v1108
    %v1110 = vlaneseq
    %v1111 = vshrl.u32 %v1110, 7
    %v1112 = vsub.s32 %v1109, %v1111
    %v1113 = vrot.slane %v1106, %v1112
    %1114 = vrot.lane.b32.xlu0 %v1113, 64
    %v1115 = vpop.permute.xlu0 %1114
    %s1117 = scalar_lea.vmem [#allocation4], 4
    %1118 = vst.msk [vmem:[%s1117] sm:$0x1] %vm595, %v1115
    %v1121 = vunpack.c.l.s4 1983009808
    %v1122 = vunpack.c.0.s8 %v1121
    %v1123 = vlaneseq
    %v1124 = vshrl.u32 %v1123, 7
    %v1125 = vsub.s32 %v1122, %v1124
    %v1126 = vrot.slane %v1052, %v1125
    %1127 = vrot.lane.b32.xlu0 %v1126, 64
    %v1128 = vpop.permute.xlu0 %1127
    %v1132 = vunpack.c.l.s4 1983009808
    %v1133 = vunpack.c.0.s8 %v1132
    %v1134 = vlaneseq
    %v1135 = vshrl.u32 %v1134, 7
    %v1136 = vsub.s32 %v1133, %v1135
    %v1137 = vrot.slane %v1076, %v1136
    %1138 = vrot.lane.b32.xlu0 %v1137, 96
    %v1139 = vpop.permute.xlu0 %1138
    %v1141 = vsel %vm241, %v1128, %v1139
    %v1142 = vpack.c.bf16 %v1141, %v1141
    %v1144 = vsel %vm475, %v1142, 0
    %1146 = vmatprep.subr.bf16.mxu0 0
    %1147 = vmatpush1.bf16.msra.mxu0 0
    %1148 = vmatprep.subr.bf16.mxu0 0
    %1149 = vmatpush1.bf16.msra.mxu0 0
    %1150 = vmatprep.subr.bf16.mxu0 0
    %1151 = vmatpush1.bf16.msra.mxu0 0
    %1152 = vmatprep.subr.bf16.mxu0 0
    %1153 = vmatpush1.bf16.msra.mxu0 0
    %1154 = vmatprep.subr.bf16.mxu0 %v466
    %1155 = vmatpush1.bf16.msra.mxu0 %v465
    %1156 = vmatprep.subr.bf16.mxu0 %v464
    %1157 = vmatpush1.bf16.msra.mxu0 %v463
    %1158 = vmatprep.subr.bf16.mxu0 %v462
    %1159 = vmatpush1.bf16.msra.mxu0 %v461
    %1160 = vmatprep.subr.bf16.mxu0 %v460
    %1161 = vmatpush1.bf16.msra.mxu0 %v459
    %1162 = vmatprep.subr.bf16.mxu0 0
    %1163 = vmatpush2.bf16.msra.mxu0 0
    %1164 = vmatprep.subr.bf16.mxu0 0
    %1165 = vmatpush2.bf16.msra.mxu0 0
    %1166 = vmatprep.subr.bf16.mxu0 0
    %1167 = vmatpush2.bf16.msra.mxu0 0
    %1168 = vmatprep.subr.bf16.mxu0 0
    %1169 = vmatpush2.bf16.msra.mxu0 0
    %1170 = vmatprep.subr.bf16.mxu0 0
    %1171 = vmatpush2.bf16.msra.mxu0 0
    %1172 = vmatprep.subr.bf16.mxu0 0
    %1173 = vmatpush2.bf16.msra.mxu0 0
    %1174 = vmatprep.subr.bf16.mxu0 0
    %1175 = vmatpush2.bf16.msra.mxu0 0
    %1176 = vmatprep.subr.bf16.mxu0 0
    %1177 = vmatpush2.bf16.msra.mxu0 0
    %1178 = vmatprep.mubr.bf16.mxu0 0
    %1179 = vmatmul.mubr.bf16.gmra.mxu0 %v1144
    %v1180 = vpop.f32.mrf.mxu0
    %v1181 = vadd.f32 0.0, %v1180
    %v1182 = vpop.f32.mrf.mxu0
    %v1183 = vadd.f32 0.0, %v1182
    %v1184 = vpop.f32.mrf.mxu0
    %v1185 = vpop.f32.mrf.mxu0
    %1186 = vdwg.mxu0
    %v1187 = vld [vmem:[%s1023] sm:$0xf]
    %v1188 = vadd.f32 %v1187, %v1181
    %v1189 = vld [vmem:[%s1020] sm:$0xf]
    %v1191 = vrot.slane %v1189, 2
    %v1193 = vadd.f32 %v1191, %v1183
    %v1194 = vxor.u32 %v1188, 2147483648
    %v1195 = vmul.f32 %v1194, 1.442695
    %v1196 = vpow.pop %v1195
    %v1197 = vadd.f32 %v1196, 1.0
    %v1198 = vrcp.pop %v1197
    %v1199 = vmul.f32 1.0, %v1198
    %v1200 = vtanh.pop %v1188
    %v1201 = vmul.f32 %v1199, %v1046
    %1203 = vrot.lane.b32.xlu0 %v1200, 32
    %v1204 = vpop.permute.xlu0 %1203
    %v1206 = vmul.f32 %v1199, %v1204
    %1208 = vrot.lane.b32.xlu0 %v1206, 32
    %v1209 = vpop.permute.xlu0 %1208
    %v1211 = vadd.f32 %v1201, %v1209
    %v1212 = vtanh.pop %v1211
    %1214 = vrot.lane.b32.xlu0 %v1212, 32
    %v1215 = vpop.permute.xlu0 %1214
    %v1217 = vmul.f32 %v1199, %v1215
    %v1218 = vxor.u32 %v1193, 2147483648
    %v1219 = vmul.f32 %v1218, 1.442695
    %v1220 = vpow.pop %v1219
    %v1221 = vadd.f32 %v1220, 1.0
    %v1222 = vrcp.pop %v1221
    %v1223 = vmul.f32 1.0, %v1222
    %v1224 = vtanh.pop %v1193
    %v1225 = vmul.f32 %v1223, %v1070
    %1227 = vrot.lane.b32.xlu0 %v1224, 32
    %v1228 = vpop.permute.xlu0 %1227
    %v1230 = vmul.f32 %v1223, %v1228
    %1232 = vrot.lane.b32.xlu0 %v1230, 32
    %v1233 = vpop.permute.xlu0 %1232
    %v1235 = vadd.f32 %v1225, %v1233
    %v1236 = vtanh.pop %v1235
    %1238 = vrot.lane.b32.xlu0 %v1236, 32
    %v1239 = vpop.permute.xlu0 %1238
    %v1241 = vmul.f32 %v1223, %v1239
    %v1242 = vpack.c.bf16 %v1217, %v1217
    %v1245 = vunpack.c.l.s4 1966171168
    %v1246 = vunpack.c.0.s8 %v1245
    %v1247 = vlaneseq
    %v1248 = vshrl.u32 %v1247, 7
    %v1249 = vsub.s32 %v1246, %v1248
    %v1250 = vrot.slane %v1242, %v1249
    %v1252 = vunpack.c.l.s4 1966171168
    %v1253 = vunpack.c.0.s8 %v1252
    %v1254 = vlaneseq
    %v1255 = vshrl.u32 %v1254, 7
    %v1256 = vsub.s32 %v1253, %v1255
    %v1257 = vrot.slane %v1250, %v1256
    %1258 = vrot.lane.b32.xlu0 %v1257, 64
    %v1259 = vpop.permute.xlu0 %1258
    %s1261 = scalar_lea.vmem [#allocation3], 4
    %1262 = vst.msk [vmem:[%s1261] sm:$0x1] %vm595, %v1259
    %v1263 = vpack.c.bf16 %v1241, %v1241
    %v1266 = vunpack.c.l.s4 1966171168
    %v1267 = vunpack.c.0.s8 %v1266
    %v1268 = vlaneseq
    %v1269 = vshrl.u32 %v1268, 7
    %v1270 = vsub.s32 %v1267, %v1269
    %v1271 = vrot.slane %v1263, %v1270
    %v1273 = vunpack.c.l.s4 1966171168
    %v1274 = vunpack.c.0.s8 %v1273
    %v1275 = vlaneseq
    %v1276 = vshrl.u32 %v1275, 7
    %v1277 = vsub.s32 %v1274, %v1276
    %v1278 = vrot.slane %v1271, %v1277
    %1279 = vrot.lane.b32.xlu0 %v1278, 64
    %v1280 = vpop.permute.xlu0 %1279
    %s1282 = scalar_lea.vmem [#allocation4], 3
    %1283 = vst.msk [vmem:[%s1282] sm:$0x1] %vm595, %v1280
    %v1286 = vunpack.c.l.s4 1983009808
    %v1287 = vunpack.c.0.s8 %v1286
    %v1288 = vlaneseq
    %v1289 = vshrl.u32 %v1288, 7
    %v1290 = vsub.s32 %v1287, %v1289
    %v1291 = vrot.slane %v1217, %v1290
    %1292 = vrot.lane.b32.xlu0 %v1291, 64
    %v1293 = vpop.permute.xlu0 %1292
    %v1297 = vunpack.c.l.s4 1983009808
    %v1298 = vunpack.c.0.s8 %v1297
    %v1299 = vlaneseq
    %v1300 = vshrl.u32 %v1299, 7
    %v1301 = vsub.s32 %v1298, %v1300
    %v1302 = vrot.slane %v1241, %v1301
    %1303 = vrot.lane.b32.xlu0 %v1302, 96
    %v1304 = vpop.permute.xlu0 %1303
    %v1306 = vsel %vm241, %v1293, %v1304
    %v1307 = vpack.c.bf16 %v1306, %v1306
    %v1309 = vsel %vm475, %v1307, 0
    %1311 = vmatprep.subr.bf16.mxu0 0
    %1312 = vmatpush1.bf16.msra.mxu0 0
    %1313 = vmatprep.subr.bf16.mxu0 0
    %1314 = vmatpush1.bf16.msra.mxu0 0
    %1315 = vmatprep.subr.bf16.mxu0 0
    %1316 = vmatpush1.bf16.msra.mxu0 0
    %1317 = vmatprep.subr.bf16.mxu0 0
    %1318 = vmatpush1.bf16.msra.mxu0 0
    %1319 = vmatprep.subr.bf16.mxu0 %v466
    %1320 = vmatpush1.bf16.msra.mxu0 %v465
    %1321 = vmatprep.subr.bf16.mxu0 %v464
    %1322 = vmatpush1.bf16.msra.mxu0 %v463
    %1323 = vmatprep.subr.bf16.mxu0 %v462
    %1324 = vmatpush1.bf16.msra.mxu0 %v461
    %1325 = vmatprep.subr.bf16.mxu0 %v460
    %1326 = vmatpush1.bf16.msra.mxu0 %v459
    %1327 = vmatprep.subr.bf16.mxu0 0
    %1328 = vmatpush2.bf16.msra.mxu0 0
    %1329 = vmatprep.subr.bf16.mxu0 0
    %1330 = vmatpush2.bf16.msra.mxu0 0
    %1331 = vmatprep.subr.bf16.mxu0 0
    %1332 = vmatpush2.bf16.msra.mxu0 0
    %1333 = vmatprep.subr.bf16.mxu0 0
    %1334 = vmatpush2.bf16.msra.mxu0 0
    %1335 = vmatprep.subr.bf16.mxu0 0
    %1336 = vmatpush2.bf16.msra.mxu0 0
    %1337 = vmatprep.subr.bf16.mxu0 0
    %1338 = vmatpush2.bf16.msra.mxu0 0
    %1339 = vmatprep.subr.bf16.mxu0 0
    %1340 = vmatpush2.bf16.msra.mxu0 0
    %1341 = vmatprep.subr.bf16.mxu0 0
    %1342 = vmatpush2.bf16.msra.mxu0 0
    %1343 = vmatprep.mubr.bf16.mxu0 0
    %1344 = vmatmul.mubr.bf16.gmra.mxu0 %v1309
    %v1345 = vpop.f32.mrf.mxu0
    %v1346 = vadd.f32 0.0, %v1345
    %v1347 = vpop.f32.mrf.mxu0
    %v1348 = vadd.f32 0.0, %v1347
    %v1349 = vpop.f32.mrf.mxu0
    %v1350 = vpop.f32.mrf.mxu0
    %1351 = vdwg.mxu0
    %v1352 = vld [vmem:[%s856] sm:$0xf]
    %v1353 = vadd.f32 %v1352, %v1346
    %v1354 = vld [vmem:[%s853] sm:$0xf]
    %v1356 = vrot.slane %v1354, 2
    %v1358 = vadd.f32 %v1356, %v1348
    %v1359 = vxor.u32 %v1353, 2147483648
    %v1360 = vmul.f32 %v1359, 1.442695
    %v1361 = vpow.pop %v1360
    %v1362 = vadd.f32 %v1361, 1.0
    %v1363 = vrcp.pop %v1362
    %v1364 = vmul.f32 1.0, %v1363
    %v1365 = vtanh.pop %v1353
    %v1366 = vmul.f32 %v1364, %v1211
    %1368 = vrot.lane.b32.xlu0 %v1365, 32
    %v1369 = vpop.permute.xlu0 %1368
    %v1371 = vmul.f32 %v1364, %v1369
    %1373 = vrot.lane.b32.xlu0 %v1371, 32
    %v1374 = vpop.permute.xlu0 %1373
    %v1376 = vadd.f32 %v1366, %v1374
    %v1377 = vtanh.pop %v1376
    %1379 = vrot.lane.b32.xlu0 %v1377, 32
    %v1380 = vpop.permute.xlu0 %1379
    %v1382 = vmul.f32 %v1364, %v1380
    %v1383 = vxor.u32 %v1358, 2147483648
    %v1384 = vmul.f32 %v1383, 1.442695
    %v1385 = vpow.pop %v1384
    %v1386 = vadd.f32 %v1385, 1.0
    %v1387 = vrcp.pop %v1386
    %v1388 = vmul.f32 1.0, %v1387
    %v1389 = vtanh.pop %v1358
    %v1390 = vmul.f32 %v1388, %v1235
    %1392 = vrot.lane.b32.xlu0 %v1389, 32
    %v1393 = vpop.permute.xlu0 %1392
    %v1395 = vmul.f32 %v1388, %v1393
    %1397 = vrot.lane.b32.xlu0 %v1395, 32
    %v1398 = vpop.permute.xlu0 %1397
    %v1400 = vadd.f32 %v1390, %v1398
    %v1401 = vtanh.pop %v1400
    %1403 = vrot.lane.b32.xlu0 %v1401, 32
    %v1404 = vpop.permute.xlu0 %1403
    %v1406 = vmul.f32 %v1388, %v1404
    %v1407 = vpack.c.bf16 %v1382, %v1382
    %v1410 = vunpack.c.l.s4 1966171168
    %v1411 = vunpack.c.0.s8 %v1410
    %v1412 = vlaneseq
    %v1413 = vshrl.u32 %v1412, 7
    %v1414 = vsub.s32 %v1411, %v1413
    %v1415 = vrot.slane %v1407, %v1414
    %v1417 = vunpack.c.l.s4 1966171168
    %v1418 = vunpack.c.0.s8 %v1417
    %v1419 = vlaneseq
    %v1420 = vshrl.u32 %v1419, 7
    %v1421 = vsub.s32 %v1418, %v1420
    %v1422 = vrot.slane %v1415, %v1421
    %1423 = vrot.lane.b32.xlu0 %v1422, 64
    %v1424 = vpop.permute.xlu0 %1423
    %s1426 = scalar_lea.vmem [#allocation3], 5
    %1427 = vst.msk [vmem:[%s1426] sm:$0x1] %vm595, %v1424
    %v1428 = vpack.c.bf16 %v1406, %v1406
    %v1431 = vunpack.c.l.s4 1966171168
    %v1432 = vunpack.c.0.s8 %v1431
    %v1433 = vlaneseq
    %v1434 = vshrl.u32 %v1433, 7
    %v1435 = vsub.s32 %v1432, %v1434
    %v1436 = vrot.slane %v1428, %v1435
    %v1438 = vunpack.c.l.s4 1966171168
    %v1439 = vunpack.c.0.s8 %v1438
    %v1440 = vlaneseq
    %v1441 = vshrl.u32 %v1440, 7
    %v1442 = vsub.s32 %v1439, %v1441
    %v1443 = vrot.slane %v1436, %v1442
    %1444 = vrot.lane.b32.xlu0 %v1443, 64
    %v1445 = vpop.permute.xlu0 %1444
    %s1447 = scalar_lea.vmem [#allocation4], 2
    %1448 = vst.msk [vmem:[%s1447] sm:$0x1] %vm595, %v1445
    %v1451 = vunpack.c.l.s4 1983009808
    %v1452 = vunpack.c.0.s8 %v1451
    %v1453 = vlaneseq
    %v1454 = vshrl.u32 %v1453, 7
    %v1455 = vsub.s32 %v1452, %v1454
    %v1456 = vrot.slane %v1382, %v1455
    %1457 = vrot.lane.b32.xlu0 %v1456, 64
    %v1458 = vpop.permute.xlu0 %1457
    %v1462 = vunpack.c.l.s4 1983009808
    %v1463 = vunpack.c.0.s8 %v1462
    %v1464 = vlaneseq
    %v1465 = vshrl.u32 %v1464, 7
    %v1466 = vsub.s32 %v1463, %v1465
    %v1467 = vrot.slane %v1406, %v1466
    %1468 = vrot.lane.b32.xlu0 %v1467, 96
    %v1469 = vpop.permute.xlu0 %1468
    %v1471 = vsel %vm241, %v1458, %v1469
    %v1472 = vpack.c.bf16 %v1471, %v1471
    %v1474 = vsel %vm475, %v1472, 0
    %1476 = vmatprep.subr.bf16.mxu0 0
    %1477 = vmatpush1.bf16.msra.mxu0 0
    %1478 = vmatprep.subr.bf16.mxu0 0
    %1479 = vmatpush1.bf16.msra.mxu0 0
    %1480 = vmatprep.subr.bf16.mxu0 0
    %1481 = vmatpush1.bf16.msra.mxu0 0
    %1482 = vmatprep.subr.bf16.mxu0 0
    %1483 = vmatpush1.bf16.msra.mxu0 0
    %1484 = vmatprep.subr.bf16.mxu0 %v466
    %1485 = vmatpush1.bf16.msra.mxu0 %v465
    %1486 = vmatprep.subr.bf16.mxu0 %v464
    %1487 = vmatpush1.bf16.msra.mxu0 %v463
    %1488 = vmatprep.subr.bf16.mxu0 %v462
    %1489 = vmatpush1.bf16.msra.mxu0 %v461
    %1490 = vmatprep.subr.bf16.mxu0 %v460
    %1491 = vmatpush1.bf16.msra.mxu0 %v459
    %1492 = vmatprep.subr.bf16.mxu0 0
    %1493 = vmatpush2.bf16.msra.mxu0 0
    %1494 = vmatprep.subr.bf16.mxu0 0
    %1495 = vmatpush2.bf16.msra.mxu0 0
    %1496 = vmatprep.subr.bf16.mxu0 0
    %1497 = vmatpush2.bf16.msra.mxu0 0
    %1498 = vmatprep.subr.bf16.mxu0 0
    %1499 = vmatpush2.bf16.msra.mxu0 0
    %1500 = vmatprep.subr.bf16.mxu0 0
    %1501 = vmatpush2.bf16.msra.mxu0 0
    %1502 = vmatprep.subr.bf16.mxu0 0
    %1503 = vmatpush2.bf16.msra.mxu0 0
    %1504 = vmatprep.subr.bf16.mxu0 0
    %1505 = vmatpush2.bf16.msra.mxu0 0
    %1506 = vmatprep.subr.bf16.mxu0 0
    %1507 = vmatpush2.bf16.msra.mxu0 0
    %1508 = vmatprep.mubr.bf16.mxu0 0
    %1509 = vmatmul.mubr.bf16.gmra.mxu0 %v1474
    %v1510 = vpop.f32.mrf.mxu0
    %v1511 = vadd.f32 0.0, %v1510
    %v1512 = vpop.f32.mrf.mxu0
    %v1513 = vadd.f32 0.0, %v1512
    %v1514 = vpop.f32.mrf.mxu0
    %v1515 = vpop.f32.mrf.mxu0
    %1516 = vdwg.mxu0
    %v1517 = vld [vmem:[%s689] sm:$0xf]
    %v1518 = vadd.f32 %v1517, %v1511
    %v1519 = vld [vmem:[%s686] sm:$0xf]
    %v1521 = vrot.slane %v1519, 2
    %v1523 = vadd.f32 %v1521, %v1513
    %v1524 = vxor.u32 %v1518, 2147483648
    %v1525 = vmul.f32 %v1524, 1.442695
    %v1526 = vpow.pop %v1525
    %v1527 = vadd.f32 %v1526, 1.0
    %v1528 = vrcp.pop %v1527
    %v1529 = vmul.f32 1.0, %v1528
    %v1530 = vtanh.pop %v1518
    %v1531 = vmul.f32 %v1529, %v1376
    %1533 = vrot.lane.b32.xlu0 %v1530, 32
    %v1534 = vpop.permute.xlu0 %1533
    %v1536 = vmul.f32 %v1529, %v1534
    %1538 = vrot.lane.b32.xlu0 %v1536, 32
    %v1539 = vpop.permute.xlu0 %1538
    %v1541 = vadd.f32 %v1531, %v1539
    %v1542 = vtanh.pop %v1541
    %1544 = vrot.lane.b32.xlu0 %v1542, 32
    %v1545 = vpop.permute.xlu0 %1544
    %v1547 = vmul.f32 %v1529, %v1545
    %v1548 = vxor.u32 %v1523, 2147483648
    %v1549 = vmul.f32 %v1548, 1.442695
    %v1550 = vpow.pop %v1549
    %v1551 = vadd.f32 %v1550, 1.0
    %v1552 = vrcp.pop %v1551
    %v1553 = vmul.f32 1.0, %v1552
    %v1554 = vtanh.pop %v1523
    %v1555 = vmul.f32 %v1553, %v1400
    %1557 = vrot.lane.b32.xlu0 %v1554, 32
    %v1558 = vpop.permute.xlu0 %1557
    %v1560 = vmul.f32 %v1553, %v1558
    %1562 = vrot.lane.b32.xlu0 %v1560, 32
    %v1563 = vpop.permute.xlu0 %1562
    %v1565 = vadd.f32 %v1555, %v1563
    %v1566 = vtanh.pop %v1565
    %1568 = vrot.lane.b32.xlu0 %v1566, 32
    %v1569 = vpop.permute.xlu0 %1568
    %v1571 = vmul.f32 %v1553, %v1569
    %v1572 = vpack.c.bf16 %v1547, %v1547
    %v1575 = vunpack.c.l.s4 1966171168
    %v1576 = vunpack.c.0.s8 %v1575
    %v1577 = vlaneseq
    %v1578 = vshrl.u32 %v1577, 7
    %v1579 = vsub.s32 %v1576, %v1578
    %v1580 = vrot.slane %v1572, %v1579
    %v1582 = vunpack.c.l.s4 1966171168
    %v1583 = vunpack.c.0.s8 %v1582
    %v1584 = vlaneseq
    %v1585 = vshrl.u32 %v1584, 7
    %v1586 = vsub.s32 %v1583, %v1585
    %v1587 = vrot.slane %v1580, %v1586
    %1588 = vrot.lane.b32.xlu0 %v1587, 64
    %v1589 = vpop.permute.xlu0 %1588
    %s1591 = scalar_lea.vmem [#allocation3], 6
    %1592 = vst.msk [vmem:[%s1591] sm:$0x1] %vm595, %v1589
    %v1593 = vpack.c.bf16 %v1571, %v1571
    %v1596 = vunpack.c.l.s4 1966171168
    %v1597 = vunpack.c.0.s8 %v1596
    %v1598 = vlaneseq
    %v1599 = vshrl.u32 %v1598, 7
    %v1600 = vsub.s32 %v1597, %v1599
    %v1601 = vrot.slane %v1593, %v1600
    %v1603 = vunpack.c.l.s4 1966171168
    %v1604 = vunpack.c.0.s8 %v1603
    %v1605 = vlaneseq
    %v1606 = vshrl.u32 %v1605, 7
    %v1607 = vsub.s32 %v1604, %v1606
    %v1608 = vrot.slane %v1601, %v1607
    %1609 = vrot.lane.b32.xlu0 %v1608, 64
    %v1610 = vpop.permute.xlu0 %1609
    %s1612 = scalar_lea.vmem [#allocation4], 1
    %1613 = vst.msk [vmem:[%s1612] sm:$0x1] %vm595, %v1610
    %v1616 = vunpack.c.l.s4 1983009808
    %v1617 = vunpack.c.0.s8 %v1616
    %v1618 = vlaneseq
    %v1619 = vshrl.u32 %v1618, 7
    %v1620 = vsub.s32 %v1617, %v1619
    %v1621 = vrot.slane %v1547, %v1620
    %1622 = vrot.lane.b32.xlu0 %v1621, 64
    %v1623 = vpop.permute.xlu0 %1622
    %v1627 = vunpack.c.l.s4 1983009808
    %v1628 = vunpack.c.0.s8 %v1627
    %v1629 = vlaneseq
    %v1630 = vshrl.u32 %v1629, 7
    %v1631 = vsub.s32 %v1628, %v1630
    %v1632 = vrot.slane %v1571, %v1631
    %1633 = vrot.lane.b32.xlu0 %v1632, 96
    %v1634 = vpop.permute.xlu0 %1633
    %v1636 = vsel %vm241, %v1623, %v1634
    %v1637 = vpack.c.bf16 %v1636, %v1636
    %v1639 = vsel %vm475, %v1637, 0
    %1641 = vmatprep.subr.bf16.mxu0 0
    %1642 = vmatpush1.bf16.msra.mxu0 0
    %1643 = vmatprep.subr.bf16.mxu0 0
    %1644 = vmatpush1.bf16.msra.mxu0 0
    %1645 = vmatprep.subr.bf16.mxu0 0
    %1646 = vmatpush1.bf16.msra.mxu0 0
    %1647 = vmatprep.subr.bf16.mxu0 0
    %1648 = vmatpush1.bf16.msra.mxu0 0
    %1649 = vmatprep.subr.bf16.mxu0 %v466
    %1650 = vmatpush1.bf16.msra.mxu0 %v465
    %1651 = vmatprep.subr.bf16.mxu0 %v464
    %1652 = vmatpush1.bf16.msra.mxu0 %v463
    %1653 = vmatprep.subr.bf16.mxu0 %v462
    %1654 = vmatpush1.bf16.msra.mxu0 %v461
    %1655 = vmatprep.subr.bf16.mxu0 %v460
    %1656 = vmatpush1.bf16.msra.mxu0 %v459
    %1657 = vmatprep.subr.bf16.mxu0 0
    %1658 = vmatpush2.bf16.msra.mxu0 0
    %1659 = vmatprep.subr.bf16.mxu0 0
    %1660 = vmatpush2.bf16.msra.mxu0 0
    %1661 = vmatprep.subr.bf16.mxu0 0
    %1662 = vmatpush2.bf16.msra.mxu0 0
    %1663 = vmatprep.subr.bf16.mxu0 0
    %1664 = vmatpush2.bf16.msra.mxu0 0
    %1665 = vmatprep.subr.bf16.mxu0 0
    %1666 = vmatpush2.bf16.msra.mxu0 0
    %1667 = vmatprep.subr.bf16.mxu0 0
    %1668 = vmatpush2.bf16.msra.mxu0 0
    %1669 = vmatprep.subr.bf16.mxu0 0
    %1670 = vmatpush2.bf16.msra.mxu0 0
    %1671 = vmatprep.subr.bf16.mxu0 0
    %1672 = vmatpush2.bf16.msra.mxu0 0
    %1673 = vmatprep.mubr.bf16.mxu0 0
    %1674 = vmatmul.mubr.bf16.gmra.mxu0 %v1639
    %v1675 = vpop.f32.mrf.mxu0
    %v1676 = vadd.f32 0.0, %v1675
    %v1677 = vpop.f32.mrf.mxu0
    %v1678 = vadd.f32 0.0, %v1677
    %v1679 = vpop.f32.mrf.mxu0
    %v1680 = vpop.f32.mrf.mxu0
    %1681 = vdwg.mxu0
    %v1682 = vld [vmem:[%s522] sm:$0xf]
    %v1683 = vadd.f32 %v1682, %v1676
    %v1684 = vld [vmem:[#allocation2] sm:$0xf]
    %v1686 = vrot.slane %v1684, 2
    %v1688 = vadd.f32 %v1686, %v1678
    %v1689 = vxor.u32 %v1683, 2147483648
    %v1690 = vmul.f32 %v1689, 1.442695
    %v1691 = vpow.pop %v1690
    %v1692 = vadd.f32 %v1691, 1.0
    %v1693 = vrcp.pop %v1692
    %v1694 = vmul.f32 1.0, %v1693
    %v1695 = vtanh.pop %v1683
    %v1696 = vmul.f32 %v1694, %v1541
    %1698 = vrot.lane.b32.xlu0 %v1695, 32
    %v1699 = vpop.permute.xlu0 %1698
    %v1701 = vmul.f32 %v1694, %v1699
    %1703 = vrot.lane.b32.xlu0 %v1701, 32
    %v1704 = vpop.permute.xlu0 %1703
    %v1706 = vadd.f32 %v1696, %v1704
    %v1707 = vtanh.pop %v1706
    %1709 = vrot.lane.b32.xlu0 %v1707, 32
    %v1710 = vpop.permute.xlu0 %1709
    %v1712 = vmul.f32 %v1694, %v1710
    %v1713 = vxor.u32 %v1688, 2147483648
    %v1714 = vmul.f32 %v1713, 1.442695
    %v1715 = vpow.pop %v1714
    %v1716 = vadd.f32 %v1715, 1.0
    %v1717 = vrcp.pop %v1716
    %v1718 = vmul.f32 1.0, %v1717
    %v1719 = vtanh.pop %v1688
    %v1720 = vmul.f32 %v1718, %v1565
    %1722 = vrot.lane.b32.xlu0 %v1719, 32
    %v1723 = vpop.permute.xlu0 %1722
    %v1725 = vmul.f32 %v1718, %v1723
    %1727 = vrot.lane.b32.xlu0 %v1725, 32
    %v1728 = vpop.permute.xlu0 %1727
    %v1730 = vadd.f32 %v1720, %v1728
    %v1731 = vtanh.pop %v1730
    %1733 = vrot.lane.b32.xlu0 %v1731, 32
    %v1734 = vpop.permute.xlu0 %1733
    %v1736 = vmul.f32 %v1718, %v1734
    %v1737 = vpack.c.bf16 %v1712, %v1712
    %v1740 = vunpack.c.l.s4 1966171168
    %v1741 = vunpack.c.0.s8 %v1740
    %v1742 = vlaneseq
    %v1743 = vshrl.u32 %v1742, 7
    %v1744 = vsub.s32 %v1741, %v1743
    %v1745 = vrot.slane %v1737, %v1744
    %v1747 = vunpack.c.l.s4 1966171168
    %v1748 = vunpack.c.0.s8 %v1747
    %v1749 = vlaneseq
    %v1750 = vshrl.u32 %v1749, 7
    %v1751 = vsub.s32 %v1748, %v1750
    %v1752 = vrot.slane %v1745, %v1751
    %1753 = vrot.lane.b32.xlu0 %v1752, 64
    %v1754 = vpop.permute.xlu0 %1753
    %s1756 = scalar_lea.vmem [#allocation3], 7
    %1757 = vst.msk [vmem:[%s1756] sm:$0x1] %vm595, %v1754
    %v1758 = vpack.c.bf16 %v1736, %v1736
    %v1761 = vunpack.c.l.s4 1966171168
    %v1762 = vunpack.c.0.s8 %v1761
    %v1763 = vlaneseq
    %v1764 = vshrl.u32 %v1763, 7
    %v1765 = vsub.s32 %v1762, %v1764
    %v1766 = vrot.slane %v1758, %v1765
    %v1768 = vunpack.c.l.s4 1966171168
    %v1769 = vunpack.c.0.s8 %v1768
    %v1770 = vlaneseq
    %v1771 = vshrl.u32 %v1770, 7
    %v1772 = vsub.s32 %v1769, %v1771
    %v1773 = vrot.slane %v1766, %v1772
    %1774 = vrot.lane.b32.xlu0 %v1773, 64
    %v1775 = vpop.permute.xlu0 %1774
    %1777 = vst.msk [vmem:[#allocation4] sm:$0x1] %vm595, %v1775
    %v1780 = vunpack.c.l.s4 1983009808
    %v1781 = vunpack.c.0.s8 %v1780
    %v1782 = vlaneseq
    %v1783 = vshrl.u32 %v1782, 7
    %v1784 = vsub.s32 %v1781, %v1783
    %v1785 = vrot.slane %v1712, %v1784
    %1786 = vrot.lane.b32.xlu0 %v1785, 64
    %v1787 = vpop.permute.xlu0 %1786
    %v1791 = vunpack.c.l.s4 1983009808
    %v1792 = vunpack.c.0.s8 %v1791
    %v1793 = vlaneseq
    %v1794 = vshrl.u32 %v1793, 7
    %v1795 = vsub.s32 %v1792, %v1794
    %v1796 = vrot.slane %v1736, %v1795
    %1797 = vrot.lane.b32.xlu0 %v1796, 96
    %v1798 = vpop.permute.xlu0 %1797
    %v1800 = vsel %vm241, %v1787, %v1798
    %v1803 = vunpack.c.l.s4 1983009808
    %v1804 = vunpack.c.0.s8 %v1803
    %v1805 = vlaneseq
    %v1806 = vshrl.u32 %v1805, 7
    %v1807 = vsub.s32 %v1804, %v1806
    %v1808 = vrot.slane %v1706, %v1807
    %1809 = vrot.lane.b32.xlu0 %v1808, 96
    %v1810 = vpop.permute.xlu0 %1809
    %v1812 = vsel %vm241, %v1810, %v1730
    %v1813 = vld [vmem:[#allocation3] sm:$0x1]
    %v1814 = vld [vmem:[#allocation3 + $0x1] sm:$0x1]
    %v1815 = vld [vmem:[#allocation3 + $0x2] sm:$0x1]
    %v1816 = vld [vmem:[#allocation3 + $0x3] sm:$0x1]
    %v1817 = vld [vmem:[#allocation3 + $0x4] sm:$0x1]
    %v1818 = vld [vmem:[#allocation3 + $0x5] sm:$0x1]
    %v1819 = vld [vmem:[#allocation3 + $0x6] sm:$0x1]
    %v1820 = vld [vmem:[#allocation3 + $0x7] sm:$0x1]
    %v1821 = vld [vmem:[#allocation4] sm:$0x1]
    %v1822 = vld [vmem:[#allocation4 + $0x1] sm:$0x1]
    %v1823 = vld [vmem:[#allocation4 + $0x2] sm:$0x1]
    %v1824 = vld [vmem:[#allocation4 + $0x3] sm:$0x1]
    %v1825 = vld [vmem:[#allocation4 + $0x4] sm:$0x1]
    %v1826 = vld [vmem:[#allocation4 + $0x5] sm:$0x1]
    %v1827 = vld [vmem:[#allocation4 + $0x6] sm:$0x1]
    %v1828 = vld [vmem:[#allocation4 + $0x7] sm:$0x1]
    %v1829 = vld [vmem:[#allocation15] sm:$0xff]
    %v1830 = vld [vmem:[#allocation15 + $0x8] sm:$0xff]
    %v1831 = vld [vmem:[#allocation15 + $0x10] sm:$0xff]
    %v1832 = vld [vmem:[#allocation15 + $0x18] sm:$0xff]
    %s1833 = scalar_lea.vmem [#allocation15], 32
    %v1834 = vld [vmem:[%s1833] sm:$0xff]
    %v1835 = vld [vmem:[%s1833 + $0x8] sm:$0xff]
    %v1836 = vld [vmem:[%s1833 + $0x10] sm:$0xff]
    %v1837 = vld [vmem:[%s1833 + $0x18] sm:$0xff]
    %v1846 = vcombine.low %v1821, %v1822
    %v1847 = vcombine.low %v1823, %v1824
    %v1848 = vcombine.low %v1825, %v1826
    %v1849 = vcombine.low %v1827, %v1828
    %v1851 = vunpack.c.l.s4 1966171168
    %v1852 = vunpack.c.0.s8 %v1851
    %v1853 = vlaneseq
    %v1854 = vshrl.u32 %v1853, 7
    %v1855 = vsub.s32 %v1852, %v1854
    %v1856 = vrot.slane %v1846, %v1855
    %v1858 = vunpack.c.l.s4 1966171168
    %v1859 = vunpack.c.0.s8 %v1858
    %v1860 = vlaneseq
    %v1861 = vshrl.u32 %v1860, 7
    %v1862 = vsub.s32 %v1859, %v1861
    %v1863 = vrot.slane %v1847, %v1862
    %v1865 = vunpack.c.l.s4 1966171168
    %v1866 = vunpack.c.0.s8 %v1865
    %v1867 = vlaneseq
    %v1868 = vshrl.u32 %v1867, 7
    %v1869 = vsub.s32 %v1866, %v1868
    %v1870 = vrot.slane %v1848, %v1869
    %v1872 = vunpack.c.l.s4 1966171168
    %v1873 = vunpack.c.0.s8 %v1872
    %v1874 = vlaneseq
    %v1875 = vshrl.u32 %v1874, 7
    %v1876 = vsub.s32 %v1873, %v1875
    %v1877 = vrot.slane %v1849, %v1876
    %v1878 = vcombine.low %v1856, %v1863
    %v1879 = vcombine.low %v1870, %v1877
    %v1881 = vunpack.c.l.s4 1966171168
    %v1882 = vunpack.c.0.s8 %v1881
    %v1883 = vlaneseq
    %v1884 = vshrl.u32 %v1883, 7
    %v1885 = vsub.s32 %v1882, %v1884
    %v1886 = vrot.slane %v1878, %v1885
    %v1888 = vunpack.c.l.s4 1966171168
    %v1889 = vunpack.c.0.s8 %v1888
    %v1890 = vlaneseq
    %v1891 = vshrl.u32 %v1890, 7
    %v1892 = vsub.s32 %v1889, %v1891
    %v1893 = vrot.slane %v1879, %v1892
    %v1894 = vcombine.low %v1886, %v1893
    %v1899 = vunpack.c.l.b16 %v1834
    %v1900 = vunpack.c.h.b16 %v1834
    %v1901 = vunpack.c.l.b16 %v1835
    %v1902 = vunpack.c.h.b16 %v1835
    %v1903 = vunpack.c.l.b16 %v1836
    %v1904 = vunpack.c.h.b16 %v1836
    %v1905 = vunpack.c.l.b16 %v1837
    %v1906 = vunpack.c.h.b16 %v1837
    %v1907 = vpack.c.b16 %v1901, %v1899
    %v1908 = vpack.c.b16 %v1902, %v1900
    %v1909 = vpack.c.b16 %v1905, %v1903
    %v1910 = vpack.c.b16 %v1906, %v1904
    %v1916 = vsel %vm241, %v1894, 0
    %1918 = vmatprep.subr.bf16.mxu0 0
    %1919 = vmatpush1.bf16.msra.mxu0 0
    %1920 = vmatprep.subr.bf16.mxu0 0
    %1921 = vmatpush1.bf16.msra.mxu0 0
    %1922 = vmatprep.subr.bf16.mxu0 0
    %1923 = vmatpush1.bf16.msra.mxu0 0
    %1924 = vmatprep.subr.bf16.mxu0 0
    %1925 = vmatpush1.bf16.msra.mxu0 0
    %1926 = vmatprep.subr.bf16.mxu0 0
    %1927 = vmatpush1.bf16.msra.mxu0 0
    %1928 = vmatprep.subr.bf16.mxu0 0
    %1929 = vmatpush1.bf16.msra.mxu0 0
    %1930 = vmatprep.subr.bf16.mxu0 %v1910
    %1931 = vmatpush1.bf16.msra.mxu0 %v1909
    %1932 = vmatprep.subr.bf16.mxu0 %v1908
    %1933 = vmatpush1.bf16.msra.mxu0 %v1907
    %1934 = vmatprep.subr.bf16.mxu0 0
    %1935 = vmatpush2.bf16.msra.mxu0 0
    %1936 = vmatprep.subr.bf16.mxu0 0
    %1937 = vmatpush2.bf16.msra.mxu0 0
    %1938 = vmatprep.subr.bf16.mxu0 0
    %1939 = vmatpush2.bf16.msra.mxu0 0
    %1940 = vmatprep.subr.bf16.mxu0 0
    %1941 = vmatpush2.bf16.msra.mxu0 0
    %1942 = vmatprep.subr.bf16.mxu0 0
    %1943 = vmatpush2.bf16.msra.mxu0 0
    %1944 = vmatprep.subr.bf16.mxu0 0
    %1945 = vmatpush2.bf16.msra.mxu0 0
    %1946 = vmatprep.subr.bf16.mxu0 0
    %1947 = vmatpush2.bf16.msra.mxu0 0
    %1948 = vmatprep.subr.bf16.mxu0 0
    %1949 = vmatpush2.bf16.msra.mxu0 0
    %1950 = vmatprep.mubr.bf16.mxu0 0
    %1951 = vmatmul.mubr.bf16.gmra.mxu0 %v1916
    %v1952 = vpop.f32.mrf.mxu0
    %v1953 = vadd.f32 0.0, %v1952
    %v1954 = vpop.f32.mrf.mxu0
    %v1955 = vadd.f32 0.0, %v1954
    %v1956 = vpop.f32.mrf.mxu0
    %v1957 = vadd.f32 0.0, %v1956
    %v1958 = vpop.f32.mrf.mxu0
    %v1959 = vadd.f32 0.0, %v1958
    %1960 = vdwg.mxu0
    %v1969 = vcombine.low %v1813, %v1814
    %v1970 = vcombine.low %v1815, %v1816
    %v1971 = vcombine.low %v1817, %v1818
    %v1972 = vcombine.low %v1819, %v1820
    %v1974 = vunpack.c.l.s4 1966171168
    %v1975 = vunpack.c.0.s8 %v1974
    %v1976 = vlaneseq
    %v1977 = vshrl.u32 %v1976, 7
    %v1978 = vsub.s32 %v1975, %v1977
    %v1979 = vrot.slane %v1969, %v1978
    %v1981 = vunpack.c.l.s4 1966171168
    %v1982 = vunpack.c.0.s8 %v1981
    %v1983 = vlaneseq
    %v1984 = vshrl.u32 %v1983, 7
    %v1985 = vsub.s32 %v1982, %v1984
    %v1986 = vrot.slane %v1970, %v1985
    %v1988 = vunpack.c.l.s4 1966171168
    %v1989 = vunpack.c.0.s8 %v1988
    %v1990 = vlaneseq
    %v1991 = vshrl.u32 %v1990, 7
    %v1992 = vsub.s32 %v1989, %v1991
    %v1993 = vrot.slane %v1971, %v1992
    %v1995 = vunpack.c.l.s4 1966171168
    %v1996 = vunpack.c.0.s8 %v1995
    %v1997 = vlaneseq
    %v1998 = vshrl.u32 %v1997, 7
    %v1999 = vsub.s32 %v1996, %v1998
    %v2000 = vrot.slane %v1972, %v1999
    %v2001 = vcombine.low %v1979, %v1986
    %v2002 = vcombine.low %v1993, %v2000
    %v2004 = vunpack.c.l.s4 1966171168
    %v2005 = vunpack.c.0.s8 %v2004
    %v2006 = vlaneseq
    %v2007 = vshrl.u32 %v2006, 7
    %v2008 = vsub.s32 %v2005, %v2007
    %v2009 = vrot.slane %v2001, %v2008
    %v2011 = vunpack.c.l.s4 1966171168
    %v2012 = vunpack.c.0.s8 %v2011
    %v2013 = vlaneseq
    %v2014 = vshrl.u32 %v2013, 7
    %v2015 = vsub.s32 %v2012, %v2014
    %v2016 = vrot.slane %v2002, %v2015
    %v2017 = vcombine.low %v2009, %v2016
    %v2022 = vunpack.c.l.b16 %v1829
    %v2023 = vunpack.c.h.b16 %v1829
    %v2024 = vunpack.c.l.b16 %v1830
    %v2025 = vunpack.c.h.b16 %v1830
    %v2026 = vunpack.c.l.b16 %v1831
    %v2027 = vunpack.c.h.b16 %v1831
    %v2028 = vunpack.c.l.b16 %v1832
    %v2029 = vunpack.c.h.b16 %v1832
    %v2030 = vpack.c.b16 %v2024, %v2022
    %v2031 = vpack.c.b16 %v2025, %v2023
    %v2032 = vpack.c.b16 %v2028, %v2026
    %v2033 = vpack.c.b16 %v2029, %v2027
    %v2039 = vsel %vm241, %v2017, 0
    %2041 = vmatprep.subr.bf16.mxu0 0
    %2042 = vmatpush1.bf16.msra.mxu0 0
    %2043 = vmatprep.subr.bf16.mxu0 0
    %2044 = vmatpush1.bf16.msra.mxu0 0
    %2045 = vmatprep.subr.bf16.mxu0 0
    %2046 = vmatpush1.bf16.msra.mxu0 0
    %2047 = vmatprep.subr.bf16.mxu0 0
    %2048 = vmatpush1.bf16.msra.mxu0 0
    %2049 = vmatprep.subr.bf16.mxu0 0
    %2050 = vmatpush1.bf16.msra.mxu0 0
    %2051 = vmatprep.subr.bf16.mxu0 0
    %2052 = vmatpush1.bf16.msra.mxu0 0
    %2053 = vmatprep.subr.bf16.mxu0 %v2033
    %2054 = vmatpush1.bf16.msra.mxu0 %v2032
    %2055 = vmatprep.subr.bf16.mxu0 %v2031
    %2056 = vmatpush1.bf16.msra.mxu0 %v2030
    %2057 = vmatprep.subr.bf16.mxu0 0
    %2058 = vmatpush2.bf16.msra.mxu0 0
    %2059 = vmatprep.subr.bf16.mxu0 0
    %2060 = vmatpush2.bf16.msra.mxu0 0
    %2061 = vmatprep.subr.bf16.mxu0 0
    %2062 = vmatpush2.bf16.msra.mxu0 0
    %2063 = vmatprep.subr.bf16.mxu0 0
    %2064 = vmatpush2.bf16.msra.mxu0 0
    %2065 = vmatprep.subr.bf16.mxu0 0
    %2066 = vmatpush2.bf16.msra.mxu0 0
    %2067 = vmatprep.subr.bf16.mxu0 0
    %2068 = vmatpush2.bf16.msra.mxu0 0
    %2069 = vmatprep.subr.bf16.mxu0 0
    %2070 = vmatpush2.bf16.msra.mxu0 0
    %2071 = vmatprep.subr.bf16.mxu0 0
    %2072 = vmatpush2.bf16.msra.mxu0 0
    %2073 = vmatprep.mubr.bf16.mxu0 0
    %2074 = vmatmul.mubr.bf16.gmra.mxu0 %v2039
    %v2075 = vpop.f32.mrf.mxu0
    %v2076 = vadd.f32 %v1953, %v2075
    %v2077 = vpop.f32.mrf.mxu0
    %v2078 = vadd.f32 %v1955, %v2077
    %v2079 = vpop.f32.mrf.mxu0
    %v2080 = vadd.f32 %v1957, %v2079
    %v2081 = vpop.f32.mrf.mxu0
    %v2082 = vadd.f32 %v1959, %v2081
    %2083 = vdwg.mxu0
    %v2084 = vld [vmem:[#allocation18] sm:$0x3]
    %v2086 = vlaneseq
    %v2087 = vshrl.u32 %v2086, 7
    %v2088 = vsub.s32 0, %v2087
    %v2089 = vrot.slane %v2084, %v2088
    %v2090 = vlaneseq
    %v2091 = vshrl.u32 %v2090, 7
    %v2092 = vsub.s32 1, %v2091
    %v2093 = vrot.slane %v2084, %v2092
    %v2096 = vadd.f32 %v2076, %v2089
    %v2097 = vadd.f32 %v2078, %v2093
    %v2098 = vadd.f32 %v2080, %v2089
    %v2099 = vadd.f32 %v2082, %v2093
    %v2104 = vcombine.low %v2096, %v2097
    %v2105 = vcombine.high %v2096, %v2097
    %v2107 = vunpack.c.l.s4 1983009808
    %v2108 = vunpack.c.0.s8 %v2107
    %v2109 = vlaneseq
    %v2110 = vshrl.u32 %v2109, 7
    %v2111 = vsub.s32 %v2108, %v2110
    %v2112 = vrot.slane %v2104, %v2111
    %v2114 = vunpack.c.l.s4 1983009808
    %v2115 = vunpack.c.0.s8 %v2114
    %v2116 = vlaneseq
    %v2117 = vshrl.u32 %v2116, 7
    %v2118 = vsub.s32 %v2115, %v2117
    %v2119 = vrot.slane %v2105, %v2118
    %v2120 = vcombine.high %v2112, %v2112
    %v2121 = vcombine.high %v2119, %v2119
    %v2122 = vcombine.low %v2098, %v2099
    %v2123 = vcombine.high %v2098, %v2099
    %v2125 = vunpack.c.l.s4 1983009808
    %v2126 = vunpack.c.0.s8 %v2125
    %v2127 = vlaneseq
    %v2128 = vshrl.u32 %v2127, 7
    %v2129 = vsub.s32 %v2126, %v2128
    %v2130 = vrot.slane %v2122, %v2129
    %v2132 = vunpack.c.l.s4 1983009808
    %v2133 = vunpack.c.0.s8 %v2132
    %v2134 = vlaneseq
    %v2135 = vshrl.u32 %v2134, 7
    %v2136 = vsub.s32 %v2133, %v2135
    %v2137 = vrot.slane %v2123, %v2136
    %v2138 = vcombine.high %v2130, %v2130
    %v2139 = vcombine.high %v2137, %v2137
    %2148 = vst [vmem:[#allocation5] sm:$0xf] %v2112
    %2149 = vst [vmem:[#allocation5 + $0x4] sm:$0xf] %v2120
    %2150 = vst [vmem:[#allocation5 + $0x8] sm:$0xf] %v2119
    %2151 = vst [vmem:[#allocation5 + $0xc] sm:$0xf] %v2121
    %2152 = vst [vmem:[#allocation5 + $0x10] sm:$0xf] %v2130
    %2153 = vst [vmem:[#allocation5 + $0x14] sm:$0xf] %v2138
    %2154 = vst [vmem:[#allocation5 + $0x18] sm:$0xf] %v2137
    %2155 = vst [vmem:[#allocation5 + $0x1c] sm:$0xf] %v2139
    %v2156 = vld [vmem:[#allocation16] sm:$0xff]
    %v2157 = vld [vmem:[#allocation16 + $0x8] sm:$0xff]
    %v2158 = vld [vmem:[#allocation16 + $0x10] sm:$0xff]
    %v2159 = vld [vmem:[#allocation16 + $0x18] sm:$0xff]
    %v2160 = vld [vmem:[#allocation16 + $0x20] sm:$0xff]
    %v2161 = vld [vmem:[#allocation16 + $0x28] sm:$0xff]
    %v2162 = vld [vmem:[#allocation16 + $0x30] sm:$0xff]
    %v2163 = vld [vmem:[#allocation16 + $0x38] sm:$0xff]
    %v2164 = vpack.c.bf16 %v1800, %v1800
    %v2173 = vunpack.c.l.b16 %v2156
    %v2174 = vunpack.c.h.b16 %v2156
    %v2175 = vunpack.c.l.b16 %v2157
    %v2176 = vunpack.c.h.b16 %v2157
    %v2177 = vunpack.c.l.b16 %v2158
    %v2178 = vunpack.c.h.b16 %v2158
    %v2179 = vunpack.c.l.b16 %v2159
    %v2180 = vunpack.c.h.b16 %v2159
    %v2181 = vunpack.c.l.b16 %v2160
    %v2182 = vunpack.c.h.b16 %v2160
    %v2183 = vunpack.c.l.b16 %v2161
    %v2184 = vunpack.c.h.b16 %v2161
    %v2185 = vunpack.c.l.b16 %v2162
    %v2186 = vunpack.c.h.b16 %v2162
    %v2187 = vunpack.c.l.b16 %v2163
    %v2188 = vunpack.c.h.b16 %v2163
    %v2189 = vpack.c.b16 %v2175, %v2173
    %v2190 = vpack.c.b16 %v2176, %v2174
    %v2191 = vpack.c.b16 %v2179, %v2177
    %v2192 = vpack.c.b16 %v2180, %v2178
    %v2193 = vpack.c.b16 %v2183, %v2181
    %v2194 = vpack.c.b16 %v2184, %v2182
    %v2195 = vpack.c.b16 %v2187, %v2185
    %v2196 = vpack.c.b16 %v2188, %v2186
    %v2206 = vsel %vm475, %v2164, 0
    %2208 = vmatprep.subr.bf16.mxu0 0
    %2209 = vmatpush1.bf16.msra.mxu0 0
    %2210 = vmatprep.subr.bf16.mxu0 0
    %2211 = vmatpush1.bf16.msra.mxu0 0
    %2212 = vmatprep.subr.bf16.mxu0 0
    %2213 = vmatpush1.bf16.msra.mxu0 0
    %2214 = vmatprep.subr.bf16.mxu0 0
    %2215 = vmatpush1.bf16.msra.mxu0 0
    %2216 = vmatprep.subr.bf16.mxu0 %v2196
    %2217 = vmatpush1.bf16.msra.mxu0 %v2195
    %2218 = vmatprep.subr.bf16.mxu0 %v2194
    %2219 = vmatpush1.bf16.msra.mxu0 %v2193
    %2220 = vmatprep.subr.bf16.mxu0 %v2192
    %2221 = vmatpush1.bf16.msra.mxu0 %v2191
    %2222 = vmatprep.subr.bf16.mxu0 %v2190
    %2223 = vmatpush1.bf16.msra.mxu0 %v2189
    %2224 = vmatprep.subr.bf16.mxu0 0
    %2225 = vmatpush2.bf16.msra.mxu0 0
    %2226 = vmatprep.subr.bf16.mxu0 0
    %2227 = vmatpush2.bf16.msra.mxu0 0
    %2228 = vmatprep.subr.bf16.mxu0 0
    %2229 = vmatpush2.bf16.msra.mxu0 0
    %2230 = vmatprep.subr.bf16.mxu0 0
    %2231 = vmatpush2.bf16.msra.mxu0 0
    %2232 = vmatprep.subr.bf16.mxu0 0
    %2233 = vmatpush2.bf16.msra.mxu0 0
    %2234 = vmatprep.subr.bf16.mxu0 0
    %2235 = vmatpush2.bf16.msra.mxu0 0
    %2236 = vmatprep.subr.bf16.mxu0 0
    %2237 = vmatpush2.bf16.msra.mxu0 0
    %2238 = vmatprep.subr.bf16.mxu0 0
    %2239 = vmatpush2.bf16.msra.mxu0 0
    %2240 = vmatprep.mubr.bf16.mxu0 0
    %2241 = vmatmul.mubr.bf16.gmra.mxu0 %v2206
    %v2242 = vpop.f32.mrf.mxu0
    %v2243 = vadd.f32 0.0, %v2242
    %v2244 = vpop.f32.mrf.mxu0
    %v2245 = vadd.f32 0.0, %v2244
    %v2246 = vpop.f32.mrf.mxu0
    %v2247 = vpop.f32.mrf.mxu0
    %2248 = vdwg.mxu0
    %v2249 = vld [vmem:[#allocation5] sm:$0xf]
    %v2250 = vadd.f32 %v2249, %v2243
    %s2251 = scalar_lea.vmem [#allocation5], 28
    %v2252 = vld [vmem:[%s2251] sm:$0xf]
    %v2254 = vrot.slane %v2252, 2
    %v2256 = vadd.f32 %v2254, %v2245
    %v2257 = vxor.u32 %v2250, 2147483648
    %v2258 = vmul.f32 %v2257, 1.442695
    %v2259 = vpow.pop %v2258
    %v2260 = vadd.f32 %v2259, 1.0
    %v2261 = vrcp.pop %v2260
    %v2262 = vmul.f32 1.0, %v2261
    %v2263 = vtanh.pop %v2250
    %v2266 = vunpack.c.l.s4 1983009808
    %v2267 = vunpack.c.0.s8 %v2266
    %v2268 = vlaneseq
    %v2269 = vshrl.u32 %v2268, 7
    %v2270 = vsub.s32 %v2267, %v2269
    %v2271 = vrot.slane %v1812, %v2270
    %2272 = vrot.lane.b32.xlu0 %v2271, 32
    %v2273 = vpop.permute.xlu0 %2272
    %v2275 = vmul.f32 %v2262, %v2273
    %2277 = vrot.lane.b32.xlu0 %v2263, 32
    %v2278 = vpop.permute.xlu0 %2277
    %v2280 = vmul.f32 %v2262, %v2278
    %2282 = vrot.lane.b32.xlu0 %v2280, 32
    %v2283 = vpop.permute.xlu0 %2282
    %v2285 = vadd.f32 %v2275, %v2283
    %v2286 = vtanh.pop %v2285
    %2288 = vrot.lane.b32.xlu0 %v2286, 32
    %v2289 = vpop.permute.xlu0 %2288
    %v2291 = vmul.f32 %v2262, %v2289
    %v2292 = vxor.u32 %v2256, 2147483648
    %v2293 = vmul.f32 %v2292, 1.442695
    %v2294 = vpow.pop %v2293
    %v2295 = vadd.f32 %v2294, 1.0
    %v2296 = vrcp.pop %v2295
    %v2297 = vmul.f32 1.0, %v2296
    %v2298 = vtanh.pop %v2256
    %v2299 = vmul.f32 %v2297, %v1812
    %2301 = vrot.lane.b32.xlu0 %v2298, 32
    %v2302 = vpop.permute.xlu0 %2301
    %v2304 = vmul.f32 %v2297, %v2302
    %2306 = vrot.lane.b32.xlu0 %v2304, 32
    %v2307 = vpop.permute.xlu0 %2306
    %v2309 = vadd.f32 %v2299, %v2307
    %v2310 = vtanh.pop %v2309
    %2312 = vrot.lane.b32.xlu0 %v2310, 32
    %v2313 = vpop.permute.xlu0 %2312
    %v2315 = vmul.f32 %v2297, %v2313
    %v2316 = vpack.c.bf16 %v2291, %v2291
    %v2319 = vunpack.c.l.s4 1966171168
    %v2320 = vunpack.c.0.s8 %v2319
    %v2321 = vlaneseq
    %v2322 = vshrl.u32 %v2321, 7
    %v2323 = vsub.s32 %v2320, %v2322
    %v2324 = vrot.slane %v2316, %v2323
    %v2326 = vunpack.c.l.s4 1966171168
    %v2327 = vunpack.c.0.s8 %v2326
    %v2328 = vlaneseq
    %v2329 = vshrl.u32 %v2328, 7
    %v2330 = vsub.s32 %v2327, %v2329
    %v2331 = vrot.slane %v2324, %v2330
    %2332 = vrot.lane.b32.xlu0 %v2331, 64
    %v2333 = vpop.permute.xlu0 %2332
    %2335 = vst.msk [vmem:[#allocation6] sm:$0x1] %vm595, %v2333
    %v2336 = vpack.c.bf16 %v2315, %v2315
    %v2339 = vunpack.c.l.s4 1966171168
    %v2340 = vunpack.c.0.s8 %v2339
    %v2341 = vlaneseq
    %v2342 = vshrl.u32 %v2341, 7
    %v2343 = vsub.s32 %v2340, %v2342
    %v2344 = vrot.slane %v2336, %v2343
    %v2346 = vunpack.c.l.s4 1966171168
    %v2347 = vunpack.c.0.s8 %v2346
    %v2348 = vlaneseq
    %v2349 = vshrl.u32 %v2348, 7
    %v2350 = vsub.s32 %v2347, %v2349
    %v2351 = vrot.slane %v2344, %v2350
    %2352 = vrot.lane.b32.xlu0 %v2351, 64
    %v2353 = vpop.permute.xlu0 %2352
    %s2355 = scalar_lea.vmem [#allocation7], 7
    %2356 = vst.msk [vmem:[%s2355] sm:$0x1] %vm595, %v2353
    %v2359 = vunpack.c.l.s4 1983009808
    %v2360 = vunpack.c.0.s8 %v2359
    %v2361 = vlaneseq
    %v2362 = vshrl.u32 %v2361, 7
    %v2363 = vsub.s32 %v2360, %v2362
    %v2364 = vrot.slane %v2291, %v2363
    %2365 = vrot.lane.b32.xlu0 %v2364, 64
    %v2366 = vpop.permute.xlu0 %2365
    %v2370 = vunpack.c.l.s4 1983009808
    %v2371 = vunpack.c.0.s8 %v2370
    %v2372 = vlaneseq
    %v2373 = vshrl.u32 %v2372, 7
    %v2374 = vsub.s32 %v2371, %v2373
    %v2375 = vrot.slane %v2315, %v2374
    %2376 = vrot.lane.b32.xlu0 %v2375, 96
    %v2377 = vpop.permute.xlu0 %2376
    %v2379 = vsel %vm241, %v2366, %v2377
    %v2380 = vpack.c.bf16 %v2379, %v2379
    %v2382 = vsel %vm475, %v2380, 0
    %2384 = vmatprep.subr.bf16.mxu0 0
    %2385 = vmatpush1.bf16.msra.mxu0 0
    %2386 = vmatprep.subr.bf16.mxu0 0
    %2387 = vmatpush1.bf16.msra.mxu0 0
    %2388 = vmatprep.subr.bf16.mxu0 0
    %2389 = vmatpush1.bf16.msra.mxu0 0
    %2390 = vmatprep.subr.bf16.mxu0 0
    %2391 = vmatpush1.bf16.msra.mxu0 0
    %2392 = vmatprep.subr.bf16.mxu0 %v2196
    %2393 = vmatpush1.bf16.msra.mxu0 %v2195
    %2394 = vmatprep.subr.bf16.mxu0 %v2194
    %2395 = vmatpush1.bf16.msra.mxu0 %v2193
    %2396 = vmatprep.subr.bf16.mxu0 %v2192
    %2397 = vmatpush1.bf16.msra.mxu0 %v2191
    %2398 = vmatprep.subr.bf16.mxu0 %v2190
    %2399 = vmatpush1.bf16.msra.mxu0 %v2189
    %2400 = vmatprep.subr.bf16.mxu0 0
    %2401 = vmatpush2.bf16.msra.mxu0 0
    %2402 = vmatprep.subr.bf16.mxu0 0
    %2403 = vmatpush2.bf16.msra.mxu0 0
    %2404 = vmatprep.subr.bf16.mxu0 0
    %2405 = vmatpush2.bf16.msra.mxu0 0
    %2406 = vmatprep.subr.bf16.mxu0 0
    %2407 = vmatpush2.bf16.msra.mxu0 0
    %2408 = vmatprep.subr.bf16.mxu0 0
    %2409 = vmatpush2.bf16.msra.mxu0 0
    %2410 = vmatprep.subr.bf16.mxu0 0
    %2411 = vmatpush2.bf16.msra.mxu0 0
    %2412 = vmatprep.subr.bf16.mxu0 0
    %2413 = vmatpush2.bf16.msra.mxu0 0
    %2414 = vmatprep.subr.bf16.mxu0 0
    %2415 = vmatpush2.bf16.msra.mxu0 0
    %2416 = vmatprep.mubr.bf16.mxu0 0
    %2417 = vmatmul.mubr.bf16.gmra.mxu0 %v2382
    %v2418 = vpop.f32.mrf.mxu0
    %v2419 = vadd.f32 0.0, %v2418
    %v2420 = vpop.f32.mrf.mxu0
    %v2421 = vadd.f32 0.0, %v2420
    %v2422 = vpop.f32.mrf.mxu0
    %v2423 = vpop.f32.mrf.mxu0
    %2424 = vdwg.mxu0
    %s2425 = scalar_lea.vmem [#allocation5], 4
    %v2426 = vld [vmem:[%s2425] sm:$0xf]
    %v2427 = vadd.f32 %v2426, %v2419
    %s2428 = scalar_lea.vmem [#allocation5], 24
    %v2429 = vld [vmem:[%s2428] sm:$0xf]
    %v2431 = vrot.slane %v2429, 2
    %v2433 = vadd.f32 %v2431, %v2421
    %v2434 = vxor.u32 %v2427, 2147483648
    %v2435 = vmul.f32 %v2434, 1.442695
    %v2436 = vpow.pop %v2435
    %v2437 = vadd.f32 %v2436, 1.0
    %v2438 = vrcp.pop %v2437
    %v2439 = vmul.f32 1.0, %v2438
    %v2440 = vtanh.pop %v2427
    %v2441 = vmul.f32 %v2439, %v2285
    %2443 = vrot.lane.b32.xlu0 %v2440, 32
    %v2444 = vpop.permute.xlu0 %2443
    %v2446 = vmul.f32 %v2439, %v2444
    %2448 = vrot.lane.b32.xlu0 %v2446, 32
    %v2449 = vpop.permute.xlu0 %2448
    %v2451 = vadd.f32 %v2441, %v2449
    %v2452 = vtanh.pop %v2451
    %2454 = vrot.lane.b32.xlu0 %v2452, 32
    %v2455 = vpop.permute.xlu0 %2454
    %v2457 = vmul.f32 %v2439, %v2455
    %v2458 = vxor.u32 %v2433, 2147483648
    %v2459 = vmul.f32 %v2458, 1.442695
    %v2460 = vpow.pop %v2459
    %v2461 = vadd.f32 %v2460, 1.0
    %v2462 = vrcp.pop %v2461
    %v2463 = vmul.f32 1.0, %v2462
    %v2464 = vtanh.pop %v2433
    %v2465 = vmul.f32 %v2463, %v2309
    %2467 = vrot.lane.b32.xlu0 %v2464, 32
    %v2468 = vpop.permute.xlu0 %2467
    %v2470 = vmul.f32 %v2463, %v2468
    %2472 = vrot.lane.b32.xlu0 %v2470, 32
    %v2473 = vpop.permute.xlu0 %2472
    %v2475 = vadd.f32 %v2465, %v2473
    %v2476 = vtanh.pop %v2475
    %2478 = vrot.lane.b32.xlu0 %v2476, 32
    %v2479 = vpop.permute.xlu0 %2478
    %v2481 = vmul.f32 %v2463, %v2479
    %v2482 = vpack.c.bf16 %v2457, %v2457
    %v2485 = vunpack.c.l.s4 1966171168
    %v2486 = vunpack.c.0.s8 %v2485
    %v2487 = vlaneseq
    %v2488 = vshrl.u32 %v2487, 7
    %v2489 = vsub.s32 %v2486, %v2488
    %v2490 = vrot.slane %v2482, %v2489
    %v2492 = vunpack.c.l.s4 1966171168
    %v2493 = vunpack.c.0.s8 %v2492
    %v2494 = vlaneseq
    %v2495 = vshrl.u32 %v2494, 7
    %v2496 = vsub.s32 %v2493, %v2495
    %v2497 = vrot.slane %v2490, %v2496
    %2498 = vrot.lane.b32.xlu0 %v2497, 64
    %v2499 = vpop.permute.xlu0 %2498
    %s2501 = scalar_lea.vmem [#allocation6], 1
    %2502 = vst.msk [vmem:[%s2501] sm:$0x1] %vm595, %v2499
    %v2503 = vpack.c.bf16 %v2481, %v2481
    %v2506 = vunpack.c.l.s4 1966171168
    %v2507 = vunpack.c.0.s8 %v2506
    %v2508 = vlaneseq
    %v2509 = vshrl.u32 %v2508, 7
    %v2510 = vsub.s32 %v2507, %v2509
    %v2511 = vrot.slane %v2503, %v2510
    %v2513 = vunpack.c.l.s4 1966171168
    %v2514 = vunpack.c.0.s8 %v2513
    %v2515 = vlaneseq
    %v2516 = vshrl.u32 %v2515, 7
    %v2517 = vsub.s32 %v2514, %v2516
    %v2518 = vrot.slane %v2511, %v2517
    %2519 = vrot.lane.b32.xlu0 %v2518, 64
    %v2520 = vpop.permute.xlu0 %2519
    %s2522 = scalar_lea.vmem [#allocation7], 6
    %2523 = vst.msk [vmem:[%s2522] sm:$0x1] %vm595, %v2520
    %v2526 = vunpack.c.l.s4 1983009808
    %v2527 = vunpack.c.0.s8 %v2526
    %v2528 = vlaneseq
    %v2529 = vshrl.u32 %v2528, 7
    %v2530 = vsub.s32 %v2527, %v2529
    %v2531 = vrot.slane %v2457, %v2530
    %2532 = vrot.lane.b32.xlu0 %v2531, 64
    %v2533 = vpop.permute.xlu0 %2532
    %v2537 = vunpack.c.l.s4 1983009808
    %v2538 = vunpack.c.0.s8 %v2537
    %v2539 = vlaneseq
    %v2540 = vshrl.u32 %v2539, 7
    %v2541 = vsub.s32 %v2538, %v2540
    %v2542 = vrot.slane %v2481, %v2541
    %2543 = vrot.lane.b32.xlu0 %v2542, 96
    %v2544 = vpop.permute.xlu0 %2543
    %v2546 = vsel %vm241, %v2533, %v2544
    %v2547 = vpack.c.bf16 %v2546, %v2546
    %v2549 = vsel %vm475, %v2547, 0
    %2551 = vmatprep.subr.bf16.mxu0 0
    %2552 = vmatpush1.bf16.msra.mxu0 0
    %2553 = vmatprep.subr.bf16.mxu0 0
    %2554 = vmatpush1.bf16.msra.mxu0 0
    %2555 = vmatprep.subr.bf16.mxu0 0
    %2556 = vmatpush1.bf16.msra.mxu0 0
    %2557 = vmatprep.subr.bf16.mxu0 0
    %2558 = vmatpush1.bf16.msra.mxu0 0
    %2559 = vmatprep.subr.bf16.mxu0 %v2196
    %2560 = vmatpush1.bf16.msra.mxu0 %v2195
    %2561 = vmatprep.subr.bf16.mxu0 %v2194
    %2562 = vmatpush1.bf16.msra.mxu0 %v2193
    %2563 = vmatprep.subr.bf16.mxu0 %v2192
    %2564 = vmatpush1.bf16.msra.mxu0 %v2191
    %2565 = vmatprep.subr.bf16.mxu0 %v2190
    %2566 = vmatpush1.bf16.msra.mxu0 %v2189
    %2567 = vmatprep.subr.bf16.mxu0 0
    %2568 = vmatpush2.bf16.msra.mxu0 0
    %2569 = vmatprep.subr.bf16.mxu0 0
    %2570 = vmatpush2.bf16.msra.mxu0 0
    %2571 = vmatprep.subr.bf16.mxu0 0
    %2572 = vmatpush2.bf16.msra.mxu0 0
    %2573 = vmatprep.subr.bf16.mxu0 0
    %2574 = vmatpush2.bf16.msra.mxu0 0
    %2575 = vmatprep.subr.bf16.mxu0 0
    %2576 = vmatpush2.bf16.msra.mxu0 0
    %2577 = vmatprep.subr.bf16.mxu0 0
    %2578 = vmatpush2.bf16.msra.mxu0 0
    %2579 = vmatprep.subr.bf16.mxu0 0
    %2580 = vmatpush2.bf16.msra.mxu0 0
    %2581 = vmatprep.subr.bf16.mxu0 0
    %2582 = vmatpush2.bf16.msra.mxu0 0
    %2583 = vmatprep.mubr.bf16.mxu0 0
    %2584 = vmatmul.mubr.bf16.gmra.mxu0 %v2549
    %v2585 = vpop.f32.mrf.mxu0
    %v2586 = vadd.f32 0.0, %v2585
    %v2587 = vpop.f32.mrf.mxu0
    %v2588 = vadd.f32 0.0, %v2587
    %v2589 = vpop.f32.mrf.mxu0
    %v2590 = vpop.f32.mrf.mxu0
    %2591 = vdwg.mxu0
    %s2592 = scalar_lea.vmem [#allocation5], 8
    %v2593 = vld [vmem:[%s2592] sm:$0xf]
    %v2594 = vadd.f32 %v2593, %v2586
    %s2595 = scalar_lea.vmem [#allocation5], 20
    %v2596 = vld [vmem:[%s2595] sm:$0xf]
    %v2598 = vrot.slane %v2596, 2
    %v2600 = vadd.f32 %v2598, %v2588
    %v2601 = vxor.u32 %v2594, 2147483648
    %v2602 = vmul.f32 %v2601, 1.442695
    %v2603 = vpow.pop %v2602
    %v2604 = vadd.f32 %v2603, 1.0
    %v2605 = vrcp.pop %v2604
    %v2606 = vmul.f32 1.0, %v2605
    %v2607 = vtanh.pop %v2594
    %v2608 = vmul.f32 %v2606, %v2451
    %2610 = vrot.lane.b32.xlu0 %v2607, 32
    %v2611 = vpop.permute.xlu0 %2610
    %v2613 = vmul.f32 %v2606, %v2611
    %2615 = vrot.lane.b32.xlu0 %v2613, 32
    %v2616 = vpop.permute.xlu0 %2615
    %v2618 = vadd.f32 %v2608, %v2616
    %v2619 = vtanh.pop %v2618
    %2621 = vrot.lane.b32.xlu0 %v2619, 32
    %v2622 = vpop.permute.xlu0 %2621
    %v2624 = vmul.f32 %v2606, %v2622
    %v2625 = vxor.u32 %v2600, 2147483648
    %v2626 = vmul.f32 %v2625, 1.442695
    %v2627 = vpow.pop %v2626
    %v2628 = vadd.f32 %v2627, 1.0
    %v2629 = vrcp.pop %v2628
    %v2630 = vmul.f32 1.0, %v2629
    %v2631 = vtanh.pop %v2600
    %v2632 = vmul.f32 %v2630, %v2475
    %2634 = vrot.lane.b32.xlu0 %v2631, 32
    %v2635 = vpop.permute.xlu0 %2634
    %v2637 = vmul.f32 %v2630, %v2635
    %2639 = vrot.lane.b32.xlu0 %v2637, 32
    %v2640 = vpop.permute.xlu0 %2639
    %v2642 = vadd.f32 %v2632, %v2640
    %v2643 = vtanh.pop %v2642
    %2645 = vrot.lane.b32.xlu0 %v2643, 32
    %v2646 = vpop.permute.xlu0 %2645
    %v2648 = vmul.f32 %v2630, %v2646
    %v2649 = vpack.c.bf16 %v2624, %v2624
    %v2652 = vunpack.c.l.s4 1966171168
    %v2653 = vunpack.c.0.s8 %v2652
    %v2654 = vlaneseq
    %v2655 = vshrl.u32 %v2654, 7
    %v2656 = vsub.s32 %v2653, %v2655
    %v2657 = vrot.slane %v2649, %v2656
    %v2659 = vunpack.c.l.s4 1966171168
    %v2660 = vunpack.c.0.s8 %v2659
    %v2661 = vlaneseq
    %v2662 = vshrl.u32 %v2661, 7
    %v2663 = vsub.s32 %v2660, %v2662
    %v2664 = vrot.slane %v2657, %v2663
    %2665 = vrot.lane.b32.xlu0 %v2664, 64
    %v2666 = vpop.permute.xlu0 %2665
    %s2668 = scalar_lea.vmem [#allocation6], 2
    %2669 = vst.msk [vmem:[%s2668] sm:$0x1] %vm595, %v2666
    %v2670 = vpack.c.bf16 %v2648, %v2648
    %v2673 = vunpack.c.l.s4 1966171168
    %v2674 = vunpack.c.0.s8 %v2673
    %v2675 = vlaneseq
    %v2676 = vshrl.u32 %v2675, 7
    %v2677 = vsub.s32 %v2674, %v2676
    %v2678 = vrot.slane %v2670, %v2677
    %v2680 = vunpack.c.l.s4 1966171168
    %v2681 = vunpack.c.0.s8 %v2680
    %v2682 = vlaneseq
    %v2683 = vshrl.u32 %v2682, 7
    %v2684 = vsub.s32 %v2681, %v2683
    %v2685 = vrot.slane %v2678, %v2684
    %2686 = vrot.lane.b32.xlu0 %v2685, 64
    %v2687 = vpop.permute.xlu0 %2686
    %s2689 = scalar_lea.vmem [#allocation7], 5
    %2690 = vst.msk [vmem:[%s2689] sm:$0x1] %vm595, %v2687
    %v2693 = vunpack.c.l.s4 1983009808
    %v2694 = vunpack.c.0.s8 %v2693
    %v2695 = vlaneseq
    %v2696 = vshrl.u32 %v2695, 7
    %v2697 = vsub.s32 %v2694, %v2696
    %v2698 = vrot.slane %v2624, %v2697
    %2699 = vrot.lane.b32.xlu0 %v2698, 64
    %v2700 = vpop.permute.xlu0 %2699
    %v2704 = vunpack.c.l.s4 1983009808
    %v2705 = vunpack.c.0.s8 %v2704
    %v2706 = vlaneseq
    %v2707 = vshrl.u32 %v2706, 7
    %v2708 = vsub.s32 %v2705, %v2707
    %v2709 = vrot.slane %v2648, %v2708
    %2710 = vrot.lane.b32.xlu0 %v2709, 96
    %v2711 = vpop.permute.xlu0 %2710
    %v2713 = vsel %vm241, %v2700, %v2711
    %v2714 = vpack.c.bf16 %v2713, %v2713
    %v2716 = vsel %vm475, %v2714, 0
    %2718 = vmatprep.subr.bf16.mxu0 0
    %2719 = vmatpush1.bf16.msra.mxu0 0
    %2720 = vmatprep.subr.bf16.mxu0 0
    %2721 = vmatpush1.bf16.msra.mxu0 0
    %2722 = vmatprep.subr.bf16.mxu0 0
    %2723 = vmatpush1.bf16.msra.mxu0 0
    %2724 = vmatprep.subr.bf16.mxu0 0
    %2725 = vmatpush1.bf16.msra.mxu0 0
    %2726 = vmatprep.subr.bf16.mxu0 %v2196
    %2727 = vmatpush1.bf16.msra.mxu0 %v2195
    %2728 = vmatprep.subr.bf16.mxu0 %v2194
    %2729 = vmatpush1.bf16.msra.mxu0 %v2193
    %2730 = vmatprep.subr.bf16.mxu0 %v2192
    %2731 = vmatpush1.bf16.msra.mxu0 %v2191
    %2732 = vmatprep.subr.bf16.mxu0 %v2190
    %2733 = vmatpush1.bf16.msra.mxu0 %v2189
    %2734 = vmatprep.subr.bf16.mxu0 0
    %2735 = vmatpush2.bf16.msra.mxu0 0
    %2736 = vmatprep.subr.bf16.mxu0 0
    %2737 = vmatpush2.bf16.msra.mxu0 0
    %2738 = vmatprep.subr.bf16.mxu0 0
    %2739 = vmatpush2.bf16.msra.mxu0 0
    %2740 = vmatprep.subr.bf16.mxu0 0
    %2741 = vmatpush2.bf16.msra.mxu0 0
    %2742 = vmatprep.subr.bf16.mxu0 0
    %2743 = vmatpush2.bf16.msra.mxu0 0
    %2744 = vmatprep.subr.bf16.mxu0 0
    %2745 = vmatpush2.bf16.msra.mxu0 0
    %2746 = vmatprep.subr.bf16.mxu0 0
    %2747 = vmatpush2.bf16.msra.mxu0 0
    %2748 = vmatprep.subr.bf16.mxu0 0
    %2749 = vmatpush2.bf16.msra.mxu0 0
    %2750 = vmatprep.mubr.bf16.mxu0 0
    %2751 = vmatmul.mubr.bf16.gmra.mxu0 %v2716
    %v2752 = vpop.f32.mrf.mxu0
    %v2753 = vadd.f32 0.0, %v2752
    %v2754 = vpop.f32.mrf.mxu0
    %v2755 = vadd.f32 0.0, %v2754
    %v2756 = vpop.f32.mrf.mxu0
    %v2757 = vpop.f32.mrf.mxu0
    %2758 = vdwg.mxu0
    %s2759 = scalar_lea.vmem [#allocation5], 12
    %v2760 = vld [vmem:[%s2759] sm:$0xf]
    %v2761 = vadd.f32 %v2760, %v2753
    %s2762 = scalar_lea.vmem [#allocation5], 16
    %v2763 = vld [vmem:[%s2762] sm:$0xf]
    %v2765 = vrot.slane %v2763, 2
    %v2767 = vadd.f32 %v2765, %v2755
    %v2768 = vxor.u32 %v2761, 2147483648
    %v2769 = vmul.f32 %v2768, 1.442695
    %v2770 = vpow.pop %v2769
    %v2771 = vadd.f32 %v2770, 1.0
    %v2772 = vrcp.pop %v2771
    %v2773 = vmul.f32 1.0, %v2772
    %v2774 = vtanh.pop %v2761
    %v2775 = vmul.f32 %v2773, %v2618
    %2777 = vrot.lane.b32.xlu0 %v2774, 32
    %v2778 = vpop.permute.xlu0 %2777
    %v2780 = vmul.f32 %v2773, %v2778
    %2782 = vrot.lane.b32.xlu0 %v2780, 32
    %v2783 = vpop.permute.xlu0 %2782
    %v2785 = vadd.f32 %v2775, %v2783
    %v2786 = vtanh.pop %v2785
    %2788 = vrot.lane.b32.xlu0 %v2786, 32
    %v2789 = vpop.permute.xlu0 %2788
    %v2791 = vmul.f32 %v2773, %v2789
    %v2792 = vxor.u32 %v2767, 2147483648
    %v2793 = vmul.f32 %v2792, 1.442695
    %v2794 = vpow.pop %v2793
    %v2795 = vadd.f32 %v2794, 1.0
    %v2796 = vrcp.pop %v2795
    %v2797 = vmul.f32 1.0, %v2796
    %v2798 = vtanh.pop %v2767
    %v2799 = vmul.f32 %v2797, %v2642
    %2801 = vrot.lane.b32.xlu0 %v2798, 32
    %v2802 = vpop.permute.xlu0 %2801
    %v2804 = vmul.f32 %v2797, %v2802
    %2806 = vrot.lane.b32.xlu0 %v2804, 32
    %v2807 = vpop.permute.xlu0 %2806
    %v2809 = vadd.f32 %v2799, %v2807
    %v2810 = vtanh.pop %v2809
    %2812 = vrot.lane.b32.xlu0 %v2810, 32
    %v2813 = vpop.permute.xlu0 %2812
    %v2815 = vmul.f32 %v2797, %v2813
    %v2816 = vpack.c.bf16 %v2791, %v2791
    %v2819 = vunpack.c.l.s4 1966171168
    %v2820 = vunpack.c.0.s8 %v2819
    %v2821 = vlaneseq
    %v2822 = vshrl.u32 %v2821, 7
    %v2823 = vsub.s32 %v2820, %v2822
    %v2824 = vrot.slane %v2816, %v2823
    %v2826 = vunpack.c.l.s4 1966171168
    %v2827 = vunpack.c.0.s8 %v2826
    %v2828 = vlaneseq
    %v2829 = vshrl.u32 %v2828, 7
    %v2830 = vsub.s32 %v2827, %v2829
    %v2831 = vrot.slane %v2824, %v2830
    %2832 = vrot.lane.b32.xlu0 %v2831, 64
    %v2833 = vpop.permute.xlu0 %2832
    %s2835 = scalar_lea.vmem [#allocation6], 3
    %2836 = vst.msk [vmem:[%s2835] sm:$0x1] %vm595, %v2833
    %v2837 = vpack.c.bf16 %v2815, %v2815
    %v2840 = vunpack.c.l.s4 1966171168
    %v2841 = vunpack.c.0.s8 %v2840
    %v2842 = vlaneseq
    %v2843 = vshrl.u32 %v2842, 7
    %v2844 = vsub.s32 %v2841, %v2843
    %v2845 = vrot.slane %v2837, %v2844
    %v2847 = vunpack.c.l.s4 1966171168
    %v2848 = vunpack.c.0.s8 %v2847
    %v2849 = vlaneseq
    %v2850 = vshrl.u32 %v2849, 7
    %v2851 = vsub.s32 %v2848, %v2850
    %v2852 = vrot.slane %v2845, %v2851
    %2853 = vrot.lane.b32.xlu0 %v2852, 64
    %v2854 = vpop.permute.xlu0 %2853
    %s2856 = scalar_lea.vmem [#allocation7], 4
    %2857 = vst.msk [vmem:[%s2856] sm:$0x1] %vm595, %v2854
    %v2860 = vunpack.c.l.s4 1983009808
    %v2861 = vunpack.c.0.s8 %v2860
    %v2862 = vlaneseq
    %v2863 = vshrl.u32 %v2862, 7
    %v2864 = vsub.s32 %v2861, %v2863
    %v2865 = vrot.slane %v2791, %v2864
    %2866 = vrot.lane.b32.xlu0 %v2865, 64
    %v2867 = vpop.permute.xlu0 %2866
    %v2871 = vunpack.c.l.s4 1983009808
    %v2872 = vunpack.c.0.s8 %v2871
    %v2873 = vlaneseq
    %v2874 = vshrl.u32 %v2873, 7
    %v2875 = vsub.s32 %v2872, %v2874
    %v2876 = vrot.slane %v2815, %v2875
    %2877 = vrot.lane.b32.xlu0 %v2876, 96
    %v2878 = vpop.permute.xlu0 %2877
    %v2880 = vsel %vm241, %v2867, %v2878
    %v2881 = vpack.c.bf16 %v2880, %v2880
    %v2883 = vsel %vm475, %v2881, 0
    %2885 = vmatprep.subr.bf16.mxu0 0
    %2886 = vmatpush1.bf16.msra.mxu0 0
    %2887 = vmatprep.subr.bf16.mxu0 0
    %2888 = vmatpush1.bf16.msra.mxu0 0
    %2889 = vmatprep.subr.bf16.mxu0 0
    %2890 = vmatpush1.bf16.msra.mxu0 0
    %2891 = vmatprep.subr.bf16.mxu0 0
    %2892 = vmatpush1.bf16.msra.mxu0 0
    %2893 = vmatprep.subr.bf16.mxu0 %v2196
    %2894 = vmatpush1.bf16.msra.mxu0 %v2195
    %2895 = vmatprep.subr.bf16.mxu0 %v2194
    %2896 = vmatpush1.bf16.msra.mxu0 %v2193
    %2897 = vmatprep.subr.bf16.mxu0 %v2192
    %2898 = vmatpush1.bf16.msra.mxu0 %v2191
    %2899 = vmatprep.subr.bf16.mxu0 %v2190
    %2900 = vmatpush1.bf16.msra.mxu0 %v2189
    %2901 = vmatprep.subr.bf16.mxu0 0
    %2902 = vmatpush2.bf16.msra.mxu0 0
    %2903 = vmatprep.subr.bf16.mxu0 0
    %2904 = vmatpush2.bf16.msra.mxu0 0
    %2905 = vmatprep.subr.bf16.mxu0 0
    %2906 = vmatpush2.bf16.msra.mxu0 0
    %2907 = vmatprep.subr.bf16.mxu0 0
    %2908 = vmatpush2.bf16.msra.mxu0 0
    %2909 = vmatprep.subr.bf16.mxu0 0
    %2910 = vmatpush2.bf16.msra.mxu0 0
    %2911 = vmatprep.subr.bf16.mxu0 0
    %2912 = vmatpush2.bf16.msra.mxu0 0
    %2913 = vmatprep.subr.bf16.mxu0 0
    %2914 = vmatpush2.bf16.msra.mxu0 0
    %2915 = vmatprep.subr.bf16.mxu0 0
    %2916 = vmatpush2.bf16.msra.mxu0 0
    %2917 = vmatprep.mubr.bf16.mxu0 0
    %2918 = vmatmul.mubr.bf16.gmra.mxu0 %v2883
    %v2919 = vpop.f32.mrf.mxu0
    %v2920 = vadd.f32 0.0, %v2919
    %v2921 = vpop.f32.mrf.mxu0
    %v2922 = vadd.f32 0.0, %v2921
    %v2923 = vpop.f32.mrf.mxu0
    %v2924 = vpop.f32.mrf.mxu0
    %2925 = vdwg.mxu0
    %v2926 = vld [vmem:[%s2762] sm:$0xf]
    %v2927 = vadd.f32 %v2926, %v2920
    %v2928 = vld [vmem:[%s2759] sm:$0xf]
    %v2930 = vrot.slane %v2928, 2
    %v2932 = vadd.f32 %v2930, %v2922
    %v2933 = vxor.u32 %v2927, 2147483648
    %v2934 = vmul.f32 %v2933, 1.442695
    %v2935 = vpow.pop %v2934
    %v2936 = vadd.f32 %v2935, 1.0
    %v2937 = vrcp.pop %v2936
    %v2938 = vmul.f32 1.0, %v2937
    %v2939 = vtanh.pop %v2927
    %v2940 = vmul.f32 %v2938, %v2785
    %2942 = vrot.lane.b32.xlu0 %v2939, 32
    %v2943 = vpop.permute.xlu0 %2942
    %v2945 = vmul.f32 %v2938, %v2943
    %2947 = vrot.lane.b32.xlu0 %v2945, 32
    %v2948 = vpop.permute.xlu0 %2947
    %v2950 = vadd.f32 %v2940, %v2948
    %v2951 = vtanh.pop %v2950
    %2953 = vrot.lane.b32.xlu0 %v2951, 32
    %v2954 = vpop.permute.xlu0 %2953
    %v2956 = vmul.f32 %v2938, %v2954
    %v2957 = vxor.u32 %v2932, 2147483648
    %v2958 = vmul.f32 %v2957, 1.442695
    %v2959 = vpow.pop %v2958
    %v2960 = vadd.f32 %v2959, 1.0
    %v2961 = vrcp.pop %v2960
    %v2962 = vmul.f32 1.0, %v2961
    %v2963 = vtanh.pop %v2932
    %v2964 = vmul.f32 %v2962, %v2809
    %2966 = vrot.lane.b32.xlu0 %v2963, 32
    %v2967 = vpop.permute.xlu0 %2966
    %v2969 = vmul.f32 %v2962, %v2967
    %2971 = vrot.lane.b32.xlu0 %v2969, 32
    %v2972 = vpop.permute.xlu0 %2971
    %v2974 = vadd.f32 %v2964, %v2972
    %v2975 = vtanh.pop %v2974
    %2977 = vrot.lane.b32.xlu0 %v2975, 32
    %v2978 = vpop.permute.xlu0 %2977
    %v2980 = vmul.f32 %v2962, %v2978
    %v2981 = vpack.c.bf16 %v2956, %v2956
    %v2984 = vunpack.c.l.s4 1966171168
    %v2985 = vunpack.c.0.s8 %v2984
    %v2986 = vlaneseq
    %v2987 = vshrl.u32 %v2986, 7
    %v2988 = vsub.s32 %v2985, %v2987
    %v2989 = vrot.slane %v2981, %v2988
    %v2991 = vunpack.c.l.s4 1966171168
    %v2992 = vunpack.c.0.s8 %v2991
    %v2993 = vlaneseq
    %v2994 = vshrl.u32 %v2993, 7
    %v2995 = vsub.s32 %v2992, %v2994
    %v2996 = vrot.slane %v2989, %v2995
    %2997 = vrot.lane.b32.xlu0 %v2996, 64
    %v2998 = vpop.permute.xlu0 %2997
    %s3000 = scalar_lea.vmem [#allocation6], 4
    %3001 = vst.msk [vmem:[%s3000] sm:$0x1] %vm595, %v2998
    %v3002 = vpack.c.bf16 %v2980, %v2980
    %v3005 = vunpack.c.l.s4 1966171168
    %v3006 = vunpack.c.0.s8 %v3005
    %v3007 = vlaneseq
    %v3008 = vshrl.u32 %v3007, 7
    %v3009 = vsub.s32 %v3006, %v3008
    %v3010 = vrot.slane %v3002, %v3009
    %v3012 = vunpack.c.l.s4 1966171168
    %v3013 = vunpack.c.0.s8 %v3012
    %v3014 = vlaneseq
    %v3015 = vshrl.u32 %v3014, 7
    %v3016 = vsub.s32 %v3013, %v3015
    %v3017 = vrot.slane %v3010, %v3016
    %3018 = vrot.lane.b32.xlu0 %v3017, 64
    %v3019 = vpop.permute.xlu0 %3018
    %s3021 = scalar_lea.vmem [#allocation7], 3
    %3022 = vst.msk [vmem:[%s3021] sm:$0x1] %vm595, %v3019
    %v3025 = vunpack.c.l.s4 1983009808
    %v3026 = vunpack.c.0.s8 %v3025
    %v3027 = vlaneseq
    %v3028 = vshrl.u32 %v3027, 7
    %v3029 = vsub.s32 %v3026, %v3028
    %v3030 = vrot.slane %v2956, %v3029
    %3031 = vrot.lane.b32.xlu0 %v3030, 64
    %v3032 = vpop.permute.xlu0 %3031
    %v3036 = vunpack.c.l.s4 1983009808
    %v3037 = vunpack.c.0.s8 %v3036
    %v3038 = vlaneseq
    %v3039 = vshrl.u32 %v3038, 7
    %v3040 = vsub.s32 %v3037, %v3039
    %v3041 = vrot.slane %v2980, %v3040
    %3042 = vrot.lane.b32.xlu0 %v3041, 96
    %v3043 = vpop.permute.xlu0 %3042
    %v3045 = vsel %vm241, %v3032, %v3043
    %v3046 = vpack.c.bf16 %v3045, %v3045
    %v3048 = vsel %vm475, %v3046, 0
    %3050 = vmatprep.subr.bf16.mxu0 0
    %3051 = vmatpush1.bf16.msra.mxu0 0
    %3052 = vmatprep.subr.bf16.mxu0 0
    %3053 = vmatpush1.bf16.msra.mxu0 0
    %3054 = vmatprep.subr.bf16.mxu0 0
    %3055 = vmatpush1.bf16.msra.mxu0 0
    %3056 = vmatprep.subr.bf16.mxu0 0
    %3057 = vmatpush1.bf16.msra.mxu0 0
    %3058 = vmatprep.subr.bf16.mxu0 %v2196
    %3059 = vmatpush1.bf16.msra.mxu0 %v2195
    %3060 = vmatprep.subr.bf16.mxu0 %v2194
    %3061 = vmatpush1.bf16.msra.mxu0 %v2193
    %3062 = vmatprep.subr.bf16.mxu0 %v2192
    %3063 = vmatpush1.bf16.msra.mxu0 %v2191
    %3064 = vmatprep.subr.bf16.mxu0 %v2190
    %3065 = vmatpush1.bf16.msra.mxu0 %v2189
    %3066 = vmatprep.subr.bf16.mxu0 0
    %3067 = vmatpush2.bf16.msra.mxu0 0
    %3068 = vmatprep.subr.bf16.mxu0 0
    %3069 = vmatpush2.bf16.msra.mxu0 0
    %3070 = vmatprep.subr.bf16.mxu0 0
    %3071 = vmatpush2.bf16.msra.mxu0 0
    %3072 = vmatprep.subr.bf16.mxu0 0
    %3073 = vmatpush2.bf16.msra.mxu0 0
    %3074 = vmatprep.subr.bf16.mxu0 0
    %3075 = vmatpush2.bf16.msra.mxu0 0
    %3076 = vmatprep.subr.bf16.mxu0 0
    %3077 = vmatpush2.bf16.msra.mxu0 0
    %3078 = vmatprep.subr.bf16.mxu0 0
    %3079 = vmatpush2.bf16.msra.mxu0 0
    %3080 = vmatprep.subr.bf16.mxu0 0
    %3081 = vmatpush2.bf16.msra.mxu0 0
    %3082 = vmatprep.mubr.bf16.mxu0 0
    %3083 = vmatmul.mubr.bf16.gmra.mxu0 %v3048
    %v3084 = vpop.f32.mrf.mxu0
    %v3085 = vadd.f32 0.0, %v3084
    %v3086 = vpop.f32.mrf.mxu0
    %v3087 = vadd.f32 0.0, %v3086
    %v3088 = vpop.f32.mrf.mxu0
    %v3089 = vpop.f32.mrf.mxu0
    %3090 = vdwg.mxu0
    %v3091 = vld [vmem:[%s2595] sm:$0xf]
    %v3092 = vadd.f32 %v3091, %v3085
    %v3093 = vld [vmem:[%s2592] sm:$0xf]
    %v3095 = vrot.slane %v3093, 2
    %v3097 = vadd.f32 %v3095, %v3087
    %v3098 = vxor.u32 %v3092, 2147483648
    %v3099 = vmul.f32 %v3098, 1.442695
    %v3100 = vpow.pop %v3099
    %v3101 = vadd.f32 %v3100, 1.0
    %v3102 = vrcp.pop %v3101
    %v3103 = vmul.f32 1.0, %v3102
    %v3104 = vtanh.pop %v3092
    %v3105 = vmul.f32 %v3103, %v2950
    %3107 = vrot.lane.b32.xlu0 %v3104, 32
    %v3108 = vpop.permute.xlu0 %3107
    %v3110 = vmul.f32 %v3103, %v3108
    %3112 = vrot.lane.b32.xlu0 %v3110, 32
    %v3113 = vpop.permute.xlu0 %3112
    %v3115 = vadd.f32 %v3105, %v3113
    %v3116 = vtanh.pop %v3115
    %3118 = vrot.lane.b32.xlu0 %v3116, 32
    %v3119 = vpop.permute.xlu0 %3118
    %v3121 = vmul.f32 %v3103, %v3119
    %v3122 = vxor.u32 %v3097, 2147483648
    %v3123 = vmul.f32 %v3122, 1.442695
    %v3124 = vpow.pop %v3123
    %v3125 = vadd.f32 %v3124, 1.0
    %v3126 = vrcp.pop %v3125
    %v3127 = vmul.f32 1.0, %v3126
    %v3128 = vtanh.pop %v3097
    %v3129 = vmul.f32 %v3127, %v2974
    %3131 = vrot.lane.b32.xlu0 %v3128, 32
    %v3132 = vpop.permute.xlu0 %3131
    %v3134 = vmul.f32 %v3127, %v3132
    %3136 = vrot.lane.b32.xlu0 %v3134, 32
    %v3137 = vpop.permute.xlu0 %3136
    %v3139 = vadd.f32 %v3129, %v3137
    %v3140 = vtanh.pop %v3139
    %3142 = vrot.lane.b32.xlu0 %v3140, 32
    %v3143 = vpop.permute.xlu0 %3142
    %v3145 = vmul.f32 %v3127, %v3143
    %v3146 = vpack.c.bf16 %v3121, %v3121
    %v3149 = vunpack.c.l.s4 1966171168
    %v3150 = vunpack.c.0.s8 %v3149
    %v3151 = vlaneseq
    %v3152 = vshrl.u32 %v3151, 7
    %v3153 = vsub.s32 %v3150, %v3152
    %v3154 = vrot.slane %v3146, %v3153
    %v3156 = vunpack.c.l.s4 1966171168
    %v3157 = vunpack.c.0.s8 %v3156
    %v3158 = vlaneseq
    %v3159 = vshrl.u32 %v3158, 7
    %v3160 = vsub.s32 %v3157, %v3159
    %v3161 = vrot.slane %v3154, %v3160
    %3162 = vrot.lane.b32.xlu0 %v3161, 64
    %v3163 = vpop.permute.xlu0 %3162
    %s3165 = scalar_lea.vmem [#allocation6], 5
    %3166 = vst.msk [vmem:[%s3165] sm:$0x1] %vm595, %v3163
    %v3167 = vpack.c.bf16 %v3145, %v3145
    %v3170 = vunpack.c.l.s4 1966171168
    %v3171 = vunpack.c.0.s8 %v3170
    %v3172 = vlaneseq
    %v3173 = vshrl.u32 %v3172, 7
    %v3174 = vsub.s32 %v3171, %v3173
    %v3175 = vrot.slane %v3167, %v3174
    %v3177 = vunpack.c.l.s4 1966171168
    %v3178 = vunpack.c.0.s8 %v3177
    %v3179 = vlaneseq
    %v3180 = vshrl.u32 %v3179, 7
    %v3181 = vsub.s32 %v3178, %v3180
    %v3182 = vrot.slane %v3175, %v3181
    %3183 = vrot.lane.b32.xlu0 %v3182, 64
    %v3184 = vpop.permute.xlu0 %3183
    %s3186 = scalar_lea.vmem [#allocation7], 2
    %3187 = vst.msk [vmem:[%s3186] sm:$0x1] %vm595, %v3184
    %v3190 = vunpack.c.l.s4 1983009808
    %v3191 = vunpack.c.0.s8 %v3190
    %v3192 = vlaneseq
    %v3193 = vshrl.u32 %v3192, 7
    %v3194 = vsub.s32 %v3191, %v3193
    %v3195 = vrot.slane %v3121, %v3194
    %3196 = vrot.lane.b32.xlu0 %v3195, 64
    %v3197 = vpop.permute.xlu0 %3196
    %v3201 = vunpack.c.l.s4 1983009808
    %v3202 = vunpack.c.0.s8 %v3201
    %v3203 = vlaneseq
    %v3204 = vshrl.u32 %v3203, 7
    %v3205 = vsub.s32 %v3202, %v3204
    %v3206 = vrot.slane %v3145, %v3205
    %3207 = vrot.lane.b32.xlu0 %v3206, 96
    %v3208 = vpop.permute.xlu0 %3207
    %v3210 = vsel %vm241, %v3197, %v3208
    %v3211 = vpack.c.bf16 %v3210, %v3210
    %v3213 = vsel %vm475, %v3211, 0
    %3215 = vmatprep.subr.bf16.mxu0 0
    %3216 = vmatpush1.bf16.msra.mxu0 0
    %3217 = vmatprep.subr.bf16.mxu0 0
    %3218 = vmatpush1.bf16.msra.mxu0 0
    %3219 = vmatprep.subr.bf16.mxu0 0
    %3220 = vmatpush1.bf16.msra.mxu0 0
    %3221 = vmatprep.subr.bf16.mxu0 0
    %3222 = vmatpush1.bf16.msra.mxu0 0
    %3223 = vmatprep.subr.bf16.mxu0 %v2196
    %3224 = vmatpush1.bf16.msra.mxu0 %v2195
    %3225 = vmatprep.subr.bf16.mxu0 %v2194
    %3226 = vmatpush1.bf16.msra.mxu0 %v2193
    %3227 = vmatprep.subr.bf16.mxu0 %v2192
    %3228 = vmatpush1.bf16.msra.mxu0 %v2191
    %3229 = vmatprep.subr.bf16.mxu0 %v2190
    %3230 = vmatpush1.bf16.msra.mxu0 %v2189
    %3231 = vmatprep.subr.bf16.mxu0 0
    %3232 = vmatpush2.bf16.msra.mxu0 0
    %3233 = vmatprep.subr.bf16.mxu0 0
    %3234 = vmatpush2.bf16.msra.mxu0 0
    %3235 = vmatprep.subr.bf16.mxu0 0
    %3236 = vmatpush2.bf16.msra.mxu0 0
    %3237 = vmatprep.subr.bf16.mxu0 0
    %3238 = vmatpush2.bf16.msra.mxu0 0
    %3239 = vmatprep.subr.bf16.mxu0 0
    %3240 = vmatpush2.bf16.msra.mxu0 0
    %3241 = vmatprep.subr.bf16.mxu0 0
    %3242 = vmatpush2.bf16.msra.mxu0 0
    %3243 = vmatprep.subr.bf16.mxu0 0
    %3244 = vmatpush2.bf16.msra.mxu0 0
    %3245 = vmatprep.subr.bf16.mxu0 0
    %3246 = vmatpush2.bf16.msra.mxu0 0
    %3247 = vmatprep.mubr.bf16.mxu0 0
    %3248 = vmatmul.mubr.bf16.gmra.mxu0 %v3213
    %v3249 = vpop.f32.mrf.mxu0
    %v3250 = vadd.f32 0.0, %v3249
    %v3251 = vpop.f32.mrf.mxu0
    %v3252 = vadd.f32 0.0, %v3251
    %v3253 = vpop.f32.mrf.mxu0
    %v3254 = vpop.f32.mrf.mxu0
    %3255 = vdwg.mxu0
    %v3256 = vld [vmem:[%s2428] sm:$0xf]
    %v3257 = vadd.f32 %v3256, %v3250
    %v3258 = vld [vmem:[%s2425] sm:$0xf]
    %v3260 = vrot.slane %v3258, 2
    %v3262 = vadd.f32 %v3260, %v3252
    %v3263 = vxor.u32 %v3257, 2147483648
    %v3264 = vmul.f32 %v3263, 1.442695
    %v3265 = vpow.pop %v3264
    %v3266 = vadd.f32 %v3265, 1.0
    %v3267 = vrcp.pop %v3266
    %v3268 = vmul.f32 1.0, %v3267
    %v3269 = vtanh.pop %v3257
    %v3270 = vmul.f32 %v3268, %v3115
    %3272 = vrot.lane.b32.xlu0 %v3269, 32
    %v3273 = vpop.permute.xlu0 %3272
    %v3275 = vmul.f32 %v3268, %v3273
    %3277 = vrot.lane.b32.xlu0 %v3275, 32
    %v3278 = vpop.permute.xlu0 %3277
    %v3280 = vadd.f32 %v3270, %v3278
    %v3281 = vtanh.pop %v3280
    %3283 = vrot.lane.b32.xlu0 %v3281, 32
    %v3284 = vpop.permute.xlu0 %3283
    %v3286 = vmul.f32 %v3268, %v3284
    %v3287 = vxor.u32 %v3262, 2147483648
    %v3288 = vmul.f32 %v3287, 1.442695
    %v3289 = vpow.pop %v3288
    %v3290 = vadd.f32 %v3289, 1.0
    %v3291 = vrcp.pop %v3290
    %v3292 = vmul.f32 1.0, %v3291
    %v3293 = vtanh.pop %v3262
    %v3294 = vmul.f32 %v3292, %v3139
    %3296 = vrot.lane.b32.xlu0 %v3293, 32
    %v3297 = vpop.permute.xlu0 %3296
    %v3299 = vmul.f32 %v3292, %v3297
    %3301 = vrot.lane.b32.xlu0 %v3299, 32
    %v3302 = vpop.permute.xlu0 %3301
    %v3304 = vadd.f32 %v3294, %v3302
    %v3305 = vtanh.pop %v3304
    %3307 = vrot.lane.b32.xlu0 %v3305, 32
    %v3308 = vpop.permute.xlu0 %3307
    %v3310 = vmul.f32 %v3292, %v3308
    %v3311 = vpack.c.bf16 %v3286, %v3286
    %v3314 = vunpack.c.l.s4 1966171168
    %v3315 = vunpack.c.0.s8 %v3314
    %v3316 = vlaneseq
    %v3317 = vshrl.u32 %v3316, 7
    %v3318 = vsub.s32 %v3315, %v3317
    %v3319 = vrot.slane %v3311, %v3318
    %v3321 = vunpack.c.l.s4 1966171168
    %v3322 = vunpack.c.0.s8 %v3321
    %v3323 = vlaneseq
    %v3324 = vshrl.u32 %v3323, 7
    %v3325 = vsub.s32 %v3322, %v3324
    %v3326 = vrot.slane %v3319, %v3325
    %3327 = vrot.lane.b32.xlu0 %v3326, 64
    %v3328 = vpop.permute.xlu0 %3327
    %s3330 = scalar_lea.vmem [#allocation6], 6
    %3331 = vst.msk [vmem:[%s3330] sm:$0x1] %vm595, %v3328
    %v3332 = vpack.c.bf16 %v3310, %v3310
    %v3335 = vunpack.c.l.s4 1966171168
    %v3336 = vunpack.c.0.s8 %v3335
    %v3337 = vlaneseq
    %v3338 = vshrl.u32 %v3337, 7
    %v3339 = vsub.s32 %v3336, %v3338
    %v3340 = vrot.slane %v3332, %v3339
    %v3342 = vunpack.c.l.s4 1966171168
    %v3343 = vunpack.c.0.s8 %v3342
    %v3344 = vlaneseq
    %v3345 = vshrl.u32 %v3344, 7
    %v3346 = vsub.s32 %v3343, %v3345
    %v3347 = vrot.slane %v3340, %v3346
    %3348 = vrot.lane.b32.xlu0 %v3347, 64
    %v3349 = vpop.permute.xlu0 %3348
    %s3351 = scalar_lea.vmem [#allocation7], 1
    %3352 = vst.msk [vmem:[%s3351] sm:$0x1] %vm595, %v3349
    %v3355 = vunpack.c.l.s4 1983009808
    %v3356 = vunpack.c.0.s8 %v3355
    %v3357 = vlaneseq
    %v3358 = vshrl.u32 %v3357, 7
    %v3359 = vsub.s32 %v3356, %v3358
    %v3360 = vrot.slane %v3286, %v3359
    %3361 = vrot.lane.b32.xlu0 %v3360, 64
    %v3362 = vpop.permute.xlu0 %3361
    %v3366 = vunpack.c.l.s4 1983009808
    %v3367 = vunpack.c.0.s8 %v3366
    %v3368 = vlaneseq
    %v3369 = vshrl.u32 %v3368, 7
    %v3370 = vsub.s32 %v3367, %v3369
    %v3371 = vrot.slane %v3310, %v3370
    %3372 = vrot.lane.b32.xlu0 %v3371, 96
    %v3373 = vpop.permute.xlu0 %3372
    %v3375 = vsel %vm241, %v3362, %v3373
    %v3376 = vpack.c.bf16 %v3375, %v3375
    %v3378 = vsel %vm475, %v3376, 0
    %3380 = vmatprep.subr.bf16.mxu0 0
    %3381 = vmatpush1.bf16.msra.mxu0 0
    %3382 = vmatprep.subr.bf16.mxu0 0
    %3383 = vmatpush1.bf16.msra.mxu0 0
    %3384 = vmatprep.subr.bf16.mxu0 0
    %3385 = vmatpush1.bf16.msra.mxu0 0
    %3386 = vmatprep.subr.bf16.mxu0 0
    %3387 = vmatpush1.bf16.msra.mxu0 0
    %3388 = vmatprep.subr.bf16.mxu0 %v2196
    %3389 = vmatpush1.bf16.msra.mxu0 %v2195
    %3390 = vmatprep.subr.bf16.mxu0 %v2194
    %3391 = vmatpush1.bf16.msra.mxu0 %v2193
    %3392 = vmatprep.subr.bf16.mxu0 %v2192
    %3393 = vmatpush1.bf16.msra.mxu0 %v2191
    %3394 = vmatprep.subr.bf16.mxu0 %v2190
    %3395 = vmatpush1.bf16.msra.mxu0 %v2189
    %3396 = vmatprep.subr.bf16.mxu0 0
    %3397 = vmatpush2.bf16.msra.mxu0 0
    %3398 = vmatprep.subr.bf16.mxu0 0
    %3399 = vmatpush2.bf16.msra.mxu0 0
    %3400 = vmatprep.subr.bf16.mxu0 0
    %3401 = vmatpush2.bf16.msra.mxu0 0
    %3402 = vmatprep.subr.bf16.mxu0 0
    %3403 = vmatpush2.bf16.msra.mxu0 0
    %3404 = vmatprep.subr.bf16.mxu0 0
    %3405 = vmatpush2.bf16.msra.mxu0 0
    %3406 = vmatprep.subr.bf16.mxu0 0
    %3407 = vmatpush2.bf16.msra.mxu0 0
    %3408 = vmatprep.subr.bf16.mxu0 0
    %3409 = vmatpush2.bf16.msra.mxu0 0
    %3410 = vmatprep.subr.bf16.mxu0 0
    %3411 = vmatpush2.bf16.msra.mxu0 0
    %3412 = vmatprep.mubr.bf16.mxu0 0
    %3413 = vmatmul.mubr.bf16.gmra.mxu0 %v3378
    %v3414 = vpop.f32.mrf.mxu0
    %v3415 = vadd.f32 0.0, %v3414
    %v3416 = vpop.f32.mrf.mxu0
    %v3417 = vadd.f32 0.0, %v3416
    %v3418 = vpop.f32.mrf.mxu0
    %v3419 = vpop.f32.mrf.mxu0
    %3420 = vdwg.mxu0
    %v3421 = vld [vmem:[%s2251] sm:$0xf]
    %v3422 = vadd.f32 %v3421, %v3415
    %v3423 = vld [vmem:[#allocation5] sm:$0xf]
    %v3425 = vrot.slane %v3423, 2
    %v3427 = vadd.f32 %v3425, %v3417
    %v3428 = vxor.u32 %v3422, 2147483648
    %v3429 = vmul.f32 %v3428, 1.442695
    %v3430 = vpow.pop %v3429
    %v3431 = vadd.f32 %v3430, 1.0
    %v3432 = vrcp.pop %v3431
    %v3433 = vmul.f32 1.0, %v3432
    %v3434 = vtanh.pop %v3422
    %v3435 = vmul.f32 %v3433, %v3280
    %3437 = vrot.lane.b32.xlu0 %v3434, 32
    %v3438 = vpop.permute.xlu0 %3437
    %v3440 = vmul.f32 %v3433, %v3438
    %3442 = vrot.lane.b32.xlu0 %v3440, 32
    %v3443 = vpop.permute.xlu0 %3442
    %v3445 = vadd.f32 %v3435, %v3443
    %v3446 = vtanh.pop %v3445
    %3448 = vrot.lane.b32.xlu0 %v3446, 32
    %v3449 = vpop.permute.xlu0 %3448
    %v3451 = vmul.f32 %v3433, %v3449
    %v3452 = vxor.u32 %v3427, 2147483648
    %v3453 = vmul.f32 %v3452, 1.442695
    %v3454 = vpow.pop %v3453
    %v3455 = vadd.f32 %v3454, 1.0
    %v3456 = vrcp.pop %v3455
    %v3457 = vmul.f32 1.0, %v3456
    %v3458 = vtanh.pop %v3427
    %v3459 = vmul.f32 %v3457, %v3304
    %3461 = vrot.lane.b32.xlu0 %v3458, 32
    %v3462 = vpop.permute.xlu0 %3461
    %v3464 = vmul.f32 %v3457, %v3462
    %3466 = vrot.lane.b32.xlu0 %v3464, 32
    %v3467 = vpop.permute.xlu0 %3466
    %v3469 = vadd.f32 %v3459, %v3467
    %v3470 = vtanh.pop %v3469
    %3472 = vrot.lane.b32.xlu0 %v3470, 32
    %v3473 = vpop.permute.xlu0 %3472
    %v3475 = vmul.f32 %v3457, %v3473
    %v3476 = vpack.c.bf16 %v3451, %v3451
    %v3479 = vunpack.c.l.s4 1966171168
    %v3480 = vunpack.c.0.s8 %v3479
    %v3481 = vlaneseq
    %v3482 = vshrl.u32 %v3481, 7
    %v3483 = vsub.s32 %v3480, %v3482
    %v3484 = vrot.slane %v3476, %v3483
    %v3486 = vunpack.c.l.s4 1966171168
    %v3487 = vunpack.c.0.s8 %v3486
    %v3488 = vlaneseq
    %v3489 = vshrl.u32 %v3488, 7
    %v3490 = vsub.s32 %v3487, %v3489
    %v3491 = vrot.slane %v3484, %v3490
    %3492 = vrot.lane.b32.xlu0 %v3491, 64
    %v3493 = vpop.permute.xlu0 %3492
    %s3495 = scalar_lea.vmem [#allocation6], 7
    %3496 = vst.msk [vmem:[%s3495] sm:$0x1] %vm595, %v3493
    %v3497 = vpack.c.bf16 %v3475, %v3475
    %v3500 = vunpack.c.l.s4 1966171168
    %v3501 = vunpack.c.0.s8 %v3500
    %v3502 = vlaneseq
    %v3503 = vshrl.u32 %v3502, 7
    %v3504 = vsub.s32 %v3501, %v3503
    %v3505 = vrot.slane %v3497, %v3504
    %v3507 = vunpack.c.l.s4 1966171168
    %v3508 = vunpack.c.0.s8 %v3507
    %v3509 = vlaneseq
    %v3510 = vshrl.u32 %v3509, 7
    %v3511 = vsub.s32 %v3508, %v3510
    %v3512 = vrot.slane %v3505, %v3511
    %3513 = vrot.lane.b32.xlu0 %v3512, 64
    %v3514 = vpop.permute.xlu0 %3513
    %3516 = vst.msk [vmem:[#allocation7] sm:$0x1] %vm595, %v3514
    %v3519 = vunpack.c.l.s4 1983009808
    %v3520 = vunpack.c.0.s8 %v3519
    %v3521 = vlaneseq
    %v3522 = vshrl.u32 %v3521, 7
    %v3523 = vsub.s32 %v3520, %v3522
    %v3524 = vrot.slane %v3451, %v3523
    %3525 = vrot.lane.b32.xlu0 %v3524, 64
    %v3526 = vpop.permute.xlu0 %3525
    %v3530 = vunpack.c.l.s4 1983009808
    %v3531 = vunpack.c.0.s8 %v3530
    %v3532 = vlaneseq
    %v3533 = vshrl.u32 %v3532, 7
    %v3534 = vsub.s32 %v3531, %v3533
    %v3535 = vrot.slane %v3475, %v3534
    %3536 = vrot.lane.b32.xlu0 %v3535, 96
    %v3537 = vpop.permute.xlu0 %3536
    %v3539 = vsel %vm241, %v3526, %v3537
    %v3542 = vunpack.c.l.s4 1983009808
    %v3543 = vunpack.c.0.s8 %v3542
    %v3544 = vlaneseq
    %v3545 = vshrl.u32 %v3544, 7
    %v3546 = vsub.s32 %v3543, %v3545
    %v3547 = vrot.slane %v3445, %v3546
    %3548 = vrot.lane.b32.xlu0 %v3547, 96
    %v3549 = vpop.permute.xlu0 %3548
    %v3551 = vsel %vm241, %v3549, %v3469
    %v3552 = vld [vmem:[#allocation6] sm:$0x1]
    %v3553 = vld [vmem:[#allocation6 + $0x1] sm:$0x1]
    %v3554 = vld [vmem:[#allocation6 + $0x2] sm:$0x1]
    %v3555 = vld [vmem:[#allocation6 + $0x3] sm:$0x1]
    %v3556 = vld [vmem:[#allocation6 + $0x4] sm:$0x1]
    %v3557 = vld [vmem:[#allocation6 + $0x5] sm:$0x1]
    %v3558 = vld [vmem:[#allocation6 + $0x6] sm:$0x1]
    %v3559 = vld [vmem:[#allocation6 + $0x7] sm:$0x1]
    %v3560 = vld [vmem:[#allocation7] sm:$0x1]
    %v3561 = vld [vmem:[#allocation7 + $0x1] sm:$0x1]
    %v3562 = vld [vmem:[#allocation7 + $0x2] sm:$0x1]
    %v3563 = vld [vmem:[#allocation7 + $0x3] sm:$0x1]
    %v3564 = vld [vmem:[#allocation7 + $0x4] sm:$0x1]
    %v3565 = vld [vmem:[#allocation7 + $0x5] sm:$0x1]
    %v3566 = vld [vmem:[#allocation7 + $0x6] sm:$0x1]
    %v3567 = vld [vmem:[#allocation7 + $0x7] sm:$0x1]
    %v3568 = vld [vmem:[%s7] sm:$0xff]
    %v3569 = vld [vmem:[%s7 + $0x8] sm:$0xff]
    %v3570 = vld [vmem:[%s7 + $0x10] sm:$0xff]
    %v3571 = vld [vmem:[%s7 + $0x18] sm:$0xff]
    %s3572 = scalar_lea.vmem %s7, 32
    %v3573 = vld [vmem:[%s3572] sm:$0xff]
    %v3574 = vld [vmem:[%s3572 + $0x8] sm:$0xff]
    %v3575 = vld [vmem:[%s3572 + $0x10] sm:$0xff]
    %v3576 = vld [vmem:[%s3572 + $0x18] sm:$0xff]
    %v3585 = vcombine.low %v3560, %v3561
    %v3586 = vcombine.low %v3562, %v3563
    %v3587 = vcombine.low %v3564, %v3565
    %v3588 = vcombine.low %v3566, %v3567
    %v3590 = vunpack.c.l.s4 1966171168
    %v3591 = vunpack.c.0.s8 %v3590
    %v3592 = vlaneseq
    %v3593 = vshrl.u32 %v3592, 7
    %v3594 = vsub.s32 %v3591, %v3593
    %v3595 = vrot.slane %v3585, %v3594
    %v3597 = vunpack.c.l.s4 1966171168
    %v3598 = vunpack.c.0.s8 %v3597
    %v3599 = vlaneseq
    %v3600 = vshrl.u32 %v3599, 7
    %v3601 = vsub.s32 %v3598, %v3600
    %v3602 = vrot.slane %v3586, %v3601
    %v3604 = vunpack.c.l.s4 1966171168
    %v3605 = vunpack.c.0.s8 %v3604
    %v3606 = vlaneseq
    %v3607 = vshrl.u32 %v3606, 7
    %v3608 = vsub.s32 %v3605, %v3607
    %v3609 = vrot.slane %v3587, %v3608
    %v3611 = vunpack.c.l.s4 1966171168
    %v3612 = vunpack.c.0.s8 %v3611
    %v3613 = vlaneseq
    %v3614 = vshrl.u32 %v3613, 7
    %v3615 = vsub.s32 %v3612, %v3614
    %v3616 = vrot.slane %v3588, %v3615
    %v3617 = vcombine.low %v3595, %v3602
    %v3618 = vcombine.low %v3609, %v3616
    %v3620 = vunpack.c.l.s4 1966171168
    %v3621 = vunpack.c.0.s8 %v3620
    %v3622 = vlaneseq
    %v3623 = vshrl.u32 %v3622, 7
    %v3624 = vsub.s32 %v3621, %v3623
    %v3625 = vrot.slane %v3617, %v3624
    %v3627 = vunpack.c.l.s4 1966171168
    %v3628 = vunpack.c.0.s8 %v3627
    %v3629 = vlaneseq
    %v3630 = vshrl.u32 %v3629, 7
    %v3631 = vsub.s32 %v3628, %v3630
    %v3632 = vrot.slane %v3618, %v3631
    %v3633 = vcombine.low %v3625, %v3632
    %v3638 = vunpack.c.l.b16 %v3573
    %v3639 = vunpack.c.h.b16 %v3573
    %v3640 = vunpack.c.l.b16 %v3574
    %v3641 = vunpack.c.h.b16 %v3574
    %v3642 = vunpack.c.l.b16 %v3575
    %v3643 = vunpack.c.h.b16 %v3575
    %v3644 = vunpack.c.l.b16 %v3576
    %v3645 = vunpack.c.h.b16 %v3576
    %v3646 = vpack.c.b16 %v3640, %v3638
    %v3647 = vpack.c.b16 %v3641, %v3639
    %v3648 = vpack.c.b16 %v3644, %v3642
    %v3649 = vpack.c.b16 %v3645, %v3643
    %v3655 = vsel %vm241, %v3633, 0
    %3657 = vmatprep.subr.bf16.mxu0 0
    %3658 = vmatpush1.bf16.msra.mxu0 0
    %3659 = vmatprep.subr.bf16.mxu0 0
    %3660 = vmatpush1.bf16.msra.mxu0 0
    %3661 = vmatprep.subr.bf16.mxu0 0
    %3662 = vmatpush1.bf16.msra.mxu0 0
    %3663 = vmatprep.subr.bf16.mxu0 0
    %3664 = vmatpush1.bf16.msra.mxu0 0
    %3665 = vmatprep.subr.bf16.mxu0 0
    %3666 = vmatpush1.bf16.msra.mxu0 0
    %3667 = vmatprep.subr.bf16.mxu0 0
    %3668 = vmatpush1.bf16.msra.mxu0 0
    %3669 = vmatprep.subr.bf16.mxu0 %v3649
    %3670 = vmatpush1.bf16.msra.mxu0 %v3648
    %3671 = vmatprep.subr.bf16.mxu0 %v3647
    %3672 = vmatpush1.bf16.msra.mxu0 %v3646
    %3673 = vmatprep.subr.bf16.mxu0 0
    %3674 = vmatpush2.bf16.msra.mxu0 0
    %3675 = vmatprep.subr.bf16.mxu0 0
    %3676 = vmatpush2.bf16.msra.mxu0 0
    %3677 = vmatprep.subr.bf16.mxu0 0
    %3678 = vmatpush2.bf16.msra.mxu0 0
    %3679 = vmatprep.subr.bf16.mxu0 0
    %3680 = vmatpush2.bf16.msra.mxu0 0
    %3681 = vmatprep.subr.bf16.mxu0 0
    %3682 = vmatpush2.bf16.msra.mxu0 0
    %3683 = vmatprep.subr.bf16.mxu0 0
    %3684 = vmatpush2.bf16.msra.mxu0 0
    %3685 = vmatprep.subr.bf16.mxu0 0
    %3686 = vmatpush2.bf16.msra.mxu0 0
    %3687 = vmatprep.subr.bf16.mxu0 0
    %3688 = vmatpush2.bf16.msra.mxu0 0
    %3689 = vmatprep.mubr.bf16.mxu0 0
    %3690 = vmatmul.mubr.bf16.gmra.mxu0 %v3655
    %v3691 = vpop.f32.mrf.mxu0
    %v3692 = vadd.f32 0.0, %v3691
    %v3693 = vpop.f32.mrf.mxu0
    %v3694 = vadd.f32 0.0, %v3693
    %v3695 = vpop.f32.mrf.mxu0
    %v3696 = vadd.f32 0.0, %v3695
    %v3697 = vpop.f32.mrf.mxu0
    %v3698 = vadd.f32 0.0, %v3697
    %3699 = vdwg.mxu0
    %v3708 = vcombine.low %v3552, %v3553
    %v3709 = vcombine.low %v3554, %v3555
    %v3710 = vcombine.low %v3556, %v3557
    %v3711 = vcombine.low %v3558, %v3559
    %v3713 = vunpack.c.l.s4 1966171168
    %v3714 = vunpack.c.0.s8 %v3713
    %v3715 = vlaneseq
    %v3716 = vshrl.u32 %v3715, 7
    %v3717 = vsub.s32 %v3714, %v3716
    %v3718 = vrot.slane %v3708, %v3717
    %v3720 = vunpack.c.l.s4 1966171168
    %v3721 = vunpack.c.0.s8 %v3720
    %v3722 = vlaneseq
    %v3723 = vshrl.u32 %v3722, 7
    %v3724 = vsub.s32 %v3721, %v3723
    %v3725 = vrot.slane %v3709, %v3724
    %v3727 = vunpack.c.l.s4 1966171168
    %v3728 = vunpack.c.0.s8 %v3727
    %v3729 = vlaneseq
    %v3730 = vshrl.u32 %v3729, 7
    %v3731 = vsub.s32 %v3728, %v3730
    %v3732 = vrot.slane %v3710, %v3731
    %v3734 = vunpack.c.l.s4 1966171168
    %v3735 = vunpack.c.0.s8 %v3734
    %v3736 = vlaneseq
    %v3737 = vshrl.u32 %v3736, 7
    %v3738 = vsub.s32 %v3735, %v3737
    %v3739 = vrot.slane %v3711, %v3738
    %v3740 = vcombine.low %v3718, %v3725
    %v3741 = vcombine.low %v3732, %v3739
    %v3743 = vunpack.c.l.s4 1966171168
    %v3744 = vunpack.c.0.s8 %v3743
    %v3745 = vlaneseq
    %v3746 = vshrl.u32 %v3745, 7
    %v3747 = vsub.s32 %v3744, %v3746
    %v3748 = vrot.slane %v3740, %v3747
    %v3750 = vunpack.c.l.s4 1966171168
    %v3751 = vunpack.c.0.s8 %v3750
    %v3752 = vlaneseq
    %v3753 = vshrl.u32 %v3752, 7
    %v3754 = vsub.s32 %v3751, %v3753
    %v3755 = vrot.slane %v3741, %v3754
    %v3756 = vcombine.low %v3748, %v3755
    %v3761 = vunpack.c.l.b16 %v3568
    %v3762 = vunpack.c.h.b16 %v3568
    %v3763 = vunpack.c.l.b16 %v3569
    %v3764 = vunpack.c.h.b16 %v3569
    %v3765 = vunpack.c.l.b16 %v3570
    %v3766 = vunpack.c.h.b16 %v3570
    %v3767 = vunpack.c.l.b16 %v3571
    %v3768 = vunpack.c.h.b16 %v3571
    %v3769 = vpack.c.b16 %v3763, %v3761
    %v3770 = vpack.c.b16 %v3764, %v3762
    %v3771 = vpack.c.b16 %v3767, %v3765
    %v3772 = vpack.c.b16 %v3768, %v3766
    %v3778 = vsel %vm241, %v3756, 0
    %3780 = vmatprep.subr.bf16.mxu0 0
    %3781 = vmatpush1.bf16.msra.mxu0 0
    %3782 = vmatprep.subr.bf16.mxu0 0
    %3783 = vmatpush1.bf16.msra.mxu0 0
    %3784 = vmatprep.subr.bf16.mxu0 0
    %3785 = vmatpush1.bf16.msra.mxu0 0
    %3786 = vmatprep.subr.bf16.mxu0 0
    %3787 = vmatpush1.bf16.msra.mxu0 0
    %3788 = vmatprep.subr.bf16.mxu0 0
    %3789 = vmatpush1.bf16.msra.mxu0 0
    %3790 = vmatprep.subr.bf16.mxu0 0
    %3791 = vmatpush1.bf16.msra.mxu0 0
    %3792 = vmatprep.subr.bf16.mxu0 %v3772
    %3793 = vmatpush1.bf16.msra.mxu0 %v3771
    %3794 = vmatprep.subr.bf16.mxu0 %v3770
    %3795 = vmatpush1.bf16.msra.mxu0 %v3769
    %3796 = vmatprep.subr.bf16.mxu0 0
    %3797 = vmatpush2.bf16.msra.mxu0 0
    %3798 = vmatprep.subr.bf16.mxu0 0
    %3799 = vmatpush2.bf16.msra.mxu0 0
    %3800 = vmatprep.subr.bf16.mxu0 0
    %3801 = vmatpush2.bf16.msra.mxu0 0
    %3802 = vmatprep.subr.bf16.mxu0 0
    %3803 = vmatpush2.bf16.msra.mxu0 0
    %3804 = vmatprep.subr.bf16.mxu0 0
    %3805 = vmatpush2.bf16.msra.mxu0 0
    %3806 = vmatprep.subr.bf16.mxu0 0
    %3807 = vmatpush2.bf16.msra.mxu0 0
    %3808 = vmatprep.subr.bf16.mxu0 0
    %3809 = vmatpush2.bf16.msra.mxu0 0
    %3810 = vmatprep.subr.bf16.mxu0 0
    %3811 = vmatpush2.bf16.msra.mxu0 0
    %3812 = vmatprep.mubr.bf16.mxu0 0
    %3813 = vmatmul.mubr.bf16.gmra.mxu0 %v3778
    %v3814 = vpop.f32.mrf.mxu0
    %v3815 = vadd.f32 %v3692, %v3814
    %v3816 = vpop.f32.mrf.mxu0
    %v3817 = vadd.f32 %v3694, %v3816
    %v3818 = vpop.f32.mrf.mxu0
    %v3819 = vadd.f32 %v3696, %v3818
    %v3820 = vpop.f32.mrf.mxu0
    %v3821 = vadd.f32 %v3698, %v3820
    %3822 = vdwg.mxu0
    %v3823 = vld [vmem:[#allocation21] sm:$0x3]
    %v3825 = vlaneseq
    %v3826 = vshrl.u32 %v3825, 7
    %v3827 = vsub.s32 0, %v3826
    %v3828 = vrot.slane %v3823, %v3827
    %v3829 = vlaneseq
    %v3830 = vshrl.u32 %v3829, 7
    %v3831 = vsub.s32 1, %v3830
    %v3832 = vrot.slane %v3823, %v3831
    %v3835 = vadd.f32 %v3815, %v3828
    %v3836 = vadd.f32 %v3817, %v3832
    %v3837 = vadd.f32 %v3819, %v3828
    %v3838 = vadd.f32 %v3821, %v3832
    %v3843 = vcombine.low %v3835, %v3836
    %v3844 = vcombine.high %v3835, %v3836
    %v3846 = vunpack.c.l.s4 1983009808
    %v3847 = vunpack.c.0.s8 %v3846
    %v3848 = vlaneseq
    %v3849 = vshrl.u32 %v3848, 7
    %v3850 = vsub.s32 %v3847, %v3849
    %v3851 = vrot.slane %v3843, %v3850
    %v3853 = vunpack.c.l.s4 1983009808
    %v3854 = vunpack.c.0.s8 %v3853
    %v3855 = vlaneseq
    %v3856 = vshrl.u32 %v3855, 7
    %v3857 = vsub.s32 %v3854, %v3856
    %v3858 = vrot.slane %v3844, %v3857
    %v3859 = vcombine.high %v3851, %v3851
    %v3860 = vcombine.high %v3858, %v3858
    %v3861 = vcombine.low %v3837, %v3838
    %v3862 = vcombine.high %v3837, %v3838
    %v3864 = vunpack.c.l.s4 1983009808
    %v3865 = vunpack.c.0.s8 %v3864
    %v3866 = vlaneseq
    %v3867 = vshrl.u32 %v3866, 7
    %v3868 = vsub.s32 %v3865, %v3867
    %v3869 = vrot.slane %v3861, %v3868
    %v3871 = vunpack.c.l.s4 1983009808
    %v3872 = vunpack.c.0.s8 %v3871
    %v3873 = vlaneseq
    %v3874 = vshrl.u32 %v3873, 7
    %v3875 = vsub.s32 %v3872, %v3874
    %v3876 = vrot.slane %v3862, %v3875
    %v3877 = vcombine.high %v3869, %v3869
    %v3878 = vcombine.high %v3876, %v3876
    %3887 = vst [vmem:[#allocation8] sm:$0xf] %v3851
    %3888 = vst [vmem:[#allocation8 + $0x4] sm:$0xf] %v3859
    %3889 = vst [vmem:[#allocation8 + $0x8] sm:$0xf] %v3858
    %3890 = vst [vmem:[#allocation8 + $0xc] sm:$0xf] %v3860
    %3891 = vst [vmem:[#allocation8 + $0x10] sm:$0xf] %v3869
    %3892 = vst [vmem:[#allocation8 + $0x14] sm:$0xf] %v3877
    %3893 = vst [vmem:[#allocation8 + $0x18] sm:$0xf] %v3876
    %3894 = vst [vmem:[#allocation8 + $0x1c] sm:$0xf] %v3878
    %v3895 = vld [vmem:[#allocation19] sm:$0xff]
    %v3896 = vld [vmem:[#allocation19 + $0x8] sm:$0xff]
    %v3897 = vld [vmem:[#allocation19 + $0x10] sm:$0xff]
    %v3898 = vld [vmem:[#allocation19 + $0x18] sm:$0xff]
    %v3899 = vld [vmem:[#allocation19 + $0x20] sm:$0xff]
    %v3900 = vld [vmem:[#allocation19 + $0x28] sm:$0xff]
    %v3901 = vld [vmem:[#allocation19 + $0x30] sm:$0xff]
    %v3902 = vld [vmem:[#allocation19 + $0x38] sm:$0xff]
    %v3903 = vpack.c.bf16 %v3539, %v3539
    %v3912 = vunpack.c.l.b16 %v3895
    %v3913 = vunpack.c.h.b16 %v3895
    %v3914 = vunpack.c.l.b16 %v3896
    %v3915 = vunpack.c.h.b16 %v3896
    %v3916 = vunpack.c.l.b16 %v3897
    %v3917 = vunpack.c.h.b16 %v3897
    %v3918 = vunpack.c.l.b16 %v3898
    %v3919 = vunpack.c.h.b16 %v3898
    %v3920 = vunpack.c.l.b16 %v3899
    %v3921 = vunpack.c.h.b16 %v3899
    %v3922 = vunpack.c.l.b16 %v3900
    %v3923 = vunpack.c.h.b16 %v3900
    %v3924 = vunpack.c.l.b16 %v3901
    %v3925 = vunpack.c.h.b16 %v3901
    %v3926 = vunpack.c.l.b16 %v3902
    %v3927 = vunpack.c.h.b16 %v3902
    %v3928 = vpack.c.b16 %v3914, %v3912
    %v3929 = vpack.c.b16 %v3915, %v3913
    %v3930 = vpack.c.b16 %v3918, %v3916
    %v3931 = vpack.c.b16 %v3919, %v3917
    %v3932 = vpack.c.b16 %v3922, %v3920
    %v3933 = vpack.c.b16 %v3923, %v3921
    %v3934 = vpack.c.b16 %v3926, %v3924
    %v3935 = vpack.c.b16 %v3927, %v3925
    %v3945 = vsel %vm475, %v3903, 0
    %3947 = vmatprep.subr.bf16.mxu0 0
    %3948 = vmatpush1.bf16.msra.mxu0 0
    %3949 = vmatprep.subr.bf16.mxu0 0
    %3950 = vmatpush1.bf16.msra.mxu0 0
    %3951 = vmatprep.subr.bf16.mxu0 0
    %3952 = vmatpush1.bf16.msra.mxu0 0
    %3953 = vmatprep.subr.bf16.mxu0 0
    %3954 = vmatpush1.bf16.msra.mxu0 0
    %3955 = vmatprep.subr.bf16.mxu0 %v3935
    %3956 = vmatpush1.bf16.msra.mxu0 %v3934
    %3957 = vmatprep.subr.bf16.mxu0 %v3933
    %3958 = vmatpush1.bf16.msra.mxu0 %v3932
    %3959 = vmatprep.subr.bf16.mxu0 %v3931
    %3960 = vmatpush1.bf16.msra.mxu0 %v3930
    %3961 = vmatprep.subr.bf16.mxu0 %v3929
    %3962 = vmatpush1.bf16.msra.mxu0 %v3928
    %3963 = vmatprep.subr.bf16.mxu0 0
    %3964 = vmatpush2.bf16.msra.mxu0 0
    %3965 = vmatprep.subr.bf16.mxu0 0
    %3966 = vmatpush2.bf16.msra.mxu0 0
    %3967 = vmatprep.subr.bf16.mxu0 0
    %3968 = vmatpush2.bf16.msra.mxu0 0
    %3969 = vmatprep.subr.bf16.mxu0 0
    %3970 = vmatpush2.bf16.msra.mxu0 0
    %3971 = vmatprep.subr.bf16.mxu0 0
    %3972 = vmatpush2.bf16.msra.mxu0 0
    %3973 = vmatprep.subr.bf16.mxu0 0
    %3974 = vmatpush2.bf16.msra.mxu0 0
    %3975 = vmatprep.subr.bf16.mxu0 0
    %3976 = vmatpush2.bf16.msra.mxu0 0
    %3977 = vmatprep.subr.bf16.mxu0 0
    %3978 = vmatpush2.bf16.msra.mxu0 0
    %3979 = vmatprep.mubr.bf16.mxu0 0
    %3980 = vmatmul.mubr.bf16.gmra.mxu0 %v3945
    %v3981 = vpop.f32.mrf.mxu0
    %v3982 = vadd.f32 0.0, %v3981
    %v3983 = vpop.f32.mrf.mxu0
    %v3984 = vadd.f32 0.0, %v3983
    %v3985 = vpop.f32.mrf.mxu0
    %v3986 = vpop.f32.mrf.mxu0
    %3987 = vdwg.mxu0
    %v3988 = vld [vmem:[#allocation8] sm:$0xf]
    %v3989 = vadd.f32 %v3988, %v3982
    %s3990 = scalar_lea.vmem [#allocation8], 28
    %v3991 = vld [vmem:[%s3990] sm:$0xf]
    %v3993 = vrot.slane %v3991, 2
    %v3995 = vadd.f32 %v3993, %v3984
    %v3996 = vxor.u32 %v3989, 2147483648
    %v3997 = vmul.f32 %v3996, 1.442695
    %v3998 = vpow.pop %v3997
    %v3999 = vadd.f32 %v3998, 1.0
    %v4000 = vrcp.pop %v3999
    %v4001 = vmul.f32 1.0, %v4000
    %v4002 = vtanh.pop %v3989
    %v4005 = vunpack.c.l.s4 1983009808
    %v4006 = vunpack.c.0.s8 %v4005
    %v4007 = vlaneseq
    %v4008 = vshrl.u32 %v4007, 7
    %v4009 = vsub.s32 %v4006, %v4008
    %v4010 = vrot.slane %v3551, %v4009
    %4011 = vrot.lane.b32.xlu0 %v4010, 32
    %v4012 = vpop.permute.xlu0 %4011
    %v4014 = vmul.f32 %v4001, %v4012
    %4016 = vrot.lane.b32.xlu0 %v4002, 32
    %v4017 = vpop.permute.xlu0 %4016
    %v4019 = vmul.f32 %v4001, %v4017
    %4021 = vrot.lane.b32.xlu0 %v4019, 32
    %v4022 = vpop.permute.xlu0 %4021
    %v4024 = vadd.f32 %v4014, %v4022
    %v4025 = vtanh.pop %v4024
    %4027 = vrot.lane.b32.xlu0 %v4025, 32
    %v4028 = vpop.permute.xlu0 %4027
    %v4030 = vmul.f32 %v4001, %v4028
    %v4031 = vxor.u32 %v3995, 2147483648
    %v4032 = vmul.f32 %v4031, 1.442695
    %v4033 = vpow.pop %v4032
    %v4034 = vadd.f32 %v4033, 1.0
    %v4035 = vrcp.pop %v4034
    %v4036 = vmul.f32 1.0, %v4035
    %v4037 = vtanh.pop %v3995
    %v4038 = vmul.f32 %v4036, %v3551
    %4040 = vrot.lane.b32.xlu0 %v4037, 32
    %v4041 = vpop.permute.xlu0 %4040
    %v4043 = vmul.f32 %v4036, %v4041
    %4045 = vrot.lane.b32.xlu0 %v4043, 32
    %v4046 = vpop.permute.xlu0 %4045
    %v4048 = vadd.f32 %v4038, %v4046
    %v4049 = vtanh.pop %v4048
    %4051 = vrot.lane.b32.xlu0 %v4049, 32
    %v4052 = vpop.permute.xlu0 %4051
    %v4054 = vmul.f32 %v4036, %v4052
    %v4055 = vpack.c.bf16 %v4030, %v4030
    %v4058 = vunpack.c.l.s4 1966171168
    %v4059 = vunpack.c.0.s8 %v4058
    %v4060 = vlaneseq
    %v4061 = vshrl.u32 %v4060, 7
    %v4062 = vsub.s32 %v4059, %v4061
    %v4063 = vrot.slane %v4055, %v4062
    %v4065 = vunpack.c.l.s4 1966171168
    %v4066 = vunpack.c.0.s8 %v4065
    %v4067 = vlaneseq
    %v4068 = vshrl.u32 %v4067, 7
    %v4069 = vsub.s32 %v4066, %v4068
    %v4070 = vrot.slane %v4063, %v4069
    %4071 = vrot.lane.b32.xlu0 %v4070, 64
    %v4072 = vpop.permute.xlu0 %4071
    %4074 = vst.msk [vmem:[#allocation9] sm:$0x1] %vm595, %v4072
    %v4075 = vpack.c.bf16 %v4054, %v4054
    %v4078 = vunpack.c.l.s4 1966171168
    %v4079 = vunpack.c.0.s8 %v4078
    %v4080 = vlaneseq
    %v4081 = vshrl.u32 %v4080, 7
    %v4082 = vsub.s32 %v4079, %v4081
    %v4083 = vrot.slane %v4075, %v4082
    %v4085 = vunpack.c.l.s4 1966171168
    %v4086 = vunpack.c.0.s8 %v4085
    %v4087 = vlaneseq
    %v4088 = vshrl.u32 %v4087, 7
    %v4089 = vsub.s32 %v4086, %v4088
    %v4090 = vrot.slane %v4083, %v4089
    %4091 = vrot.lane.b32.xlu0 %v4090, 64
    %v4092 = vpop.permute.xlu0 %4091
    %s4094 = scalar_lea.vmem [#allocation10], 7
    %4095 = vst.msk [vmem:[%s4094] sm:$0x1] %vm595, %v4092
    %v4098 = vunpack.c.l.s4 1983009808
    %v4099 = vunpack.c.0.s8 %v4098
    %v4100 = vlaneseq
    %v4101 = vshrl.u32 %v4100, 7
    %v4102 = vsub.s32 %v4099, %v4101
    %v4103 = vrot.slane %v4030, %v4102
    %4104 = vrot.lane.b32.xlu0 %v4103, 64
    %v4105 = vpop.permute.xlu0 %4104
    %v4109 = vunpack.c.l.s4 1983009808
    %v4110 = vunpack.c.0.s8 %v4109
    %v4111 = vlaneseq
    %v4112 = vshrl.u32 %v4111, 7
    %v4113 = vsub.s32 %v4110, %v4112
    %v4114 = vrot.slane %v4054, %v4113
    %4115 = vrot.lane.b32.xlu0 %v4114, 96
    %v4116 = vpop.permute.xlu0 %4115
    %v4118 = vsel %vm241, %v4105, %v4116
    %v4119 = vpack.c.bf16 %v4118, %v4118
    %v4121 = vsel %vm475, %v4119, 0
    %4123 = vmatprep.subr.bf16.mxu0 0
    %4124 = vmatpush1.bf16.msra.mxu0 0
    %4125 = vmatprep.subr.bf16.mxu0 0
    %4126 = vmatpush1.bf16.msra.mxu0 0
    %4127 = vmatprep.subr.bf16.mxu0 0
    %4128 = vmatpush1.bf16.msra.mxu0 0
    %4129 = vmatprep.subr.bf16.mxu0 0
    %4130 = vmatpush1.bf16.msra.mxu0 0
    %4131 = vmatprep.subr.bf16.mxu0 %v3935
    %4132 = vmatpush1.bf16.msra.mxu0 %v3934
    %4133 = vmatprep.subr.bf16.mxu0 %v3933
    %4134 = vmatpush1.bf16.msra.mxu0 %v3932
    %4135 = vmatprep.subr.bf16.mxu0 %v3931
    %4136 = vmatpush1.bf16.msra.mxu0 %v3930
    %4137 = vmatprep.subr.bf16.mxu0 %v3929
    %4138 = vmatpush1.bf16.msra.mxu0 %v3928
    %4139 = vmatprep.subr.bf16.mxu0 0
    %4140 = vmatpush2.bf16.msra.mxu0 0
    %4141 = vmatprep.subr.bf16.mxu0 0
    %4142 = vmatpush2.bf16.msra.mxu0 0
    %4143 = vmatprep.subr.bf16.mxu0 0
    %4144 = vmatpush2.bf16.msra.mxu0 0
    %4145 = vmatprep.subr.bf16.mxu0 0
    %4146 = vmatpush2.bf16.msra.mxu0 0
    %4147 = vmatprep.subr.bf16.mxu0 0
    %4148 = vmatpush2.bf16.msra.mxu0 0
    %4149 = vmatprep.subr.bf16.mxu0 0
    %4150 = vmatpush2.bf16.msra.mxu0 0
    %4151 = vmatprep.subr.bf16.mxu0 0
    %4152 = vmatpush2.bf16.msra.mxu0 0
    %4153 = vmatprep.subr.bf16.mxu0 0
    %4154 = vmatpush2.bf16.msra.mxu0 0
    %4155 = vmatprep.mubr.bf16.mxu0 0
    %4156 = vmatmul.mubr.bf16.gmra.mxu0 %v4121
    %v4157 = vpop.f32.mrf.mxu0
    %v4158 = vadd.f32 0.0, %v4157
    %v4159 = vpop.f32.mrf.mxu0
    %v4160 = vadd.f32 0.0, %v4159
    %v4161 = vpop.f32.mrf.mxu0
    %v4162 = vpop.f32.mrf.mxu0
    %4163 = vdwg.mxu0
    %s4164 = scalar_lea.vmem [#allocation8], 4
    %v4165 = vld [vmem:[%s4164] sm:$0xf]
    %v4166 = vadd.f32 %v4165, %v4158
    %s4167 = scalar_lea.vmem [#allocation8], 24
    %v4168 = vld [vmem:[%s4167] sm:$0xf]
    %v4170 = vrot.slane %v4168, 2
    %v4172 = vadd.f32 %v4170, %v4160
    %v4173 = vxor.u32 %v4166, 2147483648
    %v4174 = vmul.f32 %v4173, 1.442695
    %v4175 = vpow.pop %v4174
    %v4176 = vadd.f32 %v4175, 1.0
    %v4177 = vrcp.pop %v4176
    %v4178 = vmul.f32 1.0, %v4177
    %v4179 = vtanh.pop %v4166
    %v4180 = vmul.f32 %v4178, %v4024
    %4182 = vrot.lane.b32.xlu0 %v4179, 32
    %v4183 = vpop.permute.xlu0 %4182
    %v4185 = vmul.f32 %v4178, %v4183
    %4187 = vrot.lane.b32.xlu0 %v4185, 32
    %v4188 = vpop.permute.xlu0 %4187
    %v4190 = vadd.f32 %v4180, %v4188
    %v4191 = vtanh.pop %v4190
    %4193 = vrot.lane.b32.xlu0 %v4191, 32
    %v4194 = vpop.permute.xlu0 %4193
    %v4196 = vmul.f32 %v4178, %v4194
    %v4197 = vxor.u32 %v4172, 2147483648
    %v4198 = vmul.f32 %v4197, 1.442695
    %v4199 = vpow.pop %v4198
    %v4200 = vadd.f32 %v4199, 1.0
    %v4201 = vrcp.pop %v4200
    %v4202 = vmul.f32 1.0, %v4201
    %v4203 = vtanh.pop %v4172
    %v4204 = vmul.f32 %v4202, %v4048
    %4206 = vrot.lane.b32.xlu0 %v4203, 32
    %v4207 = vpop.permute.xlu0 %4206
    %v4209 = vmul.f32 %v4202, %v4207
    %4211 = vrot.lane.b32.xlu0 %v4209, 32
    %v4212 = vpop.permute.xlu0 %4211
    %v4214 = vadd.f32 %v4204, %v4212
    %v4215 = vtanh.pop %v4214
    %4217 = vrot.lane.b32.xlu0 %v4215, 32
    %v4218 = vpop.permute.xlu0 %4217
    %v4220 = vmul.f32 %v4202, %v4218
    %v4221 = vpack.c.bf16 %v4196, %v4196
    %v4224 = vunpack.c.l.s4 1966171168
    %v4225 = vunpack.c.0.s8 %v4224
    %v4226 = vlaneseq
    %v4227 = vshrl.u32 %v4226, 7
    %v4228 = vsub.s32 %v4225, %v4227
    %v4229 = vrot.slane %v4221, %v4228
    %v4231 = vunpack.c.l.s4 1966171168
    %v4232 = vunpack.c.0.s8 %v4231
    %v4233 = vlaneseq
    %v4234 = vshrl.u32 %v4233, 7
    %v4235 = vsub.s32 %v4232, %v4234
    %v4236 = vrot.slane %v4229, %v4235
    %4237 = vrot.lane.b32.xlu0 %v4236, 64
    %v4238 = vpop.permute.xlu0 %4237
    %s4240 = scalar_lea.vmem [#allocation9], 1
    %4241 = vst.msk [vmem:[%s4240] sm:$0x1] %vm595, %v4238
    %v4242 = vpack.c.bf16 %v4220, %v4220
    %v4245 = vunpack.c.l.s4 1966171168
    %v4246 = vunpack.c.0.s8 %v4245
    %v4247 = vlaneseq
    %v4248 = vshrl.u32 %v4247, 7
    %v4249 = vsub.s32 %v4246, %v4248
    %v4250 = vrot.slane %v4242, %v4249
    %v4252 = vunpack.c.l.s4 1966171168
    %v4253 = vunpack.c.0.s8 %v4252
    %v4254 = vlaneseq
    %v4255 = vshrl.u32 %v4254, 7
    %v4256 = vsub.s32 %v4253, %v4255
    %v4257 = vrot.slane %v4250, %v4256
    %4258 = vrot.lane.b32.xlu0 %v4257, 64
    %v4259 = vpop.permute.xlu0 %4258
    %s4261 = scalar_lea.vmem [#allocation10], 6
    %4262 = vst.msk [vmem:[%s4261] sm:$0x1] %vm595, %v4259
    %v4265 = vunpack.c.l.s4 1983009808
    %v4266 = vunpack.c.0.s8 %v4265
    %v4267 = vlaneseq
    %v4268 = vshrl.u32 %v4267, 7
    %v4269 = vsub.s32 %v4266, %v4268
    %v4270 = vrot.slane %v4196, %v4269
    %4271 = vrot.lane.b32.xlu0 %v4270, 64
    %v4272 = vpop.permute.xlu0 %4271
    %v4276 = vunpack.c.l.s4 1983009808
    %v4277 = vunpack.c.0.s8 %v4276
    %v4278 = vlaneseq
    %v4279 = vshrl.u32 %v4278, 7
    %v4280 = vsub.s32 %v4277, %v4279
    %v4281 = vrot.slane %v4220, %v4280
    %4282 = vrot.lane.b32.xlu0 %v4281, 96
    %v4283 = vpop.permute.xlu0 %4282
    %v4285 = vsel %vm241, %v4272, %v4283
    %v4286 = vpack.c.bf16 %v4285, %v4285
    %v4288 = vsel %vm475, %v4286, 0
    %4290 = vmatprep.subr.bf16.mxu0 0
    %4291 = vmatpush1.bf16.msra.mxu0 0
    %4292 = vmatprep.subr.bf16.mxu0 0
    %4293 = vmatpush1.bf16.msra.mxu0 0
    %4294 = vmatprep.subr.bf16.mxu0 0
    %4295 = vmatpush1.bf16.msra.mxu0 0
    %4296 = vmatprep.subr.bf16.mxu0 0
    %4297 = vmatpush1.bf16.msra.mxu0 0
    %4298 = vmatprep.subr.bf16.mxu0 %v3935
    %4299 = vmatpush1.bf16.msra.mxu0 %v3934
    %4300 = vmatprep.subr.bf16.mxu0 %v3933
    %4301 = vmatpush1.bf16.msra.mxu0 %v3932
    %4302 = vmatprep.subr.bf16.mxu0 %v3931
    %4303 = vmatpush1.bf16.msra.mxu0 %v3930
    %4304 = vmatprep.subr.bf16.mxu0 %v3929
    %4305 = vmatpush1.bf16.msra.mxu0 %v3928
    %4306 = vmatprep.subr.bf16.mxu0 0
    %4307 = vmatpush2.bf16.msra.mxu0 0
    %4308 = vmatprep.subr.bf16.mxu0 0
    %4309 = vmatpush2.bf16.msra.mxu0 0
    %4310 = vmatprep.subr.bf16.mxu0 0
    %4311 = vmatpush2.bf16.msra.mxu0 0
    %4312 = vmatprep.subr.bf16.mxu0 0
    %4313 = vmatpush2.bf16.msra.mxu0 0
    %4314 = vmatprep.subr.bf16.mxu0 0
    %4315 = vmatpush2.bf16.msra.mxu0 0
    %4316 = vmatprep.subr.bf16.mxu0 0
    %4317 = vmatpush2.bf16.msra.mxu0 0
    %4318 = vmatprep.subr.bf16.mxu0 0
    %4319 = vmatpush2.bf16.msra.mxu0 0
    %4320 = vmatprep.subr.bf16.mxu0 0
    %4321 = vmatpush2.bf16.msra.mxu0 0
    %4322 = vmatprep.mubr.bf16.mxu0 0
    %4323 = vmatmul.mubr.bf16.gmra.mxu0 %v4288
    %v4324 = vpop.f32.mrf.mxu0
    %v4325 = vadd.f32 0.0, %v4324
    %v4326 = vpop.f32.mrf.mxu0
    %v4327 = vadd.f32 0.0, %v4326
    %v4328 = vpop.f32.mrf.mxu0
    %v4329 = vpop.f32.mrf.mxu0
    %4330 = vdwg.mxu0
    %s4331 = scalar_lea.vmem [#allocation8], 8
    %v4332 = vld [vmem:[%s4331] sm:$0xf]
    %v4333 = vadd.f32 %v4332, %v4325
    %s4334 = scalar_lea.vmem [#allocation8], 20
    %v4335 = vld [vmem:[%s4334] sm:$0xf]
    %v4337 = vrot.slane %v4335, 2
    %v4339 = vadd.f32 %v4337, %v4327
    %v4340 = vxor.u32 %v4333, 2147483648
    %v4341 = vmul.f32 %v4340, 1.442695
    %v4342 = vpow.pop %v4341
    %v4343 = vadd.f32 %v4342, 1.0
    %v4344 = vrcp.pop %v4343
    %v4345 = vmul.f32 1.0, %v4344
    %v4346 = vtanh.pop %v4333
    %v4347 = vmul.f32 %v4345, %v4190
    %4349 = vrot.lane.b32.xlu0 %v4346, 32
    %v4350 = vpop.permute.xlu0 %4349
    %v4352 = vmul.f32 %v4345, %v4350
    %4354 = vrot.lane.b32.xlu0 %v4352, 32
    %v4355 = vpop.permute.xlu0 %4354
    %v4357 = vadd.f32 %v4347, %v4355
    %v4358 = vtanh.pop %v4357
    %4360 = vrot.lane.b32.xlu0 %v4358, 32
    %v4361 = vpop.permute.xlu0 %4360
    %v4363 = vmul.f32 %v4345, %v4361
    %v4364 = vxor.u32 %v4339, 2147483648
    %v4365 = vmul.f32 %v4364, 1.442695
    %v4366 = vpow.pop %v4365
    %v4367 = vadd.f32 %v4366, 1.0
    %v4368 = vrcp.pop %v4367
    %v4369 = vmul.f32 1.0, %v4368
    %v4370 = vtanh.pop %v4339
    %v4371 = vmul.f32 %v4369, %v4214
    %4373 = vrot.lane.b32.xlu0 %v4370, 32
    %v4374 = vpop.permute.xlu0 %4373
    %v4376 = vmul.f32 %v4369, %v4374
    %4378 = vrot.lane.b32.xlu0 %v4376, 32
    %v4379 = vpop.permute.xlu0 %4378
    %v4381 = vadd.f32 %v4371, %v4379
    %v4382 = vtanh.pop %v4381
    %4384 = vrot.lane.b32.xlu0 %v4382, 32
    %v4385 = vpop.permute.xlu0 %4384
    %v4387 = vmul.f32 %v4369, %v4385
    %v4388 = vpack.c.bf16 %v4363, %v4363
    %v4391 = vunpack.c.l.s4 1966171168
    %v4392 = vunpack.c.0.s8 %v4391
    %v4393 = vlaneseq
    %v4394 = vshrl.u32 %v4393, 7
    %v4395 = vsub.s32 %v4392, %v4394
    %v4396 = vrot.slane %v4388, %v4395
    %v4398 = vunpack.c.l.s4 1966171168
    %v4399 = vunpack.c.0.s8 %v4398
    %v4400 = vlaneseq
    %v4401 = vshrl.u32 %v4400, 7
    %v4402 = vsub.s32 %v4399, %v4401
    %v4403 = vrot.slane %v4396, %v4402
    %4404 = vrot.lane.b32.xlu0 %v4403, 64
    %v4405 = vpop.permute.xlu0 %4404
    %s4407 = scalar_lea.vmem [#allocation9], 2
    %4408 = vst.msk [vmem:[%s4407] sm:$0x1] %vm595, %v4405
    %v4409 = vpack.c.bf16 %v4387, %v4387
    %v4412 = vunpack.c.l.s4 1966171168
    %v4413 = vunpack.c.0.s8 %v4412
    %v4414 = vlaneseq
    %v4415 = vshrl.u32 %v4414, 7
    %v4416 = vsub.s32 %v4413, %v4415
    %v4417 = vrot.slane %v4409, %v4416
    %v4419 = vunpack.c.l.s4 1966171168
    %v4420 = vunpack.c.0.s8 %v4419
    %v4421 = vlaneseq
    %v4422 = vshrl.u32 %v4421, 7
    %v4423 = vsub.s32 %v4420, %v4422
    %v4424 = vrot.slane %v4417, %v4423
    %4425 = vrot.lane.b32.xlu0 %v4424, 64
    %v4426 = vpop.permute.xlu0 %4425
    %s4428 = scalar_lea.vmem [#allocation10], 5
    %4429 = vst.msk [vmem:[%s4428] sm:$0x1] %vm595, %v4426
    %v4432 = vunpack.c.l.s4 1983009808
    %v4433 = vunpack.c.0.s8 %v4432
    %v4434 = vlaneseq
    %v4435 = vshrl.u32 %v4434, 7
    %v4436 = vsub.s32 %v4433, %v4435
    %v4437 = vrot.slane %v4363, %v4436
    %4438 = vrot.lane.b32.xlu0 %v4437, 64
    %v4439 = vpop.permute.xlu0 %4438
    %v4443 = vunpack.c.l.s4 1983009808
    %v4444 = vunpack.c.0.s8 %v4443
    %v4445 = vlaneseq
    %v4446 = vshrl.u32 %v4445, 7
    %v4447 = vsub.s32 %v4444, %v4446
    %v4448 = vrot.slane %v4387, %v4447
    %4449 = vrot.lane.b32.xlu0 %v4448, 96
    %v4450 = vpop.permute.xlu0 %4449
    %v4452 = vsel %vm241, %v4439, %v4450
    %v4453 = vpack.c.bf16 %v4452, %v4452
    %v4455 = vsel %vm475, %v4453, 0
    %4457 = vmatprep.subr.bf16.mxu0 0
    %4458 = vmatpush1.bf16.msra.mxu0 0
    %4459 = vmatprep.subr.bf16.mxu0 0
    %4460 = vmatpush1.bf16.msra.mxu0 0
    %4461 = vmatprep.subr.bf16.mxu0 0
    %4462 = vmatpush1.bf16.msra.mxu0 0
    %4463 = vmatprep.subr.bf16.mxu0 0
    %4464 = vmatpush1.bf16.msra.mxu0 0
    %4465 = vmatprep.subr.bf16.mxu0 %v3935
    %4466 = vmatpush1.bf16.msra.mxu0 %v3934
    %4467 = vmatprep.subr.bf16.mxu0 %v3933
    %4468 = vmatpush1.bf16.msra.mxu0 %v3932
    %4469 = vmatprep.subr.bf16.mxu0 %v3931
    %4470 = vmatpush1.bf16.msra.mxu0 %v3930
    %4471 = vmatprep.subr.bf16.mxu0 %v3929
    %4472 = vmatpush1.bf16.msra.mxu0 %v3928
    %4473 = vmatprep.subr.bf16.mxu0 0
    %4474 = vmatpush2.bf16.msra.mxu0 0
    %4475 = vmatprep.subr.bf16.mxu0 0
    %4476 = vmatpush2.bf16.msra.mxu0 0
    %4477 = vmatprep.subr.bf16.mxu0 0
    %4478 = vmatpush2.bf16.msra.mxu0 0
    %4479 = vmatprep.subr.bf16.mxu0 0
    %4480 = vmatpush2.bf16.msra.mxu0 0
    %4481 = vmatprep.subr.bf16.mxu0 0
    %4482 = vmatpush2.bf16.msra.mxu0 0
    %4483 = vmatprep.subr.bf16.mxu0 0
    %4484 = vmatpush2.bf16.msra.mxu0 0
    %4485 = vmatprep.subr.bf16.mxu0 0
    %4486 = vmatpush2.bf16.msra.mxu0 0
    %4487 = vmatprep.subr.bf16.mxu0 0
    %4488 = vmatpush2.bf16.msra.mxu0 0
    %4489 = vmatprep.mubr.bf16.mxu0 0
    %4490 = vmatmul.mubr.bf16.gmra.mxu0 %v4455
    %v4491 = vpop.f32.mrf.mxu0
    %v4492 = vadd.f32 0.0, %v4491
    %v4493 = vpop.f32.mrf.mxu0
    %v4494 = vadd.f32 0.0, %v4493
    %v4495 = vpop.f32.mrf.mxu0
    %v4496 = vpop.f32.mrf.mxu0
    %4497 = vdwg.mxu0
    %s4498 = scalar_lea.vmem [#allocation8], 12
    %v4499 = vld [vmem:[%s4498] sm:$0xf]
    %v4500 = vadd.f32 %v4499, %v4492
    %s4501 = scalar_lea.vmem [#allocation8], 16
    %v4502 = vld [vmem:[%s4501] sm:$0xf]
    %v4504 = vrot.slane %v4502, 2
    %v4506 = vadd.f32 %v4504, %v4494
    %v4507 = vxor.u32 %v4500, 2147483648
    %v4508 = vmul.f32 %v4507, 1.442695
    %v4509 = vpow.pop %v4508
    %v4510 = vadd.f32 %v4509, 1.0
    %v4511 = vrcp.pop %v4510
    %v4512 = vmul.f32 1.0, %v4511
    %v4513 = vtanh.pop %v4500
    %v4514 = vmul.f32 %v4512, %v4357
    %4516 = vrot.lane.b32.xlu0 %v4513, 32
    %v4517 = vpop.permute.xlu0 %4516
    %v4519 = vmul.f32 %v4512, %v4517
    %4521 = vrot.lane.b32.xlu0 %v4519, 32
    %v4522 = vpop.permute.xlu0 %4521
    %v4524 = vadd.f32 %v4514, %v4522
    %v4525 = vtanh.pop %v4524
    %4527 = vrot.lane.b32.xlu0 %v4525, 32
    %v4528 = vpop.permute.xlu0 %4527
    %v4530 = vmul.f32 %v4512, %v4528
    %v4531 = vxor.u32 %v4506, 2147483648
    %v4532 = vmul.f32 %v4531, 1.442695
    %v4533 = vpow.pop %v4532
    %v4534 = vadd.f32 %v4533, 1.0
    %v4535 = vrcp.pop %v4534
    %v4536 = vmul.f32 1.0, %v4535
    %v4537 = vtanh.pop %v4506
    %v4538 = vmul.f32 %v4536, %v4381
    %4540 = vrot.lane.b32.xlu0 %v4537, 32
    %v4541 = vpop.permute.xlu0 %4540
    %v4543 = vmul.f32 %v4536, %v4541
    %4545 = vrot.lane.b32.xlu0 %v4543, 32
    %v4546 = vpop.permute.xlu0 %4545
    %v4548 = vadd.f32 %v4538, %v4546
    %v4549 = vtanh.pop %v4548
    %4551 = vrot.lane.b32.xlu0 %v4549, 32
    %v4552 = vpop.permute.xlu0 %4551
    %v4554 = vmul.f32 %v4536, %v4552
    %v4555 = vpack.c.bf16 %v4530, %v4530
    %v4558 = vunpack.c.l.s4 1966171168
    %v4559 = vunpack.c.0.s8 %v4558
    %v4560 = vlaneseq
    %v4561 = vshrl.u32 %v4560, 7
    %v4562 = vsub.s32 %v4559, %v4561
    %v4563 = vrot.slane %v4555, %v4562
    %v4565 = vunpack.c.l.s4 1966171168
    %v4566 = vunpack.c.0.s8 %v4565
    %v4567 = vlaneseq
    %v4568 = vshrl.u32 %v4567, 7
    %v4569 = vsub.s32 %v4566, %v4568
    %v4570 = vrot.slane %v4563, %v4569
    %4571 = vrot.lane.b32.xlu0 %v4570, 64
    %v4572 = vpop.permute.xlu0 %4571
    %s4574 = scalar_lea.vmem [#allocation9], 3
    %4575 = vst.msk [vmem:[%s4574] sm:$0x1] %vm595, %v4572
    %v4576 = vpack.c.bf16 %v4554, %v4554
    %v4579 = vunpack.c.l.s4 1966171168
    %v4580 = vunpack.c.0.s8 %v4579
    %v4581 = vlaneseq
    %v4582 = vshrl.u32 %v4581, 7
    %v4583 = vsub.s32 %v4580, %v4582
    %v4584 = vrot.slane %v4576, %v4583
    %v4586 = vunpack.c.l.s4 1966171168
    %v4587 = vunpack.c.0.s8 %v4586
    %v4588 = vlaneseq
    %v4589 = vshrl.u32 %v4588, 7
    %v4590 = vsub.s32 %v4587, %v4589
    %v4591 = vrot.slane %v4584, %v4590
    %4592 = vrot.lane.b32.xlu0 %v4591, 64
    %v4593 = vpop.permute.xlu0 %4592
    %s4595 = scalar_lea.vmem [#allocation10], 4
    %4596 = vst.msk [vmem:[%s4595] sm:$0x1] %vm595, %v4593
    %v4599 = vunpack.c.l.s4 1983009808
    %v4600 = vunpack.c.0.s8 %v4599
    %v4601 = vlaneseq
    %v4602 = vshrl.u32 %v4601, 7
    %v4603 = vsub.s32 %v4600, %v4602
    %v4604 = vrot.slane %v4530, %v4603
    %4605 = vrot.lane.b32.xlu0 %v4604, 64
    %v4606 = vpop.permute.xlu0 %4605
    %v4610 = vunpack.c.l.s4 1983009808
    %v4611 = vunpack.c.0.s8 %v4610
    %v4612 = vlaneseq
    %v4613 = vshrl.u32 %v4612, 7
    %v4614 = vsub.s32 %v4611, %v4613
    %v4615 = vrot.slane %v4554, %v4614
    %4616 = vrot.lane.b32.xlu0 %v4615, 96
    %v4617 = vpop.permute.xlu0 %4616
    %v4619 = vsel %vm241, %v4606, %v4617
    %v4620 = vpack.c.bf16 %v4619, %v4619
    %v4622 = vsel %vm475, %v4620, 0
    %4624 = vmatprep.subr.bf16.mxu0 0
    %4625 = vmatpush1.bf16.msra.mxu0 0
    %4626 = vmatprep.subr.bf16.mxu0 0
    %4627 = vmatpush1.bf16.msra.mxu0 0
    %4628 = vmatprep.subr.bf16.mxu0 0
    %4629 = vmatpush1.bf16.msra.mxu0 0
    %4630 = vmatprep.subr.bf16.mxu0 0
    %4631 = vmatpush1.bf16.msra.mxu0 0
    %4632 = vmatprep.subr.bf16.mxu0 %v3935
    %4633 = vmatpush1.bf16.msra.mxu0 %v3934
    %4634 = vmatprep.subr.bf16.mxu0 %v3933
    %4635 = vmatpush1.bf16.msra.mxu0 %v3932
    %4636 = vmatprep.subr.bf16.mxu0 %v3931
    %4637 = vmatpush1.bf16.msra.mxu0 %v3930
    %4638 = vmatprep.subr.bf16.mxu0 %v3929
    %4639 = vmatpush1.bf16.msra.mxu0 %v3928
    %4640 = vmatprep.subr.bf16.mxu0 0
    %4641 = vmatpush2.bf16.msra.mxu0 0
    %4642 = vmatprep.subr.bf16.mxu0 0
    %4643 = vmatpush2.bf16.msra.mxu0 0
    %4644 = vmatprep.subr.bf16.mxu0 0
    %4645 = vmatpush2.bf16.msra.mxu0 0
    %4646 = vmatprep.subr.bf16.mxu0 0
    %4647 = vmatpush2.bf16.msra.mxu0 0
    %4648 = vmatprep.subr.bf16.mxu0 0
    %4649 = vmatpush2.bf16.msra.mxu0 0
    %4650 = vmatprep.subr.bf16.mxu0 0
    %4651 = vmatpush2.bf16.msra.mxu0 0
    %4652 = vmatprep.subr.bf16.mxu0 0
    %4653 = vmatpush2.bf16.msra.mxu0 0
    %4654 = vmatprep.subr.bf16.mxu0 0
    %4655 = vmatpush2.bf16.msra.mxu0 0
    %4656 = vmatprep.mubr.bf16.mxu0 0
    %4657 = vmatmul.mubr.bf16.gmra.mxu0 %v4622
    %v4658 = vpop.f32.mrf.mxu0
    %v4659 = vadd.f32 0.0, %v4658
    %v4660 = vpop.f32.mrf.mxu0
    %v4661 = vadd.f32 0.0, %v4660
    %v4662 = vpop.f32.mrf.mxu0
    %v4663 = vpop.f32.mrf.mxu0
    %4664 = vdwg.mxu0
    %v4665 = vld [vmem:[%s4501] sm:$0xf]
    %v4666 = vadd.f32 %v4665, %v4659
    %v4667 = vld [vmem:[%s4498] sm:$0xf]
    %v4669 = vrot.slane %v4667, 2
    %v4671 = vadd.f32 %v4669, %v4661
    %v4672 = vxor.u32 %v4666, 2147483648
    %v4673 = vmul.f32 %v4672, 1.442695
    %v4674 = vpow.pop %v4673
    %v4675 = vadd.f32 %v4674, 1.0
    %v4676 = vrcp.pop %v4675
    %v4677 = vmul.f32 1.0, %v4676
    %v4678 = vtanh.pop %v4666
    %v4679 = vmul.f32 %v4677, %v4524
    %4681 = vrot.lane.b32.xlu0 %v4678, 32
    %v4682 = vpop.permute.xlu0 %4681
    %v4684 = vmul.f32 %v4677, %v4682
    %4686 = vrot.lane.b32.xlu0 %v4684, 32
    %v4687 = vpop.permute.xlu0 %4686
    %v4689 = vadd.f32 %v4679, %v4687
    %v4690 = vtanh.pop %v4689
    %4692 = vrot.lane.b32.xlu0 %v4690, 32
    %v4693 = vpop.permute.xlu0 %4692
    %v4695 = vmul.f32 %v4677, %v4693
    %v4696 = vxor.u32 %v4671, 2147483648
    %v4697 = vmul.f32 %v4696, 1.442695
    %v4698 = vpow.pop %v4697
    %v4699 = vadd.f32 %v4698, 1.0
    %v4700 = vrcp.pop %v4699
    %v4701 = vmul.f32 1.0, %v4700
    %v4702 = vtanh.pop %v4671
    %v4703 = vmul.f32 %v4701, %v4548
    %4705 = vrot.lane.b32.xlu0 %v4702, 32
    %v4706 = vpop.permute.xlu0 %4705
    %v4708 = vmul.f32 %v4701, %v4706
    %4710 = vrot.lane.b32.xlu0 %v4708, 32
    %v4711 = vpop.permute.xlu0 %4710
    %v4713 = vadd.f32 %v4703, %v4711
    %v4714 = vtanh.pop %v4713
    %4716 = vrot.lane.b32.xlu0 %v4714, 32
    %v4717 = vpop.permute.xlu0 %4716
    %v4719 = vmul.f32 %v4701, %v4717
    %v4720 = vpack.c.bf16 %v4695, %v4695
    %v4723 = vunpack.c.l.s4 1966171168
    %v4724 = vunpack.c.0.s8 %v4723
    %v4725 = vlaneseq
    %v4726 = vshrl.u32 %v4725, 7
    %v4727 = vsub.s32 %v4724, %v4726
    %v4728 = vrot.slane %v4720, %v4727
    %v4730 = vunpack.c.l.s4 1966171168
    %v4731 = vunpack.c.0.s8 %v4730
    %v4732 = vlaneseq
    %v4733 = vshrl.u32 %v4732, 7
    %v4734 = vsub.s32 %v4731, %v4733
    %v4735 = vrot.slane %v4728, %v4734
    %4736 = vrot.lane.b32.xlu0 %v4735, 64
    %v4737 = vpop.permute.xlu0 %4736
    %s4739 = scalar_lea.vmem [#allocation9], 4
    %4740 = vst.msk [vmem:[%s4739] sm:$0x1] %vm595, %v4737
    %v4741 = vpack.c.bf16 %v4719, %v4719
    %v4744 = vunpack.c.l.s4 1966171168
    %v4745 = vunpack.c.0.s8 %v4744
    %v4746 = vlaneseq
    %v4747 = vshrl.u32 %v4746, 7
    %v4748 = vsub.s32 %v4745, %v4747
    %v4749 = vrot.slane %v4741, %v4748
    %v4751 = vunpack.c.l.s4 1966171168
    %v4752 = vunpack.c.0.s8 %v4751
    %v4753 = vlaneseq
    %v4754 = vshrl.u32 %v4753, 7
    %v4755 = vsub.s32 %v4752, %v4754
    %v4756 = vrot.slane %v4749, %v4755
    %4757 = vrot.lane.b32.xlu0 %v4756, 64
    %v4758 = vpop.permute.xlu0 %4757
    %s4760 = scalar_lea.vmem [#allocation10], 3
    %4761 = vst.msk [vmem:[%s4760] sm:$0x1] %vm595, %v4758
    %v4764 = vunpack.c.l.s4 1983009808
    %v4765 = vunpack.c.0.s8 %v4764
    %v4766 = vlaneseq
    %v4767 = vshrl.u32 %v4766, 7
    %v4768 = vsub.s32 %v4765, %v4767
    %v4769 = vrot.slane %v4695, %v4768
    %4770 = vrot.lane.b32.xlu0 %v4769, 64
    %v4771 = vpop.permute.xlu0 %4770
    %v4775 = vunpack.c.l.s4 1983009808
    %v4776 = vunpack.c.0.s8 %v4775
    %v4777 = vlaneseq
    %v4778 = vshrl.u32 %v4777, 7
    %v4779 = vsub.s32 %v4776, %v4778
    %v4780 = vrot.slane %v4719, %v4779
    %4781 = vrot.lane.b32.xlu0 %v4780, 96
    %v4782 = vpop.permute.xlu0 %4781
    %v4784 = vsel %vm241, %v4771, %v4782
    %v4785 = vpack.c.bf16 %v4784, %v4784
    %v4787 = vsel %vm475, %v4785, 0
    %4789 = vmatprep.subr.bf16.mxu0 0
    %4790 = vmatpush1.bf16.msra.mxu0 0
    %4791 = vmatprep.subr.bf16.mxu0 0
    %4792 = vmatpush1.bf16.msra.mxu0 0
    %4793 = vmatprep.subr.bf16.mxu0 0
    %4794 = vmatpush1.bf16.msra.mxu0 0
    %4795 = vmatprep.subr.bf16.mxu0 0
    %4796 = vmatpush1.bf16.msra.mxu0 0
    %4797 = vmatprep.subr.bf16.mxu0 %v3935
    %4798 = vmatpush1.bf16.msra.mxu0 %v3934
    %4799 = vmatprep.subr.bf16.mxu0 %v3933
    %4800 = vmatpush1.bf16.msra.mxu0 %v3932
    %4801 = vmatprep.subr.bf16.mxu0 %v3931
    %4802 = vmatpush1.bf16.msra.mxu0 %v3930
    %4803 = vmatprep.subr.bf16.mxu0 %v3929
    %4804 = vmatpush1.bf16.msra.mxu0 %v3928
    %4805 = vmatprep.subr.bf16.mxu0 0
    %4806 = vmatpush2.bf16.msra.mxu0 0
    %4807 = vmatprep.subr.bf16.mxu0 0
    %4808 = vmatpush2.bf16.msra.mxu0 0
    %4809 = vmatprep.subr.bf16.mxu0 0
    %4810 = vmatpush2.bf16.msra.mxu0 0
    %4811 = vmatprep.subr.bf16.mxu0 0
    %4812 = vmatpush2.bf16.msra.mxu0 0
    %4813 = vmatprep.subr.bf16.mxu0 0
    %4814 = vmatpush2.bf16.msra.mxu0 0
    %4815 = vmatprep.subr.bf16.mxu0 0
    %4816 = vmatpush2.bf16.msra.mxu0 0
    %4817 = vmatprep.subr.bf16.mxu0 0
    %4818 = vmatpush2.bf16.msra.mxu0 0
    %4819 = vmatprep.subr.bf16.mxu0 0
    %4820 = vmatpush2.bf16.msra.mxu0 0
    %4821 = vmatprep.mubr.bf16.mxu0 0
    %4822 = vmatmul.mubr.bf16.gmra.mxu0 %v4787
    %v4823 = vpop.f32.mrf.mxu0
    %v4824 = vadd.f32 0.0, %v4823
    %v4825 = vpop.f32.mrf.mxu0
    %v4826 = vadd.f32 0.0, %v4825
    %v4827 = vpop.f32.mrf.mxu0
    %v4828 = vpop.f32.mrf.mxu0
    %4829 = vdwg.mxu0
    %v4830 = vld [vmem:[%s4334] sm:$0xf]
    %v4831 = vadd.f32 %v4830, %v4824
    %v4832 = vld [vmem:[%s4331] sm:$0xf]
    %v4834 = vrot.slane %v4832, 2
    %v4836 = vadd.f32 %v4834, %v4826
    %v4837 = vxor.u32 %v4831, 2147483648
    %v4838 = vmul.f32 %v4837, 1.442695
    %v4839 = vpow.pop %v4838
    %v4840 = vadd.f32 %v4839, 1.0
    %v4841 = vrcp.pop %v4840
    %v4842 = vmul.f32 1.0, %v4841
    %v4843 = vtanh.pop %v4831
    %v4844 = vmul.f32 %v4842, %v4689
    %4846 = vrot.lane.b32.xlu0 %v4843, 32
    %v4847 = vpop.permute.xlu0 %4846
    %v4849 = vmul.f32 %v4842, %v4847
    %4851 = vrot.lane.b32.xlu0 %v4849, 32
    %v4852 = vpop.permute.xlu0 %4851
    %v4854 = vadd.f32 %v4844, %v4852
    %v4855 = vtanh.pop %v4854
    %4857 = vrot.lane.b32.xlu0 %v4855, 32
    %v4858 = vpop.permute.xlu0 %4857
    %v4860 = vmul.f32 %v4842, %v4858
    %v4861 = vxor.u32 %v4836, 2147483648
    %v4862 = vmul.f32 %v4861, 1.442695
    %v4863 = vpow.pop %v4862
    %v4864 = vadd.f32 %v4863, 1.0
    %v4865 = vrcp.pop %v4864
    %v4866 = vmul.f32 1.0, %v4865
    %v4867 = vtanh.pop %v4836
    %v4868 = vmul.f32 %v4866, %v4713
    %4870 = vrot.lane.b32.xlu0 %v4867, 32
    %v4871 = vpop.permute.xlu0 %4870
    %v4873 = vmul.f32 %v4866, %v4871
    %4875 = vrot.lane.b32.xlu0 %v4873, 32
    %v4876 = vpop.permute.xlu0 %4875
    %v4878 = vadd.f32 %v4868, %v4876
    %v4879 = vtanh.pop %v4878
    %4881 = vrot.lane.b32.xlu0 %v4879, 32
    %v4882 = vpop.permute.xlu0 %4881
    %v4884 = vmul.f32 %v4866, %v4882
    %v4885 = vpack.c.bf16 %v4860, %v4860
    %v4888 = vunpack.c.l.s4 1966171168
    %v4889 = vunpack.c.0.s8 %v4888
    %v4890 = vlaneseq
    %v4891 = vshrl.u32 %v4890, 7
    %v4892 = vsub.s32 %v4889, %v4891
    %v4893 = vrot.slane %v4885, %v4892
    %v4895 = vunpack.c.l.s4 1966171168
    %v4896 = vunpack.c.0.s8 %v4895
    %v4897 = vlaneseq
    %v4898 = vshrl.u32 %v4897, 7
    %v4899 = vsub.s32 %v4896, %v4898
    %v4900 = vrot.slane %v4893, %v4899
    %4901 = vrot.lane.b32.xlu0 %v4900, 64
    %v4902 = vpop.permute.xlu0 %4901
    %s4904 = scalar_lea.vmem [#allocation9], 5
    %4905 = vst.msk [vmem:[%s4904] sm:$0x1] %vm595, %v4902
    %v4906 = vpack.c.bf16 %v4884, %v4884
    %v4909 = vunpack.c.l.s4 1966171168
    %v4910 = vunpack.c.0.s8 %v4909
    %v4911 = vlaneseq
    %v4912 = vshrl.u32 %v4911, 7
    %v4913 = vsub.s32 %v4910, %v4912
    %v4914 = vrot.slane %v4906, %v4913
    %v4916 = vunpack.c.l.s4 1966171168
    %v4917 = vunpack.c.0.s8 %v4916
    %v4918 = vlaneseq
    %v4919 = vshrl.u32 %v4918, 7
    %v4920 = vsub.s32 %v4917, %v4919
    %v4921 = vrot.slane %v4914, %v4920
    %4922 = vrot.lane.b32.xlu0 %v4921, 64
    %v4923 = vpop.permute.xlu0 %4922
    %s4925 = scalar_lea.vmem [#allocation10], 2
    %4926 = vst.msk [vmem:[%s4925] sm:$0x1] %vm595, %v4923
    %v4929 = vunpack.c.l.s4 1983009808
    %v4930 = vunpack.c.0.s8 %v4929
    %v4931 = vlaneseq
    %v4932 = vshrl.u32 %v4931, 7
    %v4933 = vsub.s32 %v4930, %v4932
    %v4934 = vrot.slane %v4860, %v4933
    %4935 = vrot.lane.b32.xlu0 %v4934, 64
    %v4936 = vpop.permute.xlu0 %4935
    %v4940 = vunpack.c.l.s4 1983009808
    %v4941 = vunpack.c.0.s8 %v4940
    %v4942 = vlaneseq
    %v4943 = vshrl.u32 %v4942, 7
    %v4944 = vsub.s32 %v4941, %v4943
    %v4945 = vrot.slane %v4884, %v4944
    %4946 = vrot.lane.b32.xlu0 %v4945, 96
    %v4947 = vpop.permute.xlu0 %4946
    %v4949 = vsel %vm241, %v4936, %v4947
    %v4950 = vpack.c.bf16 %v4949, %v4949
    %v4952 = vsel %vm475, %v4950, 0
    %4954 = vmatprep.subr.bf16.mxu0 0
    %4955 = vmatpush1.bf16.msra.mxu0 0
    %4956 = vmatprep.subr.bf16.mxu0 0
    %4957 = vmatpush1.bf16.msra.mxu0 0
    %4958 = vmatprep.subr.bf16.mxu0 0
    %4959 = vmatpush1.bf16.msra.mxu0 0
    %4960 = vmatprep.subr.bf16.mxu0 0
    %4961 = vmatpush1.bf16.msra.mxu0 0
    %4962 = vmatprep.subr.bf16.mxu0 %v3935
    %4963 = vmatpush1.bf16.msra.mxu0 %v3934
    %4964 = vmatprep.subr.bf16.mxu0 %v3933
    %4965 = vmatpush1.bf16.msra.mxu0 %v3932
    %4966 = vmatprep.subr.bf16.mxu0 %v3931
    %4967 = vmatpush1.bf16.msra.mxu0 %v3930
    %4968 = vmatprep.subr.bf16.mxu0 %v3929
    %4969 = vmatpush1.bf16.msra.mxu0 %v3928
    %4970 = vmatprep.subr.bf16.mxu0 0
    %4971 = vmatpush2.bf16.msra.mxu0 0
    %4972 = vmatprep.subr.bf16.mxu0 0
    %4973 = vmatpush2.bf16.msra.mxu0 0
    %4974 = vmatprep.subr.bf16.mxu0 0
    %4975 = vmatpush2.bf16.msra.mxu0 0
    %4976 = vmatprep.subr.bf16.mxu0 0
    %4977 = vmatpush2.bf16.msra.mxu0 0
    %4978 = vmatprep.subr.bf16.mxu0 0
    %4979 = vmatpush2.bf16.msra.mxu0 0
    %4980 = vmatprep.subr.bf16.mxu0 0
    %4981 = vmatpush2.bf16.msra.mxu0 0
    %4982 = vmatprep.subr.bf16.mxu0 0
    %4983 = vmatpush2.bf16.msra.mxu0 0
    %4984 = vmatprep.subr.bf16.mxu0 0
    %4985 = vmatpush2.bf16.msra.mxu0 0
    %4986 = vmatprep.mubr.bf16.mxu0 0
    %4987 = vmatmul.mubr.bf16.gmra.mxu0 %v4952
    %v4988 = vpop.f32.mrf.mxu0
    %v4989 = vadd.f32 0.0, %v4988
    %v4990 = vpop.f32.mrf.mxu0
    %v4991 = vadd.f32 0.0, %v4990
    %v4992 = vpop.f32.mrf.mxu0
    %v4993 = vpop.f32.mrf.mxu0
    %4994 = vdwg.mxu0
    %v4995 = vld [vmem:[%s4167] sm:$0xf]
    %v4996 = vadd.f32 %v4995, %v4989
    %v4997 = vld [vmem:[%s4164] sm:$0xf]
    %v4999 = vrot.slane %v4997, 2
    %v5001 = vadd.f32 %v4999, %v4991
    %v5002 = vxor.u32 %v4996, 2147483648
    %v5003 = vmul.f32 %v5002, 1.442695
    %v5004 = vpow.pop %v5003
    %v5005 = vadd.f32 %v5004, 1.0
    %v5006 = vrcp.pop %v5005
    %v5007 = vmul.f32 1.0, %v5006
    %v5008 = vtanh.pop %v4996
    %v5009 = vmul.f32 %v5007, %v4854
    %5011 = vrot.lane.b32.xlu0 %v5008, 32
    %v5012 = vpop.permute.xlu0 %5011
    %v5014 = vmul.f32 %v5007, %v5012
    %5016 = vrot.lane.b32.xlu0 %v5014, 32
    %v5017 = vpop.permute.xlu0 %5016
    %v5019 = vadd.f32 %v5009, %v5017
    %v5020 = vtanh.pop %v5019
    %5022 = vrot.lane.b32.xlu0 %v5020, 32
    %v5023 = vpop.permute.xlu0 %5022
    %v5025 = vmul.f32 %v5007, %v5023
    %v5026 = vxor.u32 %v5001, 2147483648
    %v5027 = vmul.f32 %v5026, 1.442695
    %v5028 = vpow.pop %v5027
    %v5029 = vadd.f32 %v5028, 1.0
    %v5030 = vrcp.pop %v5029
    %v5031 = vmul.f32 1.0, %v5030
    %v5032 = vtanh.pop %v5001
    %v5033 = vmul.f32 %v5031, %v4878
    %5035 = vrot.lane.b32.xlu0 %v5032, 32
    %v5036 = vpop.permute.xlu0 %5035
    %v5038 = vmul.f32 %v5031, %v5036
    %5040 = vrot.lane.b32.xlu0 %v5038, 32
    %v5041 = vpop.permute.xlu0 %5040
    %v5043 = vadd.f32 %v5033, %v5041
    %v5044 = vtanh.pop %v5043
    %5046 = vrot.lane.b32.xlu0 %v5044, 32
    %v5047 = vpop.permute.xlu0 %5046
    %v5049 = vmul.f32 %v5031, %v5047
    %v5050 = vpack.c.bf16 %v5025, %v5025
    %v5053 = vunpack.c.l.s4 1966171168
    %v5054 = vunpack.c.0.s8 %v5053
    %v5055 = vlaneseq
    %v5056 = vshrl.u32 %v5055, 7
    %v5057 = vsub.s32 %v5054, %v5056
    %v5058 = vrot.slane %v5050, %v5057
    %v5060 = vunpack.c.l.s4 1966171168
    %v5061 = vunpack.c.0.s8 %v5060
    %v5062 = vlaneseq
    %v5063 = vshrl.u32 %v5062, 7
    %v5064 = vsub.s32 %v5061, %v5063
    %v5065 = vrot.slane %v5058, %v5064
    %5066 = vrot.lane.b32.xlu0 %v5065, 64
    %v5067 = vpop.permute.xlu0 %5066
    %s5069 = scalar_lea.vmem [#allocation9], 6
    %5070 = vst.msk [vmem:[%s5069] sm:$0x1] %vm595, %v5067
    %v5071 = vpack.c.bf16 %v5049, %v5049
    %v5074 = vunpack.c.l.s4 1966171168
    %v5075 = vunpack.c.0.s8 %v5074
    %v5076 = vlaneseq
    %v5077 = vshrl.u32 %v5076, 7
    %v5078 = vsub.s32 %v5075, %v5077
    %v5079 = vrot.slane %v5071, %v5078
    %v5081 = vunpack.c.l.s4 1966171168
    %v5082 = vunpack.c.0.s8 %v5081
    %v5083 = vlaneseq
    %v5084 = vshrl.u32 %v5083, 7
    %v5085 = vsub.s32 %v5082, %v5084
    %v5086 = vrot.slane %v5079, %v5085
    %5087 = vrot.lane.b32.xlu0 %v5086, 64
    %v5088 = vpop.permute.xlu0 %5087
    %s5090 = scalar_lea.vmem [#allocation10], 1
    %5091 = vst.msk [vmem:[%s5090] sm:$0x1] %vm595, %v5088
    %v5094 = vunpack.c.l.s4 1983009808
    %v5095 = vunpack.c.0.s8 %v5094
    %v5096 = vlaneseq
    %v5097 = vshrl.u32 %v5096, 7
    %v5098 = vsub.s32 %v5095, %v5097
    %v5099 = vrot.slane %v5025, %v5098
    %5100 = vrot.lane.b32.xlu0 %v5099, 64
    %v5101 = vpop.permute.xlu0 %5100
    %v5105 = vunpack.c.l.s4 1983009808
    %v5106 = vunpack.c.0.s8 %v5105
    %v5107 = vlaneseq
    %v5108 = vshrl.u32 %v5107, 7
    %v5109 = vsub.s32 %v5106, %v5108
    %v5110 = vrot.slane %v5049, %v5109
    %5111 = vrot.lane.b32.xlu0 %v5110, 96
    %v5112 = vpop.permute.xlu0 %5111
    %v5114 = vsel %vm241, %v5101, %v5112
    %v5115 = vpack.c.bf16 %v5114, %v5114
    %v5117 = vsel %vm475, %v5115, 0
    %5119 = vmatprep.subr.bf16.mxu0 0
    %5120 = vmatpush1.bf16.msra.mxu0 0
    %5121 = vmatprep.subr.bf16.mxu0 0
    %5122 = vmatpush1.bf16.msra.mxu0 0
    %5123 = vmatprep.subr.bf16.mxu0 0
    %5124 = vmatpush1.bf16.msra.mxu0 0
    %5125 = vmatprep.subr.bf16.mxu0 0
    %5126 = vmatpush1.bf16.msra.mxu0 0
    %5127 = vmatprep.subr.bf16.mxu0 %v3935
    %5128 = vmatpush1.bf16.msra.mxu0 %v3934
    %5129 = vmatprep.subr.bf16.mxu0 %v3933
    %5130 = vmatpush1.bf16.msra.mxu0 %v3932
    %5131 = vmatprep.subr.bf16.mxu0 %v3931
    %5132 = vmatpush1.bf16.msra.mxu0 %v3930
    %5133 = vmatprep.subr.bf16.mxu0 %v3929
    %5134 = vmatpush1.bf16.msra.mxu0 %v3928
    %5135 = vmatprep.subr.bf16.mxu0 0
    %5136 = vmatpush2.bf16.msra.mxu0 0
    %5137 = vmatprep.subr.bf16.mxu0 0
    %5138 = vmatpush2.bf16.msra.mxu0 0
    %5139 = vmatprep.subr.bf16.mxu0 0
    %5140 = vmatpush2.bf16.msra.mxu0 0
    %5141 = vmatprep.subr.bf16.mxu0 0
    %5142 = vmatpush2.bf16.msra.mxu0 0
    %5143 = vmatprep.subr.bf16.mxu0 0
    %5144 = vmatpush2.bf16.msra.mxu0 0
    %5145 = vmatprep.subr.bf16.mxu0 0
    %5146 = vmatpush2.bf16.msra.mxu0 0
    %5147 = vmatprep.subr.bf16.mxu0 0
    %5148 = vmatpush2.bf16.msra.mxu0 0
    %5149 = vmatprep.subr.bf16.mxu0 0
    %5150 = vmatpush2.bf16.msra.mxu0 0
    %5151 = vmatprep.mubr.bf16.mxu0 0
    %5152 = vmatmul.mubr.bf16.gmra.mxu0 %v5117
    %v5153 = vpop.f32.mrf.mxu0
    %v5154 = vadd.f32 0.0, %v5153
    %v5155 = vpop.f32.mrf.mxu0
    %v5156 = vadd.f32 0.0, %v5155
    %v5157 = vpop.f32.mrf.mxu0
    %v5158 = vpop.f32.mrf.mxu0
    %5159 = vdwg.mxu0
    %v5160 = vld [vmem:[%s3990] sm:$0xf]
    %v5161 = vadd.f32 %v5160, %v5154
    %v5162 = vld [vmem:[#allocation8] sm:$0xf]
    %v5164 = vrot.slane %v5162, 2
    %v5166 = vadd.f32 %v5164, %v5156
    %v5167 = vxor.u32 %v5161, 2147483648
    %v5168 = vmul.f32 %v5167, 1.442695
    %v5169 = vpow.pop %v5168
    %v5170 = vadd.f32 %v5169, 1.0
    %v5171 = vrcp.pop %v5170
    %v5172 = vmul.f32 1.0, %v5171
    %v5173 = vtanh.pop %v5161
    %v5174 = vmul.f32 %v5172, %v5019
    %5176 = vrot.lane.b32.xlu0 %v5173, 32
    %v5177 = vpop.permute.xlu0 %5176
    %v5179 = vmul.f32 %v5172, %v5177
    %5181 = vrot.lane.b32.xlu0 %v5179, 32
    %v5182 = vpop.permute.xlu0 %5181
    %v5184 = vadd.f32 %v5174, %v5182
    %v5185 = vtanh.pop %v5184
    %5187 = vrot.lane.b32.xlu0 %v5185, 32
    %v5188 = vpop.permute.xlu0 %5187
    %v5190 = vmul.f32 %v5172, %v5188
    %v5191 = vxor.u32 %v5166, 2147483648
    %v5192 = vmul.f32 %v5191, 1.442695
    %v5193 = vpow.pop %v5192
    %v5194 = vadd.f32 %v5193, 1.0
    %v5195 = vrcp.pop %v5194
    %v5196 = vmul.f32 1.0, %v5195
    %v5197 = vtanh.pop %v5166
    %v5198 = vmul.f32 %v5196, %v5043
    %5200 = vrot.lane.b32.xlu0 %v5197, 32
    %v5201 = vpop.permute.xlu0 %5200
    %v5203 = vmul.f32 %v5196, %v5201
    %5205 = vrot.lane.b32.xlu0 %v5203, 32
    %v5206 = vpop.permute.xlu0 %5205
    %v5208 = vadd.f32 %v5198, %v5206
    %v5209 = vtanh.pop %v5208
    %5211 = vrot.lane.b32.xlu0 %v5209, 32
    %v5212 = vpop.permute.xlu0 %5211
    %v5214 = vmul.f32 %v5196, %v5212
    %v5215 = vpack.c.bf16 %v5190, %v5190
    %v5218 = vunpack.c.l.s4 1966171168
    %v5219 = vunpack.c.0.s8 %v5218
    %v5220 = vlaneseq
    %v5221 = vshrl.u32 %v5220, 7
    %v5222 = vsub.s32 %v5219, %v5221
    %v5223 = vrot.slane %v5215, %v5222
    %v5225 = vunpack.c.l.s4 1966171168
    %v5226 = vunpack.c.0.s8 %v5225
    %v5227 = vlaneseq
    %v5228 = vshrl.u32 %v5227, 7
    %v5229 = vsub.s32 %v5226, %v5228
    %v5230 = vrot.slane %v5223, %v5229
    %5231 = vrot.lane.b32.xlu0 %v5230, 64
    %v5232 = vpop.permute.xlu0 %5231
    %s5234 = scalar_lea.vmem [#allocation9], 7
    %5235 = vst.msk [vmem:[%s5234] sm:$0x1] %vm595, %v5232
    %v5236 = vpack.c.bf16 %v5214, %v5214
    %v5239 = vunpack.c.l.s4 1966171168
    %v5240 = vunpack.c.0.s8 %v5239
    %v5241 = vlaneseq
    %v5242 = vshrl.u32 %v5241, 7
    %v5243 = vsub.s32 %v5240, %v5242
    %v5244 = vrot.slane %v5236, %v5243
    %v5246 = vunpack.c.l.s4 1966171168
    %v5247 = vunpack.c.0.s8 %v5246
    %v5248 = vlaneseq
    %v5249 = vshrl.u32 %v5248, 7
    %v5250 = vsub.s32 %v5247, %v5249
    %v5251 = vrot.slane %v5244, %v5250
    %5252 = vrot.lane.b32.xlu0 %v5251, 64
    %v5253 = vpop.permute.xlu0 %5252
    %5255 = vst.msk [vmem:[#allocation10] sm:$0x1] %vm595, %v5253
    %v5256 = vld [vmem:[#allocation9] sm:$0x1]
    %v5257 = vld [vmem:[#allocation9 + $0x1] sm:$0x1]
    %v5258 = vld [vmem:[#allocation9 + $0x2] sm:$0x1]
    %v5259 = vld [vmem:[#allocation9 + $0x3] sm:$0x1]
    %v5260 = vld [vmem:[#allocation9 + $0x4] sm:$0x1]
    %v5261 = vld [vmem:[#allocation9 + $0x5] sm:$0x1]
    %v5262 = vld [vmem:[#allocation9 + $0x6] sm:$0x1]
    %v5263 = vld [vmem:[#allocation9 + $0x7] sm:$0x1]
    %v5264 = vld [vmem:[#allocation10] sm:$0x1]
    %v5265 = vld [vmem:[#allocation10 + $0x1] sm:$0x1]
    %v5266 = vld [vmem:[#allocation10 + $0x2] sm:$0x1]
    %v5267 = vld [vmem:[#allocation10 + $0x3] sm:$0x1]
    %v5268 = vld [vmem:[#allocation10 + $0x4] sm:$0x1]
    %v5269 = vld [vmem:[#allocation10 + $0x5] sm:$0x1]
    %v5270 = vld [vmem:[#allocation10 + $0x6] sm:$0x1]
    %v5271 = vld [vmem:[#allocation10 + $0x7] sm:$0x1]
    %v5272 = vld [vmem:[#allocation22] sm:$0xf]
    %v5273 = vld [vmem:[#allocation22 + $0x4] sm:$0xf]
    %v5274 = vld [vmem:[#allocation22 + $0x8] sm:$0xf]
    %v5275 = vld [vmem:[#allocation22 + $0xc] sm:$0xf]
    %s5276 = scalar_lea.vmem [#allocation22], 16
    %v5277 = vld [vmem:[%s5276] sm:$0xf]
    %v5278 = vld [vmem:[%s5276 + $0x4] sm:$0xf]
    %v5279 = vld [vmem:[%s5276 + $0x8] sm:$0xf]
    %v5280 = vld [vmem:[%s5276 + $0xc] sm:$0xf]
    %v5289 = vcombine.low %v5264, %v5265
    %v5290 = vcombine.low %v5266, %v5267
    %v5291 = vcombine.low %v5268, %v5269
    %v5292 = vcombine.low %v5270, %v5271
    %v5294 = vunpack.c.l.s4 1966171168
    %v5295 = vunpack.c.0.s8 %v5294
    %v5296 = vlaneseq
    %v5297 = vshrl.u32 %v5296, 7
    %v5298 = vsub.s32 %v5295, %v5297
    %v5299 = vrot.slane %v5289, %v5298
    %v5301 = vunpack.c.l.s4 1966171168
    %v5302 = vunpack.c.0.s8 %v5301
    %v5303 = vlaneseq
    %v5304 = vshrl.u32 %v5303, 7
    %v5305 = vsub.s32 %v5302, %v5304
    %v5306 = vrot.slane %v5290, %v5305
    %v5308 = vunpack.c.l.s4 1966171168
    %v5309 = vunpack.c.0.s8 %v5308
    %v5310 = vlaneseq
    %v5311 = vshrl.u32 %v5310, 7
    %v5312 = vsub.s32 %v5309, %v5311
    %v5313 = vrot.slane %v5291, %v5312
    %v5315 = vunpack.c.l.s4 1966171168
    %v5316 = vunpack.c.0.s8 %v5315
    %v5317 = vlaneseq
    %v5318 = vshrl.u32 %v5317, 7
    %v5319 = vsub.s32 %v5316, %v5318
    %v5320 = vrot.slane %v5292, %v5319
    %v5321 = vcombine.low %v5299, %v5306
    %v5322 = vcombine.low %v5313, %v5320
    %v5324 = vunpack.c.l.s4 1966171168
    %v5325 = vunpack.c.0.s8 %v5324
    %v5326 = vlaneseq
    %v5327 = vshrl.u32 %v5326, 7
    %v5328 = vsub.s32 %v5325, %v5327
    %v5329 = vrot.slane %v5321, %v5328
    %v5331 = vunpack.c.l.s4 1966171168
    %v5332 = vunpack.c.0.s8 %v5331
    %v5333 = vlaneseq
    %v5334 = vshrl.u32 %v5333, 7
    %v5335 = vsub.s32 %v5332, %v5334
    %v5336 = vrot.slane %v5322, %v5335
    %v5337 = vcombine.low %v5329, %v5336
    %v5342 = vunpack.c.l.b16 %v5277
    %v5343 = vunpack.c.l.b16 %v5278
    %v5344 = vunpack.c.l.b16 %v5279
    %v5345 = vunpack.c.l.b16 %v5280
    %v5346 = vpack.c.b16 %v5343, %v5342
    %v5347 = vpack.c.b16 %v5345, %v5344
    %v5351 = vsel %vm241, %v5337, 0
    %5353 = vmatprep.subr.bf16.mxu0 0
    %5354 = vmatpush1.bf16.msra.mxu0 0
    %5355 = vmatprep.subr.bf16.mxu0 0
    %5356 = vmatpush1.bf16.msra.mxu0 0
    %5357 = vmatprep.subr.bf16.mxu0 0
    %5358 = vmatpush1.bf16.msra.mxu0 0
    %5359 = vmatprep.subr.bf16.mxu0 0
    %5360 = vmatpush1.bf16.msra.mxu0 0
    %5361 = vmatprep.subr.bf16.mxu0 0
    %5362 = vmatpush1.bf16.msra.mxu0 0
    %5363 = vmatprep.subr.bf16.mxu0 0
    %5364 = vmatpush1.bf16.msra.mxu0 0
    %5365 = vmatprep.subr.bf16.mxu0 0
    %5366 = vmatpush1.bf16.msra.mxu0 %v5347
    %5367 = vmatprep.subr.bf16.mxu0 0
    %5368 = vmatpush1.bf16.msra.mxu0 %v5346
    %5369 = vmatprep.subr.bf16.mxu0 0
    %5370 = vmatpush2.bf16.msra.mxu0 0
    %5371 = vmatprep.subr.bf16.mxu0 0
    %5372 = vmatpush2.bf16.msra.mxu0 0
    %5373 = vmatprep.subr.bf16.mxu0 0
    %5374 = vmatpush2.bf16.msra.mxu0 0
    %5375 = vmatprep.subr.bf16.mxu0 0
    %5376 = vmatpush2.bf16.msra.mxu0 0
    %5377 = vmatprep.subr.bf16.mxu0 0
    %5378 = vmatpush2.bf16.msra.mxu0 0
    %5379 = vmatprep.subr.bf16.mxu0 0
    %5380 = vmatpush2.bf16.msra.mxu0 0
    %5381 = vmatprep.subr.bf16.mxu0 0
    %5382 = vmatpush2.bf16.msra.mxu0 0
    %5383 = vmatprep.subr.bf16.mxu0 0
    %5384 = vmatpush2.bf16.msra.mxu0 0
    %5385 = vmatprep.mubr.bf16.mxu0 0
    %5386 = vmatmul.mubr.bf16.gmra.mxu0 %v5351
    %v5387 = vpop.f32.mrf.mxu0
    %v5388 = vadd.f32 0.0, %v5387
    %v5389 = vpop.f32.mrf.mxu0
    %v5390 = vpop.f32.mrf.mxu0
    %v5391 = vadd.f32 0.0, %v5390
    %v5392 = vpop.f32.mrf.mxu0
    %5393 = vdwg.mxu0
    %v5402 = vcombine.low %v5256, %v5257
    %v5403 = vcombine.low %v5258, %v5259
    %v5404 = vcombine.low %v5260, %v5261
    %v5405 = vcombine.low %v5262, %v5263
    %v5407 = vunpack.c.l.s4 1966171168
    %v5408 = vunpack.c.0.s8 %v5407
    %v5409 = vlaneseq
    %v5410 = vshrl.u32 %v5409, 7
    %v5411 = vsub.s32 %v5408, %v5410
    %v5412 = vrot.slane %v5402, %v5411
    %v5414 = vunpack.c.l.s4 1966171168
    %v5415 = vunpack.c.0.s8 %v5414
    %v5416 = vlaneseq
    %v5417 = vshrl.u32 %v5416, 7
    %v5418 = vsub.s32 %v5415, %v5417
    %v5419 = vrot.slane %v5403, %v5418
    %v5421 = vunpack.c.l.s4 1966171168
    %v5422 = vunpack.c.0.s8 %v5421
    %v5423 = vlaneseq
    %v5424 = vshrl.u32 %v5423, 7
    %v5425 = vsub.s32 %v5422, %v5424
    %v5426 = vrot.slane %v5404, %v5425
    %v5428 = vunpack.c.l.s4 1966171168
    %v5429 = vunpack.c.0.s8 %v5428
    %v5430 = vlaneseq
    %v5431 = vshrl.u32 %v5430, 7
    %v5432 = vsub.s32 %v5429, %v5431
    %v5433 = vrot.slane %v5405, %v5432
    %v5434 = vcombine.low %v5412, %v5419
    %v5435 = vcombine.low %v5426, %v5433
    %v5437 = vunpack.c.l.s4 1966171168
    %v5438 = vunpack.c.0.s8 %v5437
    %v5439 = vlaneseq
    %v5440 = vshrl.u32 %v5439, 7
    %v5441 = vsub.s32 %v5438, %v5440
    %v5442 = vrot.slane %v5434, %v5441
    %v5444 = vunpack.c.l.s4 1966171168
    %v5445 = vunpack.c.0.s8 %v5444
    %v5446 = vlaneseq
    %v5447 = vshrl.u32 %v5446, 7
    %v5448 = vsub.s32 %v5445, %v5447
    %v5449 = vrot.slane %v5435, %v5448
    %v5450 = vcombine.low %v5442, %v5449
    %v5455 = vunpack.c.l.b16 %v5272
    %v5456 = vunpack.c.l.b16 %v5273
    %v5457 = vunpack.c.l.b16 %v5274
    %v5458 = vunpack.c.l.b16 %v5275
    %v5459 = vpack.c.b16 %v5456, %v5455
    %v5460 = vpack.c.b16 %v5458, %v5457
    %v5464 = vsel %vm241, %v5450, 0
    %5466 = vmatprep.subr.bf16.mxu0 0
    %5467 = vmatpush1.bf16.msra.mxu0 0
    %5468 = vmatprep.subr.bf16.mxu0 0
    %5469 = vmatpush1.bf16.msra.mxu0 0
    %5470 = vmatprep.subr.bf16.mxu0 0
    %5471 = vmatpush1.bf16.msra.mxu0 0
    %5472 = vmatprep.subr.bf16.mxu0 0
    %5473 = vmatpush1.bf16.msra.mxu0 0
    %5474 = vmatprep.subr.bf16.mxu0 0
    %5475 = vmatpush1.bf16.msra.mxu0 0
    %5476 = vmatprep.subr.bf16.mxu0 0
    %5477 = vmatpush1.bf16.msra.mxu0 0
    %5478 = vmatprep.subr.bf16.mxu0 0
    %5479 = vmatpush1.bf16.msra.mxu0 %v5460
    %5480 = vmatprep.subr.bf16.mxu0 0
    %5481 = vmatpush1.bf16.msra.mxu0 %v5459
    %5482 = vmatprep.subr.bf16.mxu0 0
    %5483 = vmatpush2.bf16.msra.mxu0 0
    %5484 = vmatprep.subr.bf16.mxu0 0
    %5485 = vmatpush2.bf16.msra.mxu0 0
    %5486 = vmatprep.subr.bf16.mxu0 0
    %5487 = vmatpush2.bf16.msra.mxu0 0
    %5488 = vmatprep.subr.bf16.mxu0 0
    %5489 = vmatpush2.bf16.msra.mxu0 0
    %5490 = vmatprep.subr.bf16.mxu0 0
    %5491 = vmatpush2.bf16.msra.mxu0 0
    %5492 = vmatprep.subr.bf16.mxu0 0
    %5493 = vmatpush2.bf16.msra.mxu0 0
    %5494 = vmatprep.subr.bf16.mxu0 0
    %5495 = vmatpush2.bf16.msra.mxu0 0
    %5496 = vmatprep.subr.bf16.mxu0 0
    %5497 = vmatpush2.bf16.msra.mxu0 0
    %5498 = vmatprep.mubr.bf16.mxu0 0
    %5499 = vmatmul.mubr.bf16.gmra.mxu0 %v5464
    %v5500 = vpop.f32.mrf.mxu0
    %v5501 = vadd.f32 %v5388, %v5500
    %v5502 = vpop.f32.mrf.mxu0
    %v5503 = vpop.f32.mrf.mxu0
    %v5504 = vadd.f32 %v5391, %v5503
    %v5505 = vpop.f32.mrf.mxu0
    %5506 = vdwg.mxu0
    %v5507 = vld [vmem:[%s11] sm:$0x1]
    %v5509 = vlaneseq
    %v5510 = vshrl.u32 %v5509, 7
    %v5511 = vsub.s32 0, %v5510
    %v5512 = vrot.slane %v5507, %v5511
    %v5514 = vadd.f32 %v5501, %v5512
    %v5515 = vadd.f32 %v5504, %v5512
    %v5518 = vcombine.high %v5514, %v5514
    %v5520 = vunpack.c.l.s4 1983009808
    %v5521 = vunpack.c.0.s8 %v5520
    %v5522 = vlaneseq
    %v5523 = vshrl.u32 %v5522, 7
    %v5524 = vsub.s32 %v5521, %v5523
    %v5525 = vrot.slane %v5514, %v5524
    %v5527 = vunpack.c.l.s4 1983009808
    %v5528 = vunpack.c.0.s8 %v5527
    %v5529 = vlaneseq
    %v5530 = vshrl.u32 %v5529, 7
    %v5531 = vsub.s32 %v5528, %v5530
    %v5532 = vrot.slane %v5518, %v5531
    %v5533 = vcombine.high %v5525, %v5525
    %v5534 = vcombine.high %v5532, %v5532
    %v5535 = vcombine.high %v5515, %v5515
    %v5537 = vunpack.c.l.s4 1983009808
    %v5538 = vunpack.c.0.s8 %v5537
    %v5539 = vlaneseq
    %v5540 = vshrl.u32 %v5539, 7
    %v5541 = vsub.s32 %v5538, %v5540
    %v5542 = vrot.slane %v5515, %v5541
    %v5544 = vunpack.c.l.s4 1983009808
    %v5545 = vunpack.c.0.s8 %v5544
    %v5546 = vlaneseq
    %v5547 = vshrl.u32 %v5546, 7
    %v5548 = vsub.s32 %v5545, %v5547
    %v5549 = vrot.slane %v5535, %v5548
    %v5550 = vcombine.high %v5542, %v5542
    %v5551 = vcombine.high %v5549, %v5549
    %5560 = vst [vmem:[%s12] sm:$0x3] %v5525
    %5561 = vst [vmem:[%s12 + $0x2] sm:$0x3] %v5533
    %5562 = vst [vmem:[%s12 + $0x4] sm:$0x3] %v5532
    %5563 = vst [vmem:[%s12 + $0x6] sm:$0x3] %v5534
    %5564 = vst [vmem:[%s12 + $0x8] sm:$0x3] %v5542
    %5565 = vst [vmem:[%s12 + $0xa] sm:$0x3] %v5550
    %5566 = vst [vmem:[%s12 + $0xc] sm:$0x3] %v5549
    %5567 = vst [vmem:[%s12 + $0xe] sm:$0x3] %v5551
    // Predicated region
    $region82: #{baseline_forward.1} parent=1 // pred_check
      _
    $region83: #{baseline_forward.1} parent=1 // pred_check_branch
      %5569 = sbr.rel (0) target = $region85
    $region84: #{baseline_forward.1} parent=1 // pred_region
      _
    $region85: #{baseline_forward.1} parent=1 // pred_fallthru
      _
    // Predicated region
    $region86: #{baseline_forward.1} parent=1 // pred_check
      _
    $region87: #{baseline_forward.1} parent=1 // pred_check_branch
      %5571 = sbr.rel (0) target = $region89
    $region88: #{baseline_forward.1} parent=1 // pred_region
      _
    $region89: #{baseline_forward.1} parent=1 // pred_fallthru
      _
    %5572 = vsyncpa [#allocation12], 1
    %5573 = vsyncpa [#allocation14], 1
    %5574 = vsyncpa [#allocation17], 1
    %5575 = vsyncpa [#allocation20], 1
    %5576 = vsyncpa [#allocation23], 1

</llo_original>
